<compile_context>
chip_gen: v6e
topology: v6e:2x2x1
jax: 0.10.0
libtpu: 0.0.40
codegen_flags: <defaults>
</compile_context>

<pallas_src>
import jax
import jax.numpy as jnp
from jax import lax
from jax.experimental import pallas as pl
from jax.experimental.pallas import tpu as pltpu

_VMEM_LIMIT = 48 * 1024 * 1024  # scoped-VMEM cap; under v7x's 64 MiB physical


def _cparams(dimension_semantics):
    return pltpu.CompilerParams(dimension_semantics=dimension_semantics,
                                vmem_limit_bytes=_VMEM_LIMIT)


def _round_up(v, m):
    return (v + m - 1) // m * m


# ----------------------------------------------------------------------------
# Kernel 1: fused 1x1x1 conv + BN + ReLU for branches 0 / 1 / 2
# ----------------------------------------------------------------------------
def _fused_pw_kernel(x_ref, w_ref, s_ref, b_ref, o0_ref, o1_ref, o2_ref):
    # x: (tm, Cin) f32, w: (Cin, C0+C1+C2) bf16, s/b: (1, C0+C1+C2) f32
    x = x_ref[...].astype(jnp.bfloat16)
    y = jnp.dot(x, w_ref[...], preferred_element_type=jnp.float32)
    y = jnp.maximum(y * s_ref[...] + b_ref[...], 0.0)
    c0 = o0_ref.shape[-1]
    c1 = o1_ref.shape[-1]
    c2 = o2_ref.shape[-1]
    o0_ref[...] = y[:, :c0].astype(o0_ref.dtype)
    o1_ref[...] = y[:, c0:c0 + c1].astype(o1_ref.dtype)
    o2_ref[...] = y[:, c0 + c1:c0 + c1 + c2].astype(o2_ref.dtype)


def fused_pointwise_bn_relu(x2d, w, scale, bias, splits, out_dtypes,
                            tile_m=1024):
    """Three 1x1x1 convs (+BN+ReLU) sharing the same input, as one matmul."""
    M, Cin = x2d.shape
    c0, c1, c2 = splits
    ct = c0 + c1 + c2
    tm = min(M, tile_m)
    return pl.pallas_call(
        _fused_pw_kernel,
        out_shape=(jax.ShapeDtypeStruct((M, c0), out_dtypes[0]),
                   jax.ShapeDtypeStruct((M, c1), out_dtypes[1]),
                   jax.ShapeDtypeStruct((M, c2), out_dtypes[2])),
        grid=(pl.cdiv(M, tm),),
        in_specs=[
            pl.BlockSpec((tm, Cin), lambda i: (i, 0)),
            pl.BlockSpec((Cin, ct), lambda i: (0, 0)),
            pl.BlockSpec((1, ct), lambda i: (0, 0)),
            pl.BlockSpec((1, ct), lambda i: (0, 0)),
        ],
        out_specs=(pl.BlockSpec((tm, c0), lambda i: (i, 0)),
                   pl.BlockSpec((tm, c1), lambda i: (i, 0)),
                   pl.BlockSpec((tm, c2), lambda i: (i, 0))),
        compiler_params=_cparams(("parallel",)),
    )(x2d, w, scale, bias)


# ----------------------------------------------------------------------------
# Kernel 2: 1x3x3 spatial conv + BN + ReLU (in-kernel pad + im2col matmul)
# ----------------------------------------------------------------------------
def _spatial_conv_kernel(x_ref, w_ref, s_ref, b_ref, o_ref):
    # x: (F, H, W, Cin), w: (9*Cin, Cout) bf16, s/b: (1, Cout) f32
    F, H, W, Cin = x_ref.shape
    Cout = o_ref.shape[-1]
    x = x_ref[...].astype(jnp.bfloat16)
    # zero-pad H and W by 1 in VMEM (no wrapper-side HBM pad pass)
    zw = jnp.zeros((F, H, 1, Cin), jnp.bfloat16)
    x = jnp.concatenate([zw, x, zw], axis=2)          # (F, H, W+2, Cin)
    zh = jnp.zeros((F, 1, W + 2, Cin), jnp.bfloat16)
    x = jnp.concatenate([zh, x, zh], axis=1)          # (F, H+2, W+2, Cin)
    # im2col: single matmul with a deep contraction (K = 9*Cin)
    cols = [x[:, kh:kh + H, kw:kw + W, :]
            for kh in range(3) for kw in range(3)]
    xs = jnp.concatenate(cols, axis=-1).reshape(F * H * W, 9 * Cin)
    acc = jnp.dot(xs, w_ref[...], preferred_element_type=jnp.float32)
    y = jnp.maximum(acc * s_ref[...] + b_ref[...], 0.0)
    o_ref[...] = y.reshape(F, H, W, Cout).astype(o_ref.dtype)


def spatial_conv_bn_relu(x, w, scale, bias, out_dtype, frames_per_block=4):
    """1x3x3 conv (pad 1) + BN + ReLU. x: (N*D, H, W, Cin)."""
    ND, H, W, Cin = x.shape
    Cout = w.shape[-1]
    f = min(ND, frames_per_block)
    return pl.pallas_call(
        _spatial_conv_kernel,
        out_shape=jax.ShapeDtypeStruct((ND, H, W, Cout), out_dtype),
        grid=(pl.cdiv(ND, f),),
        in_specs=[
            pl.BlockSpec((f, H, W, Cin), lambda i: (i, 0, 0, 0)),
            pl.BlockSpec((9 * Cin, Cout), lambda i: (0, 0)),
            pl.BlockSpec((1, Cout), lambda i: (0, 0)),
            pl.BlockSpec((1, Cout), lambda i: (0, 0)),
        ],
        out_specs=pl.BlockSpec((f, H, W, Cout), lambda i: (i, 0, 0, 0)),
        compiler_params=_cparams(("parallel",)),
    )(x, w, scale, bias)


# ----------------------------------------------------------------------------
# Kernel 3: 3x1x1 temporal conv + BN + ReLU (in-kernel D pad + im2col matmul)
# ----------------------------------------------------------------------------
def _temporal_conv_kernel(x_ref, w_ref, s_ref, b_ref, o_ref):
    # x: (1, D, hwT, Cin), w: (3*Cin, Cout) bf16, s/b: (1, Cout) f32
    _, D, HWt, Cin = x_ref.shape
    Cout = o_ref.shape[-1]
    x = x_ref[0].astype(jnp.bfloat16)                 # (D, hwT, Cin)
    z = jnp.zeros((1, HWt, Cin), jnp.bfloat16)
    xp = jnp.concatenate([z, x, z], axis=0)           # (D+2, hwT, Cin)
    xs = jnp.concatenate([xp[0:D], xp[1:D + 1], xp[2:D + 2]], axis=-1)
    xs = xs.reshape(D * HWt, 3 * Cin)
    acc = jnp.dot(xs, w_ref[...], preferred_element_type=jnp.float32)
    y = jnp.maximum(acc * s_ref[...] + b_ref[...], 0.0)
    o_ref[...] = y.reshape(1, D, HWt, Cout).astype(o_ref.dtype)


def temporal_conv_bn_relu(x, w, scale, bias, out_dtype, hw_tile=256):
    """3x1x1 conv (pad 1 along D) + BN + ReLU. x: (N, D, H*W, Cin)."""
    N, D, HW, Cin = x.shape
    Cout = w.shape[-1]
    hwT = min(HW, hw_tile)
    return pl.pallas_call(
        _temporal_conv_kernel,
        out_shape=jax.ShapeDtypeStruct((N, D, HW, Cout), out_dtype),
        grid=(N, pl.cdiv(HW, hwT)),
        in_specs=[
            pl.BlockSpec((1, D, hwT, Cin), lambda n, j: (n, 0, j, 0)),
            pl.BlockSpec((3 * Cin, Cout), lambda n, j: (0, 0)),
            pl.BlockSpec((1, Cout), lambda n, j: (0, 0)),
            pl.BlockSpec((1, Cout), lambda n, j: (0, 0)),
        ],
        out_specs=pl.BlockSpec((1, D, hwT, Cout), lambda n, j: (n, 0, j, 0)),
        compiler_params=_cparams(("parallel", "parallel")),
    )(x, w, scale, bias)


# ----------------------------------------------------------------------------
# Kernel 4: fused 3x3x3 maxpool (stride 1, pad 1) + branch3 1x1x1 conv+BN+ReLU
# ----------------------------------------------------------------------------
def _max3_same(x, axis):
    """3-tap running max along `axis`, same length, -inf boundaries."""
    pad_shape = list(x.shape)
    pad_shape[axis] = 1
    neg = jnp.full(pad_shape, -jnp.inf, x.dtype)
    xp = jnp.concatenate([neg, x, neg], axis=axis)
    n = x.shape[axis]
    return jnp.maximum(
        jnp.maximum(lax.slice_in_dim(xp, 0, n, axis=axis),
                    lax.slice_in_dim(xp, 1, n + 1, axis=axis)),
        lax.slice_in_dim(xp, 2, n + 2, axis=axis))


def _pool_b3_kernel(x_ref, w_ref, s_ref, b_ref, o_ref, ring_ref):
    # grid = (N, D + 2).  Step dp ingests padded frame dp (dp==0 / dp==D+1 are
    # the -inf padding frames) as a spatially 3x3-max-pooled frame into a
    # 3-slot VMEM ring; for dp >= 2 it finishes output frame dp-2: temporal max
    # over the ring, then the fused branch3 1x1x1 conv + BN + ReLU.
    dp = pl.program_id(1)
    n_dp = pl.num_programs(1)
    frame = x_ref[0, 0]                               # (H, W, C) f32
    sp = _max3_same(_max3_same(frame, 0), 1)          # separable 3x3 spatial max
    is_pad = jnp.logical_or(dp == 0, dp == n_dp - 1)
    val = jnp.where(is_pad, -jnp.inf, sp)
    slot = dp % 3

    @pl.when(slot == 0)
    def _():
        ring_ref[0] = val

    @pl.when(slot == 1)
    def _():
        ring_ref[1] = val

    @pl.when(slot == 2)
    def _():
        ring_ref[2] = val

    @pl.when(dp >= 2)
    def _():
        pooled = jnp.maximum(jnp.maximum(ring_ref[0], ring_ref[1]), ring_ref[2])
        H, W, C = pooled.shape
        acc = jnp.dot(pooled.reshape(H * W, C).astype(jnp.bfloat16), w_ref[...],
                      preferred_element_type=jnp.float32)
        y = jnp.maximum(acc * s_ref[...] + b_ref[...], 0.0)
        o_ref[...] = y.reshape(1, 1, H, W, -1)


def maxpool3_b3_conv_bn_relu(x_cl, w, scale, bias):
    """3x3x3 maxpool fused with branch3's 1x1x1 conv+BN+ReLU.

    x_cl: (N, D, H, W, C) f32 (unpadded).  The input is read from HBM once and
    the pooled 256-channel tensor stays in VMEM.
    """
    N, D, H, W, C = x_cl.shape
    Cout = w.shape[-1]
    return pl.pallas_call(
        _pool_b3_kernel,
        out_shape=jax.ShapeDtypeStruct((N, D, H, W, Cout), jnp.float32),
        grid=(N, D + 2),
        in_specs=[
            pl.BlockSpec(
                (1, 1, H, W, C),
                lambda n, dp: (n, jnp.minimum(jnp.maximum(dp - 1, 0), D - 1),
                               0, 0, 0)),
            pl.BlockSpec((C, Cout), lambda n, dp: (0, 0)),
            pl.BlockSpec((1, Cout), lambda n, dp: (0, 0)),
            pl.BlockSpec((1, Cout), lambda n, dp: (0, 0)),
        ],
        out_specs=pl.BlockSpec(
            (1, 1, H, W, Cout),
            lambda n, dp: (n, jnp.maximum(dp - 2, 0), 0, 0, 0)),
        scratch_shapes=[pltpu.VMEM((3, H, W, C), jnp.float32)],
        compiler_params=_cparams(("parallel", "arbitrary")),
    )(x_cl, w, scale, bias)


# ----------------------------------------------------------------------------
# Parameter preparation (fuse / reshape / lane-pad / bf16-cast)
# ----------------------------------------------------------------------------
def _prepare_params(p):
    bf = jnp.bfloat16
    f = {}
    # Fused stage-1 pointwise: branches 0, 1, 2 share the 256-channel input.
    f["pw_w"] = jnp.concatenate([p["b0_w"], p["b1_w0"], p["b2_w0"]], axis=1).astype(bf)
    f["pw_s"] = jnp.concatenate([p["b0_s"], p["b1_s0"], p["b2_s0"]], axis=1)
    f["pw_b"] = jnp.concatenate([p["b0_b"], p["b1_b0"], p["b2_b0"]], axis=1)

    # Branch1 SepConv3d 128 -> 192: spatial as (9*Cin, Cout), temporal as (3*Cin, Cout).
    f["b1_ws"] = p["b1_ws"].reshape(-1, p["b1_ws"].shape[-1]).astype(bf)
    f["b1_ss"], f["b1_bs"] = p["b1_ss"], p["b1_bs"]
    f["b1_wt"] = p["b1_wt"].reshape(-1, p["b1_wt"].shape[-1]).astype(bf)
    f["b1_st"], f["b1_bt"] = p["b1_st"], p["b1_bt"]

    # Branch2 SepConv3d 32 -> 96: pad Cout 96 -> 128 with zeros (lane-dense
    # stores); padded channels stay exactly zero and are sliced off at the end.
    c2 = p["b2_ws"].shape[-1]
    pad = _round_up(c2, 128) - c2
    ws = jnp.pad(p["b2_ws"], ((0, 0), (0, 0), (0, 0), (0, pad)))
    f["b2_ws"] = ws.reshape(-1, ws.shape[-1]).astype(bf)
    f["b2_ss"] = jnp.pad(p["b2_ss"], ((0, 0), (0, pad)))
    f["b2_bs"] = jnp.pad(p["b2_bs"], ((0, 0), (0, pad)))
    wt = jnp.pad(p["b2_wt"], ((0, 0), (0, pad), (0, pad)))
    f["b2_wt"] = wt.reshape(-1, wt.shape[-1]).astype(bf)
    f["b2_st"] = jnp.pad(p["b2_st"], ((0, 0), (0, pad)))
    f["b2_bt"] = jnp.pad(p["b2_bt"], ((0, 0), (0, pad)))

    # Branch3 pointwise weights (fused into the maxpool kernel).
    f["b3_w"] = p["b3_w"].astype(bf)
    f["b3_s"], f["b3_b"] = p["b3_s"], p["b3_b"]
    return f


# ----------------------------------------------------------------------------
# Module assembly
# ----------------------------------------------------------------------------
@jax.jit
def mixed_3c(x, params):
    """x: (N, 256, D, H, W) float32 -> (N, 480, D, H, W) float32."""
    N, C, D, H, W = x.shape
    fp = _prepare_params(params)
    c0 = params["b0_w"].shape[-1]        # 128
    c1 = params["b1_w0"].shape[-1]       # 128
    c2 = params["b2_w0"].shape[-1]       # 32
    co1 = params["b1_wt"].shape[-1]      # 192
    co2 = params["b2_wt"].shape[-1]      # 96
    co2p = fp["b2_wt"].shape[-1]         # 128 (lane padded)
    co3 = params["b3_w"].shape[-1]       # 64

    x_cl = jnp.transpose(x, (0, 2, 3, 4, 1))           # (N, D, H, W, C)
    x2d = x_cl.reshape(N * D * H * W, C)

    # Branches 0/1/2 first 1x1x1 convs fused: input read once.
    b0, b1, b2 = fused_pointwise_bn_relu(
        x2d, fp["pw_w"], fp["pw_s"], fp["pw_b"], (c0, c1, c2),
        (jnp.float32, jnp.bfloat16, jnp.bfloat16))

    # Branch1: SepConv3d 128 -> 192.
    y1 = spatial_conv_bn_relu(b1.reshape(N * D, H, W, c1),
                              fp["b1_ws"], fp["b1_ss"], fp["b1_bs"], jnp.bfloat16)
    y1 = temporal_conv_bn_relu(y1.reshape(N, D, H * W, co1),
                               fp["b1_wt"], fp["b1_st"], fp["b1_bt"], jnp.float32)
    b1_out = y1.reshape(N * D * H * W, co1)

    # Branch2: SepConv3d 32 -> 96 (computed with 128 lanes, sliced to 96).
    y2 = spatial_conv_bn_relu(b2.reshape(N * D, H, W, c2),
                              fp["b2_ws"], fp["b2_ss"], fp["b2_bs"], jnp.bfloat16)
    y2 = temporal_conv_bn_relu(y2.reshape(N, D, H * W, co2p),
                               fp["b2_wt"], fp["b2_st"], fp["b2_bt"], jnp.float32)
    b2_out = y2.reshape(N * D * H * W, co2p)[:, :co2]

    # Branch3: fused 3x3x3 maxpool + 1x1x1 conv.
    b3 = maxpool3_b3_conv_bn_relu(x_cl, fp["b3_w"], fp["b3_s"], fp["b3_b"])
    b3_out = b3.reshape(N * D * H * W, co3)

    # TODO(synk): write each branch straight into its channel slice of the
    # (M, 480) result (input_output_aliases) to avoid the concat's extra pass.
    out = jnp.concatenate([b0, b1_out, b2_out, b3_out], axis=-1)
    out = out.reshape(N, D, H, W, c0 + co1 + co2 + co3)
    return jnp.transpose(out, (0, 4, 1, 2, 3))          # back to NCDHW


# ----------------------------------------------------------------------------
# Deterministic parameter init (folded BN: scale = g/sqrt(var+eps), bias = b-m*scale)
# ----------------------------------------------------------------------------
def _bn_fold(key, c, eps=1e-3):
    k1, k2, k3, k4 = jax.random.split(key, 4)
    gamma = 1.0 + 0.1 * jax.random.normal(k1, (c,), jnp.float32)
    beta = 0.1 * jax.random.normal(k2, (c,), jnp.float32)
    mean = 0.1 * jax.random.normal(k3, (c,), jnp.float32)
    var = 1.0 + 0.1 * jax.random.uniform(k4, (c,), jnp.float32)
    scale = gamma / jnp.sqrt(var + eps)
    bias = beta - mean * scale
    return scale.reshape(1, c), bias.reshape(1, c)


def init_params(key):
    ks = iter(jax.random.split(key, 20))
    w = lambda shape: 0.05 * jax.random.normal(next(ks), shape, jnp.float32)
    p = {}
    # branch0
    p["b0_w"] = w((256, 128)); p["b0_s"], p["b0_b"] = _bn_fold(next(ks), 128)
    # branch1
    p["b1_w0"] = w((256, 128)); p["b1_s0"], p["b1_b0"] = _bn_fold(next(ks), 128)
    p["b1_ws"] = w((3, 3, 128, 192)); p["b1_ss"], p["b1_bs"] = _bn_fold(next(ks), 192)
    p["b1_wt"] = w((3, 192, 192)); p["b1_st"], p["b1_bt"] = _bn_fold(next(ks), 192)
    # branch2
    p["b2_w0"] = w((256, 32)); p["b2_s0"], p["b2_b0"] = _bn_fold(next(ks), 32)
    p["b2_ws"] = w((3, 3, 32, 96)); p["b2_ss"], p["b2_bs"] = _bn_fold(next(ks), 96)
    p["b2_wt"] = w((3, 96, 96)); p["b2_st"], p["b2_bt"] = _bn_fold(next(ks), 96)
    # branch3
    p["b3_w"] = w((256, 64)); p["b3_s"], p["b3_b"] = _bn_fold(next(ks), 64)
    return p


# ----------------------------------------------------------------------------
# Pure-JAX reference (lax conv / reduce_window) mirroring the bf16 MXU inputs
# ----------------------------------------------------------------------------
def _ref_mixed_3c(x, p):
    dn = ("NCDHW", "OIDHW", "NCDHW")
    bf = jnp.bfloat16

    def bnrelu(y, s, b):
        return jnp.maximum(y * s.reshape(1, -1, 1, 1, 1) + b.reshape(1, -1, 1, 1, 1), 0.0)

    def conv(x, wo, pad):
        return lax.conv_general_dilated(x.astype(bf), wo.astype(bf), (1, 1, 1), pad,
                                        dimension_numbers=dn,
                                        preferred_element_type=jnp.float32)

    def pw(x, w, s, b):  # w: (Cin, Cout)
        wo = w.T[:, :, None, None, None]
        return bnrelu(conv(x, wo, "VALID"), s, b)

    def spat(x, w, s, b):  # w: (3, 3, Cin, Cout)
        wo = jnp.transpose(w, (3, 2, 0, 1))[:, :, None, :, :]
        return bnrelu(conv(x, wo, [(0, 0), (1, 1), (1, 1)]), s, b)

    def temp(x, w, s, b):  # w: (3, Cin, Cout)
        wo = jnp.transpose(w, (2, 1, 0))[:, :, :, None, None]
        return bnrelu(conv(x, wo, [(1, 1), (0, 0), (0, 0)]), s, b)

    b0 = pw(x, p["b0_w"], p["b0_s"], p["b0_b"])
    b1 = pw(x, p["b1_w0"], p["b1_s0"], p["b1_b0"])
    b1 = temp(spat(b1, p["b1_ws"], p["b1_ss"], p["b1_bs"]),
              p["b1_wt"], p["b1_st"], p["b1_bt"])
    b2 = pw(x, p["b2_w0"], p["b2_s0"], p["b2_b0"])
    b2 = temp(spat(b2, p["b2_ws"], p["b2_ss"], p["b2_bs"]),
              p["b2_wt"], p["b2_st"], p["b2_bt"])
    pooled = lax.reduce_window(x, -jnp.inf, lax.max, (1, 1, 3, 3, 3),
                               (1, 1, 1, 1, 1),
                               [(0, 0), (0, 0), (1, 1), (1, 1), (1, 1)])
    b3 = pw(pooled, p["b3_w"], p["b3_s"], p["b3_b"])
    return jnp.concatenate([b0, b1, b2, b3], axis=1)


if __name__ == "__main__":
    key = jax.random.PRNGKey(0)
    kx, kp = jax.random.split(key)
    N, C, D, H, W = 2, 256, 4, 8, 8          # small shapes; C fixed to 256 by module
    x = jax.random.normal(kx, (N, C, D, H, W), jnp.float32)
    params = init_params(kp)

    out = jax.block_until_ready(mixed_3c(x, params))
    assert out.shape == (N, 480, D, H, W), out.shape

    ref = jax.block_until_ready(_ref_mixed_3c(x, params))
    err = float(jnp.max(jnp.abs(out - ref)))
    assert err < 5e-2, f"max abs error too large: {err}"

    print("KERNEL_OK")
</pallas_src>

<mosaic_0001>
module attributes {stable_mosaic.version = 11 : i64} {
  func.func @_pool_b3_kernel(%arg0: i32, %arg1: i32, %arg2: memref<1x1x8x8x256xf32, #tpu.memory_space<vmem>>, %arg3: memref<256x64xbf16, #tpu.memory_space<vmem>>, %arg4: memref<1x64xf32, #tpu.memory_space<vmem>>, %arg5: memref<1x64xf32, #tpu.memory_space<vmem>>, %arg6: memref<1x1x8x8x64xf32, #tpu.memory_space<vmem>>, %arg7: memref<3x8x8x256xf32, #tpu.memory_space<vmem>>) attributes {dimension_semantics = [#tpu.dimension_semantics<parallel>, #tpu.dimension_semantics<arbitrary>], iteration_bounds = array<i64: 2, 6>, scalar_prefetch = 0 : i64, scratch_operands = 1 : i64, tpu.core_type = #tpu.core_type<tc>, window_params = [{transform_indices = @transform_0, window_bounds = array<i64: 1, 1, 8, 8, 256>}, {pipeline_mode = #tpu.pipeline_mode<synchronous>, transform_indices = @transform_1, window_bounds = array<i64: 256, 64>}, {pipeline_mode = #tpu.pipeline_mode<synchronous>, transform_indices = @transform_2, window_bounds = array<i64: 1, 64>}, {pipeline_mode = #tpu.pipeline_mode<synchronous>, transform_indices = @transform_3, window_bounds = array<i64: 1, 64>}, {transform_indices = @transform_4, window_bounds = array<i64: 1, 1, 8, 8, 64>}]} {
    %c0 = arith.constant 0 : index
    %c0_0 = arith.constant 0 : index
    %c0_1 = arith.constant 0 : index
    %c0_2 = arith.constant 0 : index
    %c0_3 = arith.constant 0 : index
    %0 = vector.load %arg2[%c0, %c0_0, %c0_1, %c0_2, %c0_3] : memref<1x1x8x8x256xf32, #tpu.memory_space<vmem>>, vector<1x1x8x8x256xf32>
    %1 = vector.shape_cast %0 : vector<1x1x8x8x256xf32> to vector<8x8x256xf32>
    %cst = arith.constant 0xFF800000 : f32
    %2 = vector.broadcast %cst : f32 to vector<1x8x256xf32>
    %3 = tpu.concatenate %2, %1, %2 in 0 : vector<1x8x256xf32>, vector<8x8x256xf32>, vector<1x8x256xf32> -> vector<10x8x256xf32>
    %4 = vector.extract_strided_slice %3 {offsets = [0, 0, 0], sizes = [8, 8, 256], strides = [1, 1, 1]} : vector<10x8x256xf32> to vector<8x8x256xf32>
    %5 = vector.extract_strided_slice %3 {offsets = [1, 0, 0], sizes = [8, 8, 256], strides = [1, 1, 1]} : vector<10x8x256xf32> to vector<8x8x256xf32>
    %6 = arith.maximumf %4, %5 : vector<8x8x256xf32>
    %7 = vector.extract_strided_slice %3 {offsets = [2, 0, 0], sizes = [8, 8, 256], strides = [1, 1, 1]} : vector<10x8x256xf32> to vector<8x8x256xf32>
    %8 = arith.maximumf %6, %7 : vector<8x8x256xf32>
    %cst_4 = arith.constant 0xFF800000 : f32
    %9 = vector.broadcast %cst_4 : f32 to vector<8x1x256xf32>
    %10 = tpu.concatenate %9, %8, %9 in 1 : vector<8x1x256xf32>, vector<8x8x256xf32>, vector<8x1x256xf32> -> vector<8x10x256xf32>
    %11 = vector.extract_strided_slice %10 {offsets = [0, 0, 0], sizes = [8, 8, 256], strides = [1, 1, 1]} : vector<8x10x256xf32> to vector<8x8x256xf32>
    %12 = vector.extract_strided_slice %10 {offsets = [0, 1, 0], sizes = [8, 8, 256], strides = [1, 1, 1]} : vector<8x10x256xf32> to vector<8x8x256xf32>
    %13 = arith.maximumf %11, %12 : vector<8x8x256xf32>
    %14 = vector.extract_strided_slice %10 {offsets = [0, 2, 0], sizes = [8, 8, 256], strides = [1, 1, 1]} : vector<8x10x256xf32> to vector<8x8x256xf32>
    %15 = arith.maximumf %13, %14 : vector<8x8x256xf32>
    %c0_i32 = arith.constant 0 : i32
    %16 = arith.cmpi eq, %arg1, %c0_i32 : i32
    %c5_i32 = arith.constant 5 : i32
    %17 = arith.cmpi eq, %arg1, %c5_i32 : i32
    %18 = arith.ori %16, %17 : i1
    %cst_5 = arith.constant 0xFF800000 : f32
    %19 = vector.broadcast %cst_5 : f32 to vector<8x8x256xf32>
    %20 = arith.select %18, %19, %15 : vector<8x8x256xf32>
    %c3_i32 = arith.constant 3 : i32
    %c0_i32_6 = arith.constant 0 : i32
    %21 = arith.cmpi eq, %c3_i32, %c0_i32_6 : i32
    %c1_i32 = arith.constant 1 : i32
    %22 = arith.select %21, %c1_i32, %c3_i32 : i32
    %23 = arith.remsi %arg1, %22 : i32
    %c0_i32_7 = arith.constant 0 : i32
    %24 = arith.cmpi ne, %23, %c0_i32_7 : i32
    %c0_i32_8 = arith.constant 0 : i32
    %25 = arith.cmpi slt, %23, %c0_i32_8 : i32
    %c0_i32_9 = arith.constant 0 : i32
    %26 = arith.cmpi slt, %22, %c0_i32_9 : i32
    %27 = arith.xori %25, %26 : i1
    %28 = arith.andi %27, %24 : i1
    %29 = arith.addi %23, %22 : i32
    %30 = arith.select %28, %29, %23 : i32
    %c0_i32_10 = arith.constant 0 : i32
    %31 = arith.cmpi eq, %30, %c0_i32_10 : i32
    %32 = arith.extui %31 : i1 to i32
    %c0_i32_11 = arith.constant 0 : i32
    %33 = arith.cmpi ne, %32, %c0_i32_11 : i32
    scf.if %33 {
      %c0_17 = arith.constant 0 : index
      %c0_18 = arith.constant 0 : index
      %c0_19 = arith.constant 0 : index
      %c0_20 = arith.constant 0 : index
      %43 = vector.load %arg7[%c0_17, %c0_18, %c0_19, %c0_20] : memref<3x8x8x256xf32, #tpu.memory_space<vmem>>, vector<1x8x8x256xf32>
      %44 = vector.shape_cast %43 : vector<1x8x8x256xf32> to vector<8x8x256xf32>
      %45 = vector.shape_cast %20 : vector<8x8x256xf32> to vector<1x8x8x256xf32>
      tpu.vector_store %arg7[%c0_17, %c0_18, %c0_19, %c0_20], %45 {strides = array<i32>} : memref<3x8x8x256xf32, #tpu.memory_space<vmem>>, vector<1x8x8x256xf32>,
    } else {
    }
    %c1_i32_12 = arith.constant 1 : i32
    %34 = arith.cmpi eq, %30, %c1_i32_12 : i32
    %35 = arith.extui %34 : i1 to i32
    %c0_i32_13 = arith.constant 0 : i32
    %36 = arith.cmpi ne, %35, %c0_i32_13 : i32
    scf.if %36 {
      %c1 = arith.constant 1 : index
      %c0_17 = arith.constant 0 : index
      %c0_18 = arith.constant 0 : index
      %c0_19 = arith.constant 0 : index
      %43 = vector.load %arg7[%c1, %c0_17, %c0_18, %c0_19] : memref<3x8x8x256xf32, #tpu.memory_space<vmem>>, vector<1x8x8x256xf32>
      %44 = vector.shape_cast %43 : vector<1x8x8x256xf32> to vector<8x8x256xf32>
      %45 = vector.shape_cast %20 : vector<8x8x256xf32> to vector<1x8x8x256xf32>
      tpu.vector_store %arg7[%c1, %c0_17, %c0_18, %c0_19], %45 {strides = array<i32>} : memref<3x8x8x256xf32, #tpu.memory_space<vmem>>, vector<1x8x8x256xf32>,
    } else {
    }
    %c2_i32 = arith.constant 2 : i32
    %37 = arith.cmpi eq, %30, %c2_i32 : i32
    %38 = arith.extui %37 : i1 to i32
    %c0_i32_14 = arith.constant 0 : i32
    %39 = arith.cmpi ne, %38, %c0_i32_14 : i32
    scf.if %39 {
      %c2 = arith.constant 2 : index
      %c0_17 = arith.constant 0 : index
      %c0_18 = arith.constant 0 : index
      %c0_19 = arith.constant 0 : index
      %43 = vector.load %arg7[%c2, %c0_17, %c0_18, %c0_19] : memref<3x8x8x256xf32, #tpu.memory_space<vmem>>, vector<1x8x8x256xf32>
      %44 = vector.shape_cast %43 : vector<1x8x8x256xf32> to vector<8x8x256xf32>
      %45 = vector.shape_cast %20 : vector<8x8x256xf32> to vector<1x8x8x256xf32>
      tpu.vector_store %arg7[%c2, %c0_17, %c0_18, %c0_19], %45 {strides = array<i32>} : memref<3x8x8x256xf32, #tpu.memory_space<vmem>>, vector<1x8x8x256xf32>,
    } else {
    }
    %c2_i32_15 = arith.constant 2 : i32
    %40 = arith.cmpi sge, %arg1, %c2_i32_15 : i32
    %41 = arith.extui %40 : i1 to i32
    %c0_i32_16 = arith.constant 0 : i32
    %42 = arith.cmpi ne, %41, %c0_i32_16 : i32
    scf.if %42 {
      %c0_17 = arith.constant 0 : index
      %c0_18 = arith.constant 0 : index
      %c0_19 = arith.constant 0 : index
      %c0_20 = arith.constant 0 : index
      %43 = vector.load %arg7[%c0_17, %c0_18, %c0_19, %c0_20] : memref<3x8x8x256xf32, #tpu.memory_space<vmem>>, vector<1x8x8x256xf32>
      %44 = vector.shape_cast %43 : vector<1x8x8x256xf32> to vector<8x8x256xf32>
      %c1 = arith.constant 1 : index
      %c0_21 = arith.constant 0 : index
      %c0_22 = arith.constant 0 : index
      %c0_23 = arith.constant 0 : index
      %45 = vector.load %arg7[%c1, %c0_21, %c0_22, %c0_23] : memref<3x8x8x256xf32, #tpu.memory_space<vmem>>, vector<1x8x8x256xf32>
      %46 = vector.shape_cast %45 : vector<1x8x8x256xf32> to vector<8x8x256xf32>
      %47 = arith.maximumf %44, %46 : vector<8x8x256xf32>
      %c2 = arith.constant 2 : index
      %c0_24 = arith.constant 0 : index
      %c0_25 = arith.constant 0 : index
      %c0_26 = arith.constant 0 : index
      %48 = vector.load %arg7[%c2, %c0_24, %c0_25, %c0_26] : memref<3x8x8x256xf32, #tpu.memory_space<vmem>>, vector<1x8x8x256xf32>
      %49 = vector.shape_cast %48 : vector<1x8x8x256xf32> to vector<8x8x256xf32>
      %50 = arith.maximumf %47, %49 : vector<8x8x256xf32>
      %51 = vector.shape_cast %50 : vector<8x8x256xf32> to vector<64x256xf32>
      %52 = arith.truncf %51 : vector<64x256xf32> to vector<64x256xbf16>
      %c0_27 = arith.constant 0 : index
      %c0_28 = arith.constant 0 : index
      %53 = vector.load %arg3[%c0_27, %c0_28] : memref<256x64xbf16, #tpu.memory_space<vmem>>, vector<256x64xbf16>
      %cst_29 = arith.constant dense<0.000000e+00> : vector<64x64xf32>
      %54 = tpu.matmul %52, %53, %cst_29 {dimension_numbers = #tpu.dot_dimension_numbers<[1], [0], [0], [1], [0, 0, 1, 1], [], []>} : vector<64x256xbf16>, vector<256x64xbf16>, vector<64x64xf32> -> vector<64x64xf32>
      %c0_30 = arith.constant 0 : index
      %c0_31 = arith.constant 0 : index
      %55 = vector.load %arg4[%c0_30, %c0_31] : memref<1x64xf32, #tpu.memory_space<vmem>>, vector<1x64xf32>
      %56 = vector.broadcast %55 : vector<1x64xf32> to vector<64x64xf32>
      %57 = arith.mulf %54, %56 : vector<64x64xf32>
      %c0_32 = arith.constant 0 : index
      %c0_33 = arith.constant 0 : index
      %58 = vector.load %arg5[%c0_32, %c0_33] : memref<1x64xf32, #tpu.memory_space<vmem>>, vector<1x64xf32>
      %59 = vector.broadcast %58 : vector<1x64xf32> to vector<64x64xf32>
      %60 = arith.addf %57, %59 : vector<64x64xf32>
      %cst_34 = arith.constant 0.000000e+00 : f32
      %61 = vector.broadcast %cst_34 : f32 to vector<64x64xf32>
      %62 = arith.maximumf %60, %61 : vector<64x64xf32>
      %63 = vector.shape_cast %62 : vector<64x64xf32> to vector<1x1x8x8x64xf32>
      %c0_35 = arith.constant 0 : index
      %c0_36 = arith.constant 0 : index
      %c0_37 = arith.constant 0 : index
      %c0_38 = arith.constant 0 : index
      %c0_39 = arith.constant 0 : index
      %64 = vector.load %arg6[%c0_35, %c0_36, %c0_37, %c0_38, %c0_39] : memref<1x1x8x8x64xf32, #tpu.memory_space<vmem>>, vector<1x1x8x8x64xf32>
      tpu.vector_store %arg6[%c0_35, %c0_36, %c0_37, %c0_38, %c0_39], %63 {strides = array<i32>} : memref<1x1x8x8x64xf32, #tpu.memory_space<vmem>>, vector<1x1x8x8x64xf32>,
    } else {
    }
    return
  }
  func.func @transform_0(%arg0: i32, %arg1: i32) -> (i32, i32, i32, i32, i32) {
    %c1_i32 = arith.constant 1 : i32
    %0 = arith.subi %arg1, %c1_i32 : i32
    %c0_i32 = arith.constant 0 : i32
    %1 = arith.maxsi %0, %c0_i32 : i32
    %c3_i32 = arith.constant 3 : i32
    %2 = arith.minsi %1, %c3_i32 : i32
    %c0_i32_0 = arith.constant 0 : i32
    %c0_i32_1 = arith.constant 0 : i32
    %c0_i32_2 = arith.constant 0 : i32
    %c0_i32_3 = arith.constant 0 : i32
    return %arg0, %2, %c0_i32_0, %c0_i32_1, %c0_i32_2 : i32, i32, i32, i32, i32
  }
  func.func @transform_1(%arg0: i32, %arg1: i32) -> (i32, i32) {
    %c0_i32 = arith.constant 0 : i32
    %c0_i32_0 = arith.constant 0 : i32
    %c0_i32_1 = arith.constant 0 : i32
    return %c0_i32, %c0_i32_0 : i32, i32
  }
  func.func @transform_2(%arg0: i32, %arg1: i32) -> (i32, i32) {
    %c0_i32 = arith.constant 0 : i32
    %c0_i32_0 = arith.constant 0 : i32
    %c0_i32_1 = arith.constant 0 : i32
    return %c0_i32, %c0_i32_0 : i32, i32
  }
  func.func @transform_3(%arg0: i32, %arg1: i32) -> (i32, i32) {
    %c0_i32 = arith.constant 0 : i32
    %c0_i32_0 = arith.constant 0 : i32
    %c0_i32_1 = arith.constant 0 : i32
    return %c0_i32, %c0_i32_0 : i32, i32
  }
  func.func @transform_4(%arg0: i32, %arg1: i32) -> (i32, i32, i32, i32, i32) {
    %c2_i32 = arith.constant 2 : i32
    %0 = arith.subi %arg1, %c2_i32 : i32
    %c0_i32 = arith.constant 0 : i32
    %1 = arith.maxsi %0, %c0_i32 : i32
    %c0_i32_0 = arith.constant 0 : i32
    %c0_i32_1 = arith.constant 0 : i32
    %c0_i32_2 = arith.constant 0 : i32
    %c0_i32_3 = arith.constant 0 : i32
    return %arg0, %1, %c0_i32_0, %c0_i32_1, %c0_i32_2 : i32, i32, i32, i32, i32
  }
}

module attributes {stable_mosaic.version = 11 : i64} {
  func.func @_spatial_conv_kernel(%arg0: i32, %arg1: memref<4x8x8x32xbf16, #tpu.memory_space<vmem>>, %arg2: memref<288x128xbf16, #tpu.memory_space<vmem>>, %arg3: memref<1x128xf32, #tpu.memory_space<vmem>>, %arg4: memref<1x128xf32, #tpu.memory_space<vmem>>, %arg5: memref<4x8x8x128xbf16, #tpu.memory_space<vmem>>) attributes {dimension_semantics = [#tpu.dimension_semantics<parallel>], iteration_bounds = array<i64: 2>, scalar_prefetch = 0 : i64, scratch_operands = 0 : i64, tpu.core_type = #tpu.core_type<tc>, window_params = [{transform_indices = @transform_0, window_bounds = array<i64: 4, 8, 8, 32>}, {pipeline_mode = #tpu.pipeline_mode<synchronous>, transform_indices = @transform_1, window_bounds = array<i64: 288, 128>}, {pipeline_mode = #tpu.pipeline_mode<synchronous>, transform_indices = @transform_2, window_bounds = array<i64: 1, 128>}, {pipeline_mode = #tpu.pipeline_mode<synchronous>, transform_indices = @transform_3, window_bounds = array<i64: 1, 128>}, {transform_indices = @transform_4, window_bounds = array<i64: 4, 8, 8, 128>}]} {
    %c0 = arith.constant 0 : index
    %c0_0 = arith.constant 0 : index
    %c0_1 = arith.constant 0 : index
    %c0_2 = arith.constant 0 : index
    %0 = vector.load %arg1[%c0, %c0_0, %c0_1, %c0_2] : memref<4x8x8x32xbf16, #tpu.memory_space<vmem>>, vector<4x8x8x32xbf16>
    %cst = arith.constant 0.000000e+00 : bf16
    %1 = vector.broadcast %cst : bf16 to vector<4x8x1x32xbf16>
    %2 = tpu.concatenate %1, %0, %1 in 2 : vector<4x8x1x32xbf16>, vector<4x8x8x32xbf16>, vector<4x8x1x32xbf16> -> vector<4x8x10x32xbf16>
    %cst_3 = arith.constant 0.000000e+00 : bf16
    %3 = vector.broadcast %cst_3 : bf16 to vector<4x1x10x32xbf16>
    %4 = tpu.concatenate %3, %2, %3 in 1 : vector<4x1x10x32xbf16>, vector<4x8x10x32xbf16>, vector<4x1x10x32xbf16> -> vector<4x10x10x32xbf16>
    %5 = vector.extract_strided_slice %4 {offsets = [0, 0, 0, 0], sizes = [4, 8, 8, 32], strides = [1, 1, 1, 1]} : vector<4x10x10x32xbf16> to vector<4x8x8x32xbf16>
    %6 = vector.extract_strided_slice %4 {offsets = [0, 0, 1, 0], sizes = [4, 8, 8, 32], strides = [1, 1, 1, 1]} : vector<4x10x10x32xbf16> to vector<4x8x8x32xbf16>
    %7 = vector.extract_strided_slice %4 {offsets = [0, 0, 2, 0], sizes = [4, 8, 8, 32], strides = [1, 1, 1, 1]} : vector<4x10x10x32xbf16> to vector<4x8x8x32xbf16>
    %8 = vector.extract_strided_slice %4 {offsets = [0, 1, 0, 0], sizes = [4, 8, 8, 32], strides = [1, 1, 1, 1]} : vector<4x10x10x32xbf16> to vector<4x8x8x32xbf16>
    %9 = vector.extract_strided_slice %4 {offsets = [0, 1, 1, 0], sizes = [4, 8, 8, 32], strides = [1, 1, 1, 1]} : vector<4x10x10x32xbf16> to vector<4x8x8x32xbf16>
    %10 = vector.extract_strided_slice %4 {offsets = [0, 1, 2, 0], sizes = [4, 8, 8, 32], strides = [1, 1, 1, 1]} : vector<4x10x10x32xbf16> to vector<4x8x8x32xbf16>
    %11 = vector.extract_strided_slice %4 {offsets = [0, 2, 0, 0], sizes = [4, 8, 8, 32], strides = [1, 1, 1, 1]} : vector<4x10x10x32xbf16> to vector<4x8x8x32xbf16>
    %12 = vector.extract_strided_slice %4 {offsets = [0, 2, 1, 0], sizes = [4, 8, 8, 32], strides = [1, 1, 1, 1]} : vector<4x10x10x32xbf16> to vector<4x8x8x32xbf16>
    %13 = vector.extract_strided_slice %4 {offsets = [0, 2, 2, 0], sizes = [4, 8, 8, 32], strides = [1, 1, 1, 1]} : vector<4x10x10x32xbf16> to vector<4x8x8x32xbf16>
    %14 = tpu.concatenate %5, %6, %7, %8, %9, %10, %11, %12, %13 in 3 : vector<4x8x8x32xbf16>, vector<4x8x8x32xbf16>, vector<4x8x8x32xbf16>, vector<4x8x8x32xbf16>, vector<4x8x8x32xbf16>, vector<4x8x8x32xbf16>, vector<4x8x8x32xbf16>, vector<4x8x8x32xbf16>, vector<4x8x8x32xbf16> -> vector<4x8x8x288xbf16>
    %15 = vector.shape_cast %14 : vector<4x8x8x288xbf16> to vector<256x288xbf16>
    %c0_4 = arith.constant 0 : index
    %c0_5 = arith.constant 0 : index
    %16 = vector.load %arg2[%c0_4, %c0_5] : memref<288x128xbf16, #tpu.memory_space<vmem>>, vector<288x128xbf16>
    %cst_6 = arith.constant dense<0.000000e+00> : vector<256x128xf32>
    %17 = tpu.matmul %15, %16, %cst_6 {dimension_numbers = #tpu.dot_dimension_numbers<[1], [0], [0], [1], [0, 0, 1, 1], [], []>} : vector<256x288xbf16>, vector<288x128xbf16>, vector<256x128xf32> -> vector<256x128xf32>
    %c0_7 = arith.constant 0 : index
    %c0_8 = arith.constant 0 : index
    %18 = vector.load %arg3[%c0_7, %c0_8] : memref<1x128xf32, #tpu.memory_space<vmem>>, vector<1x128xf32>
    %19 = vector.broadcast %18 : vector<1x128xf32> to vector<256x128xf32>
    %20 = arith.mulf %17, %19 : vector<256x128xf32>
    %c0_9 = arith.constant 0 : index
    %c0_10 = arith.constant 0 : index
    %21 = vector.load %arg4[%c0_9, %c0_10] : memref<1x128xf32, #tpu.memory_space<vmem>>, vector<1x128xf32>
    %22 = vector.broadcast %21 : vector<1x128xf32> to vector<256x128xf32>
    %23 = arith.addf %20, %22 : vector<256x128xf32>
    %cst_11 = arith.constant 0.000000e+00 : f32
    %24 = vector.broadcast %cst_11 : f32 to vector<256x128xf32>
    %25 = arith.maximumf %23, %24 : vector<256x128xf32>
    %26 = vector.shape_cast %25 : vector<256x128xf32> to vector<4x8x8x128xf32>
    %27 = arith.truncf %26 : vector<4x8x8x128xf32> to vector<4x8x8x128xbf16>
    %c0_12 = arith.constant 0 : index
    %c0_13 = arith.constant 0 : index
    %c0_14 = arith.constant 0 : index
    %c0_15 = arith.constant 0 : index
    %28 = vector.load %arg5[%c0_12, %c0_13, %c0_14, %c0_15] : memref<4x8x8x128xbf16, #tpu.memory_space<vmem>>, vector<4x8x8x128xbf16>
    tpu.vector_store %arg5[%c0_12, %c0_13, %c0_14, %c0_15], %27 {strides = array<i32>} : memref<4x8x8x128xbf16, #tpu.memory_space<vmem>>, vector<4x8x8x128xbf16>,
    return
  }
  func.func @transform_0(%arg0: i32) -> (i32, i32, i32, i32) {
    %c0_i32 = arith.constant 0 : i32
    %c0_i32_0 = arith.constant 0 : i32
    %c0_i32_1 = arith.constant 0 : i32
    %c0_i32_2 = arith.constant 0 : i32
    return %arg0, %c0_i32, %c0_i32_0, %c0_i32_1 : i32, i32, i32, i32
  }
  func.func @transform_1(%arg0: i32) -> (i32, i32) {
    %c0_i32 = arith.constant 0 : i32
    %c0_i32_0 = arith.constant 0 : i32
    %c0_i32_1 = arith.constant 0 : i32
    return %c0_i32, %c0_i32_0 : i32, i32
  }
  func.func @transform_2(%arg0: i32) -> (i32, i32) {
    %c0_i32 = arith.constant 0 : i32
    %c0_i32_0 = arith.constant 0 : i32
    %c0_i32_1 = arith.constant 0 : i32
    return %c0_i32, %c0_i32_0 : i32, i32
  }
  func.func @transform_3(%arg0: i32) -> (i32, i32) {
    %c0_i32 = arith.constant 0 : i32
    %c0_i32_0 = arith.constant 0 : i32
    %c0_i32_1 = arith.constant 0 : i32
    return %c0_i32, %c0_i32_0 : i32, i32
  }
  func.func @transform_4(%arg0: i32) -> (i32, i32, i32, i32) {
    %c0_i32 = arith.constant 0 : i32
    %c0_i32_0 = arith.constant 0 : i32
    %c0_i32_1 = arith.constant 0 : i32
    %c0_i32_2 = arith.constant 0 : i32
    return %arg0, %c0_i32, %c0_i32_0, %c0_i32_1 : i32, i32, i32, i32
  }
}

module attributes {stable_mosaic.version = 11 : i64} {
  func.func @_fused_pw_kernel(%arg0: i32, %arg1: memref<512x256xf32, #tpu.memory_space<vmem>>, %arg2: memref<256x288xbf16, #tpu.memory_space<vmem>>, %arg3: memref<1x288xf32, #tpu.memory_space<vmem>>, %arg4: memref<1x288xf32, #tpu.memory_space<vmem>>, %arg5: memref<512x128xf32, #tpu.memory_space<vmem>>, %arg6: memref<512x128xbf16, #tpu.memory_space<vmem>>, %arg7: memref<512x32xbf16, #tpu.memory_space<vmem>>) attributes {dimension_semantics = [#tpu.dimension_semantics<parallel>], iteration_bounds = array<i64: 1>, scalar_prefetch = 0 : i64, scratch_operands = 0 : i64, tpu.core_type = #tpu.core_type<tc>, window_params = [{transform_indices = @transform_0, window_bounds = array<i64: 512, 256>}, {pipeline_mode = #tpu.pipeline_mode<synchronous>, transform_indices = @transform_1, window_bounds = array<i64: 256, 288>}, {pipeline_mode = #tpu.pipeline_mode<synchronous>, transform_indices = @transform_2, window_bounds = array<i64: 1, 288>}, {pipeline_mode = #tpu.pipeline_mode<synchronous>, transform_indices = @transform_3, window_bounds = array<i64: 1, 288>}, {transform_indices = @transform_4, window_bounds = array<i64: 512, 128>}, {transform_indices = @transform_5, window_bounds = array<i64: 512, 128>}, {transform_indices = @transform_6, window_bounds = array<i64: 512, 32>}]} {
    %c0 = arith.constant 0 : index
    %c0_0 = arith.constant 0 : index
    %0 = vector.load %arg1[%c0, %c0_0] : memref<512x256xf32, #tpu.memory_space<vmem>>, vector<512x256xf32>
    %1 = arith.truncf %0 : vector<512x256xf32> to vector<512x256xbf16>
    %c0_1 = arith.constant 0 : index
    %c0_2 = arith.constant 0 : index
    %2 = vector.load %arg2[%c0_1, %c0_2] : memref<256x288xbf16, #tpu.memory_space<vmem>>, vector<256x288xbf16>
    %cst = arith.constant dense<0.000000e+00> : vector<512x288xf32>
    %3 = tpu.matmul %1, %2, %cst {dimension_numbers = #tpu.dot_dimension_numbers<[1], [0], [0], [1], [0, 0, 1, 1], [], []>} : vector<512x256xbf16>, vector<256x288xbf16>, vector<512x288xf32> -> vector<512x288xf32>
    %c0_3 = arith.constant 0 : index
    %c0_4 = arith.constant 0 : index
    %4 = vector.load %arg3[%c0_3, %c0_4] : memref<1x288xf32, #tpu.memory_space<vmem>>, vector<1x288xf32>
    %5 = vector.broadcast %4 : vector<1x288xf32> to vector<512x288xf32>
    %6 = arith.mulf %3, %5 : vector<512x288xf32>
    %c0_5 = arith.constant 0 : index
    %c0_6 = arith.constant 0 : index
    %7 = vector.load %arg4[%c0_5, %c0_6] : memref<1x288xf32, #tpu.memory_space<vmem>>, vector<1x288xf32>
    %8 = vector.broadcast %7 : vector<1x288xf32> to vector<512x288xf32>
    %9 = arith.addf %6, %8 : vector<512x288xf32>
    %cst_7 = arith.constant 0.000000e+00 : f32
    %10 = vector.broadcast %cst_7 : f32 to vector<512x288xf32>
    %11 = arith.maximumf %9, %10 : vector<512x288xf32>
    %12 = vector.extract_strided_slice %11 {offsets = [0, 0], sizes = [512, 128], strides = [1, 1]} : vector<512x288xf32> to vector<512x128xf32>
    %c0_8 = arith.constant 0 : index
    %c0_9 = arith.constant 0 : index
    %13 = vector.load %arg5[%c0_8, %c0_9] : memref<512x128xf32, #tpu.memory_space<vmem>>, vector<512x128xf32>
    tpu.vector_store %arg5[%c0_8, %c0_9], %12 {strides = array<i32>} : memref<512x128xf32, #tpu.memory_space<vmem>>, vector<512x128xf32>,
    %14 = vector.extract_strided_slice %11 {offsets = [0, 128], sizes = [512, 128], strides = [1, 1]} : vector<512x288xf32> to vector<512x128xf32>
    %15 = arith.truncf %14 : vector<512x128xf32> to vector<512x128xbf16>
    %c0_10 = arith.constant 0 : index
    %c0_11 = arith.constant 0 : index
    %16 = vector.load %arg6[%c0_10, %c0_11] : memref<512x128xbf16, #tpu.memory_space<vmem>>, vector<512x128xbf16>
    tpu.vector_store %arg6[%c0_10, %c0_11], %15 {strides = array<i32>} : memref<512x128xbf16, #tpu.memory_space<vmem>>, vector<512x128xbf16>,
    %17 = vector.extract_strided_slice %11 {offsets = [0, 256], sizes = [512, 32], strides = [1, 1]} : vector<512x288xf32> to vector<512x32xf32>
    %18 = arith.truncf %17 : vector<512x32xf32> to vector<512x32xbf16>
    %c0_12 = arith.constant 0 : index
    %c0_13 = arith.constant 0 : index
    %19 = vector.load %arg7[%c0_12, %c0_13] : memref<512x32xbf16, #tpu.memory_space<vmem>>, vector<512x32xbf16>
    tpu.vector_store %arg7[%c0_12, %c0_13], %18 {strides = array<i32>} : memref<512x32xbf16, #tpu.memory_space<vmem>>, vector<512x32xbf16>,
    return
  }
  func.func @transform_0(%arg0: i32) -> (i32, i32) {
    %c0_i32 = arith.constant 0 : i32
    %c0_i32_0 = arith.constant 0 : i32
    return %arg0, %c0_i32 : i32, i32
  }
  func.func @transform_1(%arg0: i32) -> (i32, i32) {
    %c0_i32 = arith.constant 0 : i32
    %c0_i32_0 = arith.constant 0 : i32
    %c0_i32_1 = arith.constant 0 : i32
    return %c0_i32, %c0_i32_0 : i32, i32
  }
  func.func @transform_2(%arg0: i32) -> (i32, i32) {
    %c0_i32 = arith.constant 0 : i32
    %c0_i32_0 = arith.constant 0 : i32
    %c0_i32_1 = arith.constant 0 : i32
    return %c0_i32, %c0_i32_0 : i32, i32
  }
  func.func @transform_3(%arg0: i32) -> (i32, i32) {
    %c0_i32 = arith.constant 0 : i32
    %c0_i32_0 = arith.constant 0 : i32
    %c0_i32_1 = arith.constant 0 : i32
    return %c0_i32, %c0_i32_0 : i32, i32
  }
  func.func @transform_4(%arg0: i32) -> (i32, i32) {
    %c0_i32 = arith.constant 0 : i32
    %c0_i32_0 = arith.constant 0 : i32
    return %arg0, %c0_i32 : i32, i32
  }
  func.func @transform_5(%arg0: i32) -> (i32, i32) {
    %c0_i32 = arith.constant 0 : i32
    %c0_i32_0 = arith.constant 0 : i32
    return %arg0, %c0_i32 : i32, i32
  }
  func.func @transform_6(%arg0: i32) -> (i32, i32) {
    %c0_i32 = arith.constant 0 : i32
    %c0_i32_0 = arith.constant 0 : i32
    return %arg0, %c0_i32 : i32, i32
  }
}

module attributes {stable_mosaic.version = 11 : i64} {
  func.func @_temporal_conv_kernel(%arg0: i32, %arg1: i32, %arg2: memref<1x4x64x128xbf16, #tpu.memory_space<vmem>>, %arg3: memref<384x128xbf16, #tpu.memory_space<vmem>>, %arg4: memref<1x128xf32, #tpu.memory_space<vmem>>, %arg5: memref<1x128xf32, #tpu.memory_space<vmem>>, %arg6: memref<1x4x64x128xf32, #tpu.memory_space<vmem>>) attributes {dimension_semantics = [#tpu.dimension_semantics<parallel>, #tpu.dimension_semantics<parallel>], iteration_bounds = array<i64: 2, 1>, scalar_prefetch = 0 : i64, scratch_operands = 0 : i64, tpu.core_type = #tpu.core_type<tc>, window_params = [{transform_indices = @transform_0, window_bounds = array<i64: 1, 4, 64, 128>}, {pipeline_mode = #tpu.pipeline_mode<synchronous>, transform_indices = @transform_1, window_bounds = array<i64: 384, 128>}, {pipeline_mode = #tpu.pipeline_mode<synchronous>, transform_indices = @transform_2, window_bounds = array<i64: 1, 128>}, {pipeline_mode = #tpu.pipeline_mode<synchronous>, transform_indices = @transform_3, window_bounds = array<i64: 1, 128>}, {transform_indices = @transform_4, window_bounds = array<i64: 1, 4, 64, 128>}]} {
    %c0 = arith.constant 0 : index
    %c0_0 = arith.constant 0 : index
    %c0_1 = arith.constant 0 : index
    %c0_2 = arith.constant 0 : index
    %0 = vector.load %arg2[%c0, %c0_0, %c0_1, %c0_2] : memref<1x4x64x128xbf16, #tpu.memory_space<vmem>>, vector<1x4x64x128xbf16>
    %1 = vector.shape_cast %0 : vector<1x4x64x128xbf16> to vector<4x64x128xbf16>
    %cst = arith.constant 0.000000e+00 : bf16
    %2 = vector.broadcast %cst : bf16 to vector<1x64x128xbf16>
    %3 = tpu.concatenate %2, %1, %2 in 0 : vector<1x64x128xbf16>, vector<4x64x128xbf16>, vector<1x64x128xbf16> -> vector<6x64x128xbf16>
    %4 = vector.extract_strided_slice %3 {offsets = [0, 0, 0], sizes = [4, 64, 128], strides = [1, 1, 1]} : vector<6x64x128xbf16> to vector<4x64x128xbf16>
    %5 = vector.extract_strided_slice %3 {offsets = [1, 0, 0], sizes = [4, 64, 128], strides = [1, 1, 1]} : vector<6x64x128xbf16> to vector<4x64x128xbf16>
    %6 = vector.extract_strided_slice %3 {offsets = [2, 0, 0], sizes = [4, 64, 128], strides = [1, 1, 1]} : vector<6x64x128xbf16> to vector<4x64x128xbf16>
    %7 = tpu.concatenate %4, %5, %6 in 2 : vector<4x64x128xbf16>, vector<4x64x128xbf16>, vector<4x64x128xbf16> -> vector<4x64x384xbf16>
    %8 = vector.shape_cast %7 : vector<4x64x384xbf16> to vector<256x384xbf16>
    %c0_3 = arith.constant 0 : index
    %c0_4 = arith.constant 0 : index
    %9 = vector.load %arg3[%c0_3, %c0_4] : memref<384x128xbf16, #tpu.memory_space<vmem>>, vector<384x128xbf16>
    %cst_5 = arith.constant dense<0.000000e+00> : vector<256x128xf32>
    %10 = tpu.matmul %8, %9, %cst_5 {dimension_numbers = #tpu.dot_dimension_numbers<[1], [0], [0], [1], [0, 0, 1, 1], [], []>} : vector<256x384xbf16>, vector<384x128xbf16>, vector<256x128xf32> -> vector<256x128xf32>
    %c0_6 = arith.constant 0 : index
    %c0_7 = arith.constant 0 : index
    %11 = vector.load %arg4[%c0_6, %c0_7] : memref<1x128xf32, #tpu.memory_space<vmem>>, vector<1x128xf32>
    %12 = vector.broadcast %11 : vector<1x128xf32> to vector<256x128xf32>
    %13 = arith.mulf %10, %12 : vector<256x128xf32>
    %c0_8 = arith.constant 0 : index
    %c0_9 = arith.constant 0 : index
    %14 = vector.load %arg5[%c0_8, %c0_9] : memref<1x128xf32, #tpu.memory_space<vmem>>, vector<1x128xf32>
    %15 = vector.broadcast %14 : vector<1x128xf32> to vector<256x128xf32>
    %16 = arith.addf %13, %15 : vector<256x128xf32>
    %cst_10 = arith.constant 0.000000e+00 : f32
    %17 = vector.broadcast %cst_10 : f32 to vector<256x128xf32>
    %18 = arith.maximumf %16, %17 : vector<256x128xf32>
    %19 = vector.shape_cast %18 : vector<256x128xf32> to vector<1x4x64x128xf32>
    %c0_11 = arith.constant 0 : index
    %c0_12 = arith.constant 0 : index
    %c0_13 = arith.constant 0 : index
    %c0_14 = arith.constant 0 : index
    %20 = vector.load %arg6[%c0_11, %c0_12, %c0_13, %c0_14] : memref<1x4x64x128xf32, #tpu.memory_space<vmem>>, vector<1x4x64x128xf32>
    tpu.vector_store %arg6[%c0_11, %c0_12, %c0_13, %c0_14], %19 {strides = array<i32>} : memref<1x4x64x128xf32, #tpu.memory_space<vmem>>, vector<1x4x64x128xf32>,
    return
  }
  func.func @transform_0(%arg0: i32, %arg1: i32) -> (i32, i32, i32, i32) {
    %c0_i32 = arith.constant 0 : i32
    %c0_i32_0 = arith.constant 0 : i32
    %c0_i32_1 = arith.constant 0 : i32
    return %arg0, %c0_i32, %arg1, %c0_i32_0 : i32, i32, i32, i32
  }
  func.func @transform_1(%arg0: i32, %arg1: i32) -> (i32, i32) {
    %c0_i32 = arith.constant 0 : i32
    %c0_i32_0 = arith.constant 0 : i32
    %c0_i32_1 = arith.constant 0 : i32
    return %c0_i32, %c0_i32_0 : i32, i32
  }
  func.func @transform_2(%arg0: i32, %arg1: i32) -> (i32, i32) {
    %c0_i32 = arith.constant 0 : i32
    %c0_i32_0 = arith.constant 0 : i32
    %c0_i32_1 = arith.constant 0 : i32
    return %c0_i32, %c0_i32_0 : i32, i32
  }
  func.func @transform_3(%arg0: i32, %arg1: i32) -> (i32, i32) {
    %c0_i32 = arith.constant 0 : i32
    %c0_i32_0 = arith.constant 0 : i32
    %c0_i32_1 = arith.constant 0 : i32
    return %c0_i32, %c0_i32_0 : i32, i32
  }
  func.func @transform_4(%arg0: i32, %arg1: i32) -> (i32, i32, i32, i32) {
    %c0_i32 = arith.constant 0 : i32
    %c0_i32_0 = arith.constant 0 : i32
    %c0_i32_1 = arith.constant 0 : i32
    return %arg0, %c0_i32, %arg1, %c0_i32_0 : i32, i32, i32, i32
  }
}

module attributes {stable_mosaic.version = 11 : i64} {
  func.func @_spatial_conv_kernel(%arg0: i32, %arg1: memref<4x8x8x128xbf16, #tpu.memory_space<vmem>>, %arg2: memref<1152x192xbf16, #tpu.memory_space<vmem>>, %arg3: memref<1x192xf32, #tpu.memory_space<vmem>>, %arg4: memref<1x192xf32, #tpu.memory_space<vmem>>, %arg5: memref<4x8x8x192xbf16, #tpu.memory_space<vmem>>) attributes {dimension_semantics = [#tpu.dimension_semantics<parallel>], iteration_bounds = array<i64: 2>, scalar_prefetch = 0 : i64, scratch_operands = 0 : i64, tpu.core_type = #tpu.core_type<tc>, window_params = [{transform_indices = @transform_0, window_bounds = array<i64: 4, 8, 8, 128>}, {pipeline_mode = #tpu.pipeline_mode<synchronous>, transform_indices = @transform_1, window_bounds = array<i64: 1152, 192>}, {pipeline_mode = #tpu.pipeline_mode<synchronous>, transform_indices = @transform_2, window_bounds = array<i64: 1, 192>}, {pipeline_mode = #tpu.pipeline_mode<synchronous>, transform_indices = @transform_3, window_bounds = array<i64: 1, 192>}, {transform_indices = @transform_4, window_bounds = array<i64: 4, 8, 8, 192>}]} {
    %c0 = arith.constant 0 : index
    %c0_0 = arith.constant 0 : index
    %c0_1 = arith.constant 0 : index
    %c0_2 = arith.constant 0 : index
    %0 = vector.load %arg1[%c0, %c0_0, %c0_1, %c0_2] : memref<4x8x8x128xbf16, #tpu.memory_space<vmem>>, vector<4x8x8x128xbf16>
    %cst = arith.constant 0.000000e+00 : bf16
    %1 = vector.broadcast %cst : bf16 to vector<4x8x1x128xbf16>
    %2 = tpu.concatenate %1, %0, %1 in 2 : vector<4x8x1x128xbf16>, vector<4x8x8x128xbf16>, vector<4x8x1x128xbf16> -> vector<4x8x10x128xbf16>
    %cst_3 = arith.constant 0.000000e+00 : bf16
    %3 = vector.broadcast %cst_3 : bf16 to vector<4x1x10x128xbf16>
    %4 = tpu.concatenate %3, %2, %3 in 1 : vector<4x1x10x128xbf16>, vector<4x8x10x128xbf16>, vector<4x1x10x128xbf16> -> vector<4x10x10x128xbf16>
    %5 = vector.extract_strided_slice %4 {offsets = [0, 0, 0, 0], sizes = [4, 8, 8, 128], strides = [1, 1, 1, 1]} : vector<4x10x10x128xbf16> to vector<4x8x8x128xbf16>
    %6 = vector.extract_strided_slice %4 {offsets = [0, 0, 1, 0], sizes = [4, 8, 8, 128], strides = [1, 1, 1, 1]} : vector<4x10x10x128xbf16> to vector<4x8x8x128xbf16>
    %7 = vector.extract_strided_slice %4 {offsets = [0, 0, 2, 0], sizes = [4, 8, 8, 128], strides = [1, 1, 1, 1]} : vector<4x10x10x128xbf16> to vector<4x8x8x128xbf16>
    %8 = vector.extract_strided_slice %4 {offsets = [0, 1, 0, 0], sizes = [4, 8, 8, 128], strides = [1, 1, 1, 1]} : vector<4x10x10x128xbf16> to vector<4x8x8x128xbf16>
    %9 = vector.extract_strided_slice %4 {offsets = [0, 1, 1, 0], sizes = [4, 8, 8, 128], strides = [1, 1, 1, 1]} : vector<4x10x10x128xbf16> to vector<4x8x8x128xbf16>
    %10 = vector.extract_strided_slice %4 {offsets = [0, 1, 2, 0], sizes = [4, 8, 8, 128], strides = [1, 1, 1, 1]} : vector<4x10x10x128xbf16> to vector<4x8x8x128xbf16>
    %11 = vector.extract_strided_slice %4 {offsets = [0, 2, 0, 0], sizes = [4, 8, 8, 128], strides = [1, 1, 1, 1]} : vector<4x10x10x128xbf16> to vector<4x8x8x128xbf16>
    %12 = vector.extract_strided_slice %4 {offsets = [0, 2, 1, 0], sizes = [4, 8, 8, 128], strides = [1, 1, 1, 1]} : vector<4x10x10x128xbf16> to vector<4x8x8x128xbf16>
    %13 = vector.extract_strided_slice %4 {offsets = [0, 2, 2, 0], sizes = [4, 8, 8, 128], strides = [1, 1, 1, 1]} : vector<4x10x10x128xbf16> to vector<4x8x8x128xbf16>
    %14 = tpu.concatenate %5, %6, %7, %8, %9, %10, %11, %12, %13 in 3 : vector<4x8x8x128xbf16>, vector<4x8x8x128xbf16>, vector<4x8x8x128xbf16>, vector<4x8x8x128xbf16>, vector<4x8x8x128xbf16>, vector<4x8x8x128xbf16>, vector<4x8x8x128xbf16>, vector<4x8x8x128xbf16>, vector<4x8x8x128xbf16> -> vector<4x8x8x1152xbf16>
    %15 = vector.shape_cast %14 : vector<4x8x8x1152xbf16> to vector<256x1152xbf16>
    %c0_4 = arith.constant 0 : index
    %c0_5 = arith.constant 0 : index
    %16 = vector.load %arg2[%c0_4, %c0_5] : memref<1152x192xbf16, #tpu.memory_space<vmem>>, vector<1152x192xbf16>
    %cst_6 = arith.constant dense<0.000000e+00> : vector<256x192xf32>
    %17 = tpu.matmul %15, %16, %cst_6 {dimension_numbers = #tpu.dot_dimension_numbers<[1], [0], [0], [1], [0, 0, 1, 1], [], []>} : vector<256x1152xbf16>, vector<1152x192xbf16>, vector<256x192xf32> -> vector<256x192xf32>
    %c0_7 = arith.constant 0 : index
    %c0_8 = arith.constant 0 : index
    %18 = vector.load %arg3[%c0_7, %c0_8] : memref<1x192xf32, #tpu.memory_space<vmem>>, vector<1x192xf32>
    %19 = vector.broadcast %18 : vector<1x192xf32> to vector<256x192xf32>
    %20 = arith.mulf %17, %19 : vector<256x192xf32>
    %c0_9 = arith.constant 0 : index
    %c0_10 = arith.constant 0 : index
    %21 = vector.load %arg4[%c0_9, %c0_10] : memref<1x192xf32, #tpu.memory_space<vmem>>, vector<1x192xf32>
    %22 = vector.broadcast %21 : vector<1x192xf32> to vector<256x192xf32>
    %23 = arith.addf %20, %22 : vector<256x192xf32>
    %cst_11 = arith.constant 0.000000e+00 : f32
    %24 = vector.broadcast %cst_11 : f32 to vector<256x192xf32>
    %25 = arith.maximumf %23, %24 : vector<256x192xf32>
    %26 = vector.shape_cast %25 : vector<256x192xf32> to vector<4x8x8x192xf32>
    %27 = arith.truncf %26 : vector<4x8x8x192xf32> to vector<4x8x8x192xbf16>
    %c0_12 = arith.constant 0 : index
    %c0_13 = arith.constant 0 : index
    %c0_14 = arith.constant 0 : index
    %c0_15 = arith.constant 0 : index
    %28 = vector.load %arg5[%c0_12, %c0_13, %c0_14, %c0_15] : memref<4x8x8x192xbf16, #tpu.memory_space<vmem>>, vector<4x8x8x192xbf16>
    tpu.vector_store %arg5[%c0_12, %c0_13, %c0_14, %c0_15], %27 {strides = array<i32>} : memref<4x8x8x192xbf16, #tpu.memory_space<vmem>>, vector<4x8x8x192xbf16>,
    return
  }
  func.func @transform_0(%arg0: i32) -> (i32, i32, i32, i32) {
    %c0_i32 = arith.constant 0 : i32
    %c0_i32_0 = arith.constant 0 : i32
    %c0_i32_1 = arith.constant 0 : i32
    %c0_i32_2 = arith.constant 0 : i32
    return %arg0, %c0_i32, %c0_i32_0, %c0_i32_1 : i32, i32, i32, i32
  }
  func.func @transform_1(%arg0: i32) -> (i32, i32) {
    %c0_i32 = arith.constant 0 : i32
    %c0_i32_0 = arith.constant 0 : i32
    %c0_i32_1 = arith.constant 0 : i32
    return %c0_i32, %c0_i32_0 : i32, i32
  }
  func.func @transform_2(%arg0: i32) -> (i32, i32) {
    %c0_i32 = arith.constant 0 : i32
    %c0_i32_0 = arith.constant 0 : i32
    %c0_i32_1 = arith.constant 0 : i32
    return %c0_i32, %c0_i32_0 : i32, i32
  }
  func.func @transform_3(%arg0: i32) -> (i32, i32) {
    %c0_i32 = arith.constant 0 : i32
    %c0_i32_0 = arith.constant 0 : i32
    %c0_i32_1 = arith.constant 0 : i32
    return %c0_i32, %c0_i32_0 : i32, i32
  }
  func.func @transform_4(%arg0: i32) -> (i32, i32, i32, i32) {
    %c0_i32 = arith.constant 0 : i32
    %c0_i32_0 = arith.constant 0 : i32
    %c0_i32_1 = arith.constant 0 : i32
    %c0_i32_2 = arith.constant 0 : i32
    return %arg0, %c0_i32, %c0_i32_0, %c0_i32_1 : i32, i32, i32, i32
  }
}

module attributes {stable_mosaic.version = 11 : i64} {
  func.func @_temporal_conv_kernel(%arg0: i32, %arg1: i32, %arg2: memref<1x4x64x192xbf16, #tpu.memory_space<vmem>>, %arg3: memref<576x192xbf16, #tpu.memory_space<vmem>>, %arg4: memref<1x192xf32, #tpu.memory_space<vmem>>, %arg5: memref<1x192xf32, #tpu.memory_space<vmem>>, %arg6: memref<1x4x64x192xf32, #tpu.memory_space<vmem>>) attributes {dimension_semantics = [#tpu.dimension_semantics<parallel>, #tpu.dimension_semantics<parallel>], iteration_bounds = array<i64: 2, 1>, scalar_prefetch = 0 : i64, scratch_operands = 0 : i64, tpu.core_type = #tpu.core_type<tc>, window_params = [{transform_indices = @transform_0, window_bounds = array<i64: 1, 4, 64, 192>}, {pipeline_mode = #tpu.pipeline_mode<synchronous>, transform_indices = @transform_1, window_bounds = array<i64: 576, 192>}, {pipeline_mode = #tpu.pipeline_mode<synchronous>, transform_indices = @transform_2, window_bounds = array<i64: 1, 192>}, {pipeline_mode = #tpu.pipeline_mode<synchronous>, transform_indices = @transform_3, window_bounds = array<i64: 1, 192>}, {transform_indices = @transform_4, window_bounds = array<i64: 1, 4, 64, 192>}]} {
    %c0 = arith.constant 0 : index
    %c0_0 = arith.constant 0 : index
    %c0_1 = arith.constant 0 : index
    %c0_2 = arith.constant 0 : index
    %0 = vector.load %arg2[%c0, %c0_0, %c0_1, %c0_2] : memref<1x4x64x192xbf16, #tpu.memory_space<vmem>>, vector<1x4x64x192xbf16>
    %1 = vector.shape_cast %0 : vector<1x4x64x192xbf16> to vector<4x64x192xbf16>
    %cst = arith.constant 0.000000e+00 : bf16
    %2 = vector.broadcast %cst : bf16 to vector<1x64x192xbf16>
    %3 = tpu.concatenate %2, %1, %2 in 0 : vector<1x64x192xbf16>, vector<4x64x192xbf16>, vector<1x64x192xbf16> -> vector<6x64x192xbf16>
    %4 = vector.extract_strided_slice %3 {offsets = [0, 0, 0], sizes = [4, 64, 192], strides = [1, 1, 1]} : vector<6x64x192xbf16> to vector<4x64x192xbf16>
    %5 = vector.extract_strided_slice %3 {offsets = [1, 0, 0], sizes = [4, 64, 192], strides = [1, 1, 1]} : vector<6x64x192xbf16> to vector<4x64x192xbf16>
    %6 = vector.extract_strided_slice %3 {offsets = [2, 0, 0], sizes = [4, 64, 192], strides = [1, 1, 1]} : vector<6x64x192xbf16> to vector<4x64x192xbf16>
    %7 = tpu.concatenate %4, %5, %6 in 2 : vector<4x64x192xbf16>, vector<4x64x192xbf16>, vector<4x64x192xbf16> -> vector<4x64x576xbf16>
    %8 = vector.shape_cast %7 : vector<4x64x576xbf16> to vector<256x576xbf16>
    %c0_3 = arith.constant 0 : index
    %c0_4 = arith.constant 0 : index
    %9 = vector.load %arg3[%c0_3, %c0_4] : memref<576x192xbf16, #tpu.memory_space<vmem>>, vector<576x192xbf16>
    %cst_5 = arith.constant dense<0.000000e+00> : vector<256x192xf32>
    %10 = tpu.matmul %8, %9, %cst_5 {dimension_numbers = #tpu.dot_dimension_numbers<[1], [0], [0], [1], [0, 0, 1, 1], [], []>} : vector<256x576xbf16>, vector<576x192xbf16>, vector<256x192xf32> -> vector<256x192xf32>
    %c0_6 = arith.constant 0 : index
    %c0_7 = arith.constant 0 : index
    %11 = vector.load %arg4[%c0_6, %c0_7] : memref<1x192xf32, #tpu.memory_space<vmem>>, vector<1x192xf32>
    %12 = vector.broadcast %11 : vector<1x192xf32> to vector<256x192xf32>
    %13 = arith.mulf %10, %12 : vector<256x192xf32>
    %c0_8 = arith.constant 0 : index
    %c0_9 = arith.constant 0 : index
    %14 = vector.load %arg5[%c0_8, %c0_9] : memref<1x192xf32, #tpu.memory_space<vmem>>, vector<1x192xf32>
    %15 = vector.broadcast %14 : vector<1x192xf32> to vector<256x192xf32>
    %16 = arith.addf %13, %15 : vector<256x192xf32>
    %cst_10 = arith.constant 0.000000e+00 : f32
    %17 = vector.broadcast %cst_10 : f32 to vector<256x192xf32>
    %18 = arith.maximumf %16, %17 : vector<256x192xf32>
    %19 = vector.shape_cast %18 : vector<256x192xf32> to vector<1x4x64x192xf32>
    %c0_11 = arith.constant 0 : index
    %c0_12 = arith.constant 0 : index
    %c0_13 = arith.constant 0 : index
    %c0_14 = arith.constant 0 : index
    %20 = vector.load %arg6[%c0_11, %c0_12, %c0_13, %c0_14] : memref<1x4x64x192xf32, #tpu.memory_space<vmem>>, vector<1x4x64x192xf32>
    tpu.vector_store %arg6[%c0_11, %c0_12, %c0_13, %c0_14], %19 {strides = array<i32>} : memref<1x4x64x192xf32, #tpu.memory_space<vmem>>, vector<1x4x64x192xf32>,
    return
  }
  func.func @transform_0(%arg0: i32, %arg1: i32) -> (i32, i32, i32, i32) {
    %c0_i32 = arith.constant 0 : i32
    %c0_i32_0 = arith.constant 0 : i32
    %c0_i32_1 = arith.constant 0 : i32
    return %arg0, %c0_i32, %arg1, %c0_i32_0 : i32, i32, i32, i32
  }
  func.func @transform_1(%arg0: i32, %arg1: i32) -> (i32, i32) {
    %c0_i32 = arith.constant 0 : i32
    %c0_i32_0 = arith.constant 0 : i32
    %c0_i32_1 = arith.constant 0 : i32
    return %c0_i32, %c0_i32_0 : i32, i32
  }
  func.func @transform_2(%arg0: i32, %arg1: i32) -> (i32, i32) {
    %c0_i32 = arith.constant 0 : i32
    %c0_i32_0 = arith.constant 0 : i32
    %c0_i32_1 = arith.constant 0 : i32
    return %c0_i32, %c0_i32_0 : i32, i32
  }
  func.func @transform_3(%arg0: i32, %arg1: i32) -> (i32, i32) {
    %c0_i32 = arith.constant 0 : i32
    %c0_i32_0 = arith.constant 0 : i32
    %c0_i32_1 = arith.constant 0 : i32
    return %c0_i32, %c0_i32_0 : i32, i32
  }
  func.func @transform_4(%arg0: i32, %arg1: i32) -> (i32, i32, i32, i32) {
    %c0_i32 = arith.constant 0 : i32
    %c0_i32_0 = arith.constant 0 : i32
    %c0_i32_1 = arith.constant 0 : i32
    return %arg0, %c0_i32, %arg1, %c0_i32_0 : i32, i32, i32, i32
  }
}

</mosaic_0001>

<llo_original>
// kernel: mixed_3c.11
$region0: #{mixed_3c.11}
  #allocation0 [shape = 'u32[]', space=smem, size = 0x4, offset = 0x4, fixed_abs, tag = 'smem constant byte address 0x4 - core index']
  #allocation1 [shape = 'u32[144,128]{1,0:T(1,128)}', space=vmem, size = 0x12000, scoped, tag = 'internal scratch']
  #allocation2 [shape = 'f32[3,8,8,256]{3,2,1,0:T(8,128)}', space=vmem, size = 0x30000, scoped, tag = 'scratch operand']
  %s0 = inlined_call_operand.vmem [shape: f32[2,4,8,8,256], index: 0, kind: input, shape index: {}]
  %s1 = inlined_call_operand.vmem [shape: bf16[256,64], index: 1, kind: input, shape index: {}]
  %s2 = inlined_call_operand.vmem [shape: f32[1,64], index: 2, kind: input, shape index: {}]
  %s3 = inlined_call_operand.vmem [shape: f32[1,64], index: 3, kind: input, shape index: {}]
  %s4 = inlined_call_operand.vmem [shape: f32[2,4,8,8,64], index: 4, kind: output, shape index: {}]
  %s5 = sld [smem:[#allocation0]]
  $region65: #{mixed_3c.11} parent=0
    _
  %s7 = ssub.s32 1, %s5
  %s8 = scalar_select 0, %s7, %s5
  loop: start=0, step=1, limit=14
  $region2: #{mixed_3c.11} parent=0 // loop_pre_header
    _
  $region3: #{mixed_3c.11} parent=0 // loop_header
    %s10 = sphi 0, %s14
    %p11 = scmp.ge.s32.totalorder %s10, 14
    %s17 = sphi 0, %s29
    %s18 = sphi 0, %s25
    %s19 = sphi 0, %s17
    %s20 = sphi 0, %s18
    %s21 = sphi 0, %s19
    %s22 = sphi 0, %s20
    %s44 = sphi 0, %s46
    %s47 = sphi 0, %s44
    %s48 = sphi 0, %s47
    %s64 = sphi 0, %s48
    %s68 = sphi 0, %s68
    %s70 = sphi 0, %s68
    %s71 = sphi 0, %s70
    %s85 = sphi 0, %s71
    %s89 = sphi 0, %s89
    %s91 = sphi 0, %s89
    %s92 = sphi 0, %s91
    %s106 = sphi 0, %s92
    %s110 = sphi 0, %s110
    %s112 = sphi 0, %s110
    %s113 = sphi 0, %s112
    %s127 = sphi 0, %s113
    %s141 = sphi 0, %s143
    %s144 = sphi 0, %s141
    %s145 = sphi 0, %s144
    %s161 = sphi 0, %s145
  $region4: #{mixed_3c.11} parent=0 // loop_header_branch
    %13 = sbr.rel (%p11) target = $region8
  $region5: #{mixed_3c.11} parent=0 // loop_body
    %s15 = ssub.s32 %s10, 1
    %s16 = ssub.s32 %s10, 2
    %s23 = sadd.s32 1, %s18
    %p24 = scmp.ge.s32.totalorder %s23, 6
    %s25 = scalar_select %p24, 0, %s23
    %s26 = sadd.s32 1, %s17
    %s27 = scalar_select %p24, %s26, %s17
    %p28 = scmp.ge.s32.totalorder %s27, 2
    %s29 = scalar_select %p28, 0, %s27
    %s30 = ssub.s32 %s18, 1
    %p31 = scmp.gt.s32.totalorder %s30, 0
    %s32 = scalar_select %p31, %s30, 0
    %p33 = scmp.lt.s32.totalorder %s32, 3
    %s34 = scalar_select %p33, %s32, 3
    %s35 = ssub.s32 %s25, 1
    %p36 = scmp.gt.s32.totalorder %s35, 0
    %s37 = scalar_select %p36, %s35, 0
    %p38 = scmp.lt.s32.totalorder %s37, 3
    %s39 = scalar_select %p38, %s37, 3
    %s40 = ssub.s32 %s17, %s29
    %s41 = ssub.s32 %s34, %s39
    %s42 = sor.u32 %s40, %s41
    %p43 = scmp.eq.s32.totalorder %s42, 0
    %s45 = sadd.s32 %s44, 1
    %s46 = scalar_select %p43, %s44, %s45
    %p49 = pneg %p43
    %p50 = scmp.eq.s32.totalorder %s10, 11
    %p51 = por %p49, %p50
    %p52 = scmp.ne.s32.totalorder %s44, %s47
    %p53 = scmp.eq.s32.totalorder %s10, 0
    %p54 = por %p52, %p53
    %p55 = scmp.ne.s32.totalorder %s44, %s47
    %p56 = scmp.eq.s32.totalorder %s15, 11
    %p57 = por %p55, %p56
    %p58 = scmp.ne.s32.totalorder %s47, %s48
    %p59 = scmp.eq.s32.totalorder %s15, 0
    %p60 = por %p58, %p59
    %p61 = scmp.ne.s32.totalorder %s47, %s48
    %p62 = scmp.eq.s32.totalorder %s16, 11
    %p63 = por %p61, %p62
    %p65 = scmp.ne.s32.totalorder %s48, %s64
    %p66 = scmp.eq.s32.totalorder %s16, 0
    %p67 = por %p65, %p66
    %s69 = sadd.s32 %s68, 1
    %p72 = scmp.eq.s32.totalorder %s10, 11
    %p73 = scmp.ne.s32.totalorder %s68, %s70
    %p74 = scmp.eq.s32.totalorder %s10, 0
    %p75 = por %p73, %p74
    %p76 = scmp.ne.s32.totalorder %s68, %s70
    %p77 = scmp.eq.s32.totalorder %s15, 11
    %p78 = por %p76, %p77
    %p79 = scmp.ne.s32.totalorder %s70, %s71
    %p80 = scmp.eq.s32.totalorder %s15, 0
    %p81 = por %p79, %p80
    %p82 = scmp.ne.s32.totalorder %s70, %s71
    %p83 = scmp.eq.s32.totalorder %s16, 11
    %p84 = por %p82, %p83
    %p86 = scmp.ne.s32.totalorder %s71, %s85
    %p87 = scmp.eq.s32.totalorder %s16, 0
    %p88 = por %p86, %p87
    %s90 = sadd.s32 %s89, 1
    %p93 = scmp.eq.s32.totalorder %s10, 11
    %p94 = scmp.ne.s32.totalorder %s89, %s91
    %p95 = scmp.eq.s32.totalorder %s10, 0
    %p96 = por %p94, %p95
    %p97 = scmp.ne.s32.totalorder %s89, %s91
    %p98 = scmp.eq.s32.totalorder %s15, 11
    %p99 = por %p97, %p98
    %p100 = scmp.ne.s32.totalorder %s91, %s92
    %p101 = scmp.eq.s32.totalorder %s15, 0
    %p102 = por %p100, %p101
    %p103 = scmp.ne.s32.totalorder %s91, %s92
    %p104 = scmp.eq.s32.totalorder %s16, 11
    %p105 = por %p103, %p104
    %p107 = scmp.ne.s32.totalorder %s92, %s106
    %p108 = scmp.eq.s32.totalorder %s16, 0
    %p109 = por %p107, %p108
    %s111 = sadd.s32 %s110, 1
    %p114 = scmp.eq.s32.totalorder %s10, 11
    %p115 = scmp.ne.s32.totalorder %s110, %s112
    %p116 = scmp.eq.s32.totalorder %s10, 0
    %p117 = por %p115, %p116
    %p118 = scmp.ne.s32.totalorder %s110, %s112
    %p119 = scmp.eq.s32.totalorder %s15, 11
    %p120 = por %p118, %p119
    %p121 = scmp.ne.s32.totalorder %s112, %s113
    %p122 = scmp.eq.s32.totalorder %s15, 0
    %p123 = por %p121, %p122
    %p124 = scmp.ne.s32.totalorder %s112, %s113
    %p125 = scmp.eq.s32.totalorder %s16, 11
    %p126 = por %p124, %p125
    %p128 = scmp.ne.s32.totalorder %s113, %s127
    %p129 = scmp.eq.s32.totalorder %s16, 0
    %p130 = por %p128, %p129
    %s131 = ssub.s32 %s18, 2
    %p132 = scmp.gt.s32.totalorder %s131, 0
    %s133 = scalar_select %p132, %s131, 0
    %s134 = ssub.s32 %s25, 2
    %p135 = scmp.gt.s32.totalorder %s134, 0
    %s136 = scalar_select %p135, %s134, 0
    %s137 = ssub.s32 %s17, %s29
    %s138 = ssub.s32 %s133, %s136
    %s139 = sor.u32 %s137, %s138
    %p140 = scmp.eq.s32.totalorder %s139, 0
    %s142 = sadd.s32 %s141, 1
    %s143 = scalar_select %p140, %s141, %s142
    %p146 = pneg %p140
    %p147 = scmp.eq.s32.totalorder %s10, 11
    %p148 = por %p146, %p147
    %p149 = scmp.ne.s32.totalorder %s141, %s144
    %p150 = scmp.eq.s32.totalorder %s10, 0
    %p151 = por %p149, %p150
    %p152 = scmp.ne.s32.totalorder %s141, %s144
    %p153 = scmp.eq.s32.totalorder %s15, 11
    %p154 = por %p152, %p153
    %p155 = scmp.ne.s32.totalorder %s144, %s145
    %p156 = scmp.eq.s32.totalorder %s15, 0
    %p157 = por %p155, %p156
    %p158 = scmp.ne.s32.totalorder %s144, %s145
    %p159 = scmp.eq.s32.totalorder %s16, 11
    %p160 = por %p158, %p159
    %p162 = scmp.ne.s32.totalorder %s145, %s161
    %p163 = scmp.eq.s32.totalorder %s16, 0
    %p164 = por %p162, %p163
    %p165 = scmp.le.s32.totalorder 1, %s10
    %p166 = scmp.lt.s32.totalorder %s10, 13
    %p167 = pnand %p165, %p166
    %p168 = pneg %p167
    // Predicated region
    $region9: #{mixed_3c.11} parent=5 // pred_check
      _
    $region10: #{mixed_3c.11} parent=5 // pred_check_branch
      %170 = sbr.rel (%p167) target = $region12
    $region11: #{mixed_3c.11} parent=5 // pred_region
      %s171 = ssub.s32 %s10, 1
      // Predicated region
      $region13: #{mixed_3c.11} parent=11 // pred_check
        %p172 = pneg %p81
      $region14: #{mixed_3c.11} parent=11 // pred_check_branch
        %174 = sbr.rel (%p172) target = $region16
      $region15: #{mixed_3c.11} parent=11 // pred_region
        _
      $region16: #{mixed_3c.11} parent=11 // pred_fallthru
        _
      // Predicated region
      $region17: #{mixed_3c.11} parent=11 // pred_check
        %p175 = pneg %p102
      $region18: #{mixed_3c.11} parent=11 // pred_check_branch
        %177 = sbr.rel (%p175) target = $region20
      $region19: #{mixed_3c.11} parent=11 // pred_region
        _
      $region20: #{mixed_3c.11} parent=11 // pred_fallthru
        _
      // Predicated region
      $region21: #{mixed_3c.11} parent=11 // pred_check
        %p178 = pneg %p123
      $region22: #{mixed_3c.11} parent=11 // pred_check_branch
        %180 = sbr.rel (%p178) target = $region24
      $region23: #{mixed_3c.11} parent=11 // pred_region
        _
      $region24: #{mixed_3c.11} parent=11 // pred_fallthru
        _
    $region12: #{mixed_3c.11} parent=5 // pred_fallthru
      _
    %p181 = scmp.lt.s32.totalorder %s10, 12
    // Predicated region
    $region25: #{mixed_3c.11} parent=5 // pred_check
      %p182 = pneg %p181
    $region26: #{mixed_3c.11} parent=5 // pred_check_branch
      %184 = sbr.rel (%p182) target = $region28
    $region27: #{mixed_3c.11} parent=5 // pred_region
      // Predicated region
      $region29: #{mixed_3c.11} parent=27 // pred_check
        %p185 = pneg %p54
      $region30: #{mixed_3c.11} parent=27 // pred_check_branch
        %187 = sbr.rel (%p185) target = $region32
      $region31: #{mixed_3c.11} parent=27 // pred_region
        %s188 = ssub.s32 %s18, 1
        %p189 = scmp.gt.s32.totalorder %s188, 0
        %s190 = scalar_select %p189, %s188, 0
        %p191 = scmp.lt.s32.totalorder %s190, 3
        %s192 = scalar_select %p191, %s190, 3
        %p193 = scmp.lt.s32.totalorder %s17, 1
        %s194 = scalar_select %p193, %s17, 1
        %p195 = scmp.lt.s32.totalorder %s192, 3
        %s196 = scalar_select %p195, %s192, 3
        %s197 = smul.addr %s196, 16
        %s198 = smul.addr %s194, 64
        %s199 = sadd.s32 %s197, %s198
        %s200 = smul.addr %s199, 8
        %s201 = scalar_lea.vmem %s0, %s200
        %s202 = ssub.s32 %s18, 1
        %p203 = scmp.gt.s32.totalorder %s202, 0
        %s204 = scalar_select %p203, %s202, 0
        %p205 = scmp.lt.s32.totalorder %s204, 3
        %s206 = scalar_select %p205, %s204, 3
      $region32: #{mixed_3c.11} parent=27 // pred_fallthru
        _
    $region28: #{mixed_3c.11} parent=5 // pred_fallthru
      _
    %p207 = scmp.le.s32.totalorder 1, %s10
    %p208 = scmp.lt.s32.totalorder %s10, 13
    %p209 = pnand %p207, %p208
    %p210 = pneg %p209
    // Predicated region
    $region33: #{mixed_3c.11} parent=5 // pred_check
      _
    $region34: #{mixed_3c.11} parent=5 // pred_check_branch
      %212 = sbr.rel (%p209) target = $region36
    $region35: #{mixed_3c.11} parent=5 // pred_region
      %s213 = ssub.s32 %s10, 1
      %s214 = ssub.s32 %s20, 1
      %p215 = scmp.gt.s32.totalorder %s214, 0
      %s216 = scalar_select %p215, %s214, 0
      %p217 = scmp.lt.s32.totalorder %s216, 3
      %s218 = scalar_select %p217, %s216, 3
      %p219 = scmp.lt.s32.totalorder %s19, 1
      %s220 = scalar_select %p219, %s19, 1
      %p221 = scmp.lt.s32.totalorder %s218, 3
      %s222 = scalar_select %p221, %s218, 3
      %s223 = smul.addr %s222, 16
      %s224 = smul.addr %s220, 64
      %s225 = sadd.s32 %s223, %s224
      %s226 = smul.addr %s225, 8
      %s227 = scalar_lea.vmem %s0, %s226
      %p228 = pneg %p60
      %p229 = pneg %p57
      %p230 = pneg %p81
      %p231 = pneg %p78
      %p232 = pneg %p102
      %p233 = pneg %p99
      %p234 = pneg %p123
      %p235 = pneg %p120
      %p236 = pneg %p157
      %p237 = pneg %p154
      %s238 = ssub.s32 %s20, 2
      %p239 = scmp.gt.s32.totalorder %s238, 0
      %s240 = scalar_select %p239, %s238, 0
      %p241 = scmp.lt.s32.totalorder %s19, 1
      %s242 = scalar_select %p241, %s19, 1
      %p243 = scmp.lt.s32.totalorder %s240, 3
      %s244 = scalar_select %p243, %s240, 3
      %s245 = smul.addr %s244, 8
      %s246 = smul.addr %s242, 32
      %s247 = sadd.s32 %s245, %s246
      %s248 = smul.addr %s247, 8
      %s249 = scalar_lea.vmem %s4, %s248
      %s250 = ssub.s32 %s20, 1
      %p251 = scmp.gt.s32.totalorder %s250, 0
      %s252 = scalar_select %p251, %s250, 0
      %p253 = scmp.lt.s32.totalorder %s252, 3
      %s254 = scalar_select %p253, %s252, 3
      %p255 = scmp.lt.s32.totalorder %s19, 1
      %s256 = scalar_select %p255, %s19, 1
      %p257 = scmp.lt.s32.totalorder %s254, 3
      %s258 = scalar_select %p257, %s254, 3
      %s259 = smul.addr %s258, 16
      %s260 = smul.addr %s256, 64
      %s261 = sadd.s32 %s259, %s260
      %s262 = smul.addr %s261, 8
      %s263 = scalar_lea.vmem %s0, %s262
      %s264 = ssub.s32 %s20, 1
      %p265 = scmp.gt.s32.totalorder %s264, 0
      %s266 = scalar_select %p265, %s264, 0
      %p267 = scmp.lt.s32.totalorder %s266, 3
      %s268 = scalar_select %p267, %s266, 3
      %s269 = ssub.s32 %s20, 2
      %p270 = scmp.gt.s32.totalorder %s269, 0
      %s271 = scalar_select %p270, %s269, 0
      %p272 = scmp.lt.s32.totalorder %s19, 1
      %s273 = scalar_select %p272, %s19, 1
      %p274 = scmp.lt.s32.totalorder %s271, 3
      %s275 = scalar_select %p274, %s271, 3
      %s276 = smul.addr %s275, 8
      %s277 = smul.addr %s273, 32
      %s278 = sadd.s32 %s276, %s277
      %s279 = smul.addr %s278, 8
      %s280 = scalar_lea.vmem %s4, %s279
      %s281 = ssub.s32 %s20, 2
      %p282 = scmp.gt.s32.totalorder %s281, 0
      %s283 = scalar_select %p282, %s281, 0
      %v285 = vld [vmem:[%s263] sm:$0xff]
      %v286 = vld [vmem:[%s263 + $0x8] sm:$0xff]
      %v287 = vld [vmem:[%s263 + $0x10] sm:$0xff]
      %v288 = vld [vmem:[%s263 + $0x18] sm:$0xff]
      %v289 = vld [vmem:[%s263 + $0x20] sm:$0xff]
      %v290 = vld [vmem:[%s263 + $0x28] sm:$0xff]
      %v291 = vld [vmem:[%s263 + $0x30] sm:$0xff]
      %v292 = vld [vmem:[%s263 + $0x38] sm:$0xff]
      %v293 = vld [vmem:[%s263 + $0x40] sm:$0xff]
      %v294 = vld [vmem:[%s263 + $0x48] sm:$0xff]
      %v295 = vld [vmem:[%s263 + $0x50] sm:$0xff]
      %v296 = vld [vmem:[%s263 + $0x58] sm:$0xff]
      %v297 = vld [vmem:[%s263 + $0x60] sm:$0xff]
      %v298 = vld [vmem:[%s263 + $0x68] sm:$0xff]
      %v299 = vld [vmem:[%s263 + $0x70] sm:$0xff]
      %v300 = vld [vmem:[%s263 + $0x78] sm:$0xff]
      %v301 = vmax.f32 %v285, %v287
      %v302 = vmax.f32 %v286, %v288
      %v303 = vmax.f32 %v287, %v289
      %v304 = vmax.f32 %v288, %v290
      %v305 = vmax.f32 %v289, %v291
      %v306 = vmax.f32 %v290, %v292
      %v307 = vmax.f32 %v291, %v293
      %v308 = vmax.f32 %v292, %v294
      %v309 = vmax.f32 %v293, %v295
      %v310 = vmax.f32 %v294, %v296
      %v311 = vmax.f32 %v295, %v297
      %v312 = vmax.f32 %v296, %v298
      %v313 = vmax.f32 %v297, %v299
      %v314 = vmax.f32 %v298, %v300
      %v315 = vmax.f32 %v301, %v289
      %v316 = vmax.f32 %v302, %v290
      %v317 = vmax.f32 %v303, %v291
      %v318 = vmax.f32 %v304, %v292
      %v319 = vmax.f32 %v305, %v293
      %v320 = vmax.f32 %v306, %v294
      %v321 = vmax.f32 %v307, %v295
      %v322 = vmax.f32 %v308, %v296
      %v323 = vmax.f32 %v309, %v297
      %v324 = vmax.f32 %v310, %v298
      %v325 = vmax.f32 %v311, %v299
      %v326 = vmax.f32 %v312, %v300
      %v343 = vrot.slane %v301, 7
      %v344 = vrot.slane %v302, 7
      %v345 = vrot.slane %v315, 7
      %v346 = vrot.slane %v316, 7
      %v347 = vrot.slane %v317, 7
      %v348 = vrot.slane %v318, 7
      %v349 = vrot.slane %v319, 7
      %v350 = vrot.slane %v320, 7
      %v351 = vrot.slane %v321, 7
      %v352 = vrot.slane %v322, 7
      %v353 = vrot.slane %v323, 7
      %v354 = vrot.slane %v324, 7
      %v355 = vrot.slane %v325, 7
      %v356 = vrot.slane %v326, 7
      %v357 = vrot.slane %v313, 7
      %v358 = vrot.slane %v314, 7
      %vm375 = vcmask 1040384
      %v376 = vsel %vm375, -inf, %v343
      %v377 = vsel %vm375, -inf, %v344
      %v378 = vsel %vm375, -inf, %v345
      %v379 = vsel %vm375, -inf, %v346
      %v380 = vsel %vm375, -inf, %v347
      %v381 = vsel %vm375, -inf, %v348
      %v382 = vsel %vm375, -inf, %v349
      %v383 = vsel %vm375, -inf, %v350
      %v384 = vsel %vm375, -inf, %v351
      %v385 = vsel %vm375, -inf, %v352
      %v386 = vsel %vm375, -inf, %v353
      %v387 = vsel %vm375, -inf, %v354
      %v388 = vsel %vm375, -inf, %v355
      %v389 = vsel %vm375, -inf, %v356
      %v390 = vsel %vm375, -inf, %v357
      %v391 = vsel %vm375, -inf, %v358
      %v392 = vsel %vm375, %v343, -inf
      %v393 = vsel %vm375, %v344, -inf
      %v394 = vsel %vm375, %v345, -inf
      %v395 = vsel %vm375, %v346, -inf
      %v396 = vsel %vm375, %v347, -inf
      %v397 = vsel %vm375, %v348, -inf
      %v398 = vsel %vm375, %v349, -inf
      %v399 = vsel %vm375, %v350, -inf
      %v400 = vsel %vm375, %v351, -inf
      %v401 = vsel %vm375, %v352, -inf
      %v402 = vsel %vm375, %v353, -inf
      %v403 = vsel %vm375, %v354, -inf
      %v404 = vsel %vm375, %v355, -inf
      %v405 = vsel %vm375, %v356, -inf
      %v406 = vsel %vm375, %v357, -inf
      %v407 = vsel %vm375, %v358, -inf
      %vm440 = vcmask 1046528
      %v441 = vrot.slane %v376, 1
      %v442 = vrot.slane %v392, 1
      %v443 = vsel %vm440, %v441, %v442
      %v444 = vrot.slane %v377, 1
      %v445 = vrot.slane %v393, 1
      %v446 = vsel %vm440, %v444, %v445
      %v447 = vrot.slane %v378, 1
      %v448 = vrot.slane %v394, 1
      %v449 = vsel %vm440, %v447, %v448
      %v450 = vrot.slane %v379, 1
      %v451 = vrot.slane %v395, 1
      %v452 = vsel %vm440, %v450, %v451
      %v453 = vrot.slane %v380, 1
      %v454 = vrot.slane %v396, 1
      %v455 = vsel %vm440, %v453, %v454
      %v456 = vrot.slane %v381, 1
      %v457 = vrot.slane %v397, 1
      %v458 = vsel %vm440, %v456, %v457
      %v459 = vrot.slane %v382, 1
      %v460 = vrot.slane %v398, 1
      %v461 = vsel %vm440, %v459, %v460
      %v462 = vrot.slane %v383, 1
      %v463 = vrot.slane %v399, 1
      %v464 = vsel %vm440, %v462, %v463
      %v465 = vrot.slane %v384, 1
      %v466 = vrot.slane %v400, 1
      %v467 = vsel %vm440, %v465, %v466
      %v468 = vrot.slane %v385, 1
      %v469 = vrot.slane %v401, 1
      %v470 = vsel %vm440, %v468, %v469
      %v471 = vrot.slane %v386, 1
      %v472 = vrot.slane %v402, 1
      %v473 = vsel %vm440, %v471, %v472
      %v474 = vrot.slane %v387, 1
      %v475 = vrot.slane %v403, 1
      %v476 = vsel %vm440, %v474, %v475
      %v477 = vrot.slane %v388, 1
      %v478 = vrot.slane %v404, 1
      %v479 = vsel %vm440, %v477, %v478
      %v480 = vrot.slane %v389, 1
      %v481 = vrot.slane %v405, 1
      %v482 = vsel %vm440, %v480, %v481
      %v483 = vrot.slane %v390, 1
      %v484 = vrot.slane %v406, 1
      %v485 = vsel %vm440, %v483, %v484
      %v486 = vrot.slane %v391, 1
      %v487 = vrot.slane %v407, 1
      %v488 = vsel %vm440, %v486, %v487
      %v505 = vmax.f32 %v376, %v443
      %v506 = vmax.f32 %v377, %v446
      %v507 = vmax.f32 %v378, %v449
      %v508 = vmax.f32 %v379, %v452
      %v509 = vmax.f32 %v380, %v455
      %v510 = vmax.f32 %v381, %v458
      %v511 = vmax.f32 %v382, %v461
      %v512 = vmax.f32 %v383, %v464
      %v513 = vmax.f32 %v384, %v467
      %v514 = vmax.f32 %v385, %v470
      %v515 = vmax.f32 %v386, %v473
      %v516 = vmax.f32 %v387, %v476
      %v517 = vmax.f32 %v388, %v479
      %v518 = vmax.f32 %v389, %v482
      %v519 = vmax.f32 %v390, %v485
      %v520 = vmax.f32 %v391, %v488
      %vm521 = vcmask 1045504
      %v522 = vrot.slane %v376, 2
      %v523 = vrot.slane %v392, 2
      %v524 = vsel %vm521, %v522, %v523
      %v525 = vrot.slane %v377, 2
      %v526 = vrot.slane %v393, 2
      %v527 = vsel %vm521, %v525, %v526
      %v528 = vrot.slane %v378, 2
      %v529 = vrot.slane %v394, 2
      %v530 = vsel %vm521, %v528, %v529
      %v531 = vrot.slane %v379, 2
      %v532 = vrot.slane %v395, 2
      %v533 = vsel %vm521, %v531, %v532
      %v534 = vrot.slane %v380, 2
      %v535 = vrot.slane %v396, 2
      %v536 = vsel %vm521, %v534, %v535
      %v537 = vrot.slane %v381, 2
      %v538 = vrot.slane %v397, 2
      %v539 = vsel %vm521, %v537, %v538
      %v540 = vrot.slane %v382, 2
      %v541 = vrot.slane %v398, 2
      %v542 = vsel %vm521, %v540, %v541
      %v543 = vrot.slane %v383, 2
      %v544 = vrot.slane %v399, 2
      %v545 = vsel %vm521, %v543, %v544
      %v546 = vrot.slane %v384, 2
      %v547 = vrot.slane %v400, 2
      %v548 = vsel %vm521, %v546, %v547
      %v549 = vrot.slane %v385, 2
      %v550 = vrot.slane %v401, 2
      %v551 = vsel %vm521, %v549, %v550
      %v552 = vrot.slane %v386, 2
      %v553 = vrot.slane %v402, 2
      %v554 = vsel %vm521, %v552, %v553
      %v555 = vrot.slane %v387, 2
      %v556 = vrot.slane %v403, 2
      %v557 = vsel %vm521, %v555, %v556
      %v558 = vrot.slane %v388, 2
      %v559 = vrot.slane %v404, 2
      %v560 = vsel %vm521, %v558, %v559
      %v561 = vrot.slane %v389, 2
      %v562 = vrot.slane %v405, 2
      %v563 = vsel %vm521, %v561, %v562
      %v564 = vrot.slane %v390, 2
      %v565 = vrot.slane %v406, 2
      %v566 = vsel %vm521, %v564, %v565
      %v567 = vrot.slane %v391, 2
      %v568 = vrot.slane %v407, 2
      %v569 = vsel %vm521, %v567, %v568
      %v586 = vmax.f32 %v505, %v524
      %v587 = vmax.f32 %v506, %v527
      %v588 = vmax.f32 %v507, %v530
      %v589 = vmax.f32 %v508, %v533
      %v590 = vmax.f32 %v509, %v536
      %v591 = vmax.f32 %v510, %v539
      %v592 = vmax.f32 %v511, %v542
      %v593 = vmax.f32 %v512, %v545
      %v594 = vmax.f32 %v513, %v548
      %v595 = vmax.f32 %v514, %v551
      %v596 = vmax.f32 %v515, %v554
      %v597 = vmax.f32 %v516, %v557
      %v598 = vmax.f32 %v517, %v560
      %v599 = vmax.f32 %v518, %v563
      %v600 = vmax.f32 %v519, %v566
      %v601 = vmax.f32 %v520, %v569
      %p602 = scmp.eq.s32.totalorder %s20, 0
      %p603 = scmp.eq.s32.totalorder %s20, 5
      %p604 = por %p602, %p603
      %s605 = scalar_select %p604, 1, 0
      %v606 = vstv %s605
      %vm607 = vcmp.eq.s32.totalorder %v606, 1
      %v608 = vsel %vm607, -inf, %v586
      %v609 = vsel %vm607, -inf, %v587
      %v610 = vsel %vm607, -inf, %v588
      %v611 = vsel %vm607, -inf, %v589
      %v612 = vsel %vm607, -inf, %v590
      %v613 = vsel %vm607, -inf, %v591
      %v614 = vsel %vm607, -inf, %v592
      %v615 = vsel %vm607, -inf, %v593
      %v616 = vsel %vm607, -inf, %v594
      %v617 = vsel %vm607, -inf, %v595
      %v618 = vsel %vm607, -inf, %v596
      %v619 = vsel %vm607, -inf, %v597
      %v620 = vsel %vm607, -inf, %v598
      %v621 = vsel %vm607, -inf, %v599
      %v622 = vsel %vm607, -inf, %v600
      %v623 = vsel %vm607, -inf, %v601
      %p624 = scmp.lt.s32.totalorder %s20, 0
      %s625 = ssub.s32 0, %s20
      %s626 = scalar_select %p624, %s625, %s20
      %s627 = sdiv.u32.pop %s626, 3
      %s628 = srem.u32.pop %s626, 3
      %s629 = ssub.s32 0, %s628
      %s630 = scalar_select %p624, %s629, %s628
      %p631 = scmp.ne.s32.totalorder %s630, 0
      %p632 = scmp.lt.s32.totalorder %s630, 0
      %p633 = pnand %p632, %p631
      %p634 = pneg %p633
      %s635 = sadd.s32 %s630, 3
      %s636 = scalar_select %p634, %s635, %s630
      %p637 = scmp.eq.s32.totalorder %s636, 0
      // Predicated region
      $region37: #{mixed_3c.11} parent=35 // pred_check
        %p638 = pneg %p637
      $region38: #{mixed_3c.11} parent=35 // pred_check_branch
        %640 = sbr.rel (%p638) target = $region40
      $region39: #{mixed_3c.11} parent=35 // pred_region
        %641 = vst [vmem:[#allocation2] sm:$0xff] %v608
        %642 = vst [vmem:[#allocation2 + $0x8] sm:$0xff] %v609
        %643 = vst [vmem:[#allocation2 + $0x10] sm:$0xff] %v610
        %644 = vst [vmem:[#allocation2 + $0x18] sm:$0xff] %v611
        %645 = vst [vmem:[#allocation2 + $0x20] sm:$0xff] %v612
        %646 = vst [vmem:[#allocation2 + $0x28] sm:$0xff] %v613
        %647 = vst [vmem:[#allocation2 + $0x30] sm:$0xff] %v614
        %648 = vst [vmem:[#allocation2 + $0x38] sm:$0xff] %v615
        %649 = vst [vmem:[#allocation2 + $0x40] sm:$0xff] %v616
        %650 = vst [vmem:[#allocation2 + $0x48] sm:$0xff] %v617
        %651 = vst [vmem:[#allocation2 + $0x50] sm:$0xff] %v618
        %652 = vst [vmem:[#allocation2 + $0x58] sm:$0xff] %v619
        %653 = vst [vmem:[#allocation2 + $0x60] sm:$0xff] %v620
        %654 = vst [vmem:[#allocation2 + $0x68] sm:$0xff] %v621
        %655 = vst [vmem:[#allocation2 + $0x70] sm:$0xff] %v622
        %656 = vst [vmem:[#allocation2 + $0x78] sm:$0xff] %v623
      $region40: #{mixed_3c.11} parent=35 // pred_fallthru
        _
      %p657 = scmp.eq.s32.totalorder %s636, 1
      // Predicated region
      $region41: #{mixed_3c.11} parent=35 // pred_check
        %p658 = pneg %p657
      $region42: #{mixed_3c.11} parent=35 // pred_check_branch
        %660 = sbr.rel (%p658) target = $region44
      $region43: #{mixed_3c.11} parent=35 // pred_region
        %s661 = scalar_lea.vmem [#allocation2], 128
        %662 = vst [vmem:[%s661] sm:$0xff] %v608
        %663 = vst [vmem:[%s661 + $0x8] sm:$0xff] %v609
        %664 = vst [vmem:[%s661 + $0x10] sm:$0xff] %v610
        %665 = vst [vmem:[%s661 + $0x18] sm:$0xff] %v611
        %666 = vst [vmem:[%s661 + $0x20] sm:$0xff] %v612
        %667 = vst [vmem:[%s661 + $0x28] sm:$0xff] %v613
        %668 = vst [vmem:[%s661 + $0x30] sm:$0xff] %v614
        %669 = vst [vmem:[%s661 + $0x38] sm:$0xff] %v615
        %670 = vst [vmem:[%s661 + $0x40] sm:$0xff] %v616
        %671 = vst [vmem:[%s661 + $0x48] sm:$0xff] %v617
        %672 = vst [vmem:[%s661 + $0x50] sm:$0xff] %v618
        %673 = vst [vmem:[%s661 + $0x58] sm:$0xff] %v619
        %674 = vst [vmem:[%s661 + $0x60] sm:$0xff] %v620
        %675 = vst [vmem:[%s661 + $0x68] sm:$0xff] %v621
        %676 = vst [vmem:[%s661 + $0x70] sm:$0xff] %v622
        %677 = vst [vmem:[%s661 + $0x78] sm:$0xff] %v623
      $region44: #{mixed_3c.11} parent=35 // pred_fallthru
        _
      %p678 = scmp.eq.s32.totalorder %s636, 2
      // Predicated region
      $region45: #{mixed_3c.11} parent=35 // pred_check
        %p679 = pneg %p678
      $region46: #{mixed_3c.11} parent=35 // pred_check_branch
        %681 = sbr.rel (%p679) target = $region48
      $region47: #{mixed_3c.11} parent=35 // pred_region
        %s682 = scalar_lea.vmem [#allocation2], 256
        %683 = vst [vmem:[%s682] sm:$0xff] %v608
        %684 = vst [vmem:[%s682 + $0x8] sm:$0xff] %v609
        %685 = vst [vmem:[%s682 + $0x10] sm:$0xff] %v610
        %686 = vst [vmem:[%s682 + $0x18] sm:$0xff] %v611
        %687 = vst [vmem:[%s682 + $0x20] sm:$0xff] %v612
        %688 = vst [vmem:[%s682 + $0x28] sm:$0xff] %v613
        %689 = vst [vmem:[%s682 + $0x30] sm:$0xff] %v614
        %690 = vst [vmem:[%s682 + $0x38] sm:$0xff] %v615
        %691 = vst [vmem:[%s682 + $0x40] sm:$0xff] %v616
        %692 = vst [vmem:[%s682 + $0x48] sm:$0xff] %v617
        %693 = vst [vmem:[%s682 + $0x50] sm:$0xff] %v618
        %694 = vst [vmem:[%s682 + $0x58] sm:$0xff] %v619
        %695 = vst [vmem:[%s682 + $0x60] sm:$0xff] %v620
        %696 = vst [vmem:[%s682 + $0x68] sm:$0xff] %v621
        %697 = vst [vmem:[%s682 + $0x70] sm:$0xff] %v622
        %698 = vst [vmem:[%s682 + $0x78] sm:$0xff] %v623
      $region48: #{mixed_3c.11} parent=35 // pred_fallthru
        _
      %p699 = scmp.ge.s32.totalorder %s20, 2
      // Predicated region
      $region49: #{mixed_3c.11} parent=35 // pred_check
        %p700 = pneg %p699
      $region50: #{mixed_3c.11} parent=35 // pred_check_branch
        %702 = sbr.rel (%p700) target = $region52
      $region51: #{mixed_3c.11} parent=35 // pred_region
        %v703 = vld [vmem:[#allocation2] sm:$0xff]
        %v704 = vld [vmem:[#allocation2 + $0x8] sm:$0xff]
        %v705 = vld [vmem:[#allocation2 + $0x10] sm:$0xff]
        %v706 = vld [vmem:[#allocation2 + $0x18] sm:$0xff]
        %v707 = vld [vmem:[#allocation2 + $0x20] sm:$0xff]
        %v708 = vld [vmem:[#allocation2 + $0x28] sm:$0xff]
        %v709 = vld [vmem:[#allocation2 + $0x30] sm:$0xff]
        %v710 = vld [vmem:[#allocation2 + $0x38] sm:$0xff]
        %v711 = vld [vmem:[#allocation2 + $0x40] sm:$0xff]
        %v712 = vld [vmem:[#allocation2 + $0x48] sm:$0xff]
        %v713 = vld [vmem:[#allocation2 + $0x50] sm:$0xff]
        %v714 = vld [vmem:[#allocation2 + $0x58] sm:$0xff]
        %v715 = vld [vmem:[#allocation2 + $0x60] sm:$0xff]
        %v716 = vld [vmem:[#allocation2 + $0x68] sm:$0xff]
        %v717 = vld [vmem:[#allocation2 + $0x70] sm:$0xff]
        %v718 = vld [vmem:[#allocation2 + $0x78] sm:$0xff]
        %s719 = scalar_lea.vmem [#allocation2], 128
        %v720 = vld [vmem:[%s719] sm:$0xff]
        %v721 = vld [vmem:[%s719 + $0x8] sm:$0xff]
        %v722 = vld [vmem:[%s719 + $0x10] sm:$0xff]
        %v723 = vld [vmem:[%s719 + $0x18] sm:$0xff]
        %v724 = vld [vmem:[%s719 + $0x20] sm:$0xff]
        %v725 = vld [vmem:[%s719 + $0x28] sm:$0xff]
        %v726 = vld [vmem:[%s719 + $0x30] sm:$0xff]
        %v727 = vld [vmem:[%s719 + $0x38] sm:$0xff]
        %v728 = vld [vmem:[%s719 + $0x40] sm:$0xff]
        %v729 = vld [vmem:[%s719 + $0x48] sm:$0xff]
        %v730 = vld [vmem:[%s719 + $0x50] sm:$0xff]
        %v731 = vld [vmem:[%s719 + $0x58] sm:$0xff]
        %v732 = vld [vmem:[%s719 + $0x60] sm:$0xff]
        %v733 = vld [vmem:[%s719 + $0x68] sm:$0xff]
        %v734 = vld [vmem:[%s719 + $0x70] sm:$0xff]
        %v735 = vld [vmem:[%s719 + $0x78] sm:$0xff]
        %v736 = vmax.f32 %v703, %v720
        %v737 = vmax.f32 %v704, %v721
        %v738 = vmax.f32 %v705, %v722
        %v739 = vmax.f32 %v706, %v723
        %v740 = vmax.f32 %v707, %v724
        %v741 = vmax.f32 %v708, %v725
        %v742 = vmax.f32 %v709, %v726
        %v743 = vmax.f32 %v710, %v727
        %v744 = vmax.f32 %v711, %v728
        %v745 = vmax.f32 %v712, %v729
        %v746 = vmax.f32 %v713, %v730
        %v747 = vmax.f32 %v714, %v731
        %v748 = vmax.f32 %v715, %v732
        %v749 = vmax.f32 %v716, %v733
        %v750 = vmax.f32 %v717, %v734
        %v751 = vmax.f32 %v718, %v735
        %s752 = scalar_lea.vmem [#allocation2], 256
        %v753 = vld [vmem:[%s752] sm:$0xff]
        %v754 = vld [vmem:[%s752 + $0x8] sm:$0xff]
        %v755 = vld [vmem:[%s752 + $0x10] sm:$0xff]
        %v756 = vld [vmem:[%s752 + $0x18] sm:$0xff]
        %v757 = vld [vmem:[%s752 + $0x20] sm:$0xff]
        %v758 = vld [vmem:[%s752 + $0x28] sm:$0xff]
        %v759 = vld [vmem:[%s752 + $0x30] sm:$0xff]
        %v760 = vld [vmem:[%s752 + $0x38] sm:$0xff]
        %v761 = vld [vmem:[%s752 + $0x40] sm:$0xff]
        %v762 = vld [vmem:[%s752 + $0x48] sm:$0xff]
        %v763 = vld [vmem:[%s752 + $0x50] sm:$0xff]
        %v764 = vld [vmem:[%s752 + $0x58] sm:$0xff]
        %v765 = vld [vmem:[%s752 + $0x60] sm:$0xff]
        %v766 = vld [vmem:[%s752 + $0x68] sm:$0xff]
        %v767 = vld [vmem:[%s752 + $0x70] sm:$0xff]
        %v768 = vld [vmem:[%s752 + $0x78] sm:$0xff]
        %v769 = vmax.f32 %v736, %v753
        %v770 = vmax.f32 %v737, %v754
        %v771 = vmax.f32 %v738, %v755
        %v772 = vmax.f32 %v739, %v756
        %v773 = vmax.f32 %v740, %v757
        %v774 = vmax.f32 %v741, %v758
        %v775 = vmax.f32 %v742, %v759
        %v776 = vmax.f32 %v743, %v760
        %v777 = vmax.f32 %v744, %v761
        %v778 = vmax.f32 %v745, %v762
        %v779 = vmax.f32 %v746, %v763
        %v780 = vmax.f32 %v747, %v764
        %v781 = vmax.f32 %v748, %v765
        %v782 = vmax.f32 %v749, %v766
        %v783 = vmax.f32 %v750, %v767
        %v784 = vmax.f32 %v751, %v768
        %v785 = vpack.c.bf16 %v771, %v769
        %v786 = vpack.c.bf16 %v772, %v770
        %v787 = vpack.c.bf16 %v775, %v773
        %v788 = vpack.c.bf16 %v776, %v774
        %v789 = vpack.c.bf16 %v779, %v777
        %v790 = vpack.c.bf16 %v780, %v778
        %v791 = vpack.c.bf16 %v783, %v781
        %v792 = vpack.c.bf16 %v784, %v782
        %v793 = vld [vmem:[%s1] sm:$0xf]
        %v794 = vld [vmem:[%s1 + $0x4] sm:$0xf]
        %v795 = vld [vmem:[%s1 + $0x8] sm:$0xf]
        %v796 = vld [vmem:[%s1 + $0xc] sm:$0xf]
        %v797 = vld [vmem:[%s1 + $0x10] sm:$0xf]
        %v798 = vld [vmem:[%s1 + $0x14] sm:$0xf]
        %v799 = vld [vmem:[%s1 + $0x18] sm:$0xf]
        %v800 = vld [vmem:[%s1 + $0x1c] sm:$0xf]
        %v801 = vld [vmem:[%s1 + $0x20] sm:$0xf]
        %v802 = vld [vmem:[%s1 + $0x24] sm:$0xf]
        %v803 = vld [vmem:[%s1 + $0x28] sm:$0xf]
        %v804 = vld [vmem:[%s1 + $0x2c] sm:$0xf]
        %v805 = vld [vmem:[%s1 + $0x30] sm:$0xf]
        %v806 = vld [vmem:[%s1 + $0x34] sm:$0xf]
        %v807 = vld [vmem:[%s1 + $0x38] sm:$0xf]
        %v808 = vld [vmem:[%s1 + $0x3c] sm:$0xf]
        %v809 = vld [vmem:[%s1 + $0x40] sm:$0xf]
        %v810 = vld [vmem:[%s1 + $0x44] sm:$0xf]
        %v811 = vld [vmem:[%s1 + $0x48] sm:$0xf]
        %v812 = vld [vmem:[%s1 + $0x4c] sm:$0xf]
        %v813 = vld [vmem:[%s1 + $0x50] sm:$0xf]
        %v814 = vld [vmem:[%s1 + $0x54] sm:$0xf]
        %v815 = vld [vmem:[%s1 + $0x58] sm:$0xf]
        %v816 = vld [vmem:[%s1 + $0x5c] sm:$0xf]
        %v817 = vld [vmem:[%s1 + $0x60] sm:$0xf]
        %v818 = vld [vmem:[%s1 + $0x64] sm:$0xf]
        %v819 = vld [vmem:[%s1 + $0x68] sm:$0xf]
        %v820 = vld [vmem:[%s1 + $0x6c] sm:$0xf]
        %v821 = vld [vmem:[%s1 + $0x70] sm:$0xf]
        %v822 = vld [vmem:[%s1 + $0x74] sm:$0xf]
        %v823 = vld [vmem:[%s1 + $0x78] sm:$0xf]
        %v824 = vld [vmem:[%s1 + $0x7c] sm:$0xf]
        %v857 = vunpack.c.l.b16 %v793
        %v858 = vunpack.c.l.b16 %v794
        %v859 = vunpack.c.l.b16 %v795
        %v860 = vunpack.c.l.b16 %v796
        %v861 = vunpack.c.l.b16 %v797
        %v862 = vunpack.c.l.b16 %v798
        %v863 = vunpack.c.l.b16 %v799
        %v864 = vunpack.c.l.b16 %v800
        %v865 = vunpack.c.l.b16 %v801
        %v866 = vunpack.c.l.b16 %v802
        %v867 = vunpack.c.l.b16 %v803
        %v868 = vunpack.c.l.b16 %v804
        %v869 = vunpack.c.l.b16 %v805
        %v870 = vunpack.c.l.b16 %v806
        %v871 = vunpack.c.l.b16 %v807
        %v872 = vunpack.c.l.b16 %v808
        %v873 = vunpack.c.l.b16 %v809
        %v874 = vunpack.c.l.b16 %v810
        %v875 = vunpack.c.l.b16 %v811
        %v876 = vunpack.c.l.b16 %v812
        %v877 = vunpack.c.l.b16 %v813
        %v878 = vunpack.c.l.b16 %v814
        %v879 = vunpack.c.l.b16 %v815
        %v880 = vunpack.c.l.b16 %v816
        %v881 = vunpack.c.l.b16 %v817
        %v882 = vunpack.c.l.b16 %v818
        %v883 = vunpack.c.l.b16 %v819
        %v884 = vunpack.c.l.b16 %v820
        %v885 = vunpack.c.l.b16 %v821
        %v886 = vunpack.c.l.b16 %v822
        %v887 = vunpack.c.l.b16 %v823
        %v888 = vunpack.c.l.b16 %v824
        %v889 = vpack.c.b16 %v858, %v857
        %v890 = vpack.c.b16 %v860, %v859
        %v891 = vpack.c.b16 %v862, %v861
        %v892 = vpack.c.b16 %v864, %v863
        %v893 = vpack.c.b16 %v866, %v865
        %v894 = vpack.c.b16 %v868, %v867
        %v895 = vpack.c.b16 %v870, %v869
        %v896 = vpack.c.b16 %v872, %v871
        %v897 = vpack.c.b16 %v874, %v873
        %v898 = vpack.c.b16 %v876, %v875
        %v899 = vpack.c.b16 %v878, %v877
        %v900 = vpack.c.b16 %v880, %v879
        %v901 = vpack.c.b16 %v882, %v881
        %v902 = vpack.c.b16 %v884, %v883
        %v903 = vpack.c.b16 %v886, %v885
        %v904 = vpack.c.b16 %v888, %v887
        %921 = vmatprep.subr.bf16.mxu0 0
        %922 = vmatpush1.bf16.msra.mxu0 %v896
        %923 = vmatprep.subr.bf16.mxu0 0
        %924 = vmatpush1.bf16.msra.mxu0 %v895
        %925 = vmatprep.subr.bf16.mxu0 0
        %926 = vmatpush1.bf16.msra.mxu0 %v894
        %927 = vmatprep.subr.bf16.mxu0 0
        %928 = vmatpush1.bf16.msra.mxu0 %v893
        %929 = vmatprep.subr.bf16.mxu0 0
        %930 = vmatpush1.bf16.msra.mxu0 %v892
        %931 = vmatprep.subr.bf16.mxu0 0
        %932 = vmatpush1.bf16.msra.mxu0 %v891
        %933 = vmatprep.subr.bf16.mxu0 0
        %934 = vmatpush1.bf16.msra.mxu0 %v890
        %935 = vmatprep.subr.bf16.mxu0 0
        %936 = vmatpush1.bf16.msra.mxu0 %v889
        %937 = vmatprep.subr.bf16.mxu0 0
        %938 = vmatpush2.bf16.msra.mxu0 %v904
        %939 = vmatprep.subr.bf16.mxu0 0
        %940 = vmatpush2.bf16.msra.mxu0 %v903
        %941 = vmatprep.subr.bf16.mxu0 0
        %942 = vmatpush2.bf16.msra.mxu0 %v902
        %943 = vmatprep.subr.bf16.mxu0 0
        %944 = vmatpush2.bf16.msra.mxu0 %v901
        %945 = vmatprep.subr.bf16.mxu0 0
        %946 = vmatpush2.bf16.msra.mxu0 %v900
        %947 = vmatprep.subr.bf16.mxu0 0
        %948 = vmatpush2.bf16.msra.mxu0 %v899
        %949 = vmatprep.subr.bf16.mxu0 0
        %950 = vmatpush2.bf16.msra.mxu0 %v898
        %951 = vmatprep.subr.bf16.mxu0 0
        %952 = vmatpush2.bf16.msra.mxu0 %v897
        %953 = vmatprep.mubr.bf16.mxu0 %v786
        %954 = vmatmul.mubr.bf16.gmra.mxu0 %v785
        %v955 = vpop.f32.mrf.mxu0
        %v956 = vadd.f32 0.0, %v955
        %v957 = vpop.f32.mrf.mxu0
        %v958 = vpop.f32.mrf.mxu0
        %v959 = vadd.f32 0.0, %v958
        %v960 = vpop.f32.mrf.mxu0
        %961 = vmatprep.mubr.bf16.mxu0 %v788
        %962 = vmatmul.mubr.bf16.gmra.mxu0 %v787
        %v963 = vpop.f32.mrf.mxu0
        %v964 = vadd.f32 0.0, %v963
        %v965 = vpop.f32.mrf.mxu0
        %v966 = vpop.f32.mrf.mxu0
        %v967 = vadd.f32 0.0, %v966
        %v968 = vpop.f32.mrf.mxu0
        %969 = vmatprep.mubr.bf16.mxu0 %v790
        %970 = vmatmul.mubr.bf16.gmra.mxu0 %v789
        %v971 = vpop.f32.mrf.mxu0
        %v972 = vadd.f32 0.0, %v971
        %v973 = vpop.f32.mrf.mxu0
        %v974 = vpop.f32.mrf.mxu0
        %v975 = vadd.f32 0.0, %v974
        %v976 = vpop.f32.mrf.mxu0
        %977 = vmatprep.mubr.bf16.mxu0 %v792
        %978 = vmatmul.mubr.bf16.gmra.mxu0 %v791
        %v979 = vpop.f32.mrf.mxu0
        %v980 = vadd.f32 0.0, %v979
        %v981 = vpop.f32.mrf.mxu0
        %v982 = vpop.f32.mrf.mxu0
        %v983 = vadd.f32 0.0, %v982
        %v984 = vpop.f32.mrf.mxu0
        %985 = vdwg.mxu0
        %v986 = vld [vmem:[%s2] sm:$0x1]
        %v988 = vlaneseq
        %v989 = vshrl.u32 %v988, 7
        %v990 = vsub.s32 0, %v989
        %v991 = vrot.slane %v986, %v990
        %v993 = vmul.f32 %v956, %v991
        %v994 = vmul.f32 %v959, %v991
        %v995 = vmul.f32 %v964, %v991
        %v996 = vmul.f32 %v967, %v991
        %v997 = vmul.f32 %v972, %v991
        %v998 = vmul.f32 %v975, %v991
        %v999 = vmul.f32 %v980, %v991
        %v1000 = vmul.f32 %v983, %v991
        %v1001 = vld [vmem:[%s3] sm:$0x1]
        %v1003 = vlaneseq
        %v1004 = vshrl.u32 %v1003, 7
        %v1005 = vsub.s32 0, %v1004
        %v1006 = vrot.slane %v1001, %v1005
        %v1008 = vadd.f32 %v993, %v1006
        %v1009 = vadd.f32 %v994, %v1006
        %v1010 = vadd.f32 %v995, %v1006
        %v1011 = vadd.f32 %v996, %v1006
        %v1012 = vadd.f32 %v997, %v1006
        %v1013 = vadd.f32 %v998, %v1006
        %v1014 = vadd.f32 %v999, %v1006
        %v1015 = vadd.f32 %v1000, %v1006
        %v1016 = vmax.f32 %v1008, 0.0
        %v1017 = vmax.f32 %v1009, 0.0
        %v1018 = vmax.f32 %v1010, 0.0
        %v1019 = vmax.f32 %v1011, 0.0
        %v1020 = vmax.f32 %v1012, 0.0
        %v1021 = vmax.f32 %v1013, 0.0
        %v1022 = vmax.f32 %v1014, 0.0
        %v1023 = vmax.f32 %v1015, 0.0
        %vm1024 = vcmask 523264
        %1025 = vst.msk [vmem:[%s280] sm:$0xff] %vm1024, %v1016
        %1026 = vst.msk [vmem:[%s280 + $0x8] sm:$0xff] %vm1024, %v1017
        %1027 = vst.msk [vmem:[%s280 + $0x10] sm:$0xff] %vm1024, %v1018
        %1028 = vst.msk [vmem:[%s280 + $0x18] sm:$0xff] %vm1024, %v1019
        %1029 = vst.msk [vmem:[%s280 + $0x20] sm:$0xff] %vm1024, %v1020
        %1030 = vst.msk [vmem:[%s280 + $0x28] sm:$0xff] %vm1024, %v1021
        %1031 = vst.msk [vmem:[%s280 + $0x30] sm:$0xff] %vm1024, %v1022
        %1032 = vst.msk [vmem:[%s280 + $0x38] sm:$0xff] %vm1024, %v1023
      $region52: #{mixed_3c.11} parent=35 // pred_fallthru
        _
      %s1033 = ssub.s32 %s20, 2
      %p1034 = scmp.gt.s32.totalorder %s1033, 0
      %s1035 = scalar_select %p1034, %s1033, 0
      %p1036 = scmp.lt.s32.totalorder %s19, 1
      %s1037 = scalar_select %p1036, %s19, 1
      %p1038 = scmp.lt.s32.totalorder %s1035, 3
      %s1039 = scalar_select %p1038, %s1035, 3
      %s1040 = smul.addr %s1039, 8
      %s1041 = smul.addr %s1037, 32
      %s1042 = sadd.s32 %s1040, %s1041
      %s1043 = smul.addr %s1042, 8
      %s1044 = scalar_lea.vmem %s4, %s1043
      // Predicated region
      $region53: #{mixed_3c.11} parent=35 // pred_check
        %p1045 = pneg %p154
      $region54: #{mixed_3c.11} parent=35 // pred_check_branch
        %1047 = sbr.rel (%p1045) target = $region56
      $region55: #{mixed_3c.11} parent=35 // pred_region
        %s1048 = ssub.s32 %s20, 2
        %p1049 = scmp.gt.s32.totalorder %s1048, 0
        %s1050 = scalar_select %p1049, %s1048, 0
      $region56: #{mixed_3c.11} parent=35 // pred_fallthru
        _
    $region36: #{mixed_3c.11} parent=5 // pred_fallthru
      _
    %p1051 = scmp.le.s32.totalorder 2, %s10
    // Predicated region
    $region57: #{mixed_3c.11} parent=5 // pred_check
      %p1052 = pneg %p1051
    $region58: #{mixed_3c.11} parent=5 // pred_check_branch
      %1054 = sbr.rel (%p1052) target = $region60
    $region59: #{mixed_3c.11} parent=5 // pred_region
      %s1055 = ssub.s32 %s10, 2
      // Predicated region
      $region61: #{mixed_3c.11} parent=59 // pred_check
        %p1056 = pneg %p160
      $region62: #{mixed_3c.11} parent=59 // pred_check_branch
        %1058 = sbr.rel (%p1056) target = $region64
      $region63: #{mixed_3c.11} parent=59 // pred_region
        %s1059 = ssub.s32 %s22, 2
        %p1060 = scmp.gt.s32.totalorder %s1059, 0
        %s1061 = scalar_select %p1060, %s1059, 0
        %p1062 = scmp.lt.s32.totalorder %s21, 1
        %s1063 = scalar_select %p1062, %s21, 1
        %p1064 = scmp.lt.s32.totalorder %s1061, 3
        %s1065 = scalar_select %p1064, %s1061, 3
        %s1066 = smul.addr %s1065, 8
        %s1067 = smul.addr %s1063, 32
        %s1068 = sadd.s32 %s1066, %s1067
        %s1069 = smul.addr %s1068, 8
        %s1070 = scalar_lea.vmem %s4, %s1069
      $region64: #{mixed_3c.11} parent=59 // pred_fallthru
        _
    $region60: #{mixed_3c.11} parent=5 // pred_fallthru
      _
  $region6: #{mixed_3c.11} parent=0 // loop_footer
    %s14 = sadd.s32 1, %s10
  $region7: #{mixed_3c.11} parent=0 // loop_footer_branch
    %9 = sbr.rel target = $region3
  $region8: #{mixed_3c.11} parent=0 // loop_exit
    _

// kernel: mixed_3c.10
$region0: #{mixed_3c.10}
  #allocation0 [shape = 'u32[]', space=smem, size = 0x4, offset = 0x4, fixed_abs, tag = 'smem constant byte address 0x4 - core index']
  #allocation1 [shape = 'u32[144,128]{1,0:T(1,128)}', space=vmem, size = 0x12000, scoped, tag = 'internal scratch']
  %s0 = inlined_call_operand.vmem [shape: bf16[2,4,64,128], index: 0, kind: input, shape index: {}]
  %s1 = inlined_call_operand.vmem [shape: bf16[384,128], index: 1, kind: input, shape index: {}]
  %s2 = inlined_call_operand.vmem [shape: f32[1,128], index: 2, kind: input, shape index: {}]
  %s3 = inlined_call_operand.vmem [shape: f32[1,128], index: 3, kind: input, shape index: {}]
  %s4 = inlined_call_operand.vmem [shape: f32[2,4,64,128], index: 4, kind: output, shape index: {}]
  %s5 = sld [smem:[#allocation0]]
  $region49: #{mixed_3c.10} parent=0
    _
  %s7 = ssub.s32 1, %s5
  %s8 = scalar_select 0, %s7, %s5
  loop: start=0, step=1, limit=4
  $region2: #{mixed_3c.10} parent=0 // loop_pre_header
    _
  $region3: #{mixed_3c.10} parent=0 // loop_header
    %s10 = sphi 0, %s14
    %p11 = scmp.ge.s32.totalorder %s10, 4
    %s17 = sphi 0, %s29
    %s18 = sphi 0, %s25
    %s19 = sphi 0, %s17
    %s20 = sphi 0, %s18
    %s21 = sphi 0, %s19
    %s22 = sphi 0, %s20
    %s34 = sphi 0, %s36
    %s37 = sphi 0, %s34
    %s38 = sphi 0, %s37
    %s54 = sphi 0, %s38
    %s58 = sphi 0, %s58
    %s60 = sphi 0, %s58
    %s61 = sphi 0, %s60
    %s75 = sphi 0, %s61
    %s79 = sphi 0, %s79
    %s81 = sphi 0, %s79
    %s82 = sphi 0, %s81
    %s96 = sphi 0, %s82
    %s100 = sphi 0, %s100
    %s102 = sphi 0, %s100
    %s103 = sphi 0, %s102
    %s117 = sphi 0, %s103
    %s125 = sphi 0, %s127
    %s128 = sphi 0, %s125
    %s129 = sphi 0, %s128
    %s145 = sphi 0, %s129
  $region4: #{mixed_3c.10} parent=0 // loop_header_branch
    %13 = sbr.rel (%p11) target = $region8
  $region5: #{mixed_3c.10} parent=0 // loop_body
    %s15 = ssub.s32 %s10, 1
    %s16 = ssub.s32 %s10, 2
    %s23 = sadd.s32 1, %s18
    %p24 = scmp.ge.s32.totalorder %s23, 1
    %s25 = scalar_select %p24, 0, %s23
    %s26 = sadd.s32 1, %s17
    %s27 = scalar_select %p24, %s26, %s17
    %p28 = scmp.ge.s32.totalorder %s27, 2
    %s29 = scalar_select %p28, 0, %s27
    %s30 = ssub.s32 %s17, %s29
    %s31 = ssub.s32 %s18, %s25
    %s32 = sor.u32 %s30, %s31
    %p33 = scmp.eq.s32.totalorder %s32, 0
    %s35 = sadd.s32 %s34, 1
    %s36 = scalar_select %p33, %s34, %s35
    %p39 = pneg %p33
    %p40 = scmp.eq.s32.totalorder %s10, 1
    %p41 = por %p39, %p40
    %p42 = scmp.ne.s32.totalorder %s34, %s37
    %p43 = scmp.eq.s32.totalorder %s10, 0
    %p44 = por %p42, %p43
    %p45 = scmp.ne.s32.totalorder %s34, %s37
    %p46 = scmp.eq.s32.totalorder %s15, 1
    %p47 = por %p45, %p46
    %p48 = scmp.ne.s32.totalorder %s37, %s38
    %p49 = scmp.eq.s32.totalorder %s15, 0
    %p50 = por %p48, %p49
    %p51 = scmp.ne.s32.totalorder %s37, %s38
    %p52 = scmp.eq.s32.totalorder %s16, 1
    %p53 = por %p51, %p52
    %p55 = scmp.ne.s32.totalorder %s38, %s54
    %p56 = scmp.eq.s32.totalorder %s16, 0
    %p57 = por %p55, %p56
    %s59 = sadd.s32 %s58, 1
    %p62 = scmp.eq.s32.totalorder %s10, 1
    %p63 = scmp.ne.s32.totalorder %s58, %s60
    %p64 = scmp.eq.s32.totalorder %s10, 0
    %p65 = por %p63, %p64
    %p66 = scmp.ne.s32.totalorder %s58, %s60
    %p67 = scmp.eq.s32.totalorder %s15, 1
    %p68 = por %p66, %p67
    %p69 = scmp.ne.s32.totalorder %s60, %s61
    %p70 = scmp.eq.s32.totalorder %s15, 0
    %p71 = por %p69, %p70
    %p72 = scmp.ne.s32.totalorder %s60, %s61
    %p73 = scmp.eq.s32.totalorder %s16, 1
    %p74 = por %p72, %p73
    %p76 = scmp.ne.s32.totalorder %s61, %s75
    %p77 = scmp.eq.s32.totalorder %s16, 0
    %p78 = por %p76, %p77
    %s80 = sadd.s32 %s79, 1
    %p83 = scmp.eq.s32.totalorder %s10, 1
    %p84 = scmp.ne.s32.totalorder %s79, %s81
    %p85 = scmp.eq.s32.totalorder %s10, 0
    %p86 = por %p84, %p85
    %p87 = scmp.ne.s32.totalorder %s79, %s81
    %p88 = scmp.eq.s32.totalorder %s15, 1
    %p89 = por %p87, %p88
    %p90 = scmp.ne.s32.totalorder %s81, %s82
    %p91 = scmp.eq.s32.totalorder %s15, 0
    %p92 = por %p90, %p91
    %p93 = scmp.ne.s32.totalorder %s81, %s82
    %p94 = scmp.eq.s32.totalorder %s16, 1
    %p95 = por %p93, %p94
    %p97 = scmp.ne.s32.totalorder %s82, %s96
    %p98 = scmp.eq.s32.totalorder %s16, 0
    %p99 = por %p97, %p98
    %s101 = sadd.s32 %s100, 1
    %p104 = scmp.eq.s32.totalorder %s10, 1
    %p105 = scmp.ne.s32.totalorder %s100, %s102
    %p106 = scmp.eq.s32.totalorder %s10, 0
    %p107 = por %p105, %p106
    %p108 = scmp.ne.s32.totalorder %s100, %s102
    %p109 = scmp.eq.s32.totalorder %s15, 1
    %p110 = por %p108, %p109
    %p111 = scmp.ne.s32.totalorder %s102, %s103
    %p112 = scmp.eq.s32.totalorder %s15, 0
    %p113 = por %p111, %p112
    %p114 = scmp.ne.s32.totalorder %s102, %s103
    %p115 = scmp.eq.s32.totalorder %s16, 1
    %p116 = por %p114, %p115
    %p118 = scmp.ne.s32.totalorder %s103, %s117
    %p119 = scmp.eq.s32.totalorder %s16, 0
    %p120 = por %p118, %p119
    %s121 = ssub.s32 %s17, %s29
    %s122 = ssub.s32 %s18, %s25
    %s123 = sor.u32 %s121, %s122
    %p124 = scmp.eq.s32.totalorder %s123, 0
    %s126 = sadd.s32 %s125, 1
    %s127 = scalar_select %p124, %s125, %s126
    %p130 = pneg %p124
    %p131 = scmp.eq.s32.totalorder %s10, 1
    %p132 = por %p130, %p131
    %p133 = scmp.ne.s32.totalorder %s125, %s128
    %p134 = scmp.eq.s32.totalorder %s10, 0
    %p135 = por %p133, %p134
    %p136 = scmp.ne.s32.totalorder %s125, %s128
    %p137 = scmp.eq.s32.totalorder %s15, 1
    %p138 = por %p136, %p137
    %p139 = scmp.ne.s32.totalorder %s128, %s129
    %p140 = scmp.eq.s32.totalorder %s15, 0
    %p141 = por %p139, %p140
    %p142 = scmp.ne.s32.totalorder %s128, %s129
    %p143 = scmp.eq.s32.totalorder %s16, 1
    %p144 = por %p142, %p143
    %p146 = scmp.ne.s32.totalorder %s129, %s145
    %p147 = scmp.eq.s32.totalorder %s16, 0
    %p148 = por %p146, %p147
    %p149 = scmp.le.s32.totalorder 1, %s10
    %p150 = scmp.lt.s32.totalorder %s10, 3
    %p151 = pnand %p149, %p150
    %p152 = pneg %p151
    // Predicated region
    $region9: #{mixed_3c.10} parent=5 // pred_check
      _
    $region10: #{mixed_3c.10} parent=5 // pred_check_branch
      %154 = sbr.rel (%p151) target = $region12
    $region11: #{mixed_3c.10} parent=5 // pred_region
      %s155 = ssub.s32 %s10, 1
      // Predicated region
      $region13: #{mixed_3c.10} parent=11 // pred_check
        %p156 = pneg %p71
      $region14: #{mixed_3c.10} parent=11 // pred_check_branch
        %158 = sbr.rel (%p156) target = $region16
      $region15: #{mixed_3c.10} parent=11 // pred_region
        _
      $region16: #{mixed_3c.10} parent=11 // pred_fallthru
        _
      // Predicated region
      $region17: #{mixed_3c.10} parent=11 // pred_check
        %p159 = pneg %p92
      $region18: #{mixed_3c.10} parent=11 // pred_check_branch
        %161 = sbr.rel (%p159) target = $region20
      $region19: #{mixed_3c.10} parent=11 // pred_region
        _
      $region20: #{mixed_3c.10} parent=11 // pred_fallthru
        _
      // Predicated region
      $region21: #{mixed_3c.10} parent=11 // pred_check
        %p162 = pneg %p113
      $region22: #{mixed_3c.10} parent=11 // pred_check_branch
        %164 = sbr.rel (%p162) target = $region24
      $region23: #{mixed_3c.10} parent=11 // pred_region
        _
      $region24: #{mixed_3c.10} parent=11 // pred_fallthru
        _
    $region12: #{mixed_3c.10} parent=5 // pred_fallthru
      _
    %p165 = scmp.lt.s32.totalorder %s10, 2
    // Predicated region
    $region25: #{mixed_3c.10} parent=5 // pred_check
      %p166 = pneg %p165
    $region26: #{mixed_3c.10} parent=5 // pred_check_branch
      %168 = sbr.rel (%p166) target = $region28
    $region27: #{mixed_3c.10} parent=5 // pred_region
      // Predicated region
      $region29: #{mixed_3c.10} parent=27 // pred_check
        %p169 = pneg %p44
      $region30: #{mixed_3c.10} parent=27 // pred_check_branch
        %171 = sbr.rel (%p169) target = $region32
      $region31: #{mixed_3c.10} parent=27 // pred_region
        %s172 = smul.u32 8, %s18
        %p173 = scmp.lt.s32.totalorder %s17, 1
        %s174 = scalar_select %p173, %s17, 1
        %p175 = scmp.lt.s32.totalorder %s172, 7
        %s176 = scalar_select %p175, %s172, 7
        %s177 = smul.addr %s174, 32
        %s178 = sadd.s32 %s176, %s177
        %s179 = smul.addr %s178, 4
        %s180 = scalar_lea.vmem %s0, %s179
        %s181 = smul.u32 8, %s18
      $region32: #{mixed_3c.10} parent=27 // pred_fallthru
        _
    $region28: #{mixed_3c.10} parent=5 // pred_fallthru
      _
    %p182 = scmp.le.s32.totalorder 1, %s10
    %p183 = scmp.lt.s32.totalorder %s10, 3
    %p184 = pnand %p182, %p183
    %p185 = pneg %p184
    // Predicated region
    $region33: #{mixed_3c.10} parent=5 // pred_check
      _
    $region34: #{mixed_3c.10} parent=5 // pred_check_branch
      %187 = sbr.rel (%p184) target = $region36
    $region35: #{mixed_3c.10} parent=5 // pred_region
      %s188 = ssub.s32 %s10, 1
      %s189 = smul.u32 8, %s20
      %p190 = scmp.lt.s32.totalorder %s19, 1
      %s191 = scalar_select %p190, %s19, 1
      %p192 = scmp.lt.s32.totalorder %s189, 7
      %s193 = scalar_select %p192, %s189, 7
      %s194 = smul.addr %s191, 32
      %s195 = sadd.s32 %s193, %s194
      %s196 = smul.addr %s195, 4
      %s197 = scalar_lea.vmem %s0, %s196
      %p198 = pneg %p50
      %p199 = pneg %p47
      %p200 = pneg %p71
      %p201 = pneg %p68
      %p202 = pneg %p92
      %p203 = pneg %p89
      %p204 = pneg %p113
      %p205 = pneg %p110
      %p206 = pneg %p141
      %p207 = pneg %p138
      %s208 = smul.u32 8, %s20
      %p209 = scmp.lt.s32.totalorder %s19, 1
      %s210 = scalar_select %p209, %s19, 1
      %p211 = scmp.lt.s32.totalorder %s208, 7
      %s212 = scalar_select %p211, %s208, 7
      %s213 = smul.addr %s210, 32
      %s214 = sadd.s32 %s212, %s213
      %s215 = smul.addr %s214, 8
      %s216 = scalar_lea.vmem %s4, %s215
      %s217 = smul.u32 8, %s20
      %p218 = scmp.lt.s32.totalorder %s19, 1
      %s219 = scalar_select %p218, %s19, 1
      %p220 = scmp.lt.s32.totalorder %s217, 7
      %s221 = scalar_select %p220, %s217, 7
      %s222 = smul.addr %s219, 32
      %s223 = sadd.s32 %s221, %s222
      %s224 = smul.addr %s223, 4
      %s225 = scalar_lea.vmem %s0, %s224
      %s226 = smul.u32 8, %s20
      %s227 = smul.u32 8, %s20
      %p228 = scmp.lt.s32.totalorder %s19, 1
      %s229 = scalar_select %p228, %s19, 1
      %p230 = scmp.lt.s32.totalorder %s227, 7
      %s231 = scalar_select %p230, %s227, 7
      %s232 = smul.addr %s229, 32
      %s233 = sadd.s32 %s231, %s232
      %s234 = smul.addr %s233, 8
      %s235 = scalar_lea.vmem %s4, %s234
      %s236 = smul.u32 8, %s20
      %v238 = vld [vmem:[%s225] sm:$0xf]
      %v239 = vld [vmem:[%s225 + $0x4] sm:$0xf]
      %v240 = vld [vmem:[%s225 + $0x8] sm:$0xf]
      %v241 = vld [vmem:[%s225 + $0xc] sm:$0xf]
      %v242 = vld [vmem:[%s225 + $0x10] sm:$0xf]
      %v243 = vld [vmem:[%s225 + $0x14] sm:$0xf]
      %v244 = vld [vmem:[%s225 + $0x18] sm:$0xf]
      %v245 = vld [vmem:[%s225 + $0x1c] sm:$0xf]
      %v246 = vld [vmem:[%s225 + $0x20] sm:$0xf]
      %v247 = vld [vmem:[%s225 + $0x24] sm:$0xf]
      %v248 = vld [vmem:[%s225 + $0x28] sm:$0xf]
      %v249 = vld [vmem:[%s225 + $0x2c] sm:$0xf]
      %v250 = vld [vmem:[%s225 + $0x30] sm:$0xf]
      %v251 = vld [vmem:[%s225 + $0x34] sm:$0xf]
      %v252 = vld [vmem:[%s225 + $0x38] sm:$0xf]
      %v253 = vld [vmem:[%s225 + $0x3c] sm:$0xf]
      %v254 = vld [vmem:[%s225 + $0x40] sm:$0xf]
      %v255 = vld [vmem:[%s225 + $0x44] sm:$0xf]
      %v256 = vld [vmem:[%s225 + $0x48] sm:$0xf]
      %v257 = vld [vmem:[%s225 + $0x4c] sm:$0xf]
      %v258 = vld [vmem:[%s225 + $0x50] sm:$0xf]
      %v259 = vld [vmem:[%s225 + $0x54] sm:$0xf]
      %v260 = vld [vmem:[%s225 + $0x58] sm:$0xf]
      %v261 = vld [vmem:[%s225 + $0x5c] sm:$0xf]
      %v262 = vld [vmem:[%s225 + $0x60] sm:$0xf]
      %v263 = vld [vmem:[%s225 + $0x64] sm:$0xf]
      %v264 = vld [vmem:[%s225 + $0x68] sm:$0xf]
      %v265 = vld [vmem:[%s225 + $0x6c] sm:$0xf]
      %v266 = vld [vmem:[%s225 + $0x70] sm:$0xf]
      %v267 = vld [vmem:[%s225 + $0x74] sm:$0xf]
      %v268 = vld [vmem:[%s225 + $0x78] sm:$0xf]
      %v269 = vld [vmem:[%s225 + $0x7c] sm:$0xf]
      %v302 = vunpack.c.l.b16 %v238
      %v303 = vunpack.c.l.b16 %v239
      %v304 = vunpack.c.l.b16 %v240
      %v305 = vunpack.c.l.b16 %v241
      %v306 = vunpack.c.l.b16 %v242
      %v307 = vunpack.c.l.b16 %v243
      %v308 = vunpack.c.l.b16 %v244
      %v309 = vunpack.c.l.b16 %v245
      %v310 = vunpack.c.l.b16 %v246
      %v311 = vunpack.c.l.b16 %v247
      %v312 = vunpack.c.l.b16 %v248
      %v313 = vunpack.c.l.b16 %v249
      %v314 = vunpack.c.l.b16 %v250
      %v315 = vunpack.c.l.b16 %v251
      %v316 = vunpack.c.l.b16 %v252
      %v317 = vunpack.c.l.b16 %v253
      %v318 = vunpack.c.l.b16 %v254
      %v319 = vunpack.c.l.b16 %v255
      %v320 = vunpack.c.l.b16 %v256
      %v321 = vunpack.c.l.b16 %v257
      %v322 = vunpack.c.l.b16 %v258
      %v323 = vunpack.c.l.b16 %v259
      %v324 = vunpack.c.l.b16 %v260
      %v325 = vunpack.c.l.b16 %v261
      %v326 = vunpack.c.l.b16 %v262
      %v327 = vunpack.c.l.b16 %v263
      %v328 = vunpack.c.l.b16 %v264
      %v329 = vunpack.c.l.b16 %v265
      %v330 = vunpack.c.l.b16 %v266
      %v331 = vunpack.c.l.b16 %v267
      %v332 = vunpack.c.l.b16 %v268
      %v333 = vunpack.c.l.b16 %v269
      %v334 = vpack.c.b16 %v303, %v302
      %v335 = vpack.c.b16 %v305, %v304
      %v336 = vpack.c.b16 %v307, %v306
      %v337 = vpack.c.b16 %v309, %v308
      %v338 = vpack.c.b16 %v311, %v310
      %v339 = vpack.c.b16 %v313, %v312
      %v340 = vpack.c.b16 %v315, %v314
      %v341 = vpack.c.b16 %v317, %v316
      %v342 = vpack.c.b16 %v319, %v318
      %v343 = vpack.c.b16 %v321, %v320
      %v344 = vpack.c.b16 %v323, %v322
      %v345 = vpack.c.b16 %v325, %v324
      %v346 = vpack.c.b16 %v327, %v326
      %v347 = vpack.c.b16 %v329, %v328
      %v348 = vpack.c.b16 %v331, %v330
      %v349 = vpack.c.b16 %v333, %v332
      %v366 = vld [vmem:[%s1] sm:$0xf]
      %v367 = vld [vmem:[%s1 + $0x4] sm:$0xf]
      %v368 = vld [vmem:[%s1 + $0x8] sm:$0xf]
      %v369 = vld [vmem:[%s1 + $0xc] sm:$0xf]
      %v370 = vld [vmem:[%s1 + $0x10] sm:$0xf]
      %v371 = vld [vmem:[%s1 + $0x14] sm:$0xf]
      %v372 = vld [vmem:[%s1 + $0x18] sm:$0xf]
      %v373 = vld [vmem:[%s1 + $0x1c] sm:$0xf]
      %v374 = vld [vmem:[%s1 + $0x20] sm:$0xf]
      %v375 = vld [vmem:[%s1 + $0x24] sm:$0xf]
      %v376 = vld [vmem:[%s1 + $0x28] sm:$0xf]
      %v377 = vld [vmem:[%s1 + $0x2c] sm:$0xf]
      %v378 = vld [vmem:[%s1 + $0x30] sm:$0xf]
      %v379 = vld [vmem:[%s1 + $0x34] sm:$0xf]
      %v380 = vld [vmem:[%s1 + $0x38] sm:$0xf]
      %v381 = vld [vmem:[%s1 + $0x3c] sm:$0xf]
      %v382 = vld [vmem:[%s1 + $0x40] sm:$0xf]
      %v383 = vld [vmem:[%s1 + $0x44] sm:$0xf]
      %v384 = vld [vmem:[%s1 + $0x48] sm:$0xf]
      %v385 = vld [vmem:[%s1 + $0x4c] sm:$0xf]
      %v386 = vld [vmem:[%s1 + $0x50] sm:$0xf]
      %v387 = vld [vmem:[%s1 + $0x54] sm:$0xf]
      %v388 = vld [vmem:[%s1 + $0x58] sm:$0xf]
      %v389 = vld [vmem:[%s1 + $0x5c] sm:$0xf]
      %v390 = vld [vmem:[%s1 + $0x60] sm:$0xf]
      %v391 = vld [vmem:[%s1 + $0x64] sm:$0xf]
      %v392 = vld [vmem:[%s1 + $0x68] sm:$0xf]
      %v393 = vld [vmem:[%s1 + $0x6c] sm:$0xf]
      %v394 = vld [vmem:[%s1 + $0x70] sm:$0xf]
      %v395 = vld [vmem:[%s1 + $0x74] sm:$0xf]
      %v396 = vld [vmem:[%s1 + $0x78] sm:$0xf]
      %v397 = vld [vmem:[%s1 + $0x7c] sm:$0xf]
      %v398 = vld [vmem:[%s1 + $0x80] sm:$0xf]
      %v399 = vld [vmem:[%s1 + $0x84] sm:$0xf]
      %v400 = vld [vmem:[%s1 + $0x88] sm:$0xf]
      %v401 = vld [vmem:[%s1 + $0x8c] sm:$0xf]
      %v402 = vld [vmem:[%s1 + $0x90] sm:$0xf]
      %v403 = vld [vmem:[%s1 + $0x94] sm:$0xf]
      %v404 = vld [vmem:[%s1 + $0x98] sm:$0xf]
      %v405 = vld [vmem:[%s1 + $0x9c] sm:$0xf]
      %v406 = vld [vmem:[%s1 + $0xa0] sm:$0xf]
      %v407 = vld [vmem:[%s1 + $0xa4] sm:$0xf]
      %v408 = vld [vmem:[%s1 + $0xa8] sm:$0xf]
      %v409 = vld [vmem:[%s1 + $0xac] sm:$0xf]
      %v410 = vld [vmem:[%s1 + $0xb0] sm:$0xf]
      %v411 = vld [vmem:[%s1 + $0xb4] sm:$0xf]
      %v412 = vld [vmem:[%s1 + $0xb8] sm:$0xf]
      %v413 = vld [vmem:[%s1 + $0xbc] sm:$0xf]
      %v462 = vunpack.c.l.b16 %v366
      %v463 = vunpack.c.l.b16 %v367
      %v464 = vunpack.c.l.b16 %v368
      %v465 = vunpack.c.l.b16 %v369
      %v466 = vunpack.c.l.b16 %v370
      %v467 = vunpack.c.l.b16 %v371
      %v468 = vunpack.c.l.b16 %v372
      %v469 = vunpack.c.l.b16 %v373
      %v470 = vunpack.c.l.b16 %v374
      %v471 = vunpack.c.l.b16 %v375
      %v472 = vunpack.c.l.b16 %v376
      %v473 = vunpack.c.l.b16 %v377
      %v474 = vunpack.c.l.b16 %v378
      %v475 = vunpack.c.l.b16 %v379
      %v476 = vunpack.c.l.b16 %v380
      %v477 = vunpack.c.l.b16 %v381
      %v478 = vunpack.c.l.b16 %v382
      %v479 = vunpack.c.l.b16 %v383
      %v480 = vunpack.c.l.b16 %v384
      %v481 = vunpack.c.l.b16 %v385
      %v482 = vunpack.c.l.b16 %v386
      %v483 = vunpack.c.l.b16 %v387
      %v484 = vunpack.c.l.b16 %v388
      %v485 = vunpack.c.l.b16 %v389
      %v486 = vunpack.c.l.b16 %v390
      %v487 = vunpack.c.l.b16 %v391
      %v488 = vunpack.c.l.b16 %v392
      %v489 = vunpack.c.l.b16 %v393
      %v490 = vunpack.c.l.b16 %v394
      %v491 = vunpack.c.l.b16 %v395
      %v492 = vunpack.c.l.b16 %v396
      %v493 = vunpack.c.l.b16 %v397
      %v494 = vunpack.c.l.b16 %v398
      %v495 = vunpack.c.l.b16 %v399
      %v496 = vunpack.c.l.b16 %v400
      %v497 = vunpack.c.l.b16 %v401
      %v498 = vunpack.c.l.b16 %v402
      %v499 = vunpack.c.l.b16 %v403
      %v500 = vunpack.c.l.b16 %v404
      %v501 = vunpack.c.l.b16 %v405
      %v502 = vunpack.c.l.b16 %v406
      %v503 = vunpack.c.l.b16 %v407
      %v504 = vunpack.c.l.b16 %v408
      %v505 = vunpack.c.l.b16 %v409
      %v506 = vunpack.c.l.b16 %v410
      %v507 = vunpack.c.l.b16 %v411
      %v508 = vunpack.c.l.b16 %v412
      %v509 = vunpack.c.l.b16 %v413
      %v510 = vpack.c.b16 %v463, %v462
      %v511 = vpack.c.b16 %v465, %v464
      %v512 = vpack.c.b16 %v467, %v466
      %v513 = vpack.c.b16 %v469, %v468
      %v514 = vpack.c.b16 %v471, %v470
      %v515 = vpack.c.b16 %v473, %v472
      %v516 = vpack.c.b16 %v475, %v474
      %v517 = vpack.c.b16 %v477, %v476
      %v518 = vpack.c.b16 %v479, %v478
      %v519 = vpack.c.b16 %v481, %v480
      %v520 = vpack.c.b16 %v483, %v482
      %v521 = vpack.c.b16 %v485, %v484
      %v522 = vpack.c.b16 %v487, %v486
      %v523 = vpack.c.b16 %v489, %v488
      %v524 = vpack.c.b16 %v491, %v490
      %v525 = vpack.c.b16 %v493, %v492
      %v526 = vpack.c.b16 %v495, %v494
      %v527 = vpack.c.b16 %v497, %v496
      %v528 = vpack.c.b16 %v499, %v498
      %v529 = vpack.c.b16 %v501, %v500
      %v530 = vpack.c.b16 %v503, %v502
      %v531 = vpack.c.b16 %v505, %v504
      %v532 = vpack.c.b16 %v507, %v506
      %v533 = vpack.c.b16 %v509, %v508
      %558 = vmatprep.subr.bf16.mxu0 0
      %559 = vmatpush1.bf16.msra.mxu0 %v517
      %560 = vmatprep.subr.bf16.mxu0 0
      %561 = vmatpush1.bf16.msra.mxu0 %v516
      %562 = vmatprep.subr.bf16.mxu0 0
      %563 = vmatpush1.bf16.msra.mxu0 %v515
      %564 = vmatprep.subr.bf16.mxu0 0
      %565 = vmatpush1.bf16.msra.mxu0 %v514
      %566 = vmatprep.subr.bf16.mxu0 0
      %567 = vmatpush1.bf16.msra.mxu0 %v513
      %568 = vmatprep.subr.bf16.mxu0 0
      %569 = vmatpush1.bf16.msra.mxu0 %v512
      %570 = vmatprep.subr.bf16.mxu0 0
      %571 = vmatpush1.bf16.msra.mxu0 %v511
      %572 = vmatprep.subr.bf16.mxu0 0
      %573 = vmatpush1.bf16.msra.mxu0 %v510
      %574 = vmatprep.subr.bf16.mxu0 0
      %575 = vmatpush2.bf16.msra.mxu0 %v525
      %576 = vmatprep.subr.bf16.mxu0 0
      %577 = vmatpush2.bf16.msra.mxu0 %v524
      %578 = vmatprep.subr.bf16.mxu0 0
      %579 = vmatpush2.bf16.msra.mxu0 %v523
      %580 = vmatprep.subr.bf16.mxu0 0
      %581 = vmatpush2.bf16.msra.mxu0 %v522
      %582 = vmatprep.subr.bf16.mxu0 0
      %583 = vmatpush2.bf16.msra.mxu0 %v521
      %584 = vmatprep.subr.bf16.mxu0 0
      %585 = vmatpush2.bf16.msra.mxu0 %v520
      %586 = vmatprep.subr.bf16.mxu0 0
      %587 = vmatpush2.bf16.msra.mxu0 %v519
      %588 = vmatprep.subr.bf16.mxu0 0
      %589 = vmatpush2.bf16.msra.mxu0 %v518
      %590 = vmatprep.mubr.bf16.mxu0 %v334
      %591 = vmatmul.mubr.bf16.gmra.mxu0 0
      %v592 = vpop.f32.mrf.mxu0
      %v593 = vadd.f32 0.0, %v592
      %v594 = vpop.f32.mrf.mxu0
      %v595 = vpop.f32.mrf.mxu0
      %v596 = vadd.f32 0.0, %v595
      %v597 = vpop.f32.mrf.mxu0
      %598 = vmatprep.mubr.bf16.mxu0 %v335
      %599 = vmatmul.mubr.bf16.gmra.mxu0 0
      %v600 = vpop.f32.mrf.mxu0
      %v601 = vadd.f32 0.0, %v600
      %v602 = vpop.f32.mrf.mxu0
      %v603 = vpop.f32.mrf.mxu0
      %v604 = vadd.f32 0.0, %v603
      %v605 = vpop.f32.mrf.mxu0
      %606 = vmatprep.mubr.bf16.mxu0 %v336
      %607 = vmatmul.mubr.bf16.gmra.mxu0 0
      %v608 = vpop.f32.mrf.mxu0
      %v609 = vadd.f32 0.0, %v608
      %v610 = vpop.f32.mrf.mxu0
      %v611 = vpop.f32.mrf.mxu0
      %v612 = vadd.f32 0.0, %v611
      %v613 = vpop.f32.mrf.mxu0
      %614 = vmatprep.mubr.bf16.mxu0 %v337
      %615 = vmatmul.mubr.bf16.gmra.mxu0 0
      %v616 = vpop.f32.mrf.mxu0
      %v617 = vadd.f32 0.0, %v616
      %v618 = vpop.f32.mrf.mxu0
      %v619 = vpop.f32.mrf.mxu0
      %v620 = vadd.f32 0.0, %v619
      %v621 = vpop.f32.mrf.mxu0
      %622 = vmatprep.mubr.bf16.mxu0 %v338
      %623 = vmatmul.mubr.bf16.gmra.mxu0 %v334
      %v624 = vpop.f32.mrf.mxu0
      %v625 = vadd.f32 0.0, %v624
      %v626 = vpop.f32.mrf.mxu0
      %v627 = vpop.f32.mrf.mxu0
      %v628 = vadd.f32 0.0, %v627
      %v629 = vpop.f32.mrf.mxu0
      %630 = vmatprep.mubr.bf16.mxu0 %v339
      %631 = vmatmul.mubr.bf16.gmra.mxu0 %v335
      %v632 = vpop.f32.mrf.mxu0
      %v633 = vadd.f32 0.0, %v632
      %v634 = vpop.f32.mrf.mxu0
      %v635 = vpop.f32.mrf.mxu0
      %v636 = vadd.f32 0.0, %v635
      %v637 = vpop.f32.mrf.mxu0
      %638 = vmatprep.mubr.bf16.mxu0 %v340
      %639 = vmatmul.mubr.bf16.gmra.mxu0 %v336
      %v640 = vpop.f32.mrf.mxu0
      %v641 = vadd.f32 0.0, %v640
      %v642 = vpop.f32.mrf.mxu0
      %v643 = vpop.f32.mrf.mxu0
      %v644 = vadd.f32 0.0, %v643
      %v645 = vpop.f32.mrf.mxu0
      %646 = vmatprep.mubr.bf16.mxu0 %v341
      %647 = vmatmul.mubr.bf16.gmra.mxu0 %v337
      %v648 = vpop.f32.mrf.mxu0
      %v649 = vadd.f32 0.0, %v648
      %v650 = vpop.f32.mrf.mxu0
      %v651 = vpop.f32.mrf.mxu0
      %v652 = vadd.f32 0.0, %v651
      %v653 = vpop.f32.mrf.mxu0
      %654 = vmatprep.mubr.bf16.mxu0 %v342
      %655 = vmatmul.mubr.bf16.gmra.mxu0 %v338
      %v656 = vpop.f32.mrf.mxu0
      %v657 = vadd.f32 0.0, %v656
      %v658 = vpop.f32.mrf.mxu0
      %v659 = vpop.f32.mrf.mxu0
      %v660 = vadd.f32 0.0, %v659
      %v661 = vpop.f32.mrf.mxu0
      %662 = vmatprep.mubr.bf16.mxu0 %v343
      %663 = vmatmul.mubr.bf16.gmra.mxu0 %v339
      %v664 = vpop.f32.mrf.mxu0
      %v665 = vadd.f32 0.0, %v664
      %v666 = vpop.f32.mrf.mxu0
      %v667 = vpop.f32.mrf.mxu0
      %v668 = vadd.f32 0.0, %v667
      %v669 = vpop.f32.mrf.mxu0
      %670 = vmatprep.mubr.bf16.mxu0 %v344
      %671 = vmatmul.mubr.bf16.gmra.mxu0 %v340
      %v672 = vpop.f32.mrf.mxu0
      %v673 = vadd.f32 0.0, %v672
      %v674 = vpop.f32.mrf.mxu0
      %v675 = vpop.f32.mrf.mxu0
      %v676 = vadd.f32 0.0, %v675
      %v677 = vpop.f32.mrf.mxu0
      %678 = vmatprep.mubr.bf16.mxu0 %v345
      %679 = vmatmul.mubr.bf16.gmra.mxu0 %v341
      %v680 = vpop.f32.mrf.mxu0
      %v681 = vadd.f32 0.0, %v680
      %v682 = vpop.f32.mrf.mxu0
      %v683 = vpop.f32.mrf.mxu0
      %v684 = vadd.f32 0.0, %v683
      %v685 = vpop.f32.mrf.mxu0
      %686 = vmatprep.mubr.bf16.mxu0 %v346
      %687 = vmatmul.mubr.bf16.gmra.mxu0 %v342
      %v688 = vpop.f32.mrf.mxu0
      %v689 = vadd.f32 0.0, %v688
      %v690 = vpop.f32.mrf.mxu0
      %v691 = vpop.f32.mrf.mxu0
      %v692 = vadd.f32 0.0, %v691
      %v693 = vpop.f32.mrf.mxu0
      %694 = vmatprep.mubr.bf16.mxu0 %v347
      %695 = vmatmul.mubr.bf16.gmra.mxu0 %v343
      %v696 = vpop.f32.mrf.mxu0
      %v697 = vadd.f32 0.0, %v696
      %v698 = vpop.f32.mrf.mxu0
      %v699 = vpop.f32.mrf.mxu0
      %v700 = vadd.f32 0.0, %v699
      %v701 = vpop.f32.mrf.mxu0
      %702 = vmatprep.mubr.bf16.mxu0 %v348
      %703 = vmatmul.mubr.bf16.gmra.mxu0 %v344
      %v704 = vpop.f32.mrf.mxu0
      %v705 = vadd.f32 0.0, %v704
      %v706 = vpop.f32.mrf.mxu0
      %v707 = vpop.f32.mrf.mxu0
      %v708 = vadd.f32 0.0, %v707
      %v709 = vpop.f32.mrf.mxu0
      %710 = vmatprep.mubr.bf16.mxu0 %v349
      %711 = vmatmul.mubr.bf16.gmra.mxu0 %v345
      %v712 = vpop.f32.mrf.mxu0
      %v713 = vadd.f32 0.0, %v712
      %v714 = vpop.f32.mrf.mxu0
      %v715 = vpop.f32.mrf.mxu0
      %v716 = vadd.f32 0.0, %v715
      %v717 = vpop.f32.mrf.mxu0
      %718 = vdwg.mxu0
      %719 = vmatprep.subr.bf16.mxu0 0
      %720 = vmatpush1.bf16.msra.mxu0 %v533
      %721 = vmatprep.subr.bf16.mxu0 0
      %722 = vmatpush1.bf16.msra.mxu0 %v532
      %723 = vmatprep.subr.bf16.mxu0 0
      %724 = vmatpush1.bf16.msra.mxu0 %v531
      %725 = vmatprep.subr.bf16.mxu0 0
      %726 = vmatpush1.bf16.msra.mxu0 %v530
      %727 = vmatprep.subr.bf16.mxu0 0
      %728 = vmatpush1.bf16.msra.mxu0 %v529
      %729 = vmatprep.subr.bf16.mxu0 0
      %730 = vmatpush1.bf16.msra.mxu0 %v528
      %731 = vmatprep.subr.bf16.mxu0 0
      %732 = vmatpush1.bf16.msra.mxu0 %v527
      %733 = vmatprep.subr.bf16.mxu0 0
      %734 = vmatpush1.bf16.msra.mxu0 %v526
      %735 = vmatprep.subr.bf16.mxu0 0
      %736 = vmatpush2.bf16.msra.mxu0 0
      %737 = vmatprep.subr.bf16.mxu0 0
      %738 = vmatpush2.bf16.msra.mxu0 0
      %739 = vmatprep.subr.bf16.mxu0 0
      %740 = vmatpush2.bf16.msra.mxu0 0
      %741 = vmatprep.subr.bf16.mxu0 0
      %742 = vmatpush2.bf16.msra.mxu0 0
      %743 = vmatprep.subr.bf16.mxu0 0
      %744 = vmatpush2.bf16.msra.mxu0 0
      %745 = vmatprep.subr.bf16.mxu0 0
      %746 = vmatpush2.bf16.msra.mxu0 0
      %747 = vmatprep.subr.bf16.mxu0 0
      %748 = vmatpush2.bf16.msra.mxu0 0
      %749 = vmatprep.subr.bf16.mxu0 0
      %750 = vmatpush2.bf16.msra.mxu0 0
      %751 = vmatprep.mubr.bf16.mxu0 0
      %752 = vmatmul.mubr.bf16.gmra.mxu0 %v338
      %v753 = vpop.f32.mrf.mxu0
      %v754 = vadd.f32 %v593, %v753
      %v755 = vpop.f32.mrf.mxu0
      %v756 = vpop.f32.mrf.mxu0
      %v757 = vadd.f32 %v596, %v756
      %v758 = vpop.f32.mrf.mxu0
      %759 = vmatprep.mubr.bf16.mxu0 0
      %760 = vmatmul.mubr.bf16.gmra.mxu0 %v339
      %v761 = vpop.f32.mrf.mxu0
      %v762 = vadd.f32 %v601, %v761
      %v763 = vpop.f32.mrf.mxu0
      %v764 = vpop.f32.mrf.mxu0
      %v765 = vadd.f32 %v604, %v764
      %v766 = vpop.f32.mrf.mxu0
      %767 = vmatprep.mubr.bf16.mxu0 0
      %768 = vmatmul.mubr.bf16.gmra.mxu0 %v340
      %v769 = vpop.f32.mrf.mxu0
      %v770 = vadd.f32 %v609, %v769
      %v771 = vpop.f32.mrf.mxu0
      %v772 = vpop.f32.mrf.mxu0
      %v773 = vadd.f32 %v612, %v772
      %v774 = vpop.f32.mrf.mxu0
      %775 = vmatprep.mubr.bf16.mxu0 0
      %776 = vmatmul.mubr.bf16.gmra.mxu0 %v341
      %v777 = vpop.f32.mrf.mxu0
      %v778 = vadd.f32 %v617, %v777
      %v779 = vpop.f32.mrf.mxu0
      %v780 = vpop.f32.mrf.mxu0
      %v781 = vadd.f32 %v620, %v780
      %v782 = vpop.f32.mrf.mxu0
      %783 = vmatprep.mubr.bf16.mxu0 0
      %784 = vmatmul.mubr.bf16.gmra.mxu0 %v342
      %v785 = vpop.f32.mrf.mxu0
      %v786 = vadd.f32 %v625, %v785
      %v787 = vpop.f32.mrf.mxu0
      %v788 = vpop.f32.mrf.mxu0
      %v789 = vadd.f32 %v628, %v788
      %v790 = vpop.f32.mrf.mxu0
      %791 = vmatprep.mubr.bf16.mxu0 0
      %792 = vmatmul.mubr.bf16.gmra.mxu0 %v343
      %v793 = vpop.f32.mrf.mxu0
      %v794 = vadd.f32 %v633, %v793
      %v795 = vpop.f32.mrf.mxu0
      %v796 = vpop.f32.mrf.mxu0
      %v797 = vadd.f32 %v636, %v796
      %v798 = vpop.f32.mrf.mxu0
      %799 = vmatprep.mubr.bf16.mxu0 0
      %800 = vmatmul.mubr.bf16.gmra.mxu0 %v344
      %v801 = vpop.f32.mrf.mxu0
      %v802 = vadd.f32 %v641, %v801
      %v803 = vpop.f32.mrf.mxu0
      %v804 = vpop.f32.mrf.mxu0
      %v805 = vadd.f32 %v644, %v804
      %v806 = vpop.f32.mrf.mxu0
      %807 = vmatprep.mubr.bf16.mxu0 0
      %808 = vmatmul.mubr.bf16.gmra.mxu0 %v345
      %v809 = vpop.f32.mrf.mxu0
      %v810 = vadd.f32 %v649, %v809
      %v811 = vpop.f32.mrf.mxu0
      %v812 = vpop.f32.mrf.mxu0
      %v813 = vadd.f32 %v652, %v812
      %v814 = vpop.f32.mrf.mxu0
      %815 = vmatprep.mubr.bf16.mxu0 0
      %816 = vmatmul.mubr.bf16.gmra.mxu0 %v346
      %v817 = vpop.f32.mrf.mxu0
      %v818 = vadd.f32 %v657, %v817
      %v819 = vpop.f32.mrf.mxu0
      %v820 = vpop.f32.mrf.mxu0
      %v821 = vadd.f32 %v660, %v820
      %v822 = vpop.f32.mrf.mxu0
      %823 = vmatprep.mubr.bf16.mxu0 0
      %824 = vmatmul.mubr.bf16.gmra.mxu0 %v347
      %v825 = vpop.f32.mrf.mxu0
      %v826 = vadd.f32 %v665, %v825
      %v827 = vpop.f32.mrf.mxu0
      %v828 = vpop.f32.mrf.mxu0
      %v829 = vadd.f32 %v668, %v828
      %v830 = vpop.f32.mrf.mxu0
      %831 = vmatprep.mubr.bf16.mxu0 0
      %832 = vmatmul.mubr.bf16.gmra.mxu0 %v348
      %v833 = vpop.f32.mrf.mxu0
      %v834 = vadd.f32 %v673, %v833
      %v835 = vpop.f32.mrf.mxu0
      %v836 = vpop.f32.mrf.mxu0
      %v837 = vadd.f32 %v676, %v836
      %v838 = vpop.f32.mrf.mxu0
      %839 = vmatprep.mubr.bf16.mxu0 0
      %840 = vmatmul.mubr.bf16.gmra.mxu0 %v349
      %v841 = vpop.f32.mrf.mxu0
      %v842 = vadd.f32 %v681, %v841
      %v843 = vpop.f32.mrf.mxu0
      %v844 = vpop.f32.mrf.mxu0
      %v845 = vadd.f32 %v684, %v844
      %v846 = vpop.f32.mrf.mxu0
      %847 = vmatprep.mubr.bf16.mxu0 0
      %848 = vmatmul.mubr.bf16.gmra.mxu0 0
      %v849 = vpop.f32.mrf.mxu0
      %v850 = vadd.f32 %v689, %v849
      %v851 = vpop.f32.mrf.mxu0
      %v852 = vpop.f32.mrf.mxu0
      %v853 = vadd.f32 %v692, %v852
      %v854 = vpop.f32.mrf.mxu0
      %855 = vmatprep.mubr.bf16.mxu0 0
      %856 = vmatmul.mubr.bf16.gmra.mxu0 0
      %v857 = vpop.f32.mrf.mxu0
      %v858 = vadd.f32 %v697, %v857
      %v859 = vpop.f32.mrf.mxu0
      %v860 = vpop.f32.mrf.mxu0
      %v861 = vadd.f32 %v700, %v860
      %v862 = vpop.f32.mrf.mxu0
      %863 = vmatprep.mubr.bf16.mxu0 0
      %864 = vmatmul.mubr.bf16.gmra.mxu0 0
      %v865 = vpop.f32.mrf.mxu0
      %v866 = vadd.f32 %v705, %v865
      %v867 = vpop.f32.mrf.mxu0
      %v868 = vpop.f32.mrf.mxu0
      %v869 = vadd.f32 %v708, %v868
      %v870 = vpop.f32.mrf.mxu0
      %871 = vmatprep.mubr.bf16.mxu0 0
      %872 = vmatmul.mubr.bf16.gmra.mxu0 0
      %v873 = vpop.f32.mrf.mxu0
      %v874 = vadd.f32 %v713, %v873
      %v875 = vpop.f32.mrf.mxu0
      %v876 = vpop.f32.mrf.mxu0
      %v877 = vadd.f32 %v716, %v876
      %v878 = vpop.f32.mrf.mxu0
      %879 = vdwg.mxu0
      %v880 = vld [vmem:[%s2] sm:$0x1]
      %v882 = vlaneseq
      %v883 = vshrl.u32 %v882, 7
      %v884 = vsub.s32 0, %v883
      %v885 = vrot.slane %v880, %v884
      %v887 = vmul.f32 %v754, %v885
      %v888 = vmul.f32 %v757, %v885
      %v889 = vmul.f32 %v762, %v885
      %v890 = vmul.f32 %v765, %v885
      %v891 = vmul.f32 %v770, %v885
      %v892 = vmul.f32 %v773, %v885
      %v893 = vmul.f32 %v778, %v885
      %v894 = vmul.f32 %v781, %v885
      %v895 = vmul.f32 %v786, %v885
      %v896 = vmul.f32 %v789, %v885
      %v897 = vmul.f32 %v794, %v885
      %v898 = vmul.f32 %v797, %v885
      %v899 = vmul.f32 %v802, %v885
      %v900 = vmul.f32 %v805, %v885
      %v901 = vmul.f32 %v810, %v885
      %v902 = vmul.f32 %v813, %v885
      %v903 = vmul.f32 %v818, %v885
      %v904 = vmul.f32 %v821, %v885
      %v905 = vmul.f32 %v826, %v885
      %v906 = vmul.f32 %v829, %v885
      %v907 = vmul.f32 %v834, %v885
      %v908 = vmul.f32 %v837, %v885
      %v909 = vmul.f32 %v842, %v885
      %v910 = vmul.f32 %v845, %v885
      %v911 = vmul.f32 %v850, %v885
      %v912 = vmul.f32 %v853, %v885
      %v913 = vmul.f32 %v858, %v885
      %v914 = vmul.f32 %v861, %v885
      %v915 = vmul.f32 %v866, %v885
      %v916 = vmul.f32 %v869, %v885
      %v917 = vmul.f32 %v874, %v885
      %v918 = vmul.f32 %v877, %v885
      %v919 = vld [vmem:[%s3] sm:$0x1]
      %v921 = vlaneseq
      %v922 = vshrl.u32 %v921, 7
      %v923 = vsub.s32 0, %v922
      %v924 = vrot.slane %v919, %v923
      %v926 = vadd.f32 %v887, %v924
      %v927 = vadd.f32 %v888, %v924
      %v928 = vadd.f32 %v889, %v924
      %v929 = vadd.f32 %v890, %v924
      %v930 = vadd.f32 %v891, %v924
      %v931 = vadd.f32 %v892, %v924
      %v932 = vadd.f32 %v893, %v924
      %v933 = vadd.f32 %v894, %v924
      %v934 = vadd.f32 %v895, %v924
      %v935 = vadd.f32 %v896, %v924
      %v936 = vadd.f32 %v897, %v924
      %v937 = vadd.f32 %v898, %v924
      %v938 = vadd.f32 %v899, %v924
      %v939 = vadd.f32 %v900, %v924
      %v940 = vadd.f32 %v901, %v924
      %v941 = vadd.f32 %v902, %v924
      %v942 = vadd.f32 %v903, %v924
      %v943 = vadd.f32 %v904, %v924
      %v944 = vadd.f32 %v905, %v924
      %v945 = vadd.f32 %v906, %v924
      %v946 = vadd.f32 %v907, %v924
      %v947 = vadd.f32 %v908, %v924
      %v948 = vadd.f32 %v909, %v924
      %v949 = vadd.f32 %v910, %v924
      %v950 = vadd.f32 %v911, %v924
      %v951 = vadd.f32 %v912, %v924
      %v952 = vadd.f32 %v913, %v924
      %v953 = vadd.f32 %v914, %v924
      %v954 = vadd.f32 %v915, %v924
      %v955 = vadd.f32 %v916, %v924
      %v956 = vadd.f32 %v917, %v924
      %v957 = vadd.f32 %v918, %v924
      %v958 = vmax.f32 %v926, 0.0
      %v959 = vmax.f32 %v927, 0.0
      %v960 = vmax.f32 %v928, 0.0
      %v961 = vmax.f32 %v929, 0.0
      %v962 = vmax.f32 %v930, 0.0
      %v963 = vmax.f32 %v931, 0.0
      %v964 = vmax.f32 %v932, 0.0
      %v965 = vmax.f32 %v933, 0.0
      %v966 = vmax.f32 %v934, 0.0
      %v967 = vmax.f32 %v935, 0.0
      %v968 = vmax.f32 %v936, 0.0
      %v969 = vmax.f32 %v937, 0.0
      %v970 = vmax.f32 %v938, 0.0
      %v971 = vmax.f32 %v939, 0.0
      %v972 = vmax.f32 %v940, 0.0
      %v973 = vmax.f32 %v941, 0.0
      %v974 = vmax.f32 %v942, 0.0
      %v975 = vmax.f32 %v943, 0.0
      %v976 = vmax.f32 %v944, 0.0
      %v977 = vmax.f32 %v945, 0.0
      %v978 = vmax.f32 %v946, 0.0
      %v979 = vmax.f32 %v947, 0.0
      %v980 = vmax.f32 %v948, 0.0
      %v981 = vmax.f32 %v949, 0.0
      %v982 = vmax.f32 %v950, 0.0
      %v983 = vmax.f32 %v951, 0.0
      %v984 = vmax.f32 %v952, 0.0
      %v985 = vmax.f32 %v953, 0.0
      %v986 = vmax.f32 %v954, 0.0
      %v987 = vmax.f32 %v955, 0.0
      %v988 = vmax.f32 %v956, 0.0
      %v989 = vmax.f32 %v957, 0.0
      %990 = vst [vmem:[%s235] sm:$0xff] %v958
      %991 = vst [vmem:[%s235 + $0x8] sm:$0xff] %v959
      %992 = vst [vmem:[%s235 + $0x10] sm:$0xff] %v960
      %993 = vst [vmem:[%s235 + $0x18] sm:$0xff] %v961
      %994 = vst [vmem:[%s235 + $0x20] sm:$0xff] %v962
      %995 = vst [vmem:[%s235 + $0x28] sm:$0xff] %v963
      %996 = vst [vmem:[%s235 + $0x30] sm:$0xff] %v964
      %997 = vst [vmem:[%s235 + $0x38] sm:$0xff] %v965
      %998 = vst [vmem:[%s235 + $0x40] sm:$0xff] %v966
      %999 = vst [vmem:[%s235 + $0x48] sm:$0xff] %v967
      %1000 = vst [vmem:[%s235 + $0x50] sm:$0xff] %v968
      %1001 = vst [vmem:[%s235 + $0x58] sm:$0xff] %v969
      %1002 = vst [vmem:[%s235 + $0x60] sm:$0xff] %v970
      %1003 = vst [vmem:[%s235 + $0x68] sm:$0xff] %v971
      %1004 = vst [vmem:[%s235 + $0x70] sm:$0xff] %v972
      %1005 = vst [vmem:[%s235 + $0x78] sm:$0xff] %v973
      %1006 = vst [vmem:[%s235 + $0x80] sm:$0xff] %v974
      %1007 = vst [vmem:[%s235 + $0x88] sm:$0xff] %v975
      %1008 = vst [vmem:[%s235 + $0x90] sm:$0xff] %v976
      %1009 = vst [vmem:[%s235 + $0x98] sm:$0xff] %v977
      %1010 = vst [vmem:[%s235 + $0xa0] sm:$0xff] %v978
      %1011 = vst [vmem:[%s235 + $0xa8] sm:$0xff] %v979
      %1012 = vst [vmem:[%s235 + $0xb0] sm:$0xff] %v980
      %1013 = vst [vmem:[%s235 + $0xb8] sm:$0xff] %v981
      %1014 = vst [vmem:[%s235 + $0xc0] sm:$0xff] %v982
      %1015 = vst [vmem:[%s235 + $0xc8] sm:$0xff] %v983
      %1016 = vst [vmem:[%s235 + $0xd0] sm:$0xff] %v984
      %1017 = vst [vmem:[%s235 + $0xd8] sm:$0xff] %v985
      %1018 = vst [vmem:[%s235 + $0xe0] sm:$0xff] %v986
      %1019 = vst [vmem:[%s235 + $0xe8] sm:$0xff] %v987
      %1020 = vst [vmem:[%s235 + $0xf0] sm:$0xff] %v988
      %1021 = vst [vmem:[%s235 + $0xf8] sm:$0xff] %v989
      %s1022 = smul.u32 8, %s20
      %p1023 = scmp.lt.s32.totalorder %s19, 1
      %s1024 = scalar_select %p1023, %s19, 1
      %p1025 = scmp.lt.s32.totalorder %s1022, 7
      %s1026 = scalar_select %p1025, %s1022, 7
      %s1027 = smul.addr %s1024, 32
      %s1028 = sadd.s32 %s1026, %s1027
      %s1029 = smul.addr %s1028, 8
      %s1030 = scalar_lea.vmem %s4, %s1029
      // Predicated region
      $region37: #{mixed_3c.10} parent=35 // pred_check
        %p1031 = pneg %p138
      $region38: #{mixed_3c.10} parent=35 // pred_check_branch
        %1033 = sbr.rel (%p1031) target = $region40
      $region39: #{mixed_3c.10} parent=35 // pred_region
        %s1034 = smul.u32 8, %s20
      $region40: #{mixed_3c.10} parent=35 // pred_fallthru
        _
    $region36: #{mixed_3c.10} parent=5 // pred_fallthru
      _
    %p1035 = scmp.le.s32.totalorder 2, %s10
    // Predicated region
    $region41: #{mixed_3c.10} parent=5 // pred_check
      %p1036 = pneg %p1035
    $region42: #{mixed_3c.10} parent=5 // pred_check_branch
      %1038 = sbr.rel (%p1036) target = $region44
    $region43: #{mixed_3c.10} parent=5 // pred_region
      %s1039 = ssub.s32 %s10, 2
      // Predicated region
      $region45: #{mixed_3c.10} parent=43 // pred_check
        %p1040 = pneg %p144
      $region46: #{mixed_3c.10} parent=43 // pred_check_branch
        %1042 = sbr.rel (%p1040) target = $region48
      $region47: #{mixed_3c.10} parent=43 // pred_region
        %s1043 = smul.u32 8, %s22
        %p1044 = scmp.lt.s32.totalorder %s21, 1
        %s1045 = scalar_select %p1044, %s21, 1
        %p1046 = scmp.lt.s32.totalorder %s1043, 7
        %s1047 = scalar_select %p1046, %s1043, 7
        %s1048 = smul.addr %s1045, 32
        %s1049 = sadd.s32 %s1047, %s1048
        %s1050 = smul.addr %s1049, 8
        %s1051 = scalar_lea.vmem %s4, %s1050
      $region48: #{mixed_3c.10} parent=43 // pred_fallthru
        _
    $region44: #{mixed_3c.10} parent=5 // pred_fallthru
      _
  $region6: #{mixed_3c.10} parent=0 // loop_footer
    %s14 = sadd.s32 1, %s10
  $region7: #{mixed_3c.10} parent=0 // loop_footer_branch
    %9 = sbr.rel target = $region3
  $region8: #{mixed_3c.10} parent=0 // loop_exit
    _

// kernel: mixed_3c.9
$region0: #{mixed_3c.9}
  #allocation0 [shape = 'u32[]', space=smem, size = 0x4, offset = 0x4, fixed_abs, tag = 'smem constant byte address 0x4 - core index']
  #allocation1 [shape = 'u32[144,128]{1,0:T(1,128)}', space=vmem, size = 0x12000, scoped, tag = 'internal scratch']
  %s0 = inlined_call_operand.vmem [shape: bf16[8,8,8,32], index: 0, kind: input, shape index: {}]
  %s1 = inlined_call_operand.vmem [shape: bf16[288,128], index: 1, kind: input, shape index: {}]
  %s2 = inlined_call_operand.vmem [shape: f32[1,128], index: 2, kind: input, shape index: {}]
  %s3 = inlined_call_operand.vmem [shape: f32[1,128], index: 3, kind: input, shape index: {}]
  %s4 = inlined_call_operand.vmem [shape: bf16[8,8,8,128], index: 4, kind: output, shape index: {}]
  %s5 = sld [smem:[#allocation0]]
  $region49: #{mixed_3c.9} parent=0
    _
  %s7 = ssub.s32 1, %s5
  %s8 = scalar_select 0, %s7, %s5
  loop: start=0, step=1, limit=4
  $region2: #{mixed_3c.9} parent=0 // loop_pre_header
    _
  $region3: #{mixed_3c.9} parent=0 // loop_header
    %s10 = sphi 0, %s14
    %p11 = scmp.ge.s32.totalorder %s10, 4
    %s20 = sphi 0, %s22
    %s23 = sphi 0, %s20
    %s24 = sphi 0, %s23
    %s40 = sphi 0, %s24
    %s44 = sphi 0, %s44
    %s46 = sphi 0, %s44
    %s47 = sphi 0, %s46
    %s61 = sphi 0, %s47
    %s65 = sphi 0, %s65
    %s67 = sphi 0, %s65
    %s68 = sphi 0, %s67
    %s82 = sphi 0, %s68
    %s86 = sphi 0, %s86
    %s88 = sphi 0, %s86
    %s89 = sphi 0, %s88
    %s103 = sphi 0, %s89
    %s109 = sphi 0, %s111
    %s112 = sphi 0, %s109
    %s113 = sphi 0, %s112
    %s129 = sphi 0, %s113
  $region4: #{mixed_3c.9} parent=0 // loop_header_branch
    %13 = sbr.rel (%p11) target = $region8
  $region5: #{mixed_3c.9} parent=0 // loop_body
    %s15 = ssub.s32 %s10, 1
    %s16 = ssub.s32 %s10, 2
    %s17 = sadd.s32 %s10, 1
    %s18 = ssub.s32 %s10, %s17
    %p19 = scmp.eq.s32.totalorder %s18, 0
    %s21 = sadd.s32 %s20, 1
    %s22 = scalar_select %p19, %s20, %s21
    %p25 = pneg %p19
    %p26 = scmp.eq.s32.totalorder %s10, 1
    %p27 = por %p25, %p26
    %p28 = scmp.ne.s32.totalorder %s20, %s23
    %p29 = scmp.eq.s32.totalorder %s10, 0
    %p30 = por %p28, %p29
    %p31 = scmp.ne.s32.totalorder %s20, %s23
    %p32 = scmp.eq.s32.totalorder %s15, 1
    %p33 = por %p31, %p32
    %p34 = scmp.ne.s32.totalorder %s23, %s24
    %p35 = scmp.eq.s32.totalorder %s15, 0
    %p36 = por %p34, %p35
    %p37 = scmp.ne.s32.totalorder %s23, %s24
    %p38 = scmp.eq.s32.totalorder %s16, 1
    %p39 = por %p37, %p38
    %p41 = scmp.ne.s32.totalorder %s24, %s40
    %p42 = scmp.eq.s32.totalorder %s16, 0
    %p43 = por %p41, %p42
    %s45 = sadd.s32 %s44, 1
    %p48 = scmp.eq.s32.totalorder %s10, 1
    %p49 = scmp.ne.s32.totalorder %s44, %s46
    %p50 = scmp.eq.s32.totalorder %s10, 0
    %p51 = por %p49, %p50
    %p52 = scmp.ne.s32.totalorder %s44, %s46
    %p53 = scmp.eq.s32.totalorder %s15, 1
    %p54 = por %p52, %p53
    %p55 = scmp.ne.s32.totalorder %s46, %s47
    %p56 = scmp.eq.s32.totalorder %s15, 0
    %p57 = por %p55, %p56
    %p58 = scmp.ne.s32.totalorder %s46, %s47
    %p59 = scmp.eq.s32.totalorder %s16, 1
    %p60 = por %p58, %p59
    %p62 = scmp.ne.s32.totalorder %s47, %s61
    %p63 = scmp.eq.s32.totalorder %s16, 0
    %p64 = por %p62, %p63
    %s66 = sadd.s32 %s65, 1
    %p69 = scmp.eq.s32.totalorder %s10, 1
    %p70 = scmp.ne.s32.totalorder %s65, %s67
    %p71 = scmp.eq.s32.totalorder %s10, 0
    %p72 = por %p70, %p71
    %p73 = scmp.ne.s32.totalorder %s65, %s67
    %p74 = scmp.eq.s32.totalorder %s15, 1
    %p75 = por %p73, %p74
    %p76 = scmp.ne.s32.totalorder %s67, %s68
    %p77 = scmp.eq.s32.totalorder %s15, 0
    %p78 = por %p76, %p77
    %p79 = scmp.ne.s32.totalorder %s67, %s68
    %p80 = scmp.eq.s32.totalorder %s16, 1
    %p81 = por %p79, %p80
    %p83 = scmp.ne.s32.totalorder %s68, %s82
    %p84 = scmp.eq.s32.totalorder %s16, 0
    %p85 = por %p83, %p84
    %s87 = sadd.s32 %s86, 1
    %p90 = scmp.eq.s32.totalorder %s10, 1
    %p91 = scmp.ne.s32.totalorder %s86, %s88
    %p92 = scmp.eq.s32.totalorder %s10, 0
    %p93 = por %p91, %p92
    %p94 = scmp.ne.s32.totalorder %s86, %s88
    %p95 = scmp.eq.s32.totalorder %s15, 1
    %p96 = por %p94, %p95
    %p97 = scmp.ne.s32.totalorder %s88, %s89
    %p98 = scmp.eq.s32.totalorder %s15, 0
    %p99 = por %p97, %p98
    %p100 = scmp.ne.s32.totalorder %s88, %s89
    %p101 = scmp.eq.s32.totalorder %s16, 1
    %p102 = por %p100, %p101
    %p104 = scmp.ne.s32.totalorder %s89, %s103
    %p105 = scmp.eq.s32.totalorder %s16, 0
    %p106 = por %p104, %p105
    %s107 = ssub.s32 %s10, %s17
    %p108 = scmp.eq.s32.totalorder %s107, 0
    %s110 = sadd.s32 %s109, 1
    %s111 = scalar_select %p108, %s109, %s110
    %p114 = pneg %p108
    %p115 = scmp.eq.s32.totalorder %s10, 1
    %p116 = por %p114, %p115
    %p117 = scmp.ne.s32.totalorder %s109, %s112
    %p118 = scmp.eq.s32.totalorder %s10, 0
    %p119 = por %p117, %p118
    %p120 = scmp.ne.s32.totalorder %s109, %s112
    %p121 = scmp.eq.s32.totalorder %s15, 1
    %p122 = por %p120, %p121
    %p123 = scmp.ne.s32.totalorder %s112, %s113
    %p124 = scmp.eq.s32.totalorder %s15, 0
    %p125 = por %p123, %p124
    %p126 = scmp.ne.s32.totalorder %s112, %s113
    %p127 = scmp.eq.s32.totalorder %s16, 1
    %p128 = por %p126, %p127
    %p130 = scmp.ne.s32.totalorder %s113, %s129
    %p131 = scmp.eq.s32.totalorder %s16, 0
    %p132 = por %p130, %p131
    %p133 = scmp.le.s32.totalorder 1, %s10
    %p134 = scmp.lt.s32.totalorder %s10, 3
    %p135 = pnand %p133, %p134
    %p136 = pneg %p135
    // Predicated region
    $region9: #{mixed_3c.9} parent=5 // pred_check
      _
    $region10: #{mixed_3c.9} parent=5 // pred_check_branch
      %138 = sbr.rel (%p135) target = $region12
    $region11: #{mixed_3c.9} parent=5 // pred_region
      %s139 = ssub.s32 %s10, 1
      // Predicated region
      $region13: #{mixed_3c.9} parent=11 // pred_check
        %p140 = pneg %p57
      $region14: #{mixed_3c.9} parent=11 // pred_check_branch
        %142 = sbr.rel (%p140) target = $region16
      $region15: #{mixed_3c.9} parent=11 // pred_region
        _
      $region16: #{mixed_3c.9} parent=11 // pred_fallthru
        _
      // Predicated region
      $region17: #{mixed_3c.9} parent=11 // pred_check
        %p143 = pneg %p78
      $region18: #{mixed_3c.9} parent=11 // pred_check_branch
        %145 = sbr.rel (%p143) target = $region20
      $region19: #{mixed_3c.9} parent=11 // pred_region
        _
      $region20: #{mixed_3c.9} parent=11 // pred_fallthru
        _
      // Predicated region
      $region21: #{mixed_3c.9} parent=11 // pred_check
        %p146 = pneg %p99
      $region22: #{mixed_3c.9} parent=11 // pred_check_branch
        %148 = sbr.rel (%p146) target = $region24
      $region23: #{mixed_3c.9} parent=11 // pred_region
        _
      $region24: #{mixed_3c.9} parent=11 // pred_fallthru
        _
    $region12: #{mixed_3c.9} parent=5 // pred_fallthru
      _
    %p149 = scmp.lt.s32.totalorder %s10, 2
    // Predicated region
    $region25: #{mixed_3c.9} parent=5 // pred_check
      %p150 = pneg %p149
    $region26: #{mixed_3c.9} parent=5 // pred_check_branch
      %152 = sbr.rel (%p150) target = $region28
    $region27: #{mixed_3c.9} parent=5 // pred_region
      // Predicated region
      $region29: #{mixed_3c.9} parent=27 // pred_check
        %p153 = pneg %p30
      $region30: #{mixed_3c.9} parent=27 // pred_check_branch
        %155 = sbr.rel (%p153) target = $region32
      $region31: #{mixed_3c.9} parent=27 // pred_region
        %s156 = smul.u32 4, %s10
        %p157 = scmp.lt.s32.totalorder %s156, 7
        %s158 = scalar_select %p157, %s156, 7
        %s159 = smul.addr %s158, 8
        %s160 = smul.addr %s159, 4
        %s161 = scalar_lea.vmem %s0, %s160
        %s162 = smul.u32 4, %s10
      $region32: #{mixed_3c.9} parent=27 // pred_fallthru
        _
    $region28: #{mixed_3c.9} parent=5 // pred_fallthru
      _
    %p163 = scmp.le.s32.totalorder 1, %s10
    %p164 = scmp.lt.s32.totalorder %s10, 3
    %p165 = pnand %p163, %p164
    %p166 = pneg %p165
    // Predicated region
    $region33: #{mixed_3c.9} parent=5 // pred_check
      _
    $region34: #{mixed_3c.9} parent=5 // pred_check_branch
      %168 = sbr.rel (%p165) target = $region36
    $region35: #{mixed_3c.9} parent=5 // pred_region
      %s169 = ssub.s32 %s10, 1
      %s170 = smul.u32 4, %s15
      %p171 = scmp.lt.s32.totalorder %s170, 7
      %s172 = scalar_select %p171, %s170, 7
      %s173 = smul.addr %s172, 8
      %s174 = smul.addr %s173, 4
      %s175 = scalar_lea.vmem %s0, %s174
      %p176 = pneg %p36
      %p177 = pneg %p33
      %p178 = pneg %p57
      %p179 = pneg %p54
      %p180 = pneg %p78
      %p181 = pneg %p75
      %p182 = pneg %p99
      %p183 = pneg %p96
      %p184 = pneg %p125
      %p185 = pneg %p122
      %s186 = smul.u32 4, %s15
      %p187 = scmp.lt.s32.totalorder %s186, 7
      %s188 = scalar_select %p187, %s186, 7
      %s189 = smul.addr %s188, 8
      %s190 = smul.addr %s189, 4
      %s191 = scalar_lea.vmem %s4, %s190
      %s192 = smul.u32 4, %s15
      %p193 = scmp.lt.s32.totalorder %s192, 7
      %s194 = scalar_select %p193, %s192, 7
      %s195 = smul.addr %s194, 8
      %s196 = smul.addr %s195, 4
      %s197 = scalar_lea.vmem %s0, %s196
      %s198 = smul.u32 4, %s15
      %s199 = smul.u32 4, %s15
      %p200 = scmp.lt.s32.totalorder %s199, 7
      %s201 = scalar_select %p200, %s199, 7
      %s202 = smul.addr %s201, 8
      %s203 = smul.addr %s202, 4
      %s204 = scalar_lea.vmem %s4, %s203
      %s205 = smul.u32 4, %s15
      %v207 = vld [vmem:[%s197] sm:$0xf]
      %v208 = vld [vmem:[%s197 + $0x4] sm:$0xf]
      %v209 = vld [vmem:[%s197 + $0x8] sm:$0xf]
      %v210 = vld [vmem:[%s197 + $0xc] sm:$0xf]
      %v211 = vld [vmem:[%s197 + $0x10] sm:$0xf]
      %v212 = vld [vmem:[%s197 + $0x14] sm:$0xf]
      %v213 = vld [vmem:[%s197 + $0x18] sm:$0xf]
      %v214 = vld [vmem:[%s197 + $0x1c] sm:$0xf]
      %v215 = vld [vmem:[%s197 + $0x20] sm:$0xf]
      %v216 = vld [vmem:[%s197 + $0x24] sm:$0xf]
      %v217 = vld [vmem:[%s197 + $0x28] sm:$0xf]
      %v218 = vld [vmem:[%s197 + $0x2c] sm:$0xf]
      %v219 = vld [vmem:[%s197 + $0x30] sm:$0xf]
      %v220 = vld [vmem:[%s197 + $0x34] sm:$0xf]
      %v221 = vld [vmem:[%s197 + $0x38] sm:$0xf]
      %v222 = vld [vmem:[%s197 + $0x3c] sm:$0xf]
      %v223 = vld [vmem:[%s197 + $0x40] sm:$0xf]
      %v224 = vld [vmem:[%s197 + $0x44] sm:$0xf]
      %v225 = vld [vmem:[%s197 + $0x48] sm:$0xf]
      %v226 = vld [vmem:[%s197 + $0x4c] sm:$0xf]
      %v227 = vld [vmem:[%s197 + $0x50] sm:$0xf]
      %v228 = vld [vmem:[%s197 + $0x54] sm:$0xf]
      %v229 = vld [vmem:[%s197 + $0x58] sm:$0xf]
      %v230 = vld [vmem:[%s197 + $0x5c] sm:$0xf]
      %v231 = vld [vmem:[%s197 + $0x60] sm:$0xf]
      %v232 = vld [vmem:[%s197 + $0x64] sm:$0xf]
      %v233 = vld [vmem:[%s197 + $0x68] sm:$0xf]
      %v234 = vld [vmem:[%s197 + $0x6c] sm:$0xf]
      %v235 = vld [vmem:[%s197 + $0x70] sm:$0xf]
      %v236 = vld [vmem:[%s197 + $0x74] sm:$0xf]
      %v237 = vld [vmem:[%s197 + $0x78] sm:$0xf]
      %v238 = vld [vmem:[%s197 + $0x7c] sm:$0xf]
      %v271 = vunpack.c.l.b16 %v207
      %v272 = vunpack.c.l.b16 %v208
      %v273 = vunpack.c.l.b16 %v209
      %v274 = vunpack.c.l.b16 %v210
      %v275 = vunpack.c.l.b16 %v211
      %v276 = vunpack.c.l.b16 %v212
      %v277 = vunpack.c.l.b16 %v213
      %v278 = vunpack.c.l.b16 %v214
      %v279 = vunpack.c.l.b16 %v215
      %v280 = vunpack.c.l.b16 %v216
      %v281 = vunpack.c.l.b16 %v217
      %v282 = vunpack.c.l.b16 %v218
      %v283 = vunpack.c.l.b16 %v219
      %v284 = vunpack.c.l.b16 %v220
      %v285 = vunpack.c.l.b16 %v221
      %v286 = vunpack.c.l.b16 %v222
      %v287 = vunpack.c.l.b16 %v223
      %v288 = vunpack.c.l.b16 %v224
      %v289 = vunpack.c.l.b16 %v225
      %v290 = vunpack.c.l.b16 %v226
      %v291 = vunpack.c.l.b16 %v227
      %v292 = vunpack.c.l.b16 %v228
      %v293 = vunpack.c.l.b16 %v229
      %v294 = vunpack.c.l.b16 %v230
      %v295 = vunpack.c.l.b16 %v231
      %v296 = vunpack.c.l.b16 %v232
      %v297 = vunpack.c.l.b16 %v233
      %v298 = vunpack.c.l.b16 %v234
      %v299 = vunpack.c.l.b16 %v235
      %v300 = vunpack.c.l.b16 %v236
      %v301 = vunpack.c.l.b16 %v237
      %v302 = vunpack.c.l.b16 %v238
      %v303 = vpack.c.b16 %v271, %v271
      %v304 = vpack.c.b16 %v272, %v272
      %v305 = vpack.c.b16 %v273, %v273
      %v306 = vpack.c.b16 %v274, %v274
      %v307 = vpack.c.b16 %v275, %v275
      %v308 = vpack.c.b16 %v276, %v276
      %v309 = vpack.c.b16 %v277, %v277
      %v310 = vpack.c.b16 %v278, %v278
      %v311 = vpack.c.b16 %v279, %v279
      %v312 = vpack.c.b16 %v280, %v280
      %v313 = vpack.c.b16 %v281, %v281
      %v314 = vpack.c.b16 %v282, %v282
      %v315 = vpack.c.b16 %v283, %v283
      %v316 = vpack.c.b16 %v284, %v284
      %v317 = vpack.c.b16 %v285, %v285
      %v318 = vpack.c.b16 %v286, %v286
      %v319 = vpack.c.b16 %v287, %v287
      %v320 = vpack.c.b16 %v288, %v288
      %v321 = vpack.c.b16 %v289, %v289
      %v322 = vpack.c.b16 %v290, %v290
      %v323 = vpack.c.b16 %v291, %v291
      %v324 = vpack.c.b16 %v292, %v292
      %v325 = vpack.c.b16 %v293, %v293
      %v326 = vpack.c.b16 %v294, %v294
      %v327 = vpack.c.b16 %v295, %v295
      %v328 = vpack.c.b16 %v296, %v296
      %v329 = vpack.c.b16 %v297, %v297
      %v330 = vpack.c.b16 %v298, %v298
      %v331 = vpack.c.b16 %v299, %v299
      %v332 = vpack.c.b16 %v300, %v300
      %v333 = vpack.c.b16 %v301, %v301
      %v334 = vpack.c.b16 %v302, %v302
      %v336 = vshrl.u32 %v303, 16
      %v338 = vrot.slane %v336, 7
      %v339 = vshll.u32 %v303, 16
      %v341 = vor.u32 %v338, %v339
      %v343 = vshrl.u32 %v304, 16
      %v345 = vrot.slane %v343, 7
      %v346 = vshll.u32 %v304, 16
      %v348 = vor.u32 %v345, %v346
      %v350 = vshrl.u32 %v305, 16
      %v352 = vrot.slane %v350, 7
      %v353 = vshll.u32 %v305, 16
      %v355 = vor.u32 %v352, %v353
      %v357 = vshrl.u32 %v306, 16
      %v359 = vrot.slane %v357, 7
      %v360 = vshll.u32 %v306, 16
      %v362 = vor.u32 %v359, %v360
      %v364 = vshrl.u32 %v307, 16
      %v366 = vrot.slane %v364, 7
      %v367 = vshll.u32 %v307, 16
      %v369 = vor.u32 %v366, %v367
      %v371 = vshrl.u32 %v308, 16
      %v373 = vrot.slane %v371, 7
      %v374 = vshll.u32 %v308, 16
      %v376 = vor.u32 %v373, %v374
      %v378 = vshrl.u32 %v309, 16
      %v380 = vrot.slane %v378, 7
      %v381 = vshll.u32 %v309, 16
      %v383 = vor.u32 %v380, %v381
      %v385 = vshrl.u32 %v310, 16
      %v387 = vrot.slane %v385, 7
      %v388 = vshll.u32 %v310, 16
      %v390 = vor.u32 %v387, %v388
      %v392 = vshrl.u32 %v311, 16
      %v394 = vrot.slane %v392, 7
      %v395 = vshll.u32 %v311, 16
      %v397 = vor.u32 %v394, %v395
      %v399 = vshrl.u32 %v312, 16
      %v401 = vrot.slane %v399, 7
      %v402 = vshll.u32 %v312, 16
      %v404 = vor.u32 %v401, %v402
      %v406 = vshrl.u32 %v313, 16
      %v408 = vrot.slane %v406, 7
      %v409 = vshll.u32 %v313, 16
      %v411 = vor.u32 %v408, %v409
      %v413 = vshrl.u32 %v314, 16
      %v415 = vrot.slane %v413, 7
      %v416 = vshll.u32 %v314, 16
      %v418 = vor.u32 %v415, %v416
      %v420 = vshrl.u32 %v315, 16
      %v422 = vrot.slane %v420, 7
      %v423 = vshll.u32 %v315, 16
      %v425 = vor.u32 %v422, %v423
      %v427 = vshrl.u32 %v316, 16
      %v429 = vrot.slane %v427, 7
      %v430 = vshll.u32 %v316, 16
      %v432 = vor.u32 %v429, %v430
      %v434 = vshrl.u32 %v317, 16
      %v436 = vrot.slane %v434, 7
      %v437 = vshll.u32 %v317, 16
      %v439 = vor.u32 %v436, %v437
      %v441 = vshrl.u32 %v318, 16
      %v443 = vrot.slane %v441, 7
      %v444 = vshll.u32 %v318, 16
      %v446 = vor.u32 %v443, %v444
      %v448 = vshrl.u32 %v319, 16
      %v450 = vrot.slane %v448, 7
      %v451 = vshll.u32 %v319, 16
      %v453 = vor.u32 %v450, %v451
      %v455 = vshrl.u32 %v320, 16
      %v457 = vrot.slane %v455, 7
      %v458 = vshll.u32 %v320, 16
      %v460 = vor.u32 %v457, %v458
      %v462 = vshrl.u32 %v321, 16
      %v464 = vrot.slane %v462, 7
      %v465 = vshll.u32 %v321, 16
      %v467 = vor.u32 %v464, %v465
      %v469 = vshrl.u32 %v322, 16
      %v471 = vrot.slane %v469, 7
      %v472 = vshll.u32 %v322, 16
      %v474 = vor.u32 %v471, %v472
      %v476 = vshrl.u32 %v323, 16
      %v478 = vrot.slane %v476, 7
      %v479 = vshll.u32 %v323, 16
      %v481 = vor.u32 %v478, %v479
      %v483 = vshrl.u32 %v324, 16
      %v485 = vrot.slane %v483, 7
      %v486 = vshll.u32 %v324, 16
      %v488 = vor.u32 %v485, %v486
      %v490 = vshrl.u32 %v325, 16
      %v492 = vrot.slane %v490, 7
      %v493 = vshll.u32 %v325, 16
      %v495 = vor.u32 %v492, %v493
      %v497 = vshrl.u32 %v326, 16
      %v499 = vrot.slane %v497, 7
      %v500 = vshll.u32 %v326, 16
      %v502 = vor.u32 %v499, %v500
      %v504 = vshrl.u32 %v327, 16
      %v506 = vrot.slane %v504, 7
      %v507 = vshll.u32 %v327, 16
      %v509 = vor.u32 %v506, %v507
      %v511 = vshrl.u32 %v328, 16
      %v513 = vrot.slane %v511, 7
      %v514 = vshll.u32 %v328, 16
      %v516 = vor.u32 %v513, %v514
      %v518 = vshrl.u32 %v329, 16
      %v520 = vrot.slane %v518, 7
      %v521 = vshll.u32 %v329, 16
      %v523 = vor.u32 %v520, %v521
      %v525 = vshrl.u32 %v330, 16
      %v527 = vrot.slane %v525, 7
      %v528 = vshll.u32 %v330, 16
      %v530 = vor.u32 %v527, %v528
      %v532 = vshrl.u32 %v331, 16
      %v534 = vrot.slane %v532, 7
      %v535 = vshll.u32 %v331, 16
      %v537 = vor.u32 %v534, %v535
      %v539 = vshrl.u32 %v332, 16
      %v541 = vrot.slane %v539, 7
      %v542 = vshll.u32 %v332, 16
      %v544 = vor.u32 %v541, %v542
      %v546 = vshrl.u32 %v333, 16
      %v548 = vrot.slane %v546, 7
      %v549 = vshll.u32 %v333, 16
      %v551 = vor.u32 %v548, %v549
      %v553 = vshrl.u32 %v334, 16
      %v555 = vrot.slane %v553, 7
      %v556 = vshll.u32 %v334, 16
      %v558 = vor.u32 %v555, %v556
      %vm591 = vcmask 1040384
      %vm592 = vsmask.f32 256
      %vm593 = vmand %vm591, %vm592
      %v594 = vsel %vm593, 0, %v341
      %v595 = vsel %vm593, 0, %v348
      %v596 = vsel %vm593, 0, %v355
      %v597 = vsel %vm593, 0, %v362
      %v598 = vsel %vm593, 0, %v369
      %v599 = vsel %vm593, 0, %v376
      %v600 = vsel %vm593, 0, %v383
      %v601 = vsel %vm593, 0, %v390
      %v602 = vsel %vm593, 0, %v397
      %v603 = vsel %vm593, 0, %v404
      %v604 = vsel %vm593, 0, %v411
      %v605 = vsel %vm593, 0, %v418
      %v606 = vsel %vm593, 0, %v425
      %v607 = vsel %vm593, 0, %v432
      %v608 = vsel %vm593, 0, %v439
      %v609 = vsel %vm593, 0, %v446
      %v610 = vsel %vm593, 0, %v453
      %v611 = vsel %vm593, 0, %v460
      %v612 = vsel %vm593, 0, %v467
      %v613 = vsel %vm593, 0, %v474
      %v614 = vsel %vm593, 0, %v481
      %v615 = vsel %vm593, 0, %v488
      %v616 = vsel %vm593, 0, %v495
      %v617 = vsel %vm593, 0, %v502
      %v618 = vsel %vm593, 0, %v509
      %v619 = vsel %vm593, 0, %v516
      %v620 = vsel %vm593, 0, %v523
      %v621 = vsel %vm593, 0, %v530
      %v622 = vsel %vm593, 0, %v537
      %v623 = vsel %vm593, 0, %v544
      %v624 = vsel %vm593, 0, %v551
      %v625 = vsel %vm593, 0, %v558
      %vm626 = vcmask 1044480
      %vm627 = vsmask.f32 4352
      %vm628 = vmand %vm626, %vm627
      %v629 = vsel %vm628, %v594, 0
      %v630 = vsel %vm628, %v595, 0
      %v631 = vsel %vm628, %v596, 0
      %v632 = vsel %vm628, %v597, 0
      %v633 = vsel %vm628, %v598, 0
      %v634 = vsel %vm628, %v599, 0
      %v635 = vsel %vm628, %v600, 0
      %v636 = vsel %vm628, %v601, 0
      %v637 = vsel %vm628, %v602, 0
      %v638 = vsel %vm628, %v603, 0
      %v639 = vsel %vm628, %v604, 0
      %v640 = vsel %vm628, %v605, 0
      %v641 = vsel %vm628, %v606, 0
      %v642 = vsel %vm628, %v607, 0
      %v643 = vsel %vm628, %v608, 0
      %v644 = vsel %vm628, %v609, 0
      %v645 = vsel %vm628, %v610, 0
      %v646 = vsel %vm628, %v611, 0
      %v647 = vsel %vm628, %v612, 0
      %v648 = vsel %vm628, %v613, 0
      %v649 = vsel %vm628, %v614, 0
      %v650 = vsel %vm628, %v615, 0
      %v651 = vsel %vm628, %v616, 0
      %v652 = vsel %vm628, %v617, 0
      %v653 = vsel %vm628, %v618, 0
      %v654 = vsel %vm628, %v619, 0
      %v655 = vsel %vm628, %v620, 0
      %v656 = vsel %vm628, %v621, 0
      %v657 = vsel %vm628, %v622, 0
      %v658 = vsel %vm628, %v623, 0
      %v659 = vsel %vm628, %v624, 0
      %v660 = vsel %vm628, %v625, 0
      %v662 = vshrl.u32 0, 16
      %v664 = vshll.u32 0, 16
      %v666 = vrot.slane %v664, 1
      %v667 = vor.u32 %v662, %v666
      %v669 = vshrl.u32 %v629, 16
      %v671 = vshll.u32 %v629, 16
      %v673 = vrot.slane %v671, 1
      %v674 = vor.u32 %v669, %v673
      %v676 = vshrl.u32 %v630, 16
      %v678 = vshll.u32 %v630, 16
      %v680 = vrot.slane %v678, 1
      %v681 = vor.u32 %v676, %v680
      %v683 = vshrl.u32 %v631, 16
      %v685 = vshll.u32 %v631, 16
      %v687 = vrot.slane %v685, 1
      %v688 = vor.u32 %v683, %v687
      %v690 = vshrl.u32 %v632, 16
      %v692 = vshll.u32 %v632, 16
      %v694 = vrot.slane %v692, 1
      %v695 = vor.u32 %v690, %v694
      %v697 = vshrl.u32 %v633, 16
      %v699 = vshll.u32 %v633, 16
      %v701 = vrot.slane %v699, 1
      %v702 = vor.u32 %v697, %v701
      %v704 = vshrl.u32 %v634, 16
      %v706 = vshll.u32 %v634, 16
      %v708 = vrot.slane %v706, 1
      %v709 = vor.u32 %v704, %v708
      %v711 = vshrl.u32 %v635, 16
      %v713 = vshll.u32 %v635, 16
      %v715 = vrot.slane %v713, 1
      %v716 = vor.u32 %v711, %v715
      %v718 = vshrl.u32 %v637, 16
      %v720 = vshll.u32 %v637, 16
      %v722 = vrot.slane %v720, 1
      %v723 = vor.u32 %v718, %v722
      %v725 = vshrl.u32 %v638, 16
      %v727 = vshll.u32 %v638, 16
      %v729 = vrot.slane %v727, 1
      %v730 = vor.u32 %v725, %v729
      %v732 = vshrl.u32 %v639, 16
      %v734 = vshll.u32 %v639, 16
      %v736 = vrot.slane %v734, 1
      %v737 = vor.u32 %v732, %v736
      %v739 = vshrl.u32 %v640, 16
      %v741 = vshll.u32 %v640, 16
      %v743 = vrot.slane %v741, 1
      %v744 = vor.u32 %v739, %v743
      %v746 = vshrl.u32 %v641, 16
      %v748 = vshll.u32 %v641, 16
      %v750 = vrot.slane %v748, 1
      %v751 = vor.u32 %v746, %v750
      %v753 = vshrl.u32 %v642, 16
      %v755 = vshll.u32 %v642, 16
      %v757 = vrot.slane %v755, 1
      %v758 = vor.u32 %v753, %v757
      %v760 = vshrl.u32 %v643, 16
      %v762 = vshll.u32 %v643, 16
      %v764 = vrot.slane %v762, 1
      %v765 = vor.u32 %v760, %v764
      %v767 = vshrl.u32 %v645, 16
      %v769 = vshll.u32 %v645, 16
      %v771 = vrot.slane %v769, 1
      %v772 = vor.u32 %v767, %v771
      %v774 = vshrl.u32 %v646, 16
      %v776 = vshll.u32 %v646, 16
      %v778 = vrot.slane %v776, 1
      %v779 = vor.u32 %v774, %v778
      %v781 = vshrl.u32 %v647, 16
      %v783 = vshll.u32 %v647, 16
      %v785 = vrot.slane %v783, 1
      %v786 = vor.u32 %v781, %v785
      %v788 = vshrl.u32 %v648, 16
      %v790 = vshll.u32 %v648, 16
      %v792 = vrot.slane %v790, 1
      %v793 = vor.u32 %v788, %v792
      %v795 = vshrl.u32 %v649, 16
      %v797 = vshll.u32 %v649, 16
      %v799 = vrot.slane %v797, 1
      %v800 = vor.u32 %v795, %v799
      %v802 = vshrl.u32 %v650, 16
      %v804 = vshll.u32 %v650, 16
      %v806 = vrot.slane %v804, 1
      %v807 = vor.u32 %v802, %v806
      %v809 = vshrl.u32 %v651, 16
      %v811 = vshll.u32 %v651, 16
      %v813 = vrot.slane %v811, 1
      %v814 = vor.u32 %v809, %v813
      %v816 = vshrl.u32 %v653, 16
      %v818 = vshll.u32 %v653, 16
      %v820 = vrot.slane %v818, 1
      %v821 = vor.u32 %v816, %v820
      %v823 = vshrl.u32 %v654, 16
      %v825 = vshll.u32 %v654, 16
      %v827 = vrot.slane %v825, 1
      %v828 = vor.u32 %v823, %v827
      %v830 = vshrl.u32 %v655, 16
      %v832 = vshll.u32 %v655, 16
      %v834 = vrot.slane %v832, 1
      %v835 = vor.u32 %v830, %v834
      %v837 = vshrl.u32 %v656, 16
      %v839 = vshll.u32 %v656, 16
      %v841 = vrot.slane %v839, 1
      %v842 = vor.u32 %v837, %v841
      %v844 = vshrl.u32 %v657, 16
      %v846 = vshll.u32 %v657, 16
      %v848 = vrot.slane %v846, 1
      %v849 = vor.u32 %v844, %v848
      %v851 = vshrl.u32 %v658, 16
      %v853 = vshll.u32 %v658, 16
      %v855 = vrot.slane %v853, 1
      %v856 = vor.u32 %v851, %v855
      %v858 = vshrl.u32 %v659, 16
      %v860 = vshll.u32 %v659, 16
      %v862 = vrot.slane %v860, 1
      %v863 = vor.u32 %v858, %v862
      %864 = vrot.lane.b32.xlu0 %v667, 32
      %v865 = vpop.permute.xlu0 %864
      %866 = vrot.lane.b32.xlu0 %v674, 32
      %v867 = vpop.permute.xlu0 %866
      %868 = vrot.lane.b32.xlu0 %v681, 32
      %v869 = vpop.permute.xlu0 %868
      %870 = vrot.lane.b32.xlu0 %v688, 32
      %v871 = vpop.permute.xlu0 %870
      %872 = vrot.lane.b32.xlu0 %v695, 32
      %v873 = vpop.permute.xlu0 %872
      %874 = vrot.lane.b32.xlu0 %v702, 32
      %v875 = vpop.permute.xlu0 %874
      %876 = vrot.lane.b32.xlu0 %v709, 32
      %v877 = vpop.permute.xlu0 %876
      %878 = vrot.lane.b32.xlu0 %v716, 32
      %v879 = vpop.permute.xlu0 %878
      %880 = vrot.lane.b32.xlu0 %v723, 32
      %v881 = vpop.permute.xlu0 %880
      %882 = vrot.lane.b32.xlu0 %v730, 32
      %v883 = vpop.permute.xlu0 %882
      %884 = vrot.lane.b32.xlu0 %v737, 32
      %v885 = vpop.permute.xlu0 %884
      %886 = vrot.lane.b32.xlu0 %v744, 32
      %v887 = vpop.permute.xlu0 %886
      %888 = vrot.lane.b32.xlu0 %v751, 32
      %v889 = vpop.permute.xlu0 %888
      %890 = vrot.lane.b32.xlu0 %v758, 32
      %v891 = vpop.permute.xlu0 %890
      %892 = vrot.lane.b32.xlu0 %v765, 32
      %v893 = vpop.permute.xlu0 %892
      %894 = vrot.lane.b32.xlu0 %v772, 32
      %v895 = vpop.permute.xlu0 %894
      %896 = vrot.lane.b32.xlu0 %v779, 32
      %v897 = vpop.permute.xlu0 %896
      %898 = vrot.lane.b32.xlu0 %v786, 32
      %v899 = vpop.permute.xlu0 %898
      %900 = vrot.lane.b32.xlu0 %v793, 32
      %v901 = vpop.permute.xlu0 %900
      %902 = vrot.lane.b32.xlu0 %v800, 32
      %v903 = vpop.permute.xlu0 %902
      %904 = vrot.lane.b32.xlu0 %v807, 32
      %v905 = vpop.permute.xlu0 %904
      %906 = vrot.lane.b32.xlu0 %v814, 32
      %v907 = vpop.permute.xlu0 %906
      %908 = vrot.lane.b32.xlu0 %v821, 32
      %v909 = vpop.permute.xlu0 %908
      %910 = vrot.lane.b32.xlu0 %v828, 32
      %v911 = vpop.permute.xlu0 %910
      %912 = vrot.lane.b32.xlu0 %v835, 32
      %v913 = vpop.permute.xlu0 %912
      %914 = vrot.lane.b32.xlu0 %v842, 32
      %v915 = vpop.permute.xlu0 %914
      %916 = vrot.lane.b32.xlu0 %v849, 32
      %v917 = vpop.permute.xlu0 %916
      %918 = vrot.lane.b32.xlu0 %v856, 32
      %v919 = vpop.permute.xlu0 %918
      %920 = vrot.lane.b32.xlu0 %v863, 32
      %v921 = vpop.permute.xlu0 %920
      %v951 = vrot.slane 0, 1
      %v952 = vrot.slane %v629, 1
      %v953 = vrot.slane %v630, 1
      %v954 = vrot.slane %v631, 1
      %v955 = vrot.slane %v632, 1
      %v956 = vrot.slane %v633, 1
      %v957 = vrot.slane %v634, 1
      %v958 = vrot.slane %v635, 1
      %v959 = vrot.slane %v637, 1
      %v960 = vrot.slane %v638, 1
      %v961 = vrot.slane %v639, 1
      %v962 = vrot.slane %v640, 1
      %v963 = vrot.slane %v641, 1
      %v964 = vrot.slane %v642, 1
      %v965 = vrot.slane %v643, 1
      %v966 = vrot.slane %v645, 1
      %v967 = vrot.slane %v646, 1
      %v968 = vrot.slane %v647, 1
      %v969 = vrot.slane %v648, 1
      %v970 = vrot.slane %v649, 1
      %v971 = vrot.slane %v650, 1
      %v972 = vrot.slane %v651, 1
      %v973 = vrot.slane %v653, 1
      %v974 = vrot.slane %v654, 1
      %v975 = vrot.slane %v655, 1
      %v976 = vrot.slane %v656, 1
      %v977 = vrot.slane %v657, 1
      %v978 = vrot.slane %v658, 1
      %v979 = vrot.slane %v659, 1
      %980 = vrot.lane.b32.xlu0 %v951, 64
      %v981 = vpop.permute.xlu0 %980
      %982 = vrot.lane.b32.xlu0 %v952, 64
      %v983 = vpop.permute.xlu0 %982
      %984 = vrot.lane.b32.xlu0 %v953, 64
      %v985 = vpop.permute.xlu0 %984
      %986 = vrot.lane.b32.xlu0 %v954, 64
      %v987 = vpop.permute.xlu0 %986
      %988 = vrot.lane.b32.xlu0 %v955, 64
      %v989 = vpop.permute.xlu0 %988
      %990 = vrot.lane.b32.xlu0 %v956, 64
      %v991 = vpop.permute.xlu0 %990
      %992 = vrot.lane.b32.xlu0 %v957, 64
      %v993 = vpop.permute.xlu0 %992
      %994 = vrot.lane.b32.xlu0 %v958, 64
      %v995 = vpop.permute.xlu0 %994
      %996 = vrot.lane.b32.xlu0 %v959, 64
      %v997 = vpop.permute.xlu0 %996
      %998 = vrot.lane.b32.xlu0 %v960, 64
      %v999 = vpop.permute.xlu0 %998
      %1000 = vrot.lane.b32.xlu0 %v961, 64
      %v1001 = vpop.permute.xlu0 %1000
      %1002 = vrot.lane.b32.xlu0 %v962, 64
      %v1003 = vpop.permute.xlu0 %1002
      %1004 = vrot.lane.b32.xlu0 %v963, 64
      %v1005 = vpop.permute.xlu0 %1004
      %1006 = vrot.lane.b32.xlu0 %v964, 64
      %v1007 = vpop.permute.xlu0 %1006
      %1008 = vrot.lane.b32.xlu0 %v965, 64
      %v1009 = vpop.permute.xlu0 %1008
      %1010 = vrot.lane.b32.xlu0 %v966, 64
      %v1011 = vpop.permute.xlu0 %1010
      %1012 = vrot.lane.b32.xlu0 %v967, 64
      %v1013 = vpop.permute.xlu0 %1012
      %1014 = vrot.lane.b32.xlu0 %v968, 64
      %v1015 = vpop.permute.xlu0 %1014
      %1016 = vrot.lane.b32.xlu0 %v969, 64
      %v1017 = vpop.permute.xlu0 %1016
      %1018 = vrot.lane.b32.xlu0 %v970, 64
      %v1019 = vpop.permute.xlu0 %1018
      %1020 = vrot.lane.b32.xlu0 %v971, 64
      %v1021 = vpop.permute.xlu0 %1020
      %1022 = vrot.lane.b32.xlu0 %v972, 64
      %v1023 = vpop.permute.xlu0 %1022
      %1024 = vrot.lane.b32.xlu0 %v973, 64
      %v1025 = vpop.permute.xlu0 %1024
      %1026 = vrot.lane.b32.xlu0 %v974, 64
      %v1027 = vpop.permute.xlu0 %1026
      %1028 = vrot.lane.b32.xlu0 %v975, 64
      %v1029 = vpop.permute.xlu0 %1028
      %1030 = vrot.lane.b32.xlu0 %v976, 64
      %v1031 = vpop.permute.xlu0 %1030
      %1032 = vrot.lane.b32.xlu0 %v977, 64
      %v1033 = vpop.permute.xlu0 %1032
      %1034 = vrot.lane.b32.xlu0 %v978, 64
      %v1035 = vpop.permute.xlu0 %1034
      %1036 = vrot.lane.b32.xlu0 %v979, 64
      %v1037 = vpop.permute.xlu0 %1036
      %1042 = vrot.lane.b32.xlu0 %v629, 96
      %v1043 = vpop.permute.xlu0 %1042
      %1044 = vrot.lane.b32.xlu0 %v630, 96
      %v1045 = vpop.permute.xlu0 %1044
      %1046 = vrot.lane.b32.xlu0 %v631, 96
      %v1047 = vpop.permute.xlu0 %1046
      %1048 = vrot.lane.b32.xlu0 %v632, 96
      %v1049 = vpop.permute.xlu0 %1048
      %1050 = vrot.lane.b32.xlu0 %v633, 96
      %v1051 = vpop.permute.xlu0 %1050
      %1052 = vrot.lane.b32.xlu0 %v634, 96
      %v1053 = vpop.permute.xlu0 %1052
      %1054 = vrot.lane.b32.xlu0 %v635, 96
      %v1055 = vpop.permute.xlu0 %1054
      %1056 = vrot.lane.b32.xlu0 %v636, 96
      %v1057 = vpop.permute.xlu0 %1056
      %1058 = vrot.lane.b32.xlu0 %v637, 96
      %v1059 = vpop.permute.xlu0 %1058
      %1060 = vrot.lane.b32.xlu0 %v638, 96
      %v1061 = vpop.permute.xlu0 %1060
      %1062 = vrot.lane.b32.xlu0 %v639, 96
      %v1063 = vpop.permute.xlu0 %1062
      %1064 = vrot.lane.b32.xlu0 %v640, 96
      %v1065 = vpop.permute.xlu0 %1064
      %1066 = vrot.lane.b32.xlu0 %v641, 96
      %v1067 = vpop.permute.xlu0 %1066
      %1068 = vrot.lane.b32.xlu0 %v642, 96
      %v1069 = vpop.permute.xlu0 %1068
      %1070 = vrot.lane.b32.xlu0 %v643, 96
      %v1071 = vpop.permute.xlu0 %1070
      %1072 = vrot.lane.b32.xlu0 %v644, 96
      %v1073 = vpop.permute.xlu0 %1072
      %1074 = vrot.lane.b32.xlu0 %v645, 96
      %v1075 = vpop.permute.xlu0 %1074
      %1076 = vrot.lane.b32.xlu0 %v646, 96
      %v1077 = vpop.permute.xlu0 %1076
      %1078 = vrot.lane.b32.xlu0 %v647, 96
      %v1079 = vpop.permute.xlu0 %1078
      %1080 = vrot.lane.b32.xlu0 %v648, 96
      %v1081 = vpop.permute.xlu0 %1080
      %1082 = vrot.lane.b32.xlu0 %v649, 96
      %v1083 = vpop.permute.xlu0 %1082
      %1084 = vrot.lane.b32.xlu0 %v650, 96
      %v1085 = vpop.permute.xlu0 %1084
      %1086 = vrot.lane.b32.xlu0 %v651, 96
      %v1087 = vpop.permute.xlu0 %1086
      %1088 = vrot.lane.b32.xlu0 %v652, 96
      %v1089 = vpop.permute.xlu0 %1088
      %1090 = vrot.lane.b32.xlu0 %v653, 96
      %v1091 = vpop.permute.xlu0 %1090
      %1092 = vrot.lane.b32.xlu0 %v654, 96
      %v1093 = vpop.permute.xlu0 %1092
      %1094 = vrot.lane.b32.xlu0 %v655, 96
      %v1095 = vpop.permute.xlu0 %1094
      %1096 = vrot.lane.b32.xlu0 %v656, 96
      %v1097 = vpop.permute.xlu0 %1096
      %1098 = vrot.lane.b32.xlu0 %v657, 96
      %v1099 = vpop.permute.xlu0 %1098
      %1100 = vrot.lane.b32.xlu0 %v658, 96
      %v1101 = vpop.permute.xlu0 %1100
      %1102 = vrot.lane.b32.xlu0 %v659, 96
      %v1103 = vpop.permute.xlu0 %1102
      %1104 = vrot.lane.b32.xlu0 %v660, 96
      %v1105 = vpop.permute.xlu0 %1104
      %v1107 = vshrl.u32 %v636, 16
      %v1109 = vshll.u32 %v636, 16
      %v1111 = vrot.slane %v1109, 1
      %v1112 = vor.u32 %v1107, %v1111
      %v1114 = vshrl.u32 %v644, 16
      %v1116 = vshll.u32 %v644, 16
      %v1118 = vrot.slane %v1116, 1
      %v1119 = vor.u32 %v1114, %v1118
      %v1121 = vshrl.u32 %v652, 16
      %v1123 = vshll.u32 %v652, 16
      %v1125 = vrot.slane %v1123, 1
      %v1126 = vor.u32 %v1121, %v1125
      %v1128 = vshrl.u32 %v660, 16
      %v1130 = vshll.u32 %v660, 16
      %v1132 = vrot.slane %v1130, 1
      %v1133 = vor.u32 %v1128, %v1132
      %v1134 = vrot.slane %v636, 1
      %v1135 = vrot.slane %v644, 1
      %v1136 = vrot.slane %v652, 1
      %v1137 = vrot.slane %v660, 1
      %1138 = vrot.lane.b32.xlu0 %v952, 32
      %v1139 = vpop.permute.xlu0 %1138
      %1140 = vrot.lane.b32.xlu0 %v953, 32
      %v1141 = vpop.permute.xlu0 %1140
      %1142 = vrot.lane.b32.xlu0 %v954, 32
      %v1143 = vpop.permute.xlu0 %1142
      %1144 = vrot.lane.b32.xlu0 %v955, 32
      %v1145 = vpop.permute.xlu0 %1144
      %1146 = vrot.lane.b32.xlu0 %v956, 32
      %v1147 = vpop.permute.xlu0 %1146
      %1148 = vrot.lane.b32.xlu0 %v957, 32
      %v1149 = vpop.permute.xlu0 %1148
      %1150 = vrot.lane.b32.xlu0 %v958, 32
      %v1151 = vpop.permute.xlu0 %1150
      %1152 = vrot.lane.b32.xlu0 %v1134, 32
      %v1153 = vpop.permute.xlu0 %1152
      %1154 = vrot.lane.b32.xlu0 %v959, 32
      %v1155 = vpop.permute.xlu0 %1154
      %1156 = vrot.lane.b32.xlu0 %v960, 32
      %v1157 = vpop.permute.xlu0 %1156
      %1158 = vrot.lane.b32.xlu0 %v961, 32
      %v1159 = vpop.permute.xlu0 %1158
      %1160 = vrot.lane.b32.xlu0 %v962, 32
      %v1161 = vpop.permute.xlu0 %1160
      %1162 = vrot.lane.b32.xlu0 %v963, 32
      %v1163 = vpop.permute.xlu0 %1162
      %1164 = vrot.lane.b32.xlu0 %v964, 32
      %v1165 = vpop.permute.xlu0 %1164
      %1166 = vrot.lane.b32.xlu0 %v965, 32
      %v1167 = vpop.permute.xlu0 %1166
      %1168 = vrot.lane.b32.xlu0 %v1135, 32
      %v1169 = vpop.permute.xlu0 %1168
      %1170 = vrot.lane.b32.xlu0 %v966, 32
      %v1171 = vpop.permute.xlu0 %1170
      %1172 = vrot.lane.b32.xlu0 %v967, 32
      %v1173 = vpop.permute.xlu0 %1172
      %1174 = vrot.lane.b32.xlu0 %v968, 32
      %v1175 = vpop.permute.xlu0 %1174
      %1176 = vrot.lane.b32.xlu0 %v969, 32
      %v1177 = vpop.permute.xlu0 %1176
      %1178 = vrot.lane.b32.xlu0 %v970, 32
      %v1179 = vpop.permute.xlu0 %1178
      %1180 = vrot.lane.b32.xlu0 %v971, 32
      %v1181 = vpop.permute.xlu0 %1180
      %1182 = vrot.lane.b32.xlu0 %v972, 32
      %v1183 = vpop.permute.xlu0 %1182
      %1184 = vrot.lane.b32.xlu0 %v1136, 32
      %v1185 = vpop.permute.xlu0 %1184
      %1186 = vrot.lane.b32.xlu0 %v973, 32
      %v1187 = vpop.permute.xlu0 %1186
      %1188 = vrot.lane.b32.xlu0 %v974, 32
      %v1189 = vpop.permute.xlu0 %1188
      %1190 = vrot.lane.b32.xlu0 %v975, 32
      %v1191 = vpop.permute.xlu0 %1190
      %1192 = vrot.lane.b32.xlu0 %v976, 32
      %v1193 = vpop.permute.xlu0 %1192
      %1194 = vrot.lane.b32.xlu0 %v977, 32
      %v1195 = vpop.permute.xlu0 %1194
      %1196 = vrot.lane.b32.xlu0 %v978, 32
      %v1197 = vpop.permute.xlu0 %1196
      %1198 = vrot.lane.b32.xlu0 %v979, 32
      %v1199 = vpop.permute.xlu0 %1198
      %1200 = vrot.lane.b32.xlu0 %v1137, 32
      %v1201 = vpop.permute.xlu0 %1200
      %1202 = vrot.lane.b32.xlu0 %v630, 64
      %v1203 = vpop.permute.xlu0 %1202
      %1204 = vrot.lane.b32.xlu0 %v631, 64
      %v1205 = vpop.permute.xlu0 %1204
      %1206 = vrot.lane.b32.xlu0 %v632, 64
      %v1207 = vpop.permute.xlu0 %1206
      %1208 = vrot.lane.b32.xlu0 %v633, 64
      %v1209 = vpop.permute.xlu0 %1208
      %1210 = vrot.lane.b32.xlu0 %v634, 64
      %v1211 = vpop.permute.xlu0 %1210
      %1212 = vrot.lane.b32.xlu0 %v635, 64
      %v1213 = vpop.permute.xlu0 %1212
      %1214 = vrot.lane.b32.xlu0 %v636, 64
      %v1215 = vpop.permute.xlu0 %1214
      %1216 = vrot.lane.b32.xlu0 0, 64
      %v1217 = vpop.permute.xlu0 %1216
      %1218 = vrot.lane.b32.xlu0 %v638, 64
      %v1219 = vpop.permute.xlu0 %1218
      %1220 = vrot.lane.b32.xlu0 %v639, 64
      %v1221 = vpop.permute.xlu0 %1220
      %1222 = vrot.lane.b32.xlu0 %v640, 64
      %v1223 = vpop.permute.xlu0 %1222
      %1224 = vrot.lane.b32.xlu0 %v641, 64
      %v1225 = vpop.permute.xlu0 %1224
      %1226 = vrot.lane.b32.xlu0 %v642, 64
      %v1227 = vpop.permute.xlu0 %1226
      %1228 = vrot.lane.b32.xlu0 %v643, 64
      %v1229 = vpop.permute.xlu0 %1228
      %1230 = vrot.lane.b32.xlu0 %v644, 64
      %v1231 = vpop.permute.xlu0 %1230
      %1232 = vrot.lane.b32.xlu0 %v646, 64
      %v1233 = vpop.permute.xlu0 %1232
      %1234 = vrot.lane.b32.xlu0 %v647, 64
      %v1235 = vpop.permute.xlu0 %1234
      %1236 = vrot.lane.b32.xlu0 %v648, 64
      %v1237 = vpop.permute.xlu0 %1236
      %1238 = vrot.lane.b32.xlu0 %v649, 64
      %v1239 = vpop.permute.xlu0 %1238
      %1240 = vrot.lane.b32.xlu0 %v650, 64
      %v1241 = vpop.permute.xlu0 %1240
      %1242 = vrot.lane.b32.xlu0 %v651, 64
      %v1243 = vpop.permute.xlu0 %1242
      %1244 = vrot.lane.b32.xlu0 %v652, 64
      %v1245 = vpop.permute.xlu0 %1244
      %1246 = vrot.lane.b32.xlu0 %v654, 64
      %v1247 = vpop.permute.xlu0 %1246
      %1248 = vrot.lane.b32.xlu0 %v655, 64
      %v1249 = vpop.permute.xlu0 %1248
      %1250 = vrot.lane.b32.xlu0 %v656, 64
      %v1251 = vpop.permute.xlu0 %1250
      %1252 = vrot.lane.b32.xlu0 %v657, 64
      %v1253 = vpop.permute.xlu0 %1252
      %1254 = vrot.lane.b32.xlu0 %v658, 64
      %v1255 = vpop.permute.xlu0 %1254
      %1256 = vrot.lane.b32.xlu0 %v659, 64
      %v1257 = vpop.permute.xlu0 %1256
      %1258 = vrot.lane.b32.xlu0 %v660, 64
      %v1259 = vpop.permute.xlu0 %1258
      %1260 = vrot.lane.b32.xlu0 %v681, 96
      %v1261 = vpop.permute.xlu0 %1260
      %1262 = vrot.lane.b32.xlu0 %v688, 96
      %v1263 = vpop.permute.xlu0 %1262
      %1264 = vrot.lane.b32.xlu0 %v695, 96
      %v1265 = vpop.permute.xlu0 %1264
      %1266 = vrot.lane.b32.xlu0 %v702, 96
      %v1267 = vpop.permute.xlu0 %1266
      %1268 = vrot.lane.b32.xlu0 %v709, 96
      %v1269 = vpop.permute.xlu0 %1268
      %1270 = vrot.lane.b32.xlu0 %v716, 96
      %v1271 = vpop.permute.xlu0 %1270
      %1272 = vrot.lane.b32.xlu0 %v1112, 96
      %v1273 = vpop.permute.xlu0 %1272
      %1274 = vrot.lane.b32.xlu0 %v667, 96
      %v1275 = vpop.permute.xlu0 %1274
      %1276 = vrot.lane.b32.xlu0 %v730, 96
      %v1277 = vpop.permute.xlu0 %1276
      %1278 = vrot.lane.b32.xlu0 %v737, 96
      %v1279 = vpop.permute.xlu0 %1278
      %1280 = vrot.lane.b32.xlu0 %v744, 96
      %v1281 = vpop.permute.xlu0 %1280
      %1282 = vrot.lane.b32.xlu0 %v751, 96
      %v1283 = vpop.permute.xlu0 %1282
      %1284 = vrot.lane.b32.xlu0 %v758, 96
      %v1285 = vpop.permute.xlu0 %1284
      %1286 = vrot.lane.b32.xlu0 %v765, 96
      %v1287 = vpop.permute.xlu0 %1286
      %1288 = vrot.lane.b32.xlu0 %v1119, 96
      %v1289 = vpop.permute.xlu0 %1288
      %1290 = vrot.lane.b32.xlu0 %v779, 96
      %v1291 = vpop.permute.xlu0 %1290
      %1292 = vrot.lane.b32.xlu0 %v786, 96
      %v1293 = vpop.permute.xlu0 %1292
      %1294 = vrot.lane.b32.xlu0 %v793, 96
      %v1295 = vpop.permute.xlu0 %1294
      %1296 = vrot.lane.b32.xlu0 %v800, 96
      %v1297 = vpop.permute.xlu0 %1296
      %1298 = vrot.lane.b32.xlu0 %v807, 96
      %v1299 = vpop.permute.xlu0 %1298
      %1300 = vrot.lane.b32.xlu0 %v814, 96
      %v1301 = vpop.permute.xlu0 %1300
      %1302 = vrot.lane.b32.xlu0 %v1126, 96
      %v1303 = vpop.permute.xlu0 %1302
      %1304 = vrot.lane.b32.xlu0 %v828, 96
      %v1305 = vpop.permute.xlu0 %1304
      %1306 = vrot.lane.b32.xlu0 %v835, 96
      %v1307 = vpop.permute.xlu0 %1306
      %1308 = vrot.lane.b32.xlu0 %v842, 96
      %v1309 = vpop.permute.xlu0 %1308
      %1310 = vrot.lane.b32.xlu0 %v849, 96
      %v1311 = vpop.permute.xlu0 %1310
      %1312 = vrot.lane.b32.xlu0 %v856, 96
      %v1313 = vpop.permute.xlu0 %1312
      %1314 = vrot.lane.b32.xlu0 %v863, 96
      %v1315 = vpop.permute.xlu0 %1314
      %1316 = vrot.lane.b32.xlu0 %v1133, 96
      %v1317 = vpop.permute.xlu0 %1316
      %vm1318 = vcmask 261120
      %v1320 = vsel %vm1318, 0, %v865
      %v1322 = vsel %vm1318, %v629, %v867
      %v1324 = vsel %vm1318, %v630, %v869
      %v1326 = vsel %vm1318, %v631, %v871
      %v1328 = vsel %vm1318, %v632, %v873
      %v1330 = vsel %vm1318, %v633, %v875
      %v1332 = vsel %vm1318, %v634, %v877
      %v1334 = vsel %vm1318, %v635, %v879
      %v1336 = vsel %vm1318, %v637, %v881
      %v1338 = vsel %vm1318, %v638, %v883
      %v1340 = vsel %vm1318, %v639, %v885
      %v1342 = vsel %vm1318, %v640, %v887
      %v1344 = vsel %vm1318, %v641, %v889
      %v1346 = vsel %vm1318, %v642, %v891
      %v1348 = vsel %vm1318, %v643, %v893
      %v1350 = vsel %vm1318, %v645, %v895
      %v1352 = vsel %vm1318, %v646, %v897
      %v1354 = vsel %vm1318, %v647, %v899
      %v1356 = vsel %vm1318, %v648, %v901
      %v1358 = vsel %vm1318, %v649, %v903
      %v1360 = vsel %vm1318, %v650, %v905
      %v1362 = vsel %vm1318, %v651, %v907
      %v1364 = vsel %vm1318, %v653, %v909
      %v1366 = vsel %vm1318, %v654, %v911
      %v1368 = vsel %vm1318, %v655, %v913
      %v1370 = vsel %vm1318, %v656, %v915
      %v1372 = vsel %vm1318, %v657, %v917
      %v1374 = vsel %vm1318, %v658, %v919
      %v1376 = vsel %vm1318, %v659, %v921
      %vm1377 = vcmask 523264
      %v1379 = vsel %vm1377, %v1320, %v981
      %v1381 = vsel %vm1377, %v1322, %v983
      %v1383 = vsel %vm1377, %v1324, %v985
      %v1385 = vsel %vm1377, %v1326, %v987
      %v1387 = vsel %vm1377, %v1328, %v989
      %v1389 = vsel %vm1377, %v1330, %v991
      %v1391 = vsel %vm1377, %v1332, %v993
      %v1393 = vsel %vm1377, %v1334, %v995
      %v1395 = vsel %vm1377, %v1336, %v997
      %v1397 = vsel %vm1377, %v1338, %v999
      %v1399 = vsel %vm1377, %v1340, %v1001
      %v1401 = vsel %vm1377, %v1342, %v1003
      %v1403 = vsel %vm1377, %v1344, %v1005
      %v1405 = vsel %vm1377, %v1346, %v1007
      %v1407 = vsel %vm1377, %v1348, %v1009
      %v1409 = vsel %vm1377, %v1350, %v1011
      %v1411 = vsel %vm1377, %v1352, %v1013
      %v1413 = vsel %vm1377, %v1354, %v1015
      %v1415 = vsel %vm1377, %v1356, %v1017
      %v1417 = vsel %vm1377, %v1358, %v1019
      %v1419 = vsel %vm1377, %v1360, %v1021
      %v1421 = vsel %vm1377, %v1362, %v1023
      %v1423 = vsel %vm1377, %v1364, %v1025
      %v1425 = vsel %vm1377, %v1366, %v1027
      %v1427 = vsel %vm1377, %v1368, %v1029
      %v1429 = vsel %vm1377, %v1370, %v1031
      %v1431 = vsel %vm1377, %v1372, %v1033
      %v1433 = vsel %vm1377, %v1374, %v1035
      %v1435 = vsel %vm1377, %v1376, %v1037
      %vm1436 = vcmask 785408
      %v1438 = vsel %vm1436, %v1379, %v1043
      %v1440 = vsel %vm1436, %v1381, %v1045
      %v1442 = vsel %vm1436, %v1383, %v1047
      %v1444 = vsel %vm1436, %v1385, %v1049
      %v1446 = vsel %vm1436, %v1387, %v1051
      %v1448 = vsel %vm1436, %v1389, %v1053
      %v1450 = vsel %vm1436, %v1391, %v1055
      %v1452 = vsel %vm1436, %v1393, %v1057
      %v1454 = vsel %vm1436, %v1379, %v1059
      %v1456 = vsel %vm1436, %v1395, %v1061
      %v1458 = vsel %vm1436, %v1397, %v1063
      %v1460 = vsel %vm1436, %v1399, %v1065
      %v1462 = vsel %vm1436, %v1401, %v1067
      %v1464 = vsel %vm1436, %v1403, %v1069
      %v1466 = vsel %vm1436, %v1405, %v1071
      %v1468 = vsel %vm1436, %v1407, %v1073
      %v1470 = vsel %vm1436, %v1379, %v1075
      %v1472 = vsel %vm1436, %v1409, %v1077
      %v1474 = vsel %vm1436, %v1411, %v1079
      %v1476 = vsel %vm1436, %v1413, %v1081
      %v1478 = vsel %vm1436, %v1415, %v1083
      %v1480 = vsel %vm1436, %v1417, %v1085
      %v1482 = vsel %vm1436, %v1419, %v1087
      %v1484 = vsel %vm1436, %v1421, %v1089
      %v1486 = vsel %vm1436, %v1379, %v1091
      %v1488 = vsel %vm1436, %v1423, %v1093
      %v1490 = vsel %vm1436, %v1425, %v1095
      %v1492 = vsel %vm1436, %v1427, %v1097
      %v1494 = vsel %vm1436, %v1429, %v1099
      %v1496 = vsel %vm1436, %v1431, %v1101
      %v1498 = vsel %vm1436, %v1433, %v1103
      %v1500 = vsel %vm1436, %v1435, %v1105
      %v1503 = vsel %vm1318, %v674, %v1139
      %v1506 = vsel %vm1318, %v681, %v1141
      %v1509 = vsel %vm1318, %v688, %v1143
      %v1512 = vsel %vm1318, %v695, %v1145
      %v1515 = vsel %vm1318, %v702, %v1147
      %v1518 = vsel %vm1318, %v709, %v1149
      %v1521 = vsel %vm1318, %v716, %v1151
      %v1524 = vsel %vm1318, %v1112, %v1153
      %v1527 = vsel %vm1318, %v723, %v1155
      %v1530 = vsel %vm1318, %v730, %v1157
      %v1533 = vsel %vm1318, %v737, %v1159
      %v1536 = vsel %vm1318, %v744, %v1161
      %v1539 = vsel %vm1318, %v751, %v1163
      %v1542 = vsel %vm1318, %v758, %v1165
      %v1545 = vsel %vm1318, %v765, %v1167
      %v1548 = vsel %vm1318, %v1119, %v1169
      %v1551 = vsel %vm1318, %v772, %v1171
      %v1554 = vsel %vm1318, %v779, %v1173
      %v1557 = vsel %vm1318, %v786, %v1175
      %v1560 = vsel %vm1318, %v793, %v1177
      %v1563 = vsel %vm1318, %v800, %v1179
      %v1566 = vsel %vm1318, %v807, %v1181
      %v1569 = vsel %vm1318, %v814, %v1183
      %v1572 = vsel %vm1318, %v1126, %v1185
      %v1575 = vsel %vm1318, %v821, %v1187
      %v1578 = vsel %vm1318, %v828, %v1189
      %v1581 = vsel %vm1318, %v835, %v1191
      %v1584 = vsel %vm1318, %v842, %v1193
      %v1587 = vsel %vm1318, %v849, %v1195
      %v1590 = vsel %vm1318, %v856, %v1197
      %v1593 = vsel %vm1318, %v863, %v1199
      %v1596 = vsel %vm1318, %v1133, %v1201
      %v1598 = vsel %vm1377, %v1503, %v1203
      %v1600 = vsel %vm1377, %v1506, %v1205
      %v1602 = vsel %vm1377, %v1509, %v1207
      %v1604 = vsel %vm1377, %v1512, %v1209
      %v1606 = vsel %vm1377, %v1515, %v1211
      %v1608 = vsel %vm1377, %v1518, %v1213
      %v1610 = vsel %vm1377, %v1521, %v1215
      %v1612 = vsel %vm1377, %v1524, %v1217
      %v1614 = vsel %vm1377, %v1527, %v1219
      %v1616 = vsel %vm1377, %v1530, %v1221
      %v1618 = vsel %vm1377, %v1533, %v1223
      %v1620 = vsel %vm1377, %v1536, %v1225
      %v1622 = vsel %vm1377, %v1539, %v1227
      %v1624 = vsel %vm1377, %v1542, %v1229
      %v1626 = vsel %vm1377, %v1545, %v1231
      %v1627 = vsel %vm1377, %v1548, %v1217
      %v1629 = vsel %vm1377, %v1551, %v1233
      %v1631 = vsel %vm1377, %v1554, %v1235
      %v1633 = vsel %vm1377, %v1557, %v1237
      %v1635 = vsel %vm1377, %v1560, %v1239
      %v1637 = vsel %vm1377, %v1563, %v1241
      %v1639 = vsel %vm1377, %v1566, %v1243
      %v1641 = vsel %vm1377, %v1569, %v1245
      %v1642 = vsel %vm1377, %v1572, %v1217
      %v1644 = vsel %vm1377, %v1575, %v1247
      %v1646 = vsel %vm1377, %v1578, %v1249
      %v1648 = vsel %vm1377, %v1581, %v1251
      %v1650 = vsel %vm1377, %v1584, %v1253
      %v1652 = vsel %vm1377, %v1587, %v1255
      %v1654 = vsel %vm1377, %v1590, %v1257
      %v1656 = vsel %vm1377, %v1593, %v1259
      %v1657 = vsel %vm1377, %v1596, %v1217
      %v1659 = vsel %vm1436, %v1598, %v1261
      %v1661 = vsel %vm1436, %v1600, %v1263
      %v1663 = vsel %vm1436, %v1602, %v1265
      %v1665 = vsel %vm1436, %v1604, %v1267
      %v1667 = vsel %vm1436, %v1606, %v1269
      %v1669 = vsel %vm1436, %v1608, %v1271
      %v1671 = vsel %vm1436, %v1610, %v1273
      %v1673 = vsel %vm1436, %v1612, %v1275
      %v1675 = vsel %vm1436, %v1614, %v1277
      %v1677 = vsel %vm1436, %v1616, %v1279
      %v1679 = vsel %vm1436, %v1618, %v1281
      %v1681 = vsel %vm1436, %v1620, %v1283
      %v1683 = vsel %vm1436, %v1622, %v1285
      %v1685 = vsel %vm1436, %v1624, %v1287
      %v1687 = vsel %vm1436, %v1626, %v1289
      %v1688 = vsel %vm1436, %v1627, %v1275
      %v1690 = vsel %vm1436, %v1629, %v1291
      %v1692 = vsel %vm1436, %v1631, %v1293
      %v1694 = vsel %vm1436, %v1633, %v1295
      %v1696 = vsel %vm1436, %v1635, %v1297
      %v1698 = vsel %vm1436, %v1637, %v1299
      %v1700 = vsel %vm1436, %v1639, %v1301
      %v1702 = vsel %vm1436, %v1641, %v1303
      %v1703 = vsel %vm1436, %v1642, %v1275
      %v1705 = vsel %vm1436, %v1644, %v1305
      %v1707 = vsel %vm1436, %v1646, %v1307
      %v1709 = vsel %vm1436, %v1648, %v1309
      %v1711 = vsel %vm1436, %v1650, %v1311
      %v1713 = vsel %vm1436, %v1652, %v1313
      %v1715 = vsel %vm1436, %v1654, %v1315
      %v1717 = vsel %vm1436, %v1656, %v1317
      %v1718 = vsel %vm1436, %v1657, %v1275
      %v1783 = vunpack.c.l.b16 %v1438
      %v1784 = vunpack.c.l.b16 %v1659
      %v1785 = vunpack.c.l.b16 %v953
      %v1786 = vunpack.c.l.b16 %v1440
      %v1787 = vunpack.c.l.b16 %v1661
      %v1788 = vunpack.c.l.b16 %v954
      %v1789 = vunpack.c.l.b16 %v1442
      %v1790 = vunpack.c.l.b16 %v1663
      %v1791 = vunpack.c.l.b16 %v955
      %v1792 = vunpack.c.l.b16 %v1444
      %v1793 = vunpack.c.l.b16 %v1665
      %v1794 = vunpack.c.l.b16 %v956
      %v1795 = vunpack.c.l.b16 %v1446
      %v1796 = vunpack.c.l.b16 %v1667
      %v1797 = vunpack.c.l.b16 %v957
      %v1798 = vunpack.c.l.b16 %v1448
      %v1799 = vunpack.c.l.b16 %v1669
      %v1800 = vunpack.c.l.b16 %v958
      %v1801 = vunpack.c.l.b16 %v1450
      %v1802 = vunpack.c.l.b16 %v1671
      %v1803 = vunpack.c.l.b16 %v1134
      %v1804 = vunpack.c.l.b16 %v1452
      %v1805 = vunpack.c.l.b16 %v1673
      %v1806 = vunpack.c.l.b16 %v951
      %v1807 = vunpack.c.l.b16 %v1454
      %v1808 = vunpack.c.l.b16 %v1675
      %v1809 = vunpack.c.l.b16 %v960
      %v1810 = vunpack.c.l.b16 %v1456
      %v1811 = vunpack.c.l.b16 %v1677
      %v1812 = vunpack.c.l.b16 %v961
      %v1813 = vunpack.c.l.b16 %v1458
      %v1814 = vunpack.c.l.b16 %v1679
      %v1815 = vunpack.c.l.b16 %v962
      %v1816 = vunpack.c.l.b16 %v1460
      %v1817 = vunpack.c.l.b16 %v1681
      %v1818 = vunpack.c.l.b16 %v963
      %v1819 = vunpack.c.l.b16 %v1462
      %v1820 = vunpack.c.l.b16 %v1683
      %v1821 = vunpack.c.l.b16 %v964
      %v1822 = vunpack.c.l.b16 %v1464
      %v1823 = vunpack.c.l.b16 %v1685
      %v1824 = vunpack.c.l.b16 %v965
      %v1825 = vunpack.c.l.b16 %v1466
      %v1826 = vunpack.c.l.b16 %v1687
      %v1827 = vunpack.c.l.b16 %v1135
      %v1828 = vunpack.c.l.b16 %v1468
      %v1829 = vunpack.c.l.b16 %v1688
      %v1830 = vunpack.c.l.b16 %v1470
      %v1831 = vunpack.c.l.b16 %v1690
      %v1832 = vunpack.c.l.b16 %v967
      %v1833 = vunpack.c.l.b16 %v1472
      %v1834 = vunpack.c.l.b16 %v1692
      %v1835 = vunpack.c.l.b16 %v968
      %v1836 = vunpack.c.l.b16 %v1474
      %v1837 = vunpack.c.l.b16 %v1694
      %v1838 = vunpack.c.l.b16 %v969
      %v1839 = vunpack.c.l.b16 %v1476
      %v1840 = vunpack.c.l.b16 %v1696
      %v1841 = vunpack.c.l.b16 %v970
      %v1842 = vunpack.c.l.b16 %v1478
      %v1843 = vunpack.c.l.b16 %v1698
      %v1844 = vunpack.c.l.b16 %v971
      %v1845 = vunpack.c.l.b16 %v1480
      %v1846 = vunpack.c.l.b16 %v1700
      %v1847 = vunpack.c.l.b16 %v972
      %v1848 = vunpack.c.l.b16 %v1482
      %v1849 = vunpack.c.l.b16 %v1702
      %v1850 = vunpack.c.l.b16 %v1136
      %v1851 = vunpack.c.l.b16 %v1484
      %v1852 = vunpack.c.l.b16 %v1703
      %v1853 = vunpack.c.l.b16 %v1486
      %v1854 = vunpack.c.l.b16 %v1705
      %v1855 = vunpack.c.l.b16 %v974
      %v1856 = vunpack.c.l.b16 %v1488
      %v1857 = vunpack.c.l.b16 %v1707
      %v1858 = vunpack.c.l.b16 %v975
      %v1859 = vunpack.c.l.b16 %v1490
      %v1860 = vunpack.c.l.b16 %v1709
      %v1861 = vunpack.c.l.b16 %v976
      %v1862 = vunpack.c.l.b16 %v1492
      %v1863 = vunpack.c.l.b16 %v1711
      %v1864 = vunpack.c.l.b16 %v977
      %v1865 = vunpack.c.l.b16 %v1494
      %v1866 = vunpack.c.l.b16 %v1713
      %v1867 = vunpack.c.l.b16 %v978
      %v1868 = vunpack.c.l.b16 %v1496
      %v1869 = vunpack.c.l.b16 %v1715
      %v1870 = vunpack.c.l.b16 %v979
      %v1871 = vunpack.c.l.b16 %v1498
      %v1872 = vunpack.c.l.b16 %v1717
      %v1873 = vunpack.c.l.b16 %v1137
      %v1874 = vunpack.c.l.b16 %v1500
      %v1875 = vunpack.c.l.b16 %v1718
      %v1876 = vld [vmem:[%s1] sm:$0xf]
      %v1877 = vld [vmem:[%s1 + $0x4] sm:$0xf]
      %v1878 = vld [vmem:[%s1 + $0x8] sm:$0xf]
      %v1879 = vld [vmem:[%s1 + $0xc] sm:$0xf]
      %v1880 = vld [vmem:[%s1 + $0x10] sm:$0xf]
      %v1881 = vld [vmem:[%s1 + $0x14] sm:$0xf]
      %v1882 = vld [vmem:[%s1 + $0x18] sm:$0xf]
      %v1883 = vld [vmem:[%s1 + $0x1c] sm:$0xf]
      %v1884 = vld [vmem:[%s1 + $0x20] sm:$0xf]
      %v1885 = vld [vmem:[%s1 + $0x24] sm:$0xf]
      %v1886 = vld [vmem:[%s1 + $0x28] sm:$0xf]
      %v1887 = vld [vmem:[%s1 + $0x2c] sm:$0xf]
      %v1888 = vld [vmem:[%s1 + $0x30] sm:$0xf]
      %v1889 = vld [vmem:[%s1 + $0x34] sm:$0xf]
      %v1890 = vld [vmem:[%s1 + $0x38] sm:$0xf]
      %v1891 = vld [vmem:[%s1 + $0x3c] sm:$0xf]
      %v1892 = vld [vmem:[%s1 + $0x40] sm:$0xf]
      %v1893 = vld [vmem:[%s1 + $0x44] sm:$0xf]
      %v1894 = vld [vmem:[%s1 + $0x48] sm:$0xf]
      %v1895 = vld [vmem:[%s1 + $0x4c] sm:$0xf]
      %v1896 = vld [vmem:[%s1 + $0x50] sm:$0xf]
      %v1897 = vld [vmem:[%s1 + $0x54] sm:$0xf]
      %v1898 = vld [vmem:[%s1 + $0x58] sm:$0xf]
      %v1899 = vld [vmem:[%s1 + $0x5c] sm:$0xf]
      %v1900 = vld [vmem:[%s1 + $0x60] sm:$0xf]
      %v1901 = vld [vmem:[%s1 + $0x64] sm:$0xf]
      %v1902 = vld [vmem:[%s1 + $0x68] sm:$0xf]
      %v1903 = vld [vmem:[%s1 + $0x6c] sm:$0xf]
      %v1904 = vld [vmem:[%s1 + $0x70] sm:$0xf]
      %v1905 = vld [vmem:[%s1 + $0x74] sm:$0xf]
      %v1906 = vld [vmem:[%s1 + $0x78] sm:$0xf]
      %v1907 = vld [vmem:[%s1 + $0x7c] sm:$0xf]
      %v1908 = vld [vmem:[%s1 + $0x80] sm:$0xf]
      %v1909 = vld [vmem:[%s1 + $0x84] sm:$0xf]
      %v1910 = vld [vmem:[%s1 + $0x88] sm:$0xf]
      %v1911 = vld [vmem:[%s1 + $0x8c] sm:$0xf]
      %v1912 = vpack.c.b16 %v1786, %v1783
      %v1913 = vpack.c.b16 %v1787, %v1784
      %v1914 = vpack.c.b16 %v1788, %v1785
      %v1915 = vpack.c.b16 %v1792, %v1789
      %v1916 = vpack.c.b16 %v1793, %v1790
      %v1917 = vpack.c.b16 %v1794, %v1791
      %v1918 = vpack.c.b16 %v1798, %v1795
      %v1919 = vpack.c.b16 %v1799, %v1796
      %v1920 = vpack.c.b16 %v1800, %v1797
      %v1921 = vpack.c.b16 %v1804, %v1801
      %v1922 = vpack.c.b16 %v1805, %v1802
      %v1923 = vpack.c.b16 %v1806, %v1803
      %v1924 = vpack.c.b16 %v1810, %v1807
      %v1925 = vpack.c.b16 %v1811, %v1808
      %v1926 = vpack.c.b16 %v1812, %v1809
      %v1927 = vpack.c.b16 %v1816, %v1813
      %v1928 = vpack.c.b16 %v1817, %v1814
      %v1929 = vpack.c.b16 %v1818, %v1815
      %v1930 = vpack.c.b16 %v1822, %v1819
      %v1931 = vpack.c.b16 %v1823, %v1820
      %v1932 = vpack.c.b16 %v1824, %v1821
      %v1933 = vpack.c.b16 %v1828, %v1825
      %v1934 = vpack.c.b16 %v1829, %v1826
      %v1935 = vpack.c.b16 %v1806, %v1827
      %v1936 = vpack.c.b16 %v1833, %v1830
      %v1937 = vpack.c.b16 %v1834, %v1831
      %v1938 = vpack.c.b16 %v1835, %v1832
      %v1939 = vpack.c.b16 %v1839, %v1836
      %v1940 = vpack.c.b16 %v1840, %v1837
      %v1941 = vpack.c.b16 %v1841, %v1838
      %v1942 = vpack.c.b16 %v1845, %v1842
      %v1943 = vpack.c.b16 %v1846, %v1843
      %v1944 = vpack.c.b16 %v1847, %v1844
      %v1945 = vpack.c.b16 %v1851, %v1848
      %v1946 = vpack.c.b16 %v1852, %v1849
      %v1947 = vpack.c.b16 %v1806, %v1850
      %v1948 = vpack.c.b16 %v1856, %v1853
      %v1949 = vpack.c.b16 %v1857, %v1854
      %v1950 = vpack.c.b16 %v1858, %v1855
      %v1951 = vpack.c.b16 %v1862, %v1859
      %v1952 = vpack.c.b16 %v1863, %v1860
      %v1953 = vpack.c.b16 %v1864, %v1861
      %v1954 = vpack.c.b16 %v1868, %v1865
      %v1955 = vpack.c.b16 %v1869, %v1866
      %v1956 = vpack.c.b16 %v1870, %v1867
      %v1957 = vpack.c.b16 %v1874, %v1871
      %v1958 = vpack.c.b16 %v1875, %v1872
      %v1959 = vpack.c.b16 %v1806, %v1873
      %v2028 = vunpack.c.l.b16 %v1876
      %v2029 = vunpack.c.l.b16 %v1877
      %v2030 = vunpack.c.l.b16 %v1878
      %v2031 = vunpack.c.l.b16 %v1879
      %v2032 = vunpack.c.l.b16 %v1880
      %v2033 = vunpack.c.l.b16 %v1881
      %v2034 = vunpack.c.l.b16 %v1882
      %v2035 = vunpack.c.l.b16 %v1883
      %v2036 = vunpack.c.l.b16 %v1884
      %v2037 = vunpack.c.l.b16 %v1885
      %v2038 = vunpack.c.l.b16 %v1886
      %v2039 = vunpack.c.l.b16 %v1887
      %v2040 = vunpack.c.l.b16 %v1888
      %v2041 = vunpack.c.l.b16 %v1889
      %v2042 = vunpack.c.l.b16 %v1890
      %v2043 = vunpack.c.l.b16 %v1891
      %v2044 = vunpack.c.l.b16 %v1892
      %v2045 = vunpack.c.l.b16 %v1893
      %v2046 = vunpack.c.l.b16 %v1894
      %v2047 = vunpack.c.l.b16 %v1895
      %v2048 = vunpack.c.l.b16 %v1896
      %v2049 = vunpack.c.l.b16 %v1897
      %v2050 = vunpack.c.l.b16 %v1898
      %v2051 = vunpack.c.l.b16 %v1899
      %v2052 = vunpack.c.l.b16 %v1900
      %v2053 = vunpack.c.l.b16 %v1901
      %v2054 = vunpack.c.l.b16 %v1902
      %v2055 = vunpack.c.l.b16 %v1903
      %v2056 = vunpack.c.l.b16 %v1904
      %v2057 = vunpack.c.l.b16 %v1905
      %v2058 = vunpack.c.l.b16 %v1906
      %v2059 = vunpack.c.l.b16 %v1907
      %v2060 = vunpack.c.l.b16 %v1908
      %v2061 = vunpack.c.l.b16 %v1909
      %v2062 = vunpack.c.l.b16 %v1910
      %v2063 = vunpack.c.l.b16 %v1911
      %v2064 = vpack.c.b16 %v2029, %v2028
      %v2065 = vpack.c.b16 %v2031, %v2030
      %v2066 = vpack.c.b16 %v2033, %v2032
      %v2067 = vpack.c.b16 %v2035, %v2034
      %v2068 = vpack.c.b16 %v2037, %v2036
      %v2069 = vpack.c.b16 %v2039, %v2038
      %v2070 = vpack.c.b16 %v2041, %v2040
      %v2071 = vpack.c.b16 %v2043, %v2042
      %v2072 = vpack.c.b16 %v2045, %v2044
      %v2073 = vpack.c.b16 %v2047, %v2046
      %v2074 = vpack.c.b16 %v2049, %v2048
      %v2075 = vpack.c.b16 %v2051, %v2050
      %v2076 = vpack.c.b16 %v2053, %v2052
      %v2077 = vpack.c.b16 %v2055, %v2054
      %v2078 = vpack.c.b16 %v2057, %v2056
      %v2079 = vpack.c.b16 %v2059, %v2058
      %v2080 = vpack.c.b16 %v2061, %v2060
      %v2081 = vpack.c.b16 %v2063, %v2062
      %v2101 = vsel %vm1318, %v1914, 0
      %v2104 = vsel %vm1318, %v1917, 0
      %v2107 = vsel %vm1318, %v1920, 0
      %v2110 = vsel %vm1318, %v1923, 0
      %v2113 = vsel %vm1318, %v1926, 0
      %v2116 = vsel %vm1318, %v1929, 0
      %v2119 = vsel %vm1318, %v1932, 0
      %v2122 = vsel %vm1318, %v1935, 0
      %v2125 = vsel %vm1318, %v1938, 0
      %v2128 = vsel %vm1318, %v1941, 0
      %v2131 = vsel %vm1318, %v1944, 0
      %v2134 = vsel %vm1318, %v1947, 0
      %v2137 = vsel %vm1318, %v1950, 0
      %v2140 = vsel %vm1318, %v1953, 0
      %v2143 = vsel %vm1318, %v1956, 0
      %v2146 = vsel %vm1318, %v1959, 0
      %2148 = vmatprep.subr.bf16.mxu0 0
      %2149 = vmatpush1.bf16.msra.mxu0 %v2071
      %2150 = vmatprep.subr.bf16.mxu0 0
      %2151 = vmatpush1.bf16.msra.mxu0 %v2070
      %2152 = vmatprep.subr.bf16.mxu0 0
      %2153 = vmatpush1.bf16.msra.mxu0 %v2069
      %2154 = vmatprep.subr.bf16.mxu0 0
      %2155 = vmatpush1.bf16.msra.mxu0 %v2068
      %2156 = vmatprep.subr.bf16.mxu0 0
      %2157 = vmatpush1.bf16.msra.mxu0 %v2067
      %2158 = vmatprep.subr.bf16.mxu0 0
      %2159 = vmatpush1.bf16.msra.mxu0 %v2066
      %2160 = vmatprep.subr.bf16.mxu0 0
      %2161 = vmatpush1.bf16.msra.mxu0 %v2065
      %2162 = vmatprep.subr.bf16.mxu0 0
      %2163 = vmatpush1.bf16.msra.mxu0 %v2064
      %2164 = vmatprep.subr.bf16.mxu0 0
      %2165 = vmatpush2.bf16.msra.mxu0 %v2079
      %2166 = vmatprep.subr.bf16.mxu0 0
      %2167 = vmatpush2.bf16.msra.mxu0 %v2078
      %2168 = vmatprep.subr.bf16.mxu0 0
      %2169 = vmatpush2.bf16.msra.mxu0 %v2077
      %2170 = vmatprep.subr.bf16.mxu0 0
      %2171 = vmatpush2.bf16.msra.mxu0 %v2076
      %2172 = vmatprep.subr.bf16.mxu0 0
      %2173 = vmatpush2.bf16.msra.mxu0 %v2075
      %2174 = vmatprep.subr.bf16.mxu0 0
      %2175 = vmatpush2.bf16.msra.mxu0 %v2074
      %2176 = vmatprep.subr.bf16.mxu0 0
      %2177 = vmatpush2.bf16.msra.mxu0 %v2073
      %2178 = vmatprep.subr.bf16.mxu0 0
      %2179 = vmatpush2.bf16.msra.mxu0 %v2072
      %2180 = vmatprep.mubr.bf16.mxu0 %v1913
      %2181 = vmatmul.mubr.bf16.gmra.mxu0 %v1912
      %v2182 = vpop.f32.mrf.mxu0
      %v2183 = vadd.f32 0.0, %v2182
      %v2184 = vpop.f32.mrf.mxu0
      %v2185 = vpop.f32.mrf.mxu0
      %v2186 = vadd.f32 0.0, %v2185
      %v2187 = vpop.f32.mrf.mxu0
      %2188 = vmatprep.mubr.bf16.mxu0 %v1916
      %2189 = vmatmul.mubr.bf16.gmra.mxu0 %v1915
      %v2190 = vpop.f32.mrf.mxu0
      %v2191 = vadd.f32 0.0, %v2190
      %v2192 = vpop.f32.mrf.mxu0
      %v2193 = vpop.f32.mrf.mxu0
      %v2194 = vadd.f32 0.0, %v2193
      %v2195 = vpop.f32.mrf.mxu0
      %2196 = vmatprep.mubr.bf16.mxu0 %v1919
      %2197 = vmatmul.mubr.bf16.gmra.mxu0 %v1918
      %v2198 = vpop.f32.mrf.mxu0
      %v2199 = vadd.f32 0.0, %v2198
      %v2200 = vpop.f32.mrf.mxu0
      %v2201 = vpop.f32.mrf.mxu0
      %v2202 = vadd.f32 0.0, %v2201
      %v2203 = vpop.f32.mrf.mxu0
      %2204 = vmatprep.mubr.bf16.mxu0 %v1922
      %2205 = vmatmul.mubr.bf16.gmra.mxu0 %v1921
      %v2206 = vpop.f32.mrf.mxu0
      %v2207 = vadd.f32 0.0, %v2206
      %v2208 = vpop.f32.mrf.mxu0
      %v2209 = vpop.f32.mrf.mxu0
      %v2210 = vadd.f32 0.0, %v2209
      %v2211 = vpop.f32.mrf.mxu0
      %2212 = vmatprep.mubr.bf16.mxu0 %v1925
      %2213 = vmatmul.mubr.bf16.gmra.mxu0 %v1924
      %v2214 = vpop.f32.mrf.mxu0
      %v2215 = vadd.f32 0.0, %v2214
      %v2216 = vpop.f32.mrf.mxu0
      %v2217 = vpop.f32.mrf.mxu0
      %v2218 = vadd.f32 0.0, %v2217
      %v2219 = vpop.f32.mrf.mxu0
      %2220 = vmatprep.mubr.bf16.mxu0 %v1928
      %2221 = vmatmul.mubr.bf16.gmra.mxu0 %v1927
      %v2222 = vpop.f32.mrf.mxu0
      %v2223 = vadd.f32 0.0, %v2222
      %v2224 = vpop.f32.mrf.mxu0
      %v2225 = vpop.f32.mrf.mxu0
      %v2226 = vadd.f32 0.0, %v2225
      %v2227 = vpop.f32.mrf.mxu0
      %2228 = vmatprep.mubr.bf16.mxu0 %v1931
      %2229 = vmatmul.mubr.bf16.gmra.mxu0 %v1930
      %v2230 = vpop.f32.mrf.mxu0
      %v2231 = vadd.f32 0.0, %v2230
      %v2232 = vpop.f32.mrf.mxu0
      %v2233 = vpop.f32.mrf.mxu0
      %v2234 = vadd.f32 0.0, %v2233
      %v2235 = vpop.f32.mrf.mxu0
      %2236 = vmatprep.mubr.bf16.mxu0 %v1934
      %2237 = vmatmul.mubr.bf16.gmra.mxu0 %v1933
      %v2238 = vpop.f32.mrf.mxu0
      %v2239 = vadd.f32 0.0, %v2238
      %v2240 = vpop.f32.mrf.mxu0
      %v2241 = vpop.f32.mrf.mxu0
      %v2242 = vadd.f32 0.0, %v2241
      %v2243 = vpop.f32.mrf.mxu0
      %2244 = vmatprep.mubr.bf16.mxu0 %v1937
      %2245 = vmatmul.mubr.bf16.gmra.mxu0 %v1936
      %v2246 = vpop.f32.mrf.mxu0
      %v2247 = vadd.f32 0.0, %v2246
      %v2248 = vpop.f32.mrf.mxu0
      %v2249 = vpop.f32.mrf.mxu0
      %v2250 = vadd.f32 0.0, %v2249
      %v2251 = vpop.f32.mrf.mxu0
      %2252 = vmatprep.mubr.bf16.mxu0 %v1940
      %2253 = vmatmul.mubr.bf16.gmra.mxu0 %v1939
      %v2254 = vpop.f32.mrf.mxu0
      %v2255 = vadd.f32 0.0, %v2254
      %v2256 = vpop.f32.mrf.mxu0
      %v2257 = vpop.f32.mrf.mxu0
      %v2258 = vadd.f32 0.0, %v2257
      %v2259 = vpop.f32.mrf.mxu0
      %2260 = vmatprep.mubr.bf16.mxu0 %v1943
      %2261 = vmatmul.mubr.bf16.gmra.mxu0 %v1942
      %v2262 = vpop.f32.mrf.mxu0
      %v2263 = vadd.f32 0.0, %v2262
      %v2264 = vpop.f32.mrf.mxu0
      %v2265 = vpop.f32.mrf.mxu0
      %v2266 = vadd.f32 0.0, %v2265
      %v2267 = vpop.f32.mrf.mxu0
      %2268 = vmatprep.mubr.bf16.mxu0 %v1946
      %2269 = vmatmul.mubr.bf16.gmra.mxu0 %v1945
      %v2270 = vpop.f32.mrf.mxu0
      %v2271 = vadd.f32 0.0, %v2270
      %v2272 = vpop.f32.mrf.mxu0
      %v2273 = vpop.f32.mrf.mxu0
      %v2274 = vadd.f32 0.0, %v2273
      %v2275 = vpop.f32.mrf.mxu0
      %2276 = vmatprep.mubr.bf16.mxu0 %v1949
      %2277 = vmatmul.mubr.bf16.gmra.mxu0 %v1948
      %v2278 = vpop.f32.mrf.mxu0
      %v2279 = vadd.f32 0.0, %v2278
      %v2280 = vpop.f32.mrf.mxu0
      %v2281 = vpop.f32.mrf.mxu0
      %v2282 = vadd.f32 0.0, %v2281
      %v2283 = vpop.f32.mrf.mxu0
      %2284 = vmatprep.mubr.bf16.mxu0 %v1952
      %2285 = vmatmul.mubr.bf16.gmra.mxu0 %v1951
      %v2286 = vpop.f32.mrf.mxu0
      %v2287 = vadd.f32 0.0, %v2286
      %v2288 = vpop.f32.mrf.mxu0
      %v2289 = vpop.f32.mrf.mxu0
      %v2290 = vadd.f32 0.0, %v2289
      %v2291 = vpop.f32.mrf.mxu0
      %2292 = vmatprep.mubr.bf16.mxu0 %v1955
      %2293 = vmatmul.mubr.bf16.gmra.mxu0 %v1954
      %v2294 = vpop.f32.mrf.mxu0
      %v2295 = vadd.f32 0.0, %v2294
      %v2296 = vpop.f32.mrf.mxu0
      %v2297 = vpop.f32.mrf.mxu0
      %v2298 = vadd.f32 0.0, %v2297
      %v2299 = vpop.f32.mrf.mxu0
      %2300 = vmatprep.mubr.bf16.mxu0 %v1958
      %2301 = vmatmul.mubr.bf16.gmra.mxu0 %v1957
      %v2302 = vpop.f32.mrf.mxu0
      %v2303 = vadd.f32 0.0, %v2302
      %v2304 = vpop.f32.mrf.mxu0
      %v2305 = vpop.f32.mrf.mxu0
      %v2306 = vadd.f32 0.0, %v2305
      %v2307 = vpop.f32.mrf.mxu0
      %2308 = vdwg.mxu0
      %2309 = vmatprep.subr.bf16.mxu0 0
      %2310 = vmatpush1.bf16.msra.mxu0 0
      %2311 = vmatprep.subr.bf16.mxu0 0
      %2312 = vmatpush1.bf16.msra.mxu0 0
      %2313 = vmatprep.subr.bf16.mxu0 0
      %2314 = vmatpush1.bf16.msra.mxu0 0
      %2315 = vmatprep.subr.bf16.mxu0 0
      %2316 = vmatpush1.bf16.msra.mxu0 0
      %2317 = vmatprep.subr.bf16.mxu0 0
      %2318 = vmatpush1.bf16.msra.mxu0 0
      %2319 = vmatprep.subr.bf16.mxu0 0
      %2320 = vmatpush1.bf16.msra.mxu0 0
      %2321 = vmatprep.subr.bf16.mxu0 0
      %2322 = vmatpush1.bf16.msra.mxu0 %v2081
      %2323 = vmatprep.subr.bf16.mxu0 0
      %2324 = vmatpush1.bf16.msra.mxu0 %v2080
      %2325 = vmatprep.subr.bf16.mxu0 0
      %2326 = vmatpush2.bf16.msra.mxu0 0
      %2327 = vmatprep.subr.bf16.mxu0 0
      %2328 = vmatpush2.bf16.msra.mxu0 0
      %2329 = vmatprep.subr.bf16.mxu0 0
      %2330 = vmatpush2.bf16.msra.mxu0 0
      %2331 = vmatprep.subr.bf16.mxu0 0
      %2332 = vmatpush2.bf16.msra.mxu0 0
      %2333 = vmatprep.subr.bf16.mxu0 0
      %2334 = vmatpush2.bf16.msra.mxu0 0
      %2335 = vmatprep.subr.bf16.mxu0 0
      %2336 = vmatpush2.bf16.msra.mxu0 0
      %2337 = vmatprep.subr.bf16.mxu0 0
      %2338 = vmatpush2.bf16.msra.mxu0 0
      %2339 = vmatprep.subr.bf16.mxu0 0
      %2340 = vmatpush2.bf16.msra.mxu0 0
      %2341 = vmatprep.mubr.bf16.mxu0 0
      %2342 = vmatmul.mubr.bf16.gmra.mxu0 %v2101
      %v2343 = vpop.f32.mrf.mxu0
      %v2344 = vadd.f32 %v2183, %v2343
      %v2345 = vpop.f32.mrf.mxu0
      %v2346 = vpop.f32.mrf.mxu0
      %v2347 = vadd.f32 %v2186, %v2346
      %v2348 = vpop.f32.mrf.mxu0
      %2349 = vmatprep.mubr.bf16.mxu0 0
      %2350 = vmatmul.mubr.bf16.gmra.mxu0 %v2104
      %v2351 = vpop.f32.mrf.mxu0
      %v2352 = vadd.f32 %v2191, %v2351
      %v2353 = vpop.f32.mrf.mxu0
      %v2354 = vpop.f32.mrf.mxu0
      %v2355 = vadd.f32 %v2194, %v2354
      %v2356 = vpop.f32.mrf.mxu0
      %2357 = vmatprep.mubr.bf16.mxu0 0
      %2358 = vmatmul.mubr.bf16.gmra.mxu0 %v2107
      %v2359 = vpop.f32.mrf.mxu0
      %v2360 = vadd.f32 %v2199, %v2359
      %v2361 = vpop.f32.mrf.mxu0
      %v2362 = vpop.f32.mrf.mxu0
      %v2363 = vadd.f32 %v2202, %v2362
      %v2364 = vpop.f32.mrf.mxu0
      %2365 = vmatprep.mubr.bf16.mxu0 0
      %2366 = vmatmul.mubr.bf16.gmra.mxu0 %v2110
      %v2367 = vpop.f32.mrf.mxu0
      %v2368 = vadd.f32 %v2207, %v2367
      %v2369 = vpop.f32.mrf.mxu0
      %v2370 = vpop.f32.mrf.mxu0
      %v2371 = vadd.f32 %v2210, %v2370
      %v2372 = vpop.f32.mrf.mxu0
      %2373 = vmatprep.mubr.bf16.mxu0 0
      %2374 = vmatmul.mubr.bf16.gmra.mxu0 %v2113
      %v2375 = vpop.f32.mrf.mxu0
      %v2376 = vadd.f32 %v2215, %v2375
      %v2377 = vpop.f32.mrf.mxu0
      %v2378 = vpop.f32.mrf.mxu0
      %v2379 = vadd.f32 %v2218, %v2378
      %v2380 = vpop.f32.mrf.mxu0
      %2381 = vmatprep.mubr.bf16.mxu0 0
      %2382 = vmatmul.mubr.bf16.gmra.mxu0 %v2116
      %v2383 = vpop.f32.mrf.mxu0
      %v2384 = vadd.f32 %v2223, %v2383
      %v2385 = vpop.f32.mrf.mxu0
      %v2386 = vpop.f32.mrf.mxu0
      %v2387 = vadd.f32 %v2226, %v2386
      %v2388 = vpop.f32.mrf.mxu0
      %2389 = vmatprep.mubr.bf16.mxu0 0
      %2390 = vmatmul.mubr.bf16.gmra.mxu0 %v2119
      %v2391 = vpop.f32.mrf.mxu0
      %v2392 = vadd.f32 %v2231, %v2391
      %v2393 = vpop.f32.mrf.mxu0
      %v2394 = vpop.f32.mrf.mxu0
      %v2395 = vadd.f32 %v2234, %v2394
      %v2396 = vpop.f32.mrf.mxu0
      %2397 = vmatprep.mubr.bf16.mxu0 0
      %2398 = vmatmul.mubr.bf16.gmra.mxu0 %v2122
      %v2399 = vpop.f32.mrf.mxu0
      %v2400 = vadd.f32 %v2239, %v2399
      %v2401 = vpop.f32.mrf.mxu0
      %v2402 = vpop.f32.mrf.mxu0
      %v2403 = vadd.f32 %v2242, %v2402
      %v2404 = vpop.f32.mrf.mxu0
      %2405 = vmatprep.mubr.bf16.mxu0 0
      %2406 = vmatmul.mubr.bf16.gmra.mxu0 %v2125
      %v2407 = vpop.f32.mrf.mxu0
      %v2408 = vadd.f32 %v2247, %v2407
      %v2409 = vpop.f32.mrf.mxu0
      %v2410 = vpop.f32.mrf.mxu0
      %v2411 = vadd.f32 %v2250, %v2410
      %v2412 = vpop.f32.mrf.mxu0
      %2413 = vmatprep.mubr.bf16.mxu0 0
      %2414 = vmatmul.mubr.bf16.gmra.mxu0 %v2128
      %v2415 = vpop.f32.mrf.mxu0
      %v2416 = vadd.f32 %v2255, %v2415
      %v2417 = vpop.f32.mrf.mxu0
      %v2418 = vpop.f32.mrf.mxu0
      %v2419 = vadd.f32 %v2258, %v2418
      %v2420 = vpop.f32.mrf.mxu0
      %2421 = vmatprep.mubr.bf16.mxu0 0
      %2422 = vmatmul.mubr.bf16.gmra.mxu0 %v2131
      %v2423 = vpop.f32.mrf.mxu0
      %v2424 = vadd.f32 %v2263, %v2423
      %v2425 = vpop.f32.mrf.mxu0
      %v2426 = vpop.f32.mrf.mxu0
      %v2427 = vadd.f32 %v2266, %v2426
      %v2428 = vpop.f32.mrf.mxu0
      %2429 = vmatprep.mubr.bf16.mxu0 0
      %2430 = vmatmul.mubr.bf16.gmra.mxu0 %v2134
      %v2431 = vpop.f32.mrf.mxu0
      %v2432 = vadd.f32 %v2271, %v2431
      %v2433 = vpop.f32.mrf.mxu0
      %v2434 = vpop.f32.mrf.mxu0
      %v2435 = vadd.f32 %v2274, %v2434
      %v2436 = vpop.f32.mrf.mxu0
      %2437 = vmatprep.mubr.bf16.mxu0 0
      %2438 = vmatmul.mubr.bf16.gmra.mxu0 %v2137
      %v2439 = vpop.f32.mrf.mxu0
      %v2440 = vadd.f32 %v2279, %v2439
      %v2441 = vpop.f32.mrf.mxu0
      %v2442 = vpop.f32.mrf.mxu0
      %v2443 = vadd.f32 %v2282, %v2442
      %v2444 = vpop.f32.mrf.mxu0
      %2445 = vmatprep.mubr.bf16.mxu0 0
      %2446 = vmatmul.mubr.bf16.gmra.mxu0 %v2140
      %v2447 = vpop.f32.mrf.mxu0
      %v2448 = vadd.f32 %v2287, %v2447
      %v2449 = vpop.f32.mrf.mxu0
      %v2450 = vpop.f32.mrf.mxu0
      %v2451 = vadd.f32 %v2290, %v2450
      %v2452 = vpop.f32.mrf.mxu0
      %2453 = vmatprep.mubr.bf16.mxu0 0
      %2454 = vmatmul.mubr.bf16.gmra.mxu0 %v2143
      %v2455 = vpop.f32.mrf.mxu0
      %v2456 = vadd.f32 %v2295, %v2455
      %v2457 = vpop.f32.mrf.mxu0
      %v2458 = vpop.f32.mrf.mxu0
      %v2459 = vadd.f32 %v2298, %v2458
      %v2460 = vpop.f32.mrf.mxu0
      %2461 = vmatprep.mubr.bf16.mxu0 0
      %2462 = vmatmul.mubr.bf16.gmra.mxu0 %v2146
      %v2463 = vpop.f32.mrf.mxu0
      %v2464 = vadd.f32 %v2303, %v2463
      %v2465 = vpop.f32.mrf.mxu0
      %v2466 = vpop.f32.mrf.mxu0
      %v2467 = vadd.f32 %v2306, %v2466
      %v2468 = vpop.f32.mrf.mxu0
      %2469 = vdwg.mxu0
      %v2470 = vld [vmem:[%s2] sm:$0x1]
      %v2472 = vlaneseq
      %v2473 = vshrl.u32 %v2472, 7
      %v2474 = vsub.s32 0, %v2473
      %v2475 = vrot.slane %v2470, %v2474
      %v2477 = vmul.f32 %v2344, %v2475
      %v2478 = vmul.f32 %v2347, %v2475
      %v2479 = vmul.f32 %v2352, %v2475
      %v2480 = vmul.f32 %v2355, %v2475
      %v2481 = vmul.f32 %v2360, %v2475
      %v2482 = vmul.f32 %v2363, %v2475
      %v2483 = vmul.f32 %v2368, %v2475
      %v2484 = vmul.f32 %v2371, %v2475
      %v2485 = vmul.f32 %v2376, %v2475
      %v2486 = vmul.f32 %v2379, %v2475
      %v2487 = vmul.f32 %v2384, %v2475
      %v2488 = vmul.f32 %v2387, %v2475
      %v2489 = vmul.f32 %v2392, %v2475
      %v2490 = vmul.f32 %v2395, %v2475
      %v2491 = vmul.f32 %v2400, %v2475
      %v2492 = vmul.f32 %v2403, %v2475
      %v2493 = vmul.f32 %v2408, %v2475
      %v2494 = vmul.f32 %v2411, %v2475
      %v2495 = vmul.f32 %v2416, %v2475
      %v2496 = vmul.f32 %v2419, %v2475
      %v2497 = vmul.f32 %v2424, %v2475
      %v2498 = vmul.f32 %v2427, %v2475
      %v2499 = vmul.f32 %v2432, %v2475
      %v2500 = vmul.f32 %v2435, %v2475
      %v2501 = vmul.f32 %v2440, %v2475
      %v2502 = vmul.f32 %v2443, %v2475
      %v2503 = vmul.f32 %v2448, %v2475
      %v2504 = vmul.f32 %v2451, %v2475
      %v2505 = vmul.f32 %v2456, %v2475
      %v2506 = vmul.f32 %v2459, %v2475
      %v2507 = vmul.f32 %v2464, %v2475
      %v2508 = vmul.f32 %v2467, %v2475
      %v2509 = vld [vmem:[%s3] sm:$0x1]
      %v2511 = vlaneseq
      %v2512 = vshrl.u32 %v2511, 7
      %v2513 = vsub.s32 0, %v2512
      %v2514 = vrot.slane %v2509, %v2513
      %v2516 = vadd.f32 %v2477, %v2514
      %v2517 = vadd.f32 %v2478, %v2514
      %v2518 = vadd.f32 %v2479, %v2514
      %v2519 = vadd.f32 %v2480, %v2514
      %v2520 = vadd.f32 %v2481, %v2514
      %v2521 = vadd.f32 %v2482, %v2514
      %v2522 = vadd.f32 %v2483, %v2514
      %v2523 = vadd.f32 %v2484, %v2514
      %v2524 = vadd.f32 %v2485, %v2514
      %v2525 = vadd.f32 %v2486, %v2514
      %v2526 = vadd.f32 %v2487, %v2514
      %v2527 = vadd.f32 %v2488, %v2514
      %v2528 = vadd.f32 %v2489, %v2514
      %v2529 = vadd.f32 %v2490, %v2514
      %v2530 = vadd.f32 %v2491, %v2514
      %v2531 = vadd.f32 %v2492, %v2514
      %v2532 = vadd.f32 %v2493, %v2514
      %v2533 = vadd.f32 %v2494, %v2514
      %v2534 = vadd.f32 %v2495, %v2514
      %v2535 = vadd.f32 %v2496, %v2514
      %v2536 = vadd.f32 %v2497, %v2514
      %v2537 = vadd.f32 %v2498, %v2514
      %v2538 = vadd.f32 %v2499, %v2514
      %v2539 = vadd.f32 %v2500, %v2514
      %v2540 = vadd.f32 %v2501, %v2514
      %v2541 = vadd.f32 %v2502, %v2514
      %v2542 = vadd.f32 %v2503, %v2514
      %v2543 = vadd.f32 %v2504, %v2514
      %v2544 = vadd.f32 %v2505, %v2514
      %v2545 = vadd.f32 %v2506, %v2514
      %v2546 = vadd.f32 %v2507, %v2514
      %v2547 = vadd.f32 %v2508, %v2514
      %v2548 = vmax.f32 %v2516, 0.0
      %v2549 = vmax.f32 %v2517, 0.0
      %v2550 = vmax.f32 %v2518, 0.0
      %v2551 = vmax.f32 %v2519, 0.0
      %v2552 = vmax.f32 %v2520, 0.0
      %v2553 = vmax.f32 %v2521, 0.0
      %v2554 = vmax.f32 %v2522, 0.0
      %v2555 = vmax.f32 %v2523, 0.0
      %v2556 = vmax.f32 %v2524, 0.0
      %v2557 = vmax.f32 %v2525, 0.0
      %v2558 = vmax.f32 %v2526, 0.0
      %v2559 = vmax.f32 %v2527, 0.0
      %v2560 = vmax.f32 %v2528, 0.0
      %v2561 = vmax.f32 %v2529, 0.0
      %v2562 = vmax.f32 %v2530, 0.0
      %v2563 = vmax.f32 %v2531, 0.0
      %v2564 = vmax.f32 %v2532, 0.0
      %v2565 = vmax.f32 %v2533, 0.0
      %v2566 = vmax.f32 %v2534, 0.0
      %v2567 = vmax.f32 %v2535, 0.0
      %v2568 = vmax.f32 %v2536, 0.0
      %v2569 = vmax.f32 %v2537, 0.0
      %v2570 = vmax.f32 %v2538, 0.0
      %v2571 = vmax.f32 %v2539, 0.0
      %v2572 = vmax.f32 %v2540, 0.0
      %v2573 = vmax.f32 %v2541, 0.0
      %v2574 = vmax.f32 %v2542, 0.0
      %v2575 = vmax.f32 %v2543, 0.0
      %v2576 = vmax.f32 %v2544, 0.0
      %v2577 = vmax.f32 %v2545, 0.0
      %v2578 = vmax.f32 %v2546, 0.0
      %v2579 = vmax.f32 %v2547, 0.0
      %v2580 = vpack.c.bf16 %v2548, %v2548
      %v2581 = vpack.c.bf16 %v2549, %v2549
      %v2582 = vpack.c.bf16 %v2550, %v2550
      %v2583 = vpack.c.bf16 %v2551, %v2551
      %v2584 = vpack.c.bf16 %v2552, %v2552
      %v2585 = vpack.c.bf16 %v2553, %v2553
      %v2586 = vpack.c.bf16 %v2554, %v2554
      %v2587 = vpack.c.bf16 %v2555, %v2555
      %v2588 = vpack.c.bf16 %v2556, %v2556
      %v2589 = vpack.c.bf16 %v2557, %v2557
      %v2590 = vpack.c.bf16 %v2558, %v2558
      %v2591 = vpack.c.bf16 %v2559, %v2559
      %v2592 = vpack.c.bf16 %v2560, %v2560
      %v2593 = vpack.c.bf16 %v2561, %v2561
      %v2594 = vpack.c.bf16 %v2562, %v2562
      %v2595 = vpack.c.bf16 %v2563, %v2563
      %v2596 = vpack.c.bf16 %v2564, %v2564
      %v2597 = vpack.c.bf16 %v2565, %v2565
      %v2598 = vpack.c.bf16 %v2566, %v2566
      %v2599 = vpack.c.bf16 %v2567, %v2567
      %v2600 = vpack.c.bf16 %v2568, %v2568
      %v2601 = vpack.c.bf16 %v2569, %v2569
      %v2602 = vpack.c.bf16 %v2570, %v2570
      %v2603 = vpack.c.bf16 %v2571, %v2571
      %v2604 = vpack.c.bf16 %v2572, %v2572
      %v2605 = vpack.c.bf16 %v2573, %v2573
      %v2606 = vpack.c.bf16 %v2574, %v2574
      %v2607 = vpack.c.bf16 %v2575, %v2575
      %v2608 = vpack.c.bf16 %v2576, %v2576
      %v2609 = vpack.c.bf16 %v2577, %v2577
      %v2610 = vpack.c.bf16 %v2578, %v2578
      %v2611 = vpack.c.bf16 %v2579, %v2579
      %2612 = vst [vmem:[%s204] sm:$0xf] %v2580
      %2613 = vst [vmem:[%s204 + $0x4] sm:$0xf] %v2581
      %2614 = vst [vmem:[%s204 + $0x8] sm:$0xf] %v2582
      %2615 = vst [vmem:[%s204 + $0xc] sm:$0xf] %v2583
      %2616 = vst [vmem:[%s204 + $0x10] sm:$0xf] %v2584
      %2617 = vst [vmem:[%s204 + $0x14] sm:$0xf] %v2585
      %2618 = vst [vmem:[%s204 + $0x18] sm:$0xf] %v2586
      %2619 = vst [vmem:[%s204 + $0x1c] sm:$0xf] %v2587
      %2620 = vst [vmem:[%s204 + $0x20] sm:$0xf] %v2588
      %2621 = vst [vmem:[%s204 + $0x24] sm:$0xf] %v2589
      %2622 = vst [vmem:[%s204 + $0x28] sm:$0xf] %v2590
      %2623 = vst [vmem:[%s204 + $0x2c] sm:$0xf] %v2591
      %2624 = vst [vmem:[%s204 + $0x30] sm:$0xf] %v2592
      %2625 = vst [vmem:[%s204 + $0x34] sm:$0xf] %v2593
      %2626 = vst [vmem:[%s204 + $0x38] sm:$0xf] %v2594
      %2627 = vst [vmem:[%s204 + $0x3c] sm:$0xf] %v2595
      %2628 = vst [vmem:[%s204 + $0x40] sm:$0xf] %v2596
      %2629 = vst [vmem:[%s204 + $0x44] sm:$0xf] %v2597
      %2630 = vst [vmem:[%s204 + $0x48] sm:$0xf] %v2598
      %2631 = vst [vmem:[%s204 + $0x4c] sm:$0xf] %v2599
      %2632 = vst [vmem:[%s204 + $0x50] sm:$0xf] %v2600
      %2633 = vst [vmem:[%s204 + $0x54] sm:$0xf] %v2601
      %2634 = vst [vmem:[%s204 + $0x58] sm:$0xf] %v2602
      %2635 = vst [vmem:[%s204 + $0x5c] sm:$0xf] %v2603
      %2636 = vst [vmem:[%s204 + $0x60] sm:$0xf] %v2604
      %2637 = vst [vmem:[%s204 + $0x64] sm:$0xf] %v2605
      %2638 = vst [vmem:[%s204 + $0x68] sm:$0xf] %v2606
      %2639 = vst [vmem:[%s204 + $0x6c] sm:$0xf] %v2607
      %2640 = vst [vmem:[%s204 + $0x70] sm:$0xf] %v2608
      %2641 = vst [vmem:[%s204 + $0x74] sm:$0xf] %v2609
      %2642 = vst [vmem:[%s204 + $0x78] sm:$0xf] %v2610
      %2643 = vst [vmem:[%s204 + $0x7c] sm:$0xf] %v2611
      %s2644 = smul.u32 4, %s15
      %p2645 = scmp.lt.s32.totalorder %s2644, 7
      %s2646 = scalar_select %p2645, %s2644, 7
      %s2647 = smul.addr %s2646, 8
      %s2648 = smul.addr %s2647, 4
      %s2649 = scalar_lea.vmem %s4, %s2648
      // Predicated region
      $region37: #{mixed_3c.9} parent=35 // pred_check
        %p2650 = pneg %p122
      $region38: #{mixed_3c.9} parent=35 // pred_check_branch
        %2652 = sbr.rel (%p2650) target = $region40
      $region39: #{mixed_3c.9} parent=35 // pred_region
        %s2653 = smul.u32 4, %s15
      $region40: #{mixed_3c.9} parent=35 // pred_fallthru
        _
    $region36: #{mixed_3c.9} parent=5 // pred_fallthru
      _
    %p2654 = scmp.le.s32.totalorder 2, %s10
    // Predicated region
    $region41: #{mixed_3c.9} parent=5 // pred_check
      %p2655 = pneg %p2654
    $region42: #{mixed_3c.9} parent=5 // pred_check_branch
      %2657 = sbr.rel (%p2655) target = $region44
    $region43: #{mixed_3c.9} parent=5 // pred_region
      %s2658 = ssub.s32 %s10, 2
      // Predicated region
      $region45: #{mixed_3c.9} parent=43 // pred_check
        %p2659 = pneg %p128
      $region46: #{mixed_3c.9} parent=43 // pred_check_branch
        %2661 = sbr.rel (%p2659) target = $region48
      $region47: #{mixed_3c.9} parent=43 // pred_region
        %s2662 = smul.u32 4, %s16
        %p2663 = scmp.lt.s32.totalorder %s2662, 7
        %s2664 = scalar_select %p2663, %s2662, 7
        %s2665 = smul.addr %s2664, 8
        %s2666 = smul.addr %s2665, 4
        %s2667 = scalar_lea.vmem %s4, %s2666
      $region48: #{mixed_3c.9} parent=43 // pred_fallthru
        _
    $region44: #{mixed_3c.9} parent=5 // pred_fallthru
      _
  $region6: #{mixed_3c.9} parent=0 // loop_footer
    %s14 = sadd.s32 1, %s10
  $region7: #{mixed_3c.9} parent=0 // loop_footer_branch
    %9 = sbr.rel target = $region3
  $region8: #{mixed_3c.9} parent=0 // loop_exit
    _

// kernel: mixed_3c.6
$region0: #{mixed_3c.6}
  #allocation0 [shape = 'u32[]', space=smem, size = 0x4, offset = 0x4, fixed_abs, tag = 'smem constant byte address 0x4 - core index']
  #allocation1 [shape = 'u32[144,128]{1,0:T(1,128)}', space=vmem, size = 0x12000, scoped, tag = 'internal scratch']
  %s0 = inlined_call_operand.vmem [shape: f32[512,256], index: 0, kind: input, shape index: {}]
  %s1 = inlined_call_operand.vmem [shape: bf16[256,288], index: 1, kind: input, shape index: {}]
  %s2 = inlined_call_operand.vmem [shape: f32[1,288], index: 2, kind: input, shape index: {}]
  %s3 = inlined_call_operand.vmem [shape: f32[1,288], index: 3, kind: input, shape index: {}]
  %s4 = inlined_call_operand.vmem [shape: f32[512,128], index: 4, kind: output, shape index: {0}]
  %s5 = inlined_call_operand.vmem [shape: bf16[512,128], index: 5, kind: output, shape index: {1}]
  %s6 = inlined_call_operand.vmem [shape: bf16[512,32], index: 6, kind: output, shape index: {2}]
  %7 = xla_tuple %s4, %s5, %s6
  %s8 = sld [smem:[#allocation0]]
  $region42: #{mixed_3c.6} parent=0
    _
  %s10 = ssub.s32 1, %s8
  %s11 = scalar_select 0, %s10, %s8
  // Predicated region
  $region2: #{mixed_3c.6} parent=0 // pred_check
    _
  $region3: #{mixed_3c.6} parent=0 // pred_check_branch
    %13 = sbr.rel (0) target = $region5
  $region4: #{mixed_3c.6} parent=0 // pred_region
    _
  $region5: #{mixed_3c.6} parent=0 // pred_fallthru
    _
  // Predicated region
  $region6: #{mixed_3c.6} parent=0 // pred_check
    _
  $region7: #{mixed_3c.6} parent=0 // pred_check_branch
    %15 = sbr.rel (0) target = $region9
  $region8: #{mixed_3c.6} parent=0 // pred_region
    _
  $region9: #{mixed_3c.6} parent=0 // pred_fallthru
    _
  // Predicated region
  $region10: #{mixed_3c.6} parent=0 // pred_check
    _
  $region11: #{mixed_3c.6} parent=0 // pred_check_branch
    %17 = sbr.rel (0) target = $region13
  $region12: #{mixed_3c.6} parent=0 // pred_region
    _
  $region13: #{mixed_3c.6} parent=0 // pred_fallthru
    _
  // Predicated region
  $region14: #{mixed_3c.6} parent=0 // pred_check
    _
  $region15: #{mixed_3c.6} parent=0 // pred_check_branch
    %19 = sbr.rel (0) target = $region17
  $region16: #{mixed_3c.6} parent=0 // pred_region
    _
  $region17: #{mixed_3c.6} parent=0 // pred_fallthru
    _
  %v21 = vld [vmem:[%s0] sm:$0xff]
  %v22 = vld [vmem:[%s0 + $0x8] sm:$0xff]
  %v23 = vld [vmem:[%s0 + $0x10] sm:$0xff]
  %v24 = vld [vmem:[%s0 + $0x18] sm:$0xff]
  %v25 = vld [vmem:[%s0 + $0x20] sm:$0xff]
  %v26 = vld [vmem:[%s0 + $0x28] sm:$0xff]
  %v27 = vld [vmem:[%s0 + $0x30] sm:$0xff]
  %v28 = vld [vmem:[%s0 + $0x38] sm:$0xff]
  %v29 = vld [vmem:[%s0 + $0x40] sm:$0xff]
  %v30 = vld [vmem:[%s0 + $0x48] sm:$0xff]
  %v31 = vld [vmem:[%s0 + $0x50] sm:$0xff]
  %v32 = vld [vmem:[%s0 + $0x58] sm:$0xff]
  %v33 = vld [vmem:[%s0 + $0x60] sm:$0xff]
  %v34 = vld [vmem:[%s0 + $0x68] sm:$0xff]
  %v35 = vld [vmem:[%s0 + $0x70] sm:$0xff]
  %v36 = vld [vmem:[%s0 + $0x78] sm:$0xff]
  %v37 = vld [vmem:[%s0 + $0x80] sm:$0xff]
  %v38 = vld [vmem:[%s0 + $0x88] sm:$0xff]
  %v39 = vld [vmem:[%s0 + $0x90] sm:$0xff]
  %v40 = vld [vmem:[%s0 + $0x98] sm:$0xff]
  %v41 = vld [vmem:[%s0 + $0xa0] sm:$0xff]
  %v42 = vld [vmem:[%s0 + $0xa8] sm:$0xff]
  %v43 = vld [vmem:[%s0 + $0xb0] sm:$0xff]
  %v44 = vld [vmem:[%s0 + $0xb8] sm:$0xff]
  %v45 = vld [vmem:[%s0 + $0xc0] sm:$0xff]
  %v46 = vld [vmem:[%s0 + $0xc8] sm:$0xff]
  %v47 = vld [vmem:[%s0 + $0xd0] sm:$0xff]
  %v48 = vld [vmem:[%s0 + $0xd8] sm:$0xff]
  %v49 = vld [vmem:[%s0 + $0xe0] sm:$0xff]
  %v50 = vld [vmem:[%s0 + $0xe8] sm:$0xff]
  %v51 = vld [vmem:[%s0 + $0xf0] sm:$0xff]
  %v52 = vld [vmem:[%s0 + $0xf8] sm:$0xff]
  %v53 = vld [vmem:[%s0 + $0x100] sm:$0xff]
  %v54 = vld [vmem:[%s0 + $0x108] sm:$0xff]
  %v55 = vld [vmem:[%s0 + $0x110] sm:$0xff]
  %v56 = vld [vmem:[%s0 + $0x118] sm:$0xff]
  %v57 = vld [vmem:[%s0 + $0x120] sm:$0xff]
  %v58 = vld [vmem:[%s0 + $0x128] sm:$0xff]
  %v59 = vld [vmem:[%s0 + $0x130] sm:$0xff]
  %v60 = vld [vmem:[%s0 + $0x138] sm:$0xff]
  %v61 = vld [vmem:[%s0 + $0x140] sm:$0xff]
  %v62 = vld [vmem:[%s0 + $0x148] sm:$0xff]
  %v63 = vld [vmem:[%s0 + $0x150] sm:$0xff]
  %v64 = vld [vmem:[%s0 + $0x158] sm:$0xff]
  %v65 = vld [vmem:[%s0 + $0x160] sm:$0xff]
  %v66 = vld [vmem:[%s0 + $0x168] sm:$0xff]
  %v67 = vld [vmem:[%s0 + $0x170] sm:$0xff]
  %v68 = vld [vmem:[%s0 + $0x178] sm:$0xff]
  %v69 = vld [vmem:[%s0 + $0x180] sm:$0xff]
  %v70 = vld [vmem:[%s0 + $0x188] sm:$0xff]
  %v71 = vld [vmem:[%s0 + $0x190] sm:$0xff]
  %v72 = vld [vmem:[%s0 + $0x198] sm:$0xff]
  %v73 = vld [vmem:[%s0 + $0x1a0] sm:$0xff]
  %v74 = vld [vmem:[%s0 + $0x1a8] sm:$0xff]
  %v75 = vld [vmem:[%s0 + $0x1b0] sm:$0xff]
  %v76 = vld [vmem:[%s0 + $0x1b8] sm:$0xff]
  %v77 = vld [vmem:[%s0 + $0x1c0] sm:$0xff]
  %v78 = vld [vmem:[%s0 + $0x1c8] sm:$0xff]
  %v79 = vld [vmem:[%s0 + $0x1d0] sm:$0xff]
  %v80 = vld [vmem:[%s0 + $0x1d8] sm:$0xff]
  %v81 = vld [vmem:[%s0 + $0x1e0] sm:$0xff]
  %v82 = vld [vmem:[%s0 + $0x1e8] sm:$0xff]
  %v83 = vld [vmem:[%s0 + $0x1f0] sm:$0xff]
  %v84 = vld [vmem:[%s0 + $0x1f8] sm:$0xff]
  %v85 = vld [vmem:[%s0 + $0x200] sm:$0xff]
  %v86 = vld [vmem:[%s0 + $0x208] sm:$0xff]
  %v87 = vld [vmem:[%s0 + $0x210] sm:$0xff]
  %v88 = vld [vmem:[%s0 + $0x218] sm:$0xff]
  %v89 = vld [vmem:[%s0 + $0x220] sm:$0xff]
  %v90 = vld [vmem:[%s0 + $0x228] sm:$0xff]
  %v91 = vld [vmem:[%s0 + $0x230] sm:$0xff]
  %v92 = vld [vmem:[%s0 + $0x238] sm:$0xff]
  %v93 = vld [vmem:[%s0 + $0x240] sm:$0xff]
  %v94 = vld [vmem:[%s0 + $0x248] sm:$0xff]
  %v95 = vld [vmem:[%s0 + $0x250] sm:$0xff]
  %v96 = vld [vmem:[%s0 + $0x258] sm:$0xff]
  %v97 = vld [vmem:[%s0 + $0x260] sm:$0xff]
  %v98 = vld [vmem:[%s0 + $0x268] sm:$0xff]
  %v99 = vld [vmem:[%s0 + $0x270] sm:$0xff]
  %v100 = vld [vmem:[%s0 + $0x278] sm:$0xff]
  %v101 = vld [vmem:[%s0 + $0x280] sm:$0xff]
  %v102 = vld [vmem:[%s0 + $0x288] sm:$0xff]
  %v103 = vld [vmem:[%s0 + $0x290] sm:$0xff]
  %v104 = vld [vmem:[%s0 + $0x298] sm:$0xff]
  %v105 = vld [vmem:[%s0 + $0x2a0] sm:$0xff]
  %v106 = vld [vmem:[%s0 + $0x2a8] sm:$0xff]
  %v107 = vld [vmem:[%s0 + $0x2b0] sm:$0xff]
  %v108 = vld [vmem:[%s0 + $0x2b8] sm:$0xff]
  %v109 = vld [vmem:[%s0 + $0x2c0] sm:$0xff]
  %v110 = vld [vmem:[%s0 + $0x2c8] sm:$0xff]
  %v111 = vld [vmem:[%s0 + $0x2d0] sm:$0xff]
  %v112 = vld [vmem:[%s0 + $0x2d8] sm:$0xff]
  %v113 = vld [vmem:[%s0 + $0x2e0] sm:$0xff]
  %v114 = vld [vmem:[%s0 + $0x2e8] sm:$0xff]
  %v115 = vld [vmem:[%s0 + $0x2f0] sm:$0xff]
  %v116 = vld [vmem:[%s0 + $0x2f8] sm:$0xff]
  %v117 = vld [vmem:[%s0 + $0x300] sm:$0xff]
  %v118 = vld [vmem:[%s0 + $0x308] sm:$0xff]
  %v119 = vld [vmem:[%s0 + $0x310] sm:$0xff]
  %v120 = vld [vmem:[%s0 + $0x318] sm:$0xff]
  %v121 = vld [vmem:[%s0 + $0x320] sm:$0xff]
  %v122 = vld [vmem:[%s0 + $0x328] sm:$0xff]
  %v123 = vld [vmem:[%s0 + $0x330] sm:$0xff]
  %v124 = vld [vmem:[%s0 + $0x338] sm:$0xff]
  %v125 = vld [vmem:[%s0 + $0x340] sm:$0xff]
  %v126 = vld [vmem:[%s0 + $0x348] sm:$0xff]
  %v127 = vld [vmem:[%s0 + $0x350] sm:$0xff]
  %v128 = vld [vmem:[%s0 + $0x358] sm:$0xff]
  %v129 = vld [vmem:[%s0 + $0x360] sm:$0xff]
  %v130 = vld [vmem:[%s0 + $0x368] sm:$0xff]
  %v131 = vld [vmem:[%s0 + $0x370] sm:$0xff]
  %v132 = vld [vmem:[%s0 + $0x378] sm:$0xff]
  %v133 = vld [vmem:[%s0 + $0x380] sm:$0xff]
  %v134 = vld [vmem:[%s0 + $0x388] sm:$0xff]
  %v135 = vld [vmem:[%s0 + $0x390] sm:$0xff]
  %v136 = vld [vmem:[%s0 + $0x398] sm:$0xff]
  %v137 = vld [vmem:[%s0 + $0x3a0] sm:$0xff]
  %v138 = vld [vmem:[%s0 + $0x3a8] sm:$0xff]
  %v139 = vld [vmem:[%s0 + $0x3b0] sm:$0xff]
  %v140 = vld [vmem:[%s0 + $0x3b8] sm:$0xff]
  %v141 = vld [vmem:[%s0 + $0x3c0] sm:$0xff]
  %v142 = vld [vmem:[%s0 + $0x3c8] sm:$0xff]
  %v143 = vld [vmem:[%s0 + $0x3d0] sm:$0xff]
  %v144 = vld [vmem:[%s0 + $0x3d8] sm:$0xff]
  %v145 = vld [vmem:[%s0 + $0x3e0] sm:$0xff]
  %v146 = vld [vmem:[%s0 + $0x3e8] sm:$0xff]
  %v147 = vld [vmem:[%s0 + $0x3f0] sm:$0xff]
  %v148 = vld [vmem:[%s0 + $0x3f8] sm:$0xff]
  %v149 = vpack.c.bf16 %v23, %v21
  %v150 = vpack.c.bf16 %v24, %v22
  %v151 = vpack.c.bf16 %v27, %v25
  %v152 = vpack.c.bf16 %v28, %v26
  %v153 = vpack.c.bf16 %v31, %v29
  %v154 = vpack.c.bf16 %v32, %v30
  %v155 = vpack.c.bf16 %v35, %v33
  %v156 = vpack.c.bf16 %v36, %v34
  %v157 = vpack.c.bf16 %v39, %v37
  %v158 = vpack.c.bf16 %v40, %v38
  %v159 = vpack.c.bf16 %v43, %v41
  %v160 = vpack.c.bf16 %v44, %v42
  %v161 = vpack.c.bf16 %v47, %v45
  %v162 = vpack.c.bf16 %v48, %v46
  %v163 = vpack.c.bf16 %v51, %v49
  %v164 = vpack.c.bf16 %v52, %v50
  %v165 = vpack.c.bf16 %v55, %v53
  %v166 = vpack.c.bf16 %v56, %v54
  %v167 = vpack.c.bf16 %v59, %v57
  %v168 = vpack.c.bf16 %v60, %v58
  %v169 = vpack.c.bf16 %v63, %v61
  %v170 = vpack.c.bf16 %v64, %v62
  %v171 = vpack.c.bf16 %v67, %v65
  %v172 = vpack.c.bf16 %v68, %v66
  %v173 = vpack.c.bf16 %v71, %v69
  %v174 = vpack.c.bf16 %v72, %v70
  %v175 = vpack.c.bf16 %v75, %v73
  %v176 = vpack.c.bf16 %v76, %v74
  %v177 = vpack.c.bf16 %v79, %v77
  %v178 = vpack.c.bf16 %v80, %v78
  %v179 = vpack.c.bf16 %v83, %v81
  %v180 = vpack.c.bf16 %v84, %v82
  %v181 = vpack.c.bf16 %v87, %v85
  %v182 = vpack.c.bf16 %v88, %v86
  %v183 = vpack.c.bf16 %v91, %v89
  %v184 = vpack.c.bf16 %v92, %v90
  %v185 = vpack.c.bf16 %v95, %v93
  %v186 = vpack.c.bf16 %v96, %v94
  %v187 = vpack.c.bf16 %v99, %v97
  %v188 = vpack.c.bf16 %v100, %v98
  %v189 = vpack.c.bf16 %v103, %v101
  %v190 = vpack.c.bf16 %v104, %v102
  %v191 = vpack.c.bf16 %v107, %v105
  %v192 = vpack.c.bf16 %v108, %v106
  %v193 = vpack.c.bf16 %v111, %v109
  %v194 = vpack.c.bf16 %v112, %v110
  %v195 = vpack.c.bf16 %v115, %v113
  %v196 = vpack.c.bf16 %v116, %v114
  %v197 = vpack.c.bf16 %v119, %v117
  %v198 = vpack.c.bf16 %v120, %v118
  %v199 = vpack.c.bf16 %v123, %v121
  %v200 = vpack.c.bf16 %v124, %v122
  %v201 = vpack.c.bf16 %v127, %v125
  %v202 = vpack.c.bf16 %v128, %v126
  %v203 = vpack.c.bf16 %v131, %v129
  %v204 = vpack.c.bf16 %v132, %v130
  %v205 = vpack.c.bf16 %v135, %v133
  %v206 = vpack.c.bf16 %v136, %v134
  %v207 = vpack.c.bf16 %v139, %v137
  %v208 = vpack.c.bf16 %v140, %v138
  %v209 = vpack.c.bf16 %v143, %v141
  %v210 = vpack.c.bf16 %v144, %v142
  %v211 = vpack.c.bf16 %v147, %v145
  %v212 = vpack.c.bf16 %v148, %v146
  %v213 = vld [vmem:[%s1] sm:$0xff]
  %v214 = vld [vmem:[%s1 + $0x8] sm:$0xf]
  %v215 = vld [vmem:[%s1 + $0xc] sm:$0xff]
  %v216 = vld [vmem:[%s1 + $0x14] sm:$0xf]
  %v217 = vld [vmem:[%s1 + $0x18] sm:$0xff]
  %v218 = vld [vmem:[%s1 + $0x20] sm:$0xf]
  %v219 = vld [vmem:[%s1 + $0x24] sm:$0xff]
  %v220 = vld [vmem:[%s1 + $0x2c] sm:$0xf]
  %v221 = vld [vmem:[%s1 + $0x30] sm:$0xff]
  %v222 = vld [vmem:[%s1 + $0x38] sm:$0xf]
  %v223 = vld [vmem:[%s1 + $0x3c] sm:$0xff]
  %v224 = vld [vmem:[%s1 + $0x44] sm:$0xf]
  %v225 = vld [vmem:[%s1 + $0x48] sm:$0xff]
  %v226 = vld [vmem:[%s1 + $0x50] sm:$0xf]
  %v227 = vld [vmem:[%s1 + $0x54] sm:$0xff]
  %v228 = vld [vmem:[%s1 + $0x5c] sm:$0xf]
  %v229 = vld [vmem:[%s1 + $0x60] sm:$0xff]
  %v230 = vld [vmem:[%s1 + $0x68] sm:$0xf]
  %v231 = vld [vmem:[%s1 + $0x6c] sm:$0xff]
  %v232 = vld [vmem:[%s1 + $0x74] sm:$0xf]
  %v233 = vld [vmem:[%s1 + $0x78] sm:$0xff]
  %v234 = vld [vmem:[%s1 + $0x80] sm:$0xf]
  %v235 = vld [vmem:[%s1 + $0x84] sm:$0xff]
  %v236 = vld [vmem:[%s1 + $0x8c] sm:$0xf]
  %v237 = vld [vmem:[%s1 + $0x90] sm:$0xff]
  %v238 = vld [vmem:[%s1 + $0x98] sm:$0xf]
  %v239 = vld [vmem:[%s1 + $0x9c] sm:$0xff]
  %v240 = vld [vmem:[%s1 + $0xa4] sm:$0xf]
  %v241 = vld [vmem:[%s1 + $0xa8] sm:$0xff]
  %v242 = vld [vmem:[%s1 + $0xb0] sm:$0xf]
  %v243 = vld [vmem:[%s1 + $0xb4] sm:$0xff]
  %v244 = vld [vmem:[%s1 + $0xbc] sm:$0xf]
  %v245 = vld [vmem:[%s1 + $0xc0] sm:$0xff]
  %v246 = vld [vmem:[%s1 + $0xc8] sm:$0xf]
  %v247 = vld [vmem:[%s1 + $0xcc] sm:$0xff]
  %v248 = vld [vmem:[%s1 + $0xd4] sm:$0xf]
  %v249 = vld [vmem:[%s1 + $0xd8] sm:$0xff]
  %v250 = vld [vmem:[%s1 + $0xe0] sm:$0xf]
  %v251 = vld [vmem:[%s1 + $0xe4] sm:$0xff]
  %v252 = vld [vmem:[%s1 + $0xec] sm:$0xf]
  %v253 = vld [vmem:[%s1 + $0xf0] sm:$0xff]
  %v254 = vld [vmem:[%s1 + $0xf8] sm:$0xf]
  %v255 = vld [vmem:[%s1 + $0xfc] sm:$0xff]
  %v256 = vld [vmem:[%s1 + $0x104] sm:$0xf]
  %v257 = vld [vmem:[%s1 + $0x108] sm:$0xff]
  %v258 = vld [vmem:[%s1 + $0x110] sm:$0xf]
  %v259 = vld [vmem:[%s1 + $0x114] sm:$0xff]
  %v260 = vld [vmem:[%s1 + $0x11c] sm:$0xf]
  %v261 = vld [vmem:[%s1 + $0x120] sm:$0xff]
  %v262 = vld [vmem:[%s1 + $0x128] sm:$0xf]
  %v263 = vld [vmem:[%s1 + $0x12c] sm:$0xff]
  %v264 = vld [vmem:[%s1 + $0x134] sm:$0xf]
  %v265 = vld [vmem:[%s1 + $0x138] sm:$0xff]
  %v266 = vld [vmem:[%s1 + $0x140] sm:$0xf]
  %v267 = vld [vmem:[%s1 + $0x144] sm:$0xff]
  %v268 = vld [vmem:[%s1 + $0x14c] sm:$0xf]
  %v269 = vld [vmem:[%s1 + $0x150] sm:$0xff]
  %v270 = vld [vmem:[%s1 + $0x158] sm:$0xf]
  %v271 = vld [vmem:[%s1 + $0x15c] sm:$0xff]
  %v272 = vld [vmem:[%s1 + $0x164] sm:$0xf]
  %v273 = vld [vmem:[%s1 + $0x168] sm:$0xff]
  %v274 = vld [vmem:[%s1 + $0x170] sm:$0xf]
  %v275 = vld [vmem:[%s1 + $0x174] sm:$0xff]
  %v276 = vld [vmem:[%s1 + $0x17c] sm:$0xf]
  %v341 = vunpack.c.l.b16 %v213
  %v342 = vunpack.c.h.b16 %v213
  %v343 = vunpack.c.l.b16 %v214
  %v344 = vunpack.c.l.b16 %v215
  %v345 = vunpack.c.h.b16 %v215
  %v346 = vunpack.c.l.b16 %v216
  %v347 = vunpack.c.l.b16 %v217
  %v348 = vunpack.c.h.b16 %v217
  %v349 = vunpack.c.l.b16 %v218
  %v350 = vunpack.c.l.b16 %v219
  %v351 = vunpack.c.h.b16 %v219
  %v352 = vunpack.c.l.b16 %v220
  %v353 = vunpack.c.l.b16 %v221
  %v354 = vunpack.c.h.b16 %v221
  %v355 = vunpack.c.l.b16 %v222
  %v356 = vunpack.c.l.b16 %v223
  %v357 = vunpack.c.h.b16 %v223
  %v358 = vunpack.c.l.b16 %v224
  %v359 = vunpack.c.l.b16 %v225
  %v360 = vunpack.c.h.b16 %v225
  %v361 = vunpack.c.l.b16 %v226
  %v362 = vunpack.c.l.b16 %v227
  %v363 = vunpack.c.h.b16 %v227
  %v364 = vunpack.c.l.b16 %v228
  %v365 = vunpack.c.l.b16 %v229
  %v366 = vunpack.c.h.b16 %v229
  %v367 = vunpack.c.l.b16 %v230
  %v368 = vunpack.c.l.b16 %v231
  %v369 = vunpack.c.h.b16 %v231
  %v370 = vunpack.c.l.b16 %v232
  %v371 = vunpack.c.l.b16 %v233
  %v372 = vunpack.c.h.b16 %v233
  %v373 = vunpack.c.l.b16 %v234
  %v374 = vunpack.c.l.b16 %v235
  %v375 = vunpack.c.h.b16 %v235
  %v376 = vunpack.c.l.b16 %v236
  %v377 = vunpack.c.l.b16 %v237
  %v378 = vunpack.c.h.b16 %v237
  %v379 = vunpack.c.l.b16 %v238
  %v380 = vunpack.c.l.b16 %v239
  %v381 = vunpack.c.h.b16 %v239
  %v382 = vunpack.c.l.b16 %v240
  %v383 = vunpack.c.l.b16 %v241
  %v384 = vunpack.c.h.b16 %v241
  %v385 = vunpack.c.l.b16 %v242
  %v386 = vunpack.c.l.b16 %v243
  %v387 = vunpack.c.h.b16 %v243
  %v388 = vunpack.c.l.b16 %v244
  %v389 = vunpack.c.l.b16 %v245
  %v390 = vunpack.c.h.b16 %v245
  %v391 = vunpack.c.l.b16 %v246
  %v392 = vunpack.c.l.b16 %v247
  %v393 = vunpack.c.h.b16 %v247
  %v394 = vunpack.c.l.b16 %v248
  %v395 = vunpack.c.l.b16 %v249
  %v396 = vunpack.c.h.b16 %v249
  %v397 = vunpack.c.l.b16 %v250
  %v398 = vunpack.c.l.b16 %v251
  %v399 = vunpack.c.h.b16 %v251
  %v400 = vunpack.c.l.b16 %v252
  %v401 = vunpack.c.l.b16 %v253
  %v402 = vunpack.c.h.b16 %v253
  %v403 = vunpack.c.l.b16 %v254
  %v404 = vunpack.c.l.b16 %v255
  %v405 = vunpack.c.h.b16 %v255
  %v406 = vunpack.c.l.b16 %v256
  %v407 = vunpack.c.l.b16 %v257
  %v408 = vunpack.c.h.b16 %v257
  %v409 = vunpack.c.l.b16 %v258
  %v410 = vunpack.c.l.b16 %v259
  %v411 = vunpack.c.h.b16 %v259
  %v412 = vunpack.c.l.b16 %v260
  %v413 = vunpack.c.l.b16 %v261
  %v414 = vunpack.c.h.b16 %v261
  %v415 = vunpack.c.l.b16 %v262
  %v416 = vunpack.c.l.b16 %v263
  %v417 = vunpack.c.h.b16 %v263
  %v418 = vunpack.c.l.b16 %v264
  %v419 = vunpack.c.l.b16 %v265
  %v420 = vunpack.c.h.b16 %v265
  %v421 = vunpack.c.l.b16 %v266
  %v422 = vunpack.c.l.b16 %v267
  %v423 = vunpack.c.h.b16 %v267
  %v424 = vunpack.c.l.b16 %v268
  %v425 = vunpack.c.l.b16 %v269
  %v426 = vunpack.c.h.b16 %v269
  %v427 = vunpack.c.l.b16 %v270
  %v428 = vunpack.c.l.b16 %v271
  %v429 = vunpack.c.h.b16 %v271
  %v430 = vunpack.c.l.b16 %v272
  %v431 = vunpack.c.l.b16 %v273
  %v432 = vunpack.c.h.b16 %v273
  %v433 = vunpack.c.l.b16 %v274
  %v434 = vunpack.c.l.b16 %v275
  %v435 = vunpack.c.h.b16 %v275
  %v436 = vunpack.c.l.b16 %v276
  %v437 = vpack.c.b16 %v344, %v341
  %v438 = vpack.c.b16 %v345, %v342
  %v439 = vpack.c.b16 %v346, %v343
  %v440 = vpack.c.b16 %v350, %v347
  %v441 = vpack.c.b16 %v351, %v348
  %v442 = vpack.c.b16 %v352, %v349
  %v443 = vpack.c.b16 %v356, %v353
  %v444 = vpack.c.b16 %v357, %v354
  %v445 = vpack.c.b16 %v358, %v355
  %v446 = vpack.c.b16 %v362, %v359
  %v447 = vpack.c.b16 %v363, %v360
  %v448 = vpack.c.b16 %v364, %v361
  %v449 = vpack.c.b16 %v368, %v365
  %v450 = vpack.c.b16 %v369, %v366
  %v451 = vpack.c.b16 %v370, %v367
  %v452 = vpack.c.b16 %v374, %v371
  %v453 = vpack.c.b16 %v375, %v372
  %v454 = vpack.c.b16 %v376, %v373
  %v455 = vpack.c.b16 %v380, %v377
  %v456 = vpack.c.b16 %v381, %v378
  %v457 = vpack.c.b16 %v382, %v379
  %v458 = vpack.c.b16 %v386, %v383
  %v459 = vpack.c.b16 %v387, %v384
  %v460 = vpack.c.b16 %v388, %v385
  %v461 = vpack.c.b16 %v392, %v389
  %v462 = vpack.c.b16 %v393, %v390
  %v463 = vpack.c.b16 %v394, %v391
  %v464 = vpack.c.b16 %v398, %v395
  %v465 = vpack.c.b16 %v399, %v396
  %v466 = vpack.c.b16 %v400, %v397
  %v467 = vpack.c.b16 %v404, %v401
  %v468 = vpack.c.b16 %v405, %v402
  %v469 = vpack.c.b16 %v406, %v403
  %v470 = vpack.c.b16 %v410, %v407
  %v471 = vpack.c.b16 %v411, %v408
  %v472 = vpack.c.b16 %v412, %v409
  %v473 = vpack.c.b16 %v416, %v413
  %v474 = vpack.c.b16 %v417, %v414
  %v475 = vpack.c.b16 %v418, %v415
  %v476 = vpack.c.b16 %v422, %v419
  %v477 = vpack.c.b16 %v423, %v420
  %v478 = vpack.c.b16 %v424, %v421
  %v479 = vpack.c.b16 %v428, %v425
  %v480 = vpack.c.b16 %v429, %v426
  %v481 = vpack.c.b16 %v430, %v427
  %v482 = vpack.c.b16 %v434, %v431
  %v483 = vpack.c.b16 %v435, %v432
  %v484 = vpack.c.b16 %v436, %v433
  %533 = vmatprep.subr.bf16.mxu0 %v459
  %534 = vmatpush1.bf16.msra.mxu0 %v458
  %535 = vmatprep.subr.bf16.mxu0 %v456
  %536 = vmatpush1.bf16.msra.mxu0 %v455
  %537 = vmatprep.subr.bf16.mxu0 %v453
  %538 = vmatpush1.bf16.msra.mxu0 %v452
  %539 = vmatprep.subr.bf16.mxu0 %v450
  %540 = vmatpush1.bf16.msra.mxu0 %v449
  %541 = vmatprep.subr.bf16.mxu0 %v447
  %542 = vmatpush1.bf16.msra.mxu0 %v446
  %543 = vmatprep.subr.bf16.mxu0 %v444
  %544 = vmatpush1.bf16.msra.mxu0 %v443
  %545 = vmatprep.subr.bf16.mxu0 %v441
  %546 = vmatpush1.bf16.msra.mxu0 %v440
  %547 = vmatprep.subr.bf16.mxu0 %v438
  %548 = vmatpush1.bf16.msra.mxu0 %v437
  %549 = vmatprep.subr.bf16.mxu0 %v483
  %550 = vmatpush2.bf16.msra.mxu0 %v482
  %551 = vmatprep.subr.bf16.mxu0 %v480
  %552 = vmatpush2.bf16.msra.mxu0 %v479
  %553 = vmatprep.subr.bf16.mxu0 %v477
  %554 = vmatpush2.bf16.msra.mxu0 %v476
  %555 = vmatprep.subr.bf16.mxu0 %v474
  %556 = vmatpush2.bf16.msra.mxu0 %v473
  %557 = vmatprep.subr.bf16.mxu0 %v471
  %558 = vmatpush2.bf16.msra.mxu0 %v470
  %559 = vmatprep.subr.bf16.mxu0 %v468
  %560 = vmatpush2.bf16.msra.mxu0 %v467
  %561 = vmatprep.subr.bf16.mxu0 %v465
  %562 = vmatpush2.bf16.msra.mxu0 %v464
  %563 = vmatprep.subr.bf16.mxu0 %v462
  %564 = vmatpush2.bf16.msra.mxu0 %v461
  %565 = vmatprep.mubr.bf16.mxu0 %v150
  %566 = vmatmul.mubr.bf16.gmra.mxu0 %v149
  %v567 = vpop.f32.mrf.mxu0
  %v568 = vadd.f32 0.0, %v567
  %v569 = vpop.f32.mrf.mxu0
  %v570 = vadd.f32 0.0, %v569
  %v571 = vpop.f32.mrf.mxu0
  %v572 = vadd.f32 0.0, %v571
  %v573 = vpop.f32.mrf.mxu0
  %v574 = vadd.f32 0.0, %v573
  %575 = vmatprep.mubr.bf16.mxu0 %v152
  %576 = vmatmul.mubr.bf16.gmra.mxu0 %v151
  %v577 = vpop.f32.mrf.mxu0
  %v578 = vadd.f32 0.0, %v577
  %v579 = vpop.f32.mrf.mxu0
  %v580 = vadd.f32 0.0, %v579
  %v581 = vpop.f32.mrf.mxu0
  %v582 = vadd.f32 0.0, %v581
  %v583 = vpop.f32.mrf.mxu0
  %v584 = vadd.f32 0.0, %v583
  %585 = vmatprep.mubr.bf16.mxu0 %v154
  %586 = vmatmul.mubr.bf16.gmra.mxu0 %v153
  %v587 = vpop.f32.mrf.mxu0
  %v588 = vadd.f32 0.0, %v587
  %v589 = vpop.f32.mrf.mxu0
  %v590 = vadd.f32 0.0, %v589
  %v591 = vpop.f32.mrf.mxu0
  %v592 = vadd.f32 0.0, %v591
  %v593 = vpop.f32.mrf.mxu0
  %v594 = vadd.f32 0.0, %v593
  %595 = vmatprep.mubr.bf16.mxu0 %v156
  %596 = vmatmul.mubr.bf16.gmra.mxu0 %v155
  %v597 = vpop.f32.mrf.mxu0
  %v598 = vadd.f32 0.0, %v597
  %v599 = vpop.f32.mrf.mxu0
  %v600 = vadd.f32 0.0, %v599
  %v601 = vpop.f32.mrf.mxu0
  %v602 = vadd.f32 0.0, %v601
  %v603 = vpop.f32.mrf.mxu0
  %v604 = vadd.f32 0.0, %v603
  %605 = vmatprep.mubr.bf16.mxu0 %v158
  %606 = vmatmul.mubr.bf16.gmra.mxu0 %v157
  %v607 = vpop.f32.mrf.mxu0
  %v608 = vadd.f32 0.0, %v607
  %v609 = vpop.f32.mrf.mxu0
  %v610 = vadd.f32 0.0, %v609
  %v611 = vpop.f32.mrf.mxu0
  %v612 = vadd.f32 0.0, %v611
  %v613 = vpop.f32.mrf.mxu0
  %v614 = vadd.f32 0.0, %v613
  %615 = vmatprep.mubr.bf16.mxu0 %v160
  %616 = vmatmul.mubr.bf16.gmra.mxu0 %v159
  %v617 = vpop.f32.mrf.mxu0
  %v618 = vadd.f32 0.0, %v617
  %v619 = vpop.f32.mrf.mxu0
  %v620 = vadd.f32 0.0, %v619
  %v621 = vpop.f32.mrf.mxu0
  %v622 = vadd.f32 0.0, %v621
  %v623 = vpop.f32.mrf.mxu0
  %v624 = vadd.f32 0.0, %v623
  %625 = vmatprep.mubr.bf16.mxu0 %v162
  %626 = vmatmul.mubr.bf16.gmra.mxu0 %v161
  %v627 = vpop.f32.mrf.mxu0
  %v628 = vadd.f32 0.0, %v627
  %v629 = vpop.f32.mrf.mxu0
  %v630 = vadd.f32 0.0, %v629
  %v631 = vpop.f32.mrf.mxu0
  %v632 = vadd.f32 0.0, %v631
  %v633 = vpop.f32.mrf.mxu0
  %v634 = vadd.f32 0.0, %v633
  %635 = vmatprep.mubr.bf16.mxu0 %v164
  %636 = vmatmul.mubr.bf16.gmra.mxu0 %v163
  %v637 = vpop.f32.mrf.mxu0
  %v638 = vadd.f32 0.0, %v637
  %v639 = vpop.f32.mrf.mxu0
  %v640 = vadd.f32 0.0, %v639
  %v641 = vpop.f32.mrf.mxu0
  %v642 = vadd.f32 0.0, %v641
  %v643 = vpop.f32.mrf.mxu0
  %v644 = vadd.f32 0.0, %v643
  %645 = vmatprep.mubr.bf16.mxu0 %v166
  %646 = vmatmul.mubr.bf16.gmra.mxu0 %v165
  %v647 = vpop.f32.mrf.mxu0
  %v648 = vadd.f32 0.0, %v647
  %v649 = vpop.f32.mrf.mxu0
  %v650 = vadd.f32 0.0, %v649
  %v651 = vpop.f32.mrf.mxu0
  %v652 = vadd.f32 0.0, %v651
  %v653 = vpop.f32.mrf.mxu0
  %v654 = vadd.f32 0.0, %v653
  %655 = vmatprep.mubr.bf16.mxu0 %v168
  %656 = vmatmul.mubr.bf16.gmra.mxu0 %v167
  %v657 = vpop.f32.mrf.mxu0
  %v658 = vadd.f32 0.0, %v657
  %v659 = vpop.f32.mrf.mxu0
  %v660 = vadd.f32 0.0, %v659
  %v661 = vpop.f32.mrf.mxu0
  %v662 = vadd.f32 0.0, %v661
  %v663 = vpop.f32.mrf.mxu0
  %v664 = vadd.f32 0.0, %v663
  %665 = vmatprep.mubr.bf16.mxu0 %v170
  %666 = vmatmul.mubr.bf16.gmra.mxu0 %v169
  %v667 = vpop.f32.mrf.mxu0
  %v668 = vadd.f32 0.0, %v667
  %v669 = vpop.f32.mrf.mxu0
  %v670 = vadd.f32 0.0, %v669
  %v671 = vpop.f32.mrf.mxu0
  %v672 = vadd.f32 0.0, %v671
  %v673 = vpop.f32.mrf.mxu0
  %v674 = vadd.f32 0.0, %v673
  %675 = vmatprep.mubr.bf16.mxu0 %v172
  %676 = vmatmul.mubr.bf16.gmra.mxu0 %v171
  %v677 = vpop.f32.mrf.mxu0
  %v678 = vadd.f32 0.0, %v677
  %v679 = vpop.f32.mrf.mxu0
  %v680 = vadd.f32 0.0, %v679
  %v681 = vpop.f32.mrf.mxu0
  %v682 = vadd.f32 0.0, %v681
  %v683 = vpop.f32.mrf.mxu0
  %v684 = vadd.f32 0.0, %v683
  %685 = vmatprep.mubr.bf16.mxu0 %v174
  %686 = vmatmul.mubr.bf16.gmra.mxu0 %v173
  %v687 = vpop.f32.mrf.mxu0
  %v688 = vadd.f32 0.0, %v687
  %v689 = vpop.f32.mrf.mxu0
  %v690 = vadd.f32 0.0, %v689
  %v691 = vpop.f32.mrf.mxu0
  %v692 = vadd.f32 0.0, %v691
  %v693 = vpop.f32.mrf.mxu0
  %v694 = vadd.f32 0.0, %v693
  %695 = vmatprep.mubr.bf16.mxu0 %v176
  %696 = vmatmul.mubr.bf16.gmra.mxu0 %v175
  %v697 = vpop.f32.mrf.mxu0
  %v698 = vadd.f32 0.0, %v697
  %v699 = vpop.f32.mrf.mxu0
  %v700 = vadd.f32 0.0, %v699
  %v701 = vpop.f32.mrf.mxu0
  %v702 = vadd.f32 0.0, %v701
  %v703 = vpop.f32.mrf.mxu0
  %v704 = vadd.f32 0.0, %v703
  %705 = vmatprep.mubr.bf16.mxu0 %v178
  %706 = vmatmul.mubr.bf16.gmra.mxu0 %v177
  %v707 = vpop.f32.mrf.mxu0
  %v708 = vadd.f32 0.0, %v707
  %v709 = vpop.f32.mrf.mxu0
  %v710 = vadd.f32 0.0, %v709
  %v711 = vpop.f32.mrf.mxu0
  %v712 = vadd.f32 0.0, %v711
  %v713 = vpop.f32.mrf.mxu0
  %v714 = vadd.f32 0.0, %v713
  %715 = vmatprep.mubr.bf16.mxu0 %v180
  %716 = vmatmul.mubr.bf16.gmra.mxu0 %v179
  %v717 = vpop.f32.mrf.mxu0
  %v718 = vadd.f32 0.0, %v717
  %v719 = vpop.f32.mrf.mxu0
  %v720 = vadd.f32 0.0, %v719
  %v721 = vpop.f32.mrf.mxu0
  %v722 = vadd.f32 0.0, %v721
  %v723 = vpop.f32.mrf.mxu0
  %v724 = vadd.f32 0.0, %v723
  %725 = vmatprep.mubr.bf16.mxu0 %v182
  %726 = vmatmul.mubr.bf16.gmra.mxu0 %v181
  %v727 = vpop.f32.mrf.mxu0
  %v728 = vadd.f32 0.0, %v727
  %v729 = vpop.f32.mrf.mxu0
  %v730 = vadd.f32 0.0, %v729
  %v731 = vpop.f32.mrf.mxu0
  %v732 = vadd.f32 0.0, %v731
  %v733 = vpop.f32.mrf.mxu0
  %v734 = vadd.f32 0.0, %v733
  %735 = vmatprep.mubr.bf16.mxu0 %v184
  %736 = vmatmul.mubr.bf16.gmra.mxu0 %v183
  %v737 = vpop.f32.mrf.mxu0
  %v738 = vadd.f32 0.0, %v737
  %v739 = vpop.f32.mrf.mxu0
  %v740 = vadd.f32 0.0, %v739
  %v741 = vpop.f32.mrf.mxu0
  %v742 = vadd.f32 0.0, %v741
  %v743 = vpop.f32.mrf.mxu0
  %v744 = vadd.f32 0.0, %v743
  %745 = vmatprep.mubr.bf16.mxu0 %v186
  %746 = vmatmul.mubr.bf16.gmra.mxu0 %v185
  %v747 = vpop.f32.mrf.mxu0
  %v748 = vadd.f32 0.0, %v747
  %v749 = vpop.f32.mrf.mxu0
  %v750 = vadd.f32 0.0, %v749
  %v751 = vpop.f32.mrf.mxu0
  %v752 = vadd.f32 0.0, %v751
  %v753 = vpop.f32.mrf.mxu0
  %v754 = vadd.f32 0.0, %v753
  %755 = vmatprep.mubr.bf16.mxu0 %v188
  %756 = vmatmul.mubr.bf16.gmra.mxu0 %v187
  %v757 = vpop.f32.mrf.mxu0
  %v758 = vadd.f32 0.0, %v757
  %v759 = vpop.f32.mrf.mxu0
  %v760 = vadd.f32 0.0, %v759
  %v761 = vpop.f32.mrf.mxu0
  %v762 = vadd.f32 0.0, %v761
  %v763 = vpop.f32.mrf.mxu0
  %v764 = vadd.f32 0.0, %v763
  %765 = vmatprep.mubr.bf16.mxu0 %v190
  %766 = vmatmul.mubr.bf16.gmra.mxu0 %v189
  %v767 = vpop.f32.mrf.mxu0
  %v768 = vadd.f32 0.0, %v767
  %v769 = vpop.f32.mrf.mxu0
  %v770 = vadd.f32 0.0, %v769
  %v771 = vpop.f32.mrf.mxu0
  %v772 = vadd.f32 0.0, %v771
  %v773 = vpop.f32.mrf.mxu0
  %v774 = vadd.f32 0.0, %v773
  %775 = vmatprep.mubr.bf16.mxu0 %v192
  %776 = vmatmul.mubr.bf16.gmra.mxu0 %v191
  %v777 = vpop.f32.mrf.mxu0
  %v778 = vadd.f32 0.0, %v777
  %v779 = vpop.f32.mrf.mxu0
  %v780 = vadd.f32 0.0, %v779
  %v781 = vpop.f32.mrf.mxu0
  %v782 = vadd.f32 0.0, %v781
  %v783 = vpop.f32.mrf.mxu0
  %v784 = vadd.f32 0.0, %v783
  %785 = vmatprep.mubr.bf16.mxu0 %v194
  %786 = vmatmul.mubr.bf16.gmra.mxu0 %v193
  %v787 = vpop.f32.mrf.mxu0
  %v788 = vadd.f32 0.0, %v787
  %v789 = vpop.f32.mrf.mxu0
  %v790 = vadd.f32 0.0, %v789
  %v791 = vpop.f32.mrf.mxu0
  %v792 = vadd.f32 0.0, %v791
  %v793 = vpop.f32.mrf.mxu0
  %v794 = vadd.f32 0.0, %v793
  %795 = vmatprep.mubr.bf16.mxu0 %v196
  %796 = vmatmul.mubr.bf16.gmra.mxu0 %v195
  %v797 = vpop.f32.mrf.mxu0
  %v798 = vadd.f32 0.0, %v797
  %v799 = vpop.f32.mrf.mxu0
  %v800 = vadd.f32 0.0, %v799
  %v801 = vpop.f32.mrf.mxu0
  %v802 = vadd.f32 0.0, %v801
  %v803 = vpop.f32.mrf.mxu0
  %v804 = vadd.f32 0.0, %v803
  %805 = vmatprep.mubr.bf16.mxu0 %v198
  %806 = vmatmul.mubr.bf16.gmra.mxu0 %v197
  %v807 = vpop.f32.mrf.mxu0
  %v808 = vadd.f32 0.0, %v807
  %v809 = vpop.f32.mrf.mxu0
  %v810 = vadd.f32 0.0, %v809
  %v811 = vpop.f32.mrf.mxu0
  %v812 = vadd.f32 0.0, %v811
  %v813 = vpop.f32.mrf.mxu0
  %v814 = vadd.f32 0.0, %v813
  %815 = vmatprep.mubr.bf16.mxu0 %v200
  %816 = vmatmul.mubr.bf16.gmra.mxu0 %v199
  %v817 = vpop.f32.mrf.mxu0
  %v818 = vadd.f32 0.0, %v817
  %v819 = vpop.f32.mrf.mxu0
  %v820 = vadd.f32 0.0, %v819
  %v821 = vpop.f32.mrf.mxu0
  %v822 = vadd.f32 0.0, %v821
  %v823 = vpop.f32.mrf.mxu0
  %v824 = vadd.f32 0.0, %v823
  %825 = vmatprep.mubr.bf16.mxu0 %v202
  %826 = vmatmul.mubr.bf16.gmra.mxu0 %v201
  %v827 = vpop.f32.mrf.mxu0
  %v828 = vadd.f32 0.0, %v827
  %v829 = vpop.f32.mrf.mxu0
  %v830 = vadd.f32 0.0, %v829
  %v831 = vpop.f32.mrf.mxu0
  %v832 = vadd.f32 0.0, %v831
  %v833 = vpop.f32.mrf.mxu0
  %v834 = vadd.f32 0.0, %v833
  %835 = vmatprep.mubr.bf16.mxu0 %v204
  %836 = vmatmul.mubr.bf16.gmra.mxu0 %v203
  %v837 = vpop.f32.mrf.mxu0
  %v838 = vadd.f32 0.0, %v837
  %v839 = vpop.f32.mrf.mxu0
  %v840 = vadd.f32 0.0, %v839
  %v841 = vpop.f32.mrf.mxu0
  %v842 = vadd.f32 0.0, %v841
  %v843 = vpop.f32.mrf.mxu0
  %v844 = vadd.f32 0.0, %v843
  %845 = vmatprep.mubr.bf16.mxu0 %v206
  %846 = vmatmul.mubr.bf16.gmra.mxu0 %v205
  %v847 = vpop.f32.mrf.mxu0
  %v848 = vadd.f32 0.0, %v847
  %v849 = vpop.f32.mrf.mxu0
  %v850 = vadd.f32 0.0, %v849
  %v851 = vpop.f32.mrf.mxu0
  %v852 = vadd.f32 0.0, %v851
  %v853 = vpop.f32.mrf.mxu0
  %v854 = vadd.f32 0.0, %v853
  %855 = vmatprep.mubr.bf16.mxu0 %v208
  %856 = vmatmul.mubr.bf16.gmra.mxu0 %v207
  %v857 = vpop.f32.mrf.mxu0
  %v858 = vadd.f32 0.0, %v857
  %v859 = vpop.f32.mrf.mxu0
  %v860 = vadd.f32 0.0, %v859
  %v861 = vpop.f32.mrf.mxu0
  %v862 = vadd.f32 0.0, %v861
  %v863 = vpop.f32.mrf.mxu0
  %v864 = vadd.f32 0.0, %v863
  %865 = vmatprep.mubr.bf16.mxu0 %v210
  %866 = vmatmul.mubr.bf16.gmra.mxu0 %v209
  %v867 = vpop.f32.mrf.mxu0
  %v868 = vadd.f32 0.0, %v867
  %v869 = vpop.f32.mrf.mxu0
  %v870 = vadd.f32 0.0, %v869
  %v871 = vpop.f32.mrf.mxu0
  %v872 = vadd.f32 0.0, %v871
  %v873 = vpop.f32.mrf.mxu0
  %v874 = vadd.f32 0.0, %v873
  %875 = vmatprep.mubr.bf16.mxu0 %v212
  %876 = vmatmul.mubr.bf16.gmra.mxu0 %v211
  %v877 = vpop.f32.mrf.mxu0
  %v878 = vadd.f32 0.0, %v877
  %v879 = vpop.f32.mrf.mxu0
  %v880 = vadd.f32 0.0, %v879
  %v881 = vpop.f32.mrf.mxu0
  %v882 = vadd.f32 0.0, %v881
  %v883 = vpop.f32.mrf.mxu0
  %v884 = vadd.f32 0.0, %v883
  %885 = vdwg.mxu0
  %886 = vmatprep.subr.bf16.mxu0 0
  %887 = vmatpush1.bf16.msra.mxu0 %v460
  %888 = vmatprep.subr.bf16.mxu0 0
  %889 = vmatpush1.bf16.msra.mxu0 %v457
  %890 = vmatprep.subr.bf16.mxu0 0
  %891 = vmatpush1.bf16.msra.mxu0 %v454
  %892 = vmatprep.subr.bf16.mxu0 0
  %893 = vmatpush1.bf16.msra.mxu0 %v451
  %894 = vmatprep.subr.bf16.mxu0 0
  %895 = vmatpush1.bf16.msra.mxu0 %v448
  %896 = vmatprep.subr.bf16.mxu0 0
  %897 = vmatpush1.bf16.msra.mxu0 %v445
  %898 = vmatprep.subr.bf16.mxu0 0
  %899 = vmatpush1.bf16.msra.mxu0 %v442
  %900 = vmatprep.subr.bf16.mxu0 0
  %901 = vmatpush1.bf16.msra.mxu0 %v439
  %902 = vmatprep.subr.bf16.mxu0 0
  %903 = vmatpush2.bf16.msra.mxu0 %v484
  %904 = vmatprep.subr.bf16.mxu0 0
  %905 = vmatpush2.bf16.msra.mxu0 %v481
  %906 = vmatprep.subr.bf16.mxu0 0
  %907 = vmatpush2.bf16.msra.mxu0 %v478
  %908 = vmatprep.subr.bf16.mxu0 0
  %909 = vmatpush2.bf16.msra.mxu0 %v475
  %910 = vmatprep.subr.bf16.mxu0 0
  %911 = vmatpush2.bf16.msra.mxu0 %v472
  %912 = vmatprep.subr.bf16.mxu0 0
  %913 = vmatpush2.bf16.msra.mxu0 %v469
  %914 = vmatprep.subr.bf16.mxu0 0
  %915 = vmatpush2.bf16.msra.mxu0 %v466
  %916 = vmatprep.subr.bf16.mxu0 0
  %917 = vmatpush2.bf16.msra.mxu0 %v463
  %918 = vmatprep.mubr.bf16.mxu0 %v150
  %919 = vmatmul.mubr.bf16.gmra.mxu0 %v149
  %v920 = vpop.f32.mrf.mxu0
  %v921 = vadd.f32 0.0, %v920
  %v922 = vpop.f32.mrf.mxu0
  %v923 = vpop.f32.mrf.mxu0
  %v924 = vadd.f32 0.0, %v923
  %v925 = vpop.f32.mrf.mxu0
  %926 = vmatprep.mubr.bf16.mxu0 %v152
  %927 = vmatmul.mubr.bf16.gmra.mxu0 %v151
  %v928 = vpop.f32.mrf.mxu0
  %v929 = vadd.f32 0.0, %v928
  %v930 = vpop.f32.mrf.mxu0
  %v931 = vpop.f32.mrf.mxu0
  %v932 = vadd.f32 0.0, %v931
  %v933 = vpop.f32.mrf.mxu0
  %934 = vmatprep.mubr.bf16.mxu0 %v154
  %935 = vmatmul.mubr.bf16.gmra.mxu0 %v153
  %v936 = vpop.f32.mrf.mxu0
  %v937 = vadd.f32 0.0, %v936
  %v938 = vpop.f32.mrf.mxu0
  %v939 = vpop.f32.mrf.mxu0
  %v940 = vadd.f32 0.0, %v939
  %v941 = vpop.f32.mrf.mxu0
  %942 = vmatprep.mubr.bf16.mxu0 %v156
  %943 = vmatmul.mubr.bf16.gmra.mxu0 %v155
  %v944 = vpop.f32.mrf.mxu0
  %v945 = vadd.f32 0.0, %v944
  %v946 = vpop.f32.mrf.mxu0
  %v947 = vpop.f32.mrf.mxu0
  %v948 = vadd.f32 0.0, %v947
  %v949 = vpop.f32.mrf.mxu0
  %950 = vmatprep.mubr.bf16.mxu0 %v158
  %951 = vmatmul.mubr.bf16.gmra.mxu0 %v157
  %v952 = vpop.f32.mrf.mxu0
  %v953 = vadd.f32 0.0, %v952
  %v954 = vpop.f32.mrf.mxu0
  %v955 = vpop.f32.mrf.mxu0
  %v956 = vadd.f32 0.0, %v955
  %v957 = vpop.f32.mrf.mxu0
  %958 = vmatprep.mubr.bf16.mxu0 %v160
  %959 = vmatmul.mubr.bf16.gmra.mxu0 %v159
  %v960 = vpop.f32.mrf.mxu0
  %v961 = vadd.f32 0.0, %v960
  %v962 = vpop.f32.mrf.mxu0
  %v963 = vpop.f32.mrf.mxu0
  %v964 = vadd.f32 0.0, %v963
  %v965 = vpop.f32.mrf.mxu0
  %966 = vmatprep.mubr.bf16.mxu0 %v162
  %967 = vmatmul.mubr.bf16.gmra.mxu0 %v161
  %v968 = vpop.f32.mrf.mxu0
  %v969 = vadd.f32 0.0, %v968
  %v970 = vpop.f32.mrf.mxu0
  %v971 = vpop.f32.mrf.mxu0
  %v972 = vadd.f32 0.0, %v971
  %v973 = vpop.f32.mrf.mxu0
  %974 = vmatprep.mubr.bf16.mxu0 %v164
  %975 = vmatmul.mubr.bf16.gmra.mxu0 %v163
  %v976 = vpop.f32.mrf.mxu0
  %v977 = vadd.f32 0.0, %v976
  %v978 = vpop.f32.mrf.mxu0
  %v979 = vpop.f32.mrf.mxu0
  %v980 = vadd.f32 0.0, %v979
  %v981 = vpop.f32.mrf.mxu0
  %982 = vmatprep.mubr.bf16.mxu0 %v166
  %983 = vmatmul.mubr.bf16.gmra.mxu0 %v165
  %v984 = vpop.f32.mrf.mxu0
  %v985 = vadd.f32 0.0, %v984
  %v986 = vpop.f32.mrf.mxu0
  %v987 = vpop.f32.mrf.mxu0
  %v988 = vadd.f32 0.0, %v987
  %v989 = vpop.f32.mrf.mxu0
  %990 = vmatprep.mubr.bf16.mxu0 %v168
  %991 = vmatmul.mubr.bf16.gmra.mxu0 %v167
  %v992 = vpop.f32.mrf.mxu0
  %v993 = vadd.f32 0.0, %v992
  %v994 = vpop.f32.mrf.mxu0
  %v995 = vpop.f32.mrf.mxu0
  %v996 = vadd.f32 0.0, %v995
  %v997 = vpop.f32.mrf.mxu0
  %998 = vmatprep.mubr.bf16.mxu0 %v170
  %999 = vmatmul.mubr.bf16.gmra.mxu0 %v169
  %v1000 = vpop.f32.mrf.mxu0
  %v1001 = vadd.f32 0.0, %v1000
  %v1002 = vpop.f32.mrf.mxu0
  %v1003 = vpop.f32.mrf.mxu0
  %v1004 = vadd.f32 0.0, %v1003
  %v1005 = vpop.f32.mrf.mxu0
  %1006 = vmatprep.mubr.bf16.mxu0 %v172
  %1007 = vmatmul.mubr.bf16.gmra.mxu0 %v171
  %v1008 = vpop.f32.mrf.mxu0
  %v1009 = vadd.f32 0.0, %v1008
  %v1010 = vpop.f32.mrf.mxu0
  %v1011 = vpop.f32.mrf.mxu0
  %v1012 = vadd.f32 0.0, %v1011
  %v1013 = vpop.f32.mrf.mxu0
  %1014 = vmatprep.mubr.bf16.mxu0 %v174
  %1015 = vmatmul.mubr.bf16.gmra.mxu0 %v173
  %v1016 = vpop.f32.mrf.mxu0
  %v1017 = vadd.f32 0.0, %v1016
  %v1018 = vpop.f32.mrf.mxu0
  %v1019 = vpop.f32.mrf.mxu0
  %v1020 = vadd.f32 0.0, %v1019
  %v1021 = vpop.f32.mrf.mxu0
  %1022 = vmatprep.mubr.bf16.mxu0 %v176
  %1023 = vmatmul.mubr.bf16.gmra.mxu0 %v175
  %v1024 = vpop.f32.mrf.mxu0
  %v1025 = vadd.f32 0.0, %v1024
  %v1026 = vpop.f32.mrf.mxu0
  %v1027 = vpop.f32.mrf.mxu0
  %v1028 = vadd.f32 0.0, %v1027
  %v1029 = vpop.f32.mrf.mxu0
  %1030 = vmatprep.mubr.bf16.mxu0 %v178
  %1031 = vmatmul.mubr.bf16.gmra.mxu0 %v177
  %v1032 = vpop.f32.mrf.mxu0
  %v1033 = vadd.f32 0.0, %v1032
  %v1034 = vpop.f32.mrf.mxu0
  %v1035 = vpop.f32.mrf.mxu0
  %v1036 = vadd.f32 0.0, %v1035
  %v1037 = vpop.f32.mrf.mxu0
  %1038 = vmatprep.mubr.bf16.mxu0 %v180
  %1039 = vmatmul.mubr.bf16.gmra.mxu0 %v179
  %v1040 = vpop.f32.mrf.mxu0
  %v1041 = vadd.f32 0.0, %v1040
  %v1042 = vpop.f32.mrf.mxu0
  %v1043 = vpop.f32.mrf.mxu0
  %v1044 = vadd.f32 0.0, %v1043
  %v1045 = vpop.f32.mrf.mxu0
  %1046 = vmatprep.mubr.bf16.mxu0 %v182
  %1047 = vmatmul.mubr.bf16.gmra.mxu0 %v181
  %v1048 = vpop.f32.mrf.mxu0
  %v1049 = vadd.f32 0.0, %v1048
  %v1050 = vpop.f32.mrf.mxu0
  %v1051 = vpop.f32.mrf.mxu0
  %v1052 = vadd.f32 0.0, %v1051
  %v1053 = vpop.f32.mrf.mxu0
  %1054 = vmatprep.mubr.bf16.mxu0 %v184
  %1055 = vmatmul.mubr.bf16.gmra.mxu0 %v183
  %v1056 = vpop.f32.mrf.mxu0
  %v1057 = vadd.f32 0.0, %v1056
  %v1058 = vpop.f32.mrf.mxu0
  %v1059 = vpop.f32.mrf.mxu0
  %v1060 = vadd.f32 0.0, %v1059
  %v1061 = vpop.f32.mrf.mxu0
  %1062 = vmatprep.mubr.bf16.mxu0 %v186
  %1063 = vmatmul.mubr.bf16.gmra.mxu0 %v185
  %v1064 = vpop.f32.mrf.mxu0
  %v1065 = vadd.f32 0.0, %v1064
  %v1066 = vpop.f32.mrf.mxu0
  %v1067 = vpop.f32.mrf.mxu0
  %v1068 = vadd.f32 0.0, %v1067
  %v1069 = vpop.f32.mrf.mxu0
  %1070 = vmatprep.mubr.bf16.mxu0 %v188
  %1071 = vmatmul.mubr.bf16.gmra.mxu0 %v187
  %v1072 = vpop.f32.mrf.mxu0
  %v1073 = vadd.f32 0.0, %v1072
  %v1074 = vpop.f32.mrf.mxu0
  %v1075 = vpop.f32.mrf.mxu0
  %v1076 = vadd.f32 0.0, %v1075
  %v1077 = vpop.f32.mrf.mxu0
  %1078 = vmatprep.mubr.bf16.mxu0 %v190
  %1079 = vmatmul.mubr.bf16.gmra.mxu0 %v189
  %v1080 = vpop.f32.mrf.mxu0
  %v1081 = vadd.f32 0.0, %v1080
  %v1082 = vpop.f32.mrf.mxu0
  %v1083 = vpop.f32.mrf.mxu0
  %v1084 = vadd.f32 0.0, %v1083
  %v1085 = vpop.f32.mrf.mxu0
  %1086 = vmatprep.mubr.bf16.mxu0 %v192
  %1087 = vmatmul.mubr.bf16.gmra.mxu0 %v191
  %v1088 = vpop.f32.mrf.mxu0
  %v1089 = vadd.f32 0.0, %v1088
  %v1090 = vpop.f32.mrf.mxu0
  %v1091 = vpop.f32.mrf.mxu0
  %v1092 = vadd.f32 0.0, %v1091
  %v1093 = vpop.f32.mrf.mxu0
  %1094 = vmatprep.mubr.bf16.mxu0 %v194
  %1095 = vmatmul.mubr.bf16.gmra.mxu0 %v193
  %v1096 = vpop.f32.mrf.mxu0
  %v1097 = vadd.f32 0.0, %v1096
  %v1098 = vpop.f32.mrf.mxu0
  %v1099 = vpop.f32.mrf.mxu0
  %v1100 = vadd.f32 0.0, %v1099
  %v1101 = vpop.f32.mrf.mxu0
  %1102 = vmatprep.mubr.bf16.mxu0 %v196
  %1103 = vmatmul.mubr.bf16.gmra.mxu0 %v195
  %v1104 = vpop.f32.mrf.mxu0
  %v1105 = vadd.f32 0.0, %v1104
  %v1106 = vpop.f32.mrf.mxu0
  %v1107 = vpop.f32.mrf.mxu0
  %v1108 = vadd.f32 0.0, %v1107
  %v1109 = vpop.f32.mrf.mxu0
  %1110 = vmatprep.mubr.bf16.mxu0 %v198
  %1111 = vmatmul.mubr.bf16.gmra.mxu0 %v197
  %v1112 = vpop.f32.mrf.mxu0
  %v1113 = vadd.f32 0.0, %v1112
  %v1114 = vpop.f32.mrf.mxu0
  %v1115 = vpop.f32.mrf.mxu0
  %v1116 = vadd.f32 0.0, %v1115
  %v1117 = vpop.f32.mrf.mxu0
  %1118 = vmatprep.mubr.bf16.mxu0 %v200
  %1119 = vmatmul.mubr.bf16.gmra.mxu0 %v199
  %v1120 = vpop.f32.mrf.mxu0
  %v1121 = vadd.f32 0.0, %v1120
  %v1122 = vpop.f32.mrf.mxu0
  %v1123 = vpop.f32.mrf.mxu0
  %v1124 = vadd.f32 0.0, %v1123
  %v1125 = vpop.f32.mrf.mxu0
  %1126 = vmatprep.mubr.bf16.mxu0 %v202
  %1127 = vmatmul.mubr.bf16.gmra.mxu0 %v201
  %v1128 = vpop.f32.mrf.mxu0
  %v1129 = vadd.f32 0.0, %v1128
  %v1130 = vpop.f32.mrf.mxu0
  %v1131 = vpop.f32.mrf.mxu0
  %v1132 = vadd.f32 0.0, %v1131
  %v1133 = vpop.f32.mrf.mxu0
  %1134 = vmatprep.mubr.bf16.mxu0 %v204
  %1135 = vmatmul.mubr.bf16.gmra.mxu0 %v203
  %v1136 = vpop.f32.mrf.mxu0
  %v1137 = vadd.f32 0.0, %v1136
  %v1138 = vpop.f32.mrf.mxu0
  %v1139 = vpop.f32.mrf.mxu0
  %v1140 = vadd.f32 0.0, %v1139
  %v1141 = vpop.f32.mrf.mxu0
  %1142 = vmatprep.mubr.bf16.mxu0 %v206
  %1143 = vmatmul.mubr.bf16.gmra.mxu0 %v205
  %v1144 = vpop.f32.mrf.mxu0
  %v1145 = vadd.f32 0.0, %v1144
  %v1146 = vpop.f32.mrf.mxu0
  %v1147 = vpop.f32.mrf.mxu0
  %v1148 = vadd.f32 0.0, %v1147
  %v1149 = vpop.f32.mrf.mxu0
  %1150 = vmatprep.mubr.bf16.mxu0 %v208
  %1151 = vmatmul.mubr.bf16.gmra.mxu0 %v207
  %v1152 = vpop.f32.mrf.mxu0
  %v1153 = vadd.f32 0.0, %v1152
  %v1154 = vpop.f32.mrf.mxu0
  %v1155 = vpop.f32.mrf.mxu0
  %v1156 = vadd.f32 0.0, %v1155
  %v1157 = vpop.f32.mrf.mxu0
  %1158 = vmatprep.mubr.bf16.mxu0 %v210
  %1159 = vmatmul.mubr.bf16.gmra.mxu0 %v209
  %v1160 = vpop.f32.mrf.mxu0
  %v1161 = vadd.f32 0.0, %v1160
  %v1162 = vpop.f32.mrf.mxu0
  %v1163 = vpop.f32.mrf.mxu0
  %v1164 = vadd.f32 0.0, %v1163
  %v1165 = vpop.f32.mrf.mxu0
  %1166 = vmatprep.mubr.bf16.mxu0 %v212
  %1167 = vmatmul.mubr.bf16.gmra.mxu0 %v211
  %v1168 = vpop.f32.mrf.mxu0
  %v1169 = vadd.f32 0.0, %v1168
  %v1170 = vpop.f32.mrf.mxu0
  %v1171 = vpop.f32.mrf.mxu0
  %v1172 = vadd.f32 0.0, %v1171
  %v1173 = vpop.f32.mrf.mxu0
  %1174 = vdwg.mxu0
  %v1175 = vld [vmem:[%s2] sm:$0x7]
  %v1177 = vlaneseq
  %v1178 = vshrl.u32 %v1177, 7
  %v1179 = vsub.s32 0, %v1178
  %v1180 = vrot.slane %v1175, %v1179
  %v1181 = vlaneseq
  %v1182 = vshrl.u32 %v1181, 7
  %v1183 = vsub.s32 1, %v1182
  %v1184 = vrot.slane %v1175, %v1183
  %v1185 = vlaneseq
  %v1186 = vshrl.u32 %v1185, 7
  %v1187 = vsub.s32 2, %v1186
  %v1188 = vrot.slane %v1175, %v1187
  %v1192 = vmul.f32 %v568, %v1180
  %v1193 = vmul.f32 %v570, %v1184
  %v1194 = vmul.f32 %v921, %v1188
  %v1195 = vmul.f32 %v572, %v1180
  %v1196 = vmul.f32 %v574, %v1184
  %v1197 = vmul.f32 %v924, %v1188
  %v1198 = vmul.f32 %v578, %v1180
  %v1199 = vmul.f32 %v580, %v1184
  %v1200 = vmul.f32 %v929, %v1188
  %v1201 = vmul.f32 %v582, %v1180
  %v1202 = vmul.f32 %v584, %v1184
  %v1203 = vmul.f32 %v932, %v1188
  %v1204 = vmul.f32 %v588, %v1180
  %v1205 = vmul.f32 %v590, %v1184
  %v1206 = vmul.f32 %v937, %v1188
  %v1207 = vmul.f32 %v592, %v1180
  %v1208 = vmul.f32 %v594, %v1184
  %v1209 = vmul.f32 %v940, %v1188
  %v1210 = vmul.f32 %v598, %v1180
  %v1211 = vmul.f32 %v600, %v1184
  %v1212 = vmul.f32 %v945, %v1188
  %v1213 = vmul.f32 %v602, %v1180
  %v1214 = vmul.f32 %v604, %v1184
  %v1215 = vmul.f32 %v948, %v1188
  %v1216 = vmul.f32 %v608, %v1180
  %v1217 = vmul.f32 %v610, %v1184
  %v1218 = vmul.f32 %v953, %v1188
  %v1219 = vmul.f32 %v612, %v1180
  %v1220 = vmul.f32 %v614, %v1184
  %v1221 = vmul.f32 %v956, %v1188
  %v1222 = vmul.f32 %v618, %v1180
  %v1223 = vmul.f32 %v620, %v1184
  %v1224 = vmul.f32 %v961, %v1188
  %v1225 = vmul.f32 %v622, %v1180
  %v1226 = vmul.f32 %v624, %v1184
  %v1227 = vmul.f32 %v964, %v1188
  %v1228 = vmul.f32 %v628, %v1180
  %v1229 = vmul.f32 %v630, %v1184
  %v1230 = vmul.f32 %v969, %v1188
  %v1231 = vmul.f32 %v632, %v1180
  %v1232 = vmul.f32 %v634, %v1184
  %v1233 = vmul.f32 %v972, %v1188
  %v1234 = vmul.f32 %v638, %v1180
  %v1235 = vmul.f32 %v640, %v1184
  %v1236 = vmul.f32 %v977, %v1188
  %v1237 = vmul.f32 %v642, %v1180
  %v1238 = vmul.f32 %v644, %v1184
  %v1239 = vmul.f32 %v980, %v1188
  %v1240 = vmul.f32 %v648, %v1180
  %v1241 = vmul.f32 %v650, %v1184
  %v1242 = vmul.f32 %v985, %v1188
  %v1243 = vmul.f32 %v652, %v1180
  %v1244 = vmul.f32 %v654, %v1184
  %v1245 = vmul.f32 %v988, %v1188
  %v1246 = vmul.f32 %v658, %v1180
  %v1247 = vmul.f32 %v660, %v1184
  %v1248 = vmul.f32 %v993, %v1188
  %v1249 = vmul.f32 %v662, %v1180
  %v1250 = vmul.f32 %v664, %v1184
  %v1251 = vmul.f32 %v996, %v1188
  %v1252 = vmul.f32 %v668, %v1180
  %v1253 = vmul.f32 %v670, %v1184
  %v1254 = vmul.f32 %v1001, %v1188
  %v1255 = vmul.f32 %v672, %v1180
  %v1256 = vmul.f32 %v674, %v1184
  %v1257 = vmul.f32 %v1004, %v1188
  %v1258 = vmul.f32 %v678, %v1180
  %v1259 = vmul.f32 %v680, %v1184
  %v1260 = vmul.f32 %v1009, %v1188
  %v1261 = vmul.f32 %v682, %v1180
  %v1262 = vmul.f32 %v684, %v1184
  %v1263 = vmul.f32 %v1012, %v1188
  %v1264 = vmul.f32 %v688, %v1180
  %v1265 = vmul.f32 %v690, %v1184
  %v1266 = vmul.f32 %v1017, %v1188
  %v1267 = vmul.f32 %v692, %v1180
  %v1268 = vmul.f32 %v694, %v1184
  %v1269 = vmul.f32 %v1020, %v1188
  %v1270 = vmul.f32 %v698, %v1180
  %v1271 = vmul.f32 %v700, %v1184
  %v1272 = vmul.f32 %v1025, %v1188
  %v1273 = vmul.f32 %v702, %v1180
  %v1274 = vmul.f32 %v704, %v1184
  %v1275 = vmul.f32 %v1028, %v1188
  %v1276 = vmul.f32 %v708, %v1180
  %v1277 = vmul.f32 %v710, %v1184
  %v1278 = vmul.f32 %v1033, %v1188
  %v1279 = vmul.f32 %v712, %v1180
  %v1280 = vmul.f32 %v714, %v1184
  %v1281 = vmul.f32 %v1036, %v1188
  %v1282 = vmul.f32 %v718, %v1180
  %v1283 = vmul.f32 %v720, %v1184
  %v1284 = vmul.f32 %v1041, %v1188
  %v1285 = vmul.f32 %v722, %v1180
  %v1286 = vmul.f32 %v724, %v1184
  %v1287 = vmul.f32 %v1044, %v1188
  %v1288 = vmul.f32 %v728, %v1180
  %v1289 = vmul.f32 %v730, %v1184
  %v1290 = vmul.f32 %v1049, %v1188
  %v1291 = vmul.f32 %v732, %v1180
  %v1292 = vmul.f32 %v734, %v1184
  %v1293 = vmul.f32 %v1052, %v1188
  %v1294 = vmul.f32 %v738, %v1180
  %v1295 = vmul.f32 %v740, %v1184
  %v1296 = vmul.f32 %v1057, %v1188
  %v1297 = vmul.f32 %v742, %v1180
  %v1298 = vmul.f32 %v744, %v1184
  %v1299 = vmul.f32 %v1060, %v1188
  %v1300 = vmul.f32 %v748, %v1180
  %v1301 = vmul.f32 %v750, %v1184
  %v1302 = vmul.f32 %v1065, %v1188
  %v1303 = vmul.f32 %v752, %v1180
  %v1304 = vmul.f32 %v754, %v1184
  %v1305 = vmul.f32 %v1068, %v1188
  %v1306 = vmul.f32 %v758, %v1180
  %v1307 = vmul.f32 %v760, %v1184
  %v1308 = vmul.f32 %v1073, %v1188
  %v1309 = vmul.f32 %v762, %v1180
  %v1310 = vmul.f32 %v764, %v1184
  %v1311 = vmul.f32 %v1076, %v1188
  %v1312 = vmul.f32 %v768, %v1180
  %v1313 = vmul.f32 %v770, %v1184
  %v1314 = vmul.f32 %v1081, %v1188
  %v1315 = vmul.f32 %v772, %v1180
  %v1316 = vmul.f32 %v774, %v1184
  %v1317 = vmul.f32 %v1084, %v1188
  %v1318 = vmul.f32 %v778, %v1180
  %v1319 = vmul.f32 %v780, %v1184
  %v1320 = vmul.f32 %v1089, %v1188
  %v1321 = vmul.f32 %v782, %v1180
  %v1322 = vmul.f32 %v784, %v1184
  %v1323 = vmul.f32 %v1092, %v1188
  %v1324 = vmul.f32 %v788, %v1180
  %v1325 = vmul.f32 %v790, %v1184
  %v1326 = vmul.f32 %v1097, %v1188
  %v1327 = vmul.f32 %v792, %v1180
  %v1328 = vmul.f32 %v794, %v1184
  %v1329 = vmul.f32 %v1100, %v1188
  %v1330 = vmul.f32 %v798, %v1180
  %v1331 = vmul.f32 %v800, %v1184
  %v1332 = vmul.f32 %v1105, %v1188
  %v1333 = vmul.f32 %v802, %v1180
  %v1334 = vmul.f32 %v804, %v1184
  %v1335 = vmul.f32 %v1108, %v1188
  %v1336 = vmul.f32 %v808, %v1180
  %v1337 = vmul.f32 %v810, %v1184
  %v1338 = vmul.f32 %v1113, %v1188
  %v1339 = vmul.f32 %v812, %v1180
  %v1340 = vmul.f32 %v814, %v1184
  %v1341 = vmul.f32 %v1116, %v1188
  %v1342 = vmul.f32 %v818, %v1180
  %v1343 = vmul.f32 %v820, %v1184
  %v1344 = vmul.f32 %v1121, %v1188
  %v1345 = vmul.f32 %v822, %v1180
  %v1346 = vmul.f32 %v824, %v1184
  %v1347 = vmul.f32 %v1124, %v1188
  %v1348 = vmul.f32 %v828, %v1180
  %v1349 = vmul.f32 %v830, %v1184
  %v1350 = vmul.f32 %v1129, %v1188
  %v1351 = vmul.f32 %v832, %v1180
  %v1352 = vmul.f32 %v834, %v1184
  %v1353 = vmul.f32 %v1132, %v1188
  %v1354 = vmul.f32 %v838, %v1180
  %v1355 = vmul.f32 %v840, %v1184
  %v1356 = vmul.f32 %v1137, %v1188
  %v1357 = vmul.f32 %v842, %v1180
  %v1358 = vmul.f32 %v844, %v1184
  %v1359 = vmul.f32 %v1140, %v1188
  %v1360 = vmul.f32 %v848, %v1180
  %v1361 = vmul.f32 %v850, %v1184
  %v1362 = vmul.f32 %v1145, %v1188
  %v1363 = vmul.f32 %v852, %v1180
  %v1364 = vmul.f32 %v854, %v1184
  %v1365 = vmul.f32 %v1148, %v1188
  %v1366 = vmul.f32 %v858, %v1180
  %v1367 = vmul.f32 %v860, %v1184
  %v1368 = vmul.f32 %v1153, %v1188
  %v1369 = vmul.f32 %v862, %v1180
  %v1370 = vmul.f32 %v864, %v1184
  %v1371 = vmul.f32 %v1156, %v1188
  %v1372 = vmul.f32 %v868, %v1180
  %v1373 = vmul.f32 %v870, %v1184
  %v1374 = vmul.f32 %v1161, %v1188
  %v1375 = vmul.f32 %v872, %v1180
  %v1376 = vmul.f32 %v874, %v1184
  %v1377 = vmul.f32 %v1164, %v1188
  %v1378 = vmul.f32 %v878, %v1180
  %v1379 = vmul.f32 %v880, %v1184
  %v1380 = vmul.f32 %v1169, %v1188
  %v1381 = vmul.f32 %v882, %v1180
  %v1382 = vmul.f32 %v884, %v1184
  %v1383 = vmul.f32 %v1172, %v1188
  %v1384 = vld [vmem:[%s3] sm:$0x7]
  %v1386 = vlaneseq
  %v1387 = vshrl.u32 %v1386, 7
  %v1388 = vsub.s32 0, %v1387
  %v1389 = vrot.slane %v1384, %v1388
  %v1390 = vlaneseq
  %v1391 = vshrl.u32 %v1390, 7
  %v1392 = vsub.s32 1, %v1391
  %v1393 = vrot.slane %v1384, %v1392
  %v1394 = vlaneseq
  %v1395 = vshrl.u32 %v1394, 7
  %v1396 = vsub.s32 2, %v1395
  %v1397 = vrot.slane %v1384, %v1396
  %v1401 = vadd.f32 %v1192, %v1389
  %v1402 = vadd.f32 %v1193, %v1393
  %v1403 = vadd.f32 %v1194, %v1397
  %v1404 = vadd.f32 %v1195, %v1389
  %v1405 = vadd.f32 %v1196, %v1393
  %v1406 = vadd.f32 %v1197, %v1397
  %v1407 = vadd.f32 %v1198, %v1389
  %v1408 = vadd.f32 %v1199, %v1393
  %v1409 = vadd.f32 %v1200, %v1397
  %v1410 = vadd.f32 %v1201, %v1389
  %v1411 = vadd.f32 %v1202, %v1393
  %v1412 = vadd.f32 %v1203, %v1397
  %v1413 = vadd.f32 %v1204, %v1389
  %v1414 = vadd.f32 %v1205, %v1393
  %v1415 = vadd.f32 %v1206, %v1397
  %v1416 = vadd.f32 %v1207, %v1389
  %v1417 = vadd.f32 %v1208, %v1393
  %v1418 = vadd.f32 %v1209, %v1397
  %v1419 = vadd.f32 %v1210, %v1389
  %v1420 = vadd.f32 %v1211, %v1393
  %v1421 = vadd.f32 %v1212, %v1397
  %v1422 = vadd.f32 %v1213, %v1389
  %v1423 = vadd.f32 %v1214, %v1393
  %v1424 = vadd.f32 %v1215, %v1397
  %v1425 = vadd.f32 %v1216, %v1389
  %v1426 = vadd.f32 %v1217, %v1393
  %v1427 = vadd.f32 %v1218, %v1397
  %v1428 = vadd.f32 %v1219, %v1389
  %v1429 = vadd.f32 %v1220, %v1393
  %v1430 = vadd.f32 %v1221, %v1397
  %v1431 = vadd.f32 %v1222, %v1389
  %v1432 = vadd.f32 %v1223, %v1393
  %v1433 = vadd.f32 %v1224, %v1397
  %v1434 = vadd.f32 %v1225, %v1389
  %v1435 = vadd.f32 %v1226, %v1393
  %v1436 = vadd.f32 %v1227, %v1397
  %v1437 = vadd.f32 %v1228, %v1389
  %v1438 = vadd.f32 %v1229, %v1393
  %v1439 = vadd.f32 %v1230, %v1397
  %v1440 = vadd.f32 %v1231, %v1389
  %v1441 = vadd.f32 %v1232, %v1393
  %v1442 = vadd.f32 %v1233, %v1397
  %v1443 = vadd.f32 %v1234, %v1389
  %v1444 = vadd.f32 %v1235, %v1393
  %v1445 = vadd.f32 %v1236, %v1397
  %v1446 = vadd.f32 %v1237, %v1389
  %v1447 = vadd.f32 %v1238, %v1393
  %v1448 = vadd.f32 %v1239, %v1397
  %v1449 = vadd.f32 %v1240, %v1389
  %v1450 = vadd.f32 %v1241, %v1393
  %v1451 = vadd.f32 %v1242, %v1397
  %v1452 = vadd.f32 %v1243, %v1389
  %v1453 = vadd.f32 %v1244, %v1393
  %v1454 = vadd.f32 %v1245, %v1397
  %v1455 = vadd.f32 %v1246, %v1389
  %v1456 = vadd.f32 %v1247, %v1393
  %v1457 = vadd.f32 %v1248, %v1397
  %v1458 = vadd.f32 %v1249, %v1389
  %v1459 = vadd.f32 %v1250, %v1393
  %v1460 = vadd.f32 %v1251, %v1397
  %v1461 = vadd.f32 %v1252, %v1389
  %v1462 = vadd.f32 %v1253, %v1393
  %v1463 = vadd.f32 %v1254, %v1397
  %v1464 = vadd.f32 %v1255, %v1389
  %v1465 = vadd.f32 %v1256, %v1393
  %v1466 = vadd.f32 %v1257, %v1397
  %v1467 = vadd.f32 %v1258, %v1389
  %v1468 = vadd.f32 %v1259, %v1393
  %v1469 = vadd.f32 %v1260, %v1397
  %v1470 = vadd.f32 %v1261, %v1389
  %v1471 = vadd.f32 %v1262, %v1393
  %v1472 = vadd.f32 %v1263, %v1397
  %v1473 = vadd.f32 %v1264, %v1389
  %v1474 = vadd.f32 %v1265, %v1393
  %v1475 = vadd.f32 %v1266, %v1397
  %v1476 = vadd.f32 %v1267, %v1389
  %v1477 = vadd.f32 %v1268, %v1393
  %v1478 = vadd.f32 %v1269, %v1397
  %v1479 = vadd.f32 %v1270, %v1389
  %v1480 = vadd.f32 %v1271, %v1393
  %v1481 = vadd.f32 %v1272, %v1397
  %v1482 = vadd.f32 %v1273, %v1389
  %v1483 = vadd.f32 %v1274, %v1393
  %v1484 = vadd.f32 %v1275, %v1397
  %v1485 = vadd.f32 %v1276, %v1389
  %v1486 = vadd.f32 %v1277, %v1393
  %v1487 = vadd.f32 %v1278, %v1397
  %v1488 = vadd.f32 %v1279, %v1389
  %v1489 = vadd.f32 %v1280, %v1393
  %v1490 = vadd.f32 %v1281, %v1397
  %v1491 = vadd.f32 %v1282, %v1389
  %v1492 = vadd.f32 %v1283, %v1393
  %v1493 = vadd.f32 %v1284, %v1397
  %v1494 = vadd.f32 %v1285, %v1389
  %v1495 = vadd.f32 %v1286, %v1393
  %v1496 = vadd.f32 %v1287, %v1397
  %v1497 = vadd.f32 %v1288, %v1389
  %v1498 = vadd.f32 %v1289, %v1393
  %v1499 = vadd.f32 %v1290, %v1397
  %v1500 = vadd.f32 %v1291, %v1389
  %v1501 = vadd.f32 %v1292, %v1393
  %v1502 = vadd.f32 %v1293, %v1397
  %v1503 = vadd.f32 %v1294, %v1389
  %v1504 = vadd.f32 %v1295, %v1393
  %v1505 = vadd.f32 %v1296, %v1397
  %v1506 = vadd.f32 %v1297, %v1389
  %v1507 = vadd.f32 %v1298, %v1393
  %v1508 = vadd.f32 %v1299, %v1397
  %v1509 = vadd.f32 %v1300, %v1389
  %v1510 = vadd.f32 %v1301, %v1393
  %v1511 = vadd.f32 %v1302, %v1397
  %v1512 = vadd.f32 %v1303, %v1389
  %v1513 = vadd.f32 %v1304, %v1393
  %v1514 = vadd.f32 %v1305, %v1397
  %v1515 = vadd.f32 %v1306, %v1389
  %v1516 = vadd.f32 %v1307, %v1393
  %v1517 = vadd.f32 %v1308, %v1397
  %v1518 = vadd.f32 %v1309, %v1389
  %v1519 = vadd.f32 %v1310, %v1393
  %v1520 = vadd.f32 %v1311, %v1397
  %v1521 = vadd.f32 %v1312, %v1389
  %v1522 = vadd.f32 %v1313, %v1393
  %v1523 = vadd.f32 %v1314, %v1397
  %v1524 = vadd.f32 %v1315, %v1389
  %v1525 = vadd.f32 %v1316, %v1393
  %v1526 = vadd.f32 %v1317, %v1397
  %v1527 = vadd.f32 %v1318, %v1389
  %v1528 = vadd.f32 %v1319, %v1393
  %v1529 = vadd.f32 %v1320, %v1397
  %v1530 = vadd.f32 %v1321, %v1389
  %v1531 = vadd.f32 %v1322, %v1393
  %v1532 = vadd.f32 %v1323, %v1397
  %v1533 = vadd.f32 %v1324, %v1389
  %v1534 = vadd.f32 %v1325, %v1393
  %v1535 = vadd.f32 %v1326, %v1397
  %v1536 = vadd.f32 %v1327, %v1389
  %v1537 = vadd.f32 %v1328, %v1393
  %v1538 = vadd.f32 %v1329, %v1397
  %v1539 = vadd.f32 %v1330, %v1389
  %v1540 = vadd.f32 %v1331, %v1393
  %v1541 = vadd.f32 %v1332, %v1397
  %v1542 = vadd.f32 %v1333, %v1389
  %v1543 = vadd.f32 %v1334, %v1393
  %v1544 = vadd.f32 %v1335, %v1397
  %v1545 = vadd.f32 %v1336, %v1389
  %v1546 = vadd.f32 %v1337, %v1393
  %v1547 = vadd.f32 %v1338, %v1397
  %v1548 = vadd.f32 %v1339, %v1389
  %v1549 = vadd.f32 %v1340, %v1393
  %v1550 = vadd.f32 %v1341, %v1397
  %v1551 = vadd.f32 %v1342, %v1389
  %v1552 = vadd.f32 %v1343, %v1393
  %v1553 = vadd.f32 %v1344, %v1397
  %v1554 = vadd.f32 %v1345, %v1389
  %v1555 = vadd.f32 %v1346, %v1393
  %v1556 = vadd.f32 %v1347, %v1397
  %v1557 = vadd.f32 %v1348, %v1389
  %v1558 = vadd.f32 %v1349, %v1393
  %v1559 = vadd.f32 %v1350, %v1397
  %v1560 = vadd.f32 %v1351, %v1389
  %v1561 = vadd.f32 %v1352, %v1393
  %v1562 = vadd.f32 %v1353, %v1397
  %v1563 = vadd.f32 %v1354, %v1389
  %v1564 = vadd.f32 %v1355, %v1393
  %v1565 = vadd.f32 %v1356, %v1397
  %v1566 = vadd.f32 %v1357, %v1389
  %v1567 = vadd.f32 %v1358, %v1393
  %v1568 = vadd.f32 %v1359, %v1397
  %v1569 = vadd.f32 %v1360, %v1389
  %v1570 = vadd.f32 %v1361, %v1393
  %v1571 = vadd.f32 %v1362, %v1397
  %v1572 = vadd.f32 %v1363, %v1389
  %v1573 = vadd.f32 %v1364, %v1393
  %v1574 = vadd.f32 %v1365, %v1397
  %v1575 = vadd.f32 %v1366, %v1389
  %v1576 = vadd.f32 %v1367, %v1393
  %v1577 = vadd.f32 %v1368, %v1397
  %v1578 = vadd.f32 %v1369, %v1389
  %v1579 = vadd.f32 %v1370, %v1393
  %v1580 = vadd.f32 %v1371, %v1397
  %v1581 = vadd.f32 %v1372, %v1389
  %v1582 = vadd.f32 %v1373, %v1393
  %v1583 = vadd.f32 %v1374, %v1397
  %v1584 = vadd.f32 %v1375, %v1389
  %v1585 = vadd.f32 %v1376, %v1393
  %v1586 = vadd.f32 %v1377, %v1397
  %v1587 = vadd.f32 %v1378, %v1389
  %v1588 = vadd.f32 %v1379, %v1393
  %v1589 = vadd.f32 %v1380, %v1397
  %v1590 = vadd.f32 %v1381, %v1389
  %v1591 = vadd.f32 %v1382, %v1393
  %v1592 = vadd.f32 %v1383, %v1397
  %v1593 = vmax.f32 %v1401, 0.0
  %v1594 = vmax.f32 %v1402, 0.0
  %v1595 = vmax.f32 %v1403, 0.0
  %v1596 = vmax.f32 %v1404, 0.0
  %v1597 = vmax.f32 %v1405, 0.0
  %v1598 = vmax.f32 %v1406, 0.0
  %v1599 = vmax.f32 %v1407, 0.0
  %v1600 = vmax.f32 %v1408, 0.0
  %v1601 = vmax.f32 %v1409, 0.0
  %v1602 = vmax.f32 %v1410, 0.0
  %v1603 = vmax.f32 %v1411, 0.0
  %v1604 = vmax.f32 %v1412, 0.0
  %v1605 = vmax.f32 %v1413, 0.0
  %v1606 = vmax.f32 %v1414, 0.0
  %v1607 = vmax.f32 %v1415, 0.0
  %v1608 = vmax.f32 %v1416, 0.0
  %v1609 = vmax.f32 %v1417, 0.0
  %v1610 = vmax.f32 %v1418, 0.0
  %v1611 = vmax.f32 %v1419, 0.0
  %v1612 = vmax.f32 %v1420, 0.0
  %v1613 = vmax.f32 %v1421, 0.0
  %v1614 = vmax.f32 %v1422, 0.0
  %v1615 = vmax.f32 %v1423, 0.0
  %v1616 = vmax.f32 %v1424, 0.0
  %v1617 = vmax.f32 %v1425, 0.0
  %v1618 = vmax.f32 %v1426, 0.0
  %v1619 = vmax.f32 %v1427, 0.0
  %v1620 = vmax.f32 %v1428, 0.0
  %v1621 = vmax.f32 %v1429, 0.0
  %v1622 = vmax.f32 %v1430, 0.0
  %v1623 = vmax.f32 %v1431, 0.0
  %v1624 = vmax.f32 %v1432, 0.0
  %v1625 = vmax.f32 %v1433, 0.0
  %v1626 = vmax.f32 %v1434, 0.0
  %v1627 = vmax.f32 %v1435, 0.0
  %v1628 = vmax.f32 %v1436, 0.0
  %v1629 = vmax.f32 %v1437, 0.0
  %v1630 = vmax.f32 %v1438, 0.0
  %v1631 = vmax.f32 %v1439, 0.0
  %v1632 = vmax.f32 %v1440, 0.0
  %v1633 = vmax.f32 %v1441, 0.0
  %v1634 = vmax.f32 %v1442, 0.0
  %v1635 = vmax.f32 %v1443, 0.0
  %v1636 = vmax.f32 %v1444, 0.0
  %v1637 = vmax.f32 %v1445, 0.0
  %v1638 = vmax.f32 %v1446, 0.0
  %v1639 = vmax.f32 %v1447, 0.0
  %v1640 = vmax.f32 %v1448, 0.0
  %v1641 = vmax.f32 %v1449, 0.0
  %v1642 = vmax.f32 %v1450, 0.0
  %v1643 = vmax.f32 %v1451, 0.0
  %v1644 = vmax.f32 %v1452, 0.0
  %v1645 = vmax.f32 %v1453, 0.0
  %v1646 = vmax.f32 %v1454, 0.0
  %v1647 = vmax.f32 %v1455, 0.0
  %v1648 = vmax.f32 %v1456, 0.0
  %v1649 = vmax.f32 %v1457, 0.0
  %v1650 = vmax.f32 %v1458, 0.0
  %v1651 = vmax.f32 %v1459, 0.0
  %v1652 = vmax.f32 %v1460, 0.0
  %v1653 = vmax.f32 %v1461, 0.0
  %v1654 = vmax.f32 %v1462, 0.0
  %v1655 = vmax.f32 %v1463, 0.0
  %v1656 = vmax.f32 %v1464, 0.0
  %v1657 = vmax.f32 %v1465, 0.0
  %v1658 = vmax.f32 %v1466, 0.0
  %v1659 = vmax.f32 %v1467, 0.0
  %v1660 = vmax.f32 %v1468, 0.0
  %v1661 = vmax.f32 %v1469, 0.0
  %v1662 = vmax.f32 %v1470, 0.0
  %v1663 = vmax.f32 %v1471, 0.0
  %v1664 = vmax.f32 %v1472, 0.0
  %v1665 = vmax.f32 %v1473, 0.0
  %v1666 = vmax.f32 %v1474, 0.0
  %v1667 = vmax.f32 %v1475, 0.0
  %v1668 = vmax.f32 %v1476, 0.0
  %v1669 = vmax.f32 %v1477, 0.0
  %v1670 = vmax.f32 %v1478, 0.0
  %v1671 = vmax.f32 %v1479, 0.0
  %v1672 = vmax.f32 %v1480, 0.0
  %v1673 = vmax.f32 %v1481, 0.0
  %v1674 = vmax.f32 %v1482, 0.0
  %v1675 = vmax.f32 %v1483, 0.0
  %v1676 = vmax.f32 %v1484, 0.0
  %v1677 = vmax.f32 %v1485, 0.0
  %v1678 = vmax.f32 %v1486, 0.0
  %v1679 = vmax.f32 %v1487, 0.0
  %v1680 = vmax.f32 %v1488, 0.0
  %v1681 = vmax.f32 %v1489, 0.0
  %v1682 = vmax.f32 %v1490, 0.0
  %v1683 = vmax.f32 %v1491, 0.0
  %v1684 = vmax.f32 %v1492, 0.0
  %v1685 = vmax.f32 %v1493, 0.0
  %v1686 = vmax.f32 %v1494, 0.0
  %v1687 = vmax.f32 %v1495, 0.0
  %v1688 = vmax.f32 %v1496, 0.0
  %v1689 = vmax.f32 %v1497, 0.0
  %v1690 = vmax.f32 %v1498, 0.0
  %v1691 = vmax.f32 %v1499, 0.0
  %v1692 = vmax.f32 %v1500, 0.0
  %v1693 = vmax.f32 %v1501, 0.0
  %v1694 = vmax.f32 %v1502, 0.0
  %v1695 = vmax.f32 %v1503, 0.0
  %v1696 = vmax.f32 %v1504, 0.0
  %v1697 = vmax.f32 %v1505, 0.0
  %v1698 = vmax.f32 %v1506, 0.0
  %v1699 = vmax.f32 %v1507, 0.0
  %v1700 = vmax.f32 %v1508, 0.0
  %v1701 = vmax.f32 %v1509, 0.0
  %v1702 = vmax.f32 %v1510, 0.0
  %v1703 = vmax.f32 %v1511, 0.0
  %v1704 = vmax.f32 %v1512, 0.0
  %v1705 = vmax.f32 %v1513, 0.0
  %v1706 = vmax.f32 %v1514, 0.0
  %v1707 = vmax.f32 %v1515, 0.0
  %v1708 = vmax.f32 %v1516, 0.0
  %v1709 = vmax.f32 %v1517, 0.0
  %v1710 = vmax.f32 %v1518, 0.0
  %v1711 = vmax.f32 %v1519, 0.0
  %v1712 = vmax.f32 %v1520, 0.0
  %v1713 = vmax.f32 %v1521, 0.0
  %v1714 = vmax.f32 %v1522, 0.0
  %v1715 = vmax.f32 %v1523, 0.0
  %v1716 = vmax.f32 %v1524, 0.0
  %v1717 = vmax.f32 %v1525, 0.0
  %v1718 = vmax.f32 %v1526, 0.0
  %v1719 = vmax.f32 %v1527, 0.0
  %v1720 = vmax.f32 %v1528, 0.0
  %v1721 = vmax.f32 %v1529, 0.0
  %v1722 = vmax.f32 %v1530, 0.0
  %v1723 = vmax.f32 %v1531, 0.0
  %v1724 = vmax.f32 %v1532, 0.0
  %v1725 = vmax.f32 %v1533, 0.0
  %v1726 = vmax.f32 %v1534, 0.0
  %v1727 = vmax.f32 %v1535, 0.0
  %v1728 = vmax.f32 %v1536, 0.0
  %v1729 = vmax.f32 %v1537, 0.0
  %v1730 = vmax.f32 %v1538, 0.0
  %v1731 = vmax.f32 %v1539, 0.0
  %v1732 = vmax.f32 %v1540, 0.0
  %v1733 = vmax.f32 %v1541, 0.0
  %v1734 = vmax.f32 %v1542, 0.0
  %v1735 = vmax.f32 %v1543, 0.0
  %v1736 = vmax.f32 %v1544, 0.0
  %v1737 = vmax.f32 %v1545, 0.0
  %v1738 = vmax.f32 %v1546, 0.0
  %v1739 = vmax.f32 %v1547, 0.0
  %v1740 = vmax.f32 %v1548, 0.0
  %v1741 = vmax.f32 %v1549, 0.0
  %v1742 = vmax.f32 %v1550, 0.0
  %v1743 = vmax.f32 %v1551, 0.0
  %v1744 = vmax.f32 %v1552, 0.0
  %v1745 = vmax.f32 %v1553, 0.0
  %v1746 = vmax.f32 %v1554, 0.0
  %v1747 = vmax.f32 %v1555, 0.0
  %v1748 = vmax.f32 %v1556, 0.0
  %v1749 = vmax.f32 %v1557, 0.0
  %v1750 = vmax.f32 %v1558, 0.0
  %v1751 = vmax.f32 %v1559, 0.0
  %v1752 = vmax.f32 %v1560, 0.0
  %v1753 = vmax.f32 %v1561, 0.0
  %v1754 = vmax.f32 %v1562, 0.0
  %v1755 = vmax.f32 %v1563, 0.0
  %v1756 = vmax.f32 %v1564, 0.0
  %v1757 = vmax.f32 %v1565, 0.0
  %v1758 = vmax.f32 %v1566, 0.0
  %v1759 = vmax.f32 %v1567, 0.0
  %v1760 = vmax.f32 %v1568, 0.0
  %v1761 = vmax.f32 %v1569, 0.0
  %v1762 = vmax.f32 %v1570, 0.0
  %v1763 = vmax.f32 %v1571, 0.0
  %v1764 = vmax.f32 %v1572, 0.0
  %v1765 = vmax.f32 %v1573, 0.0
  %v1766 = vmax.f32 %v1574, 0.0
  %v1767 = vmax.f32 %v1575, 0.0
  %v1768 = vmax.f32 %v1576, 0.0
  %v1769 = vmax.f32 %v1577, 0.0
  %v1770 = vmax.f32 %v1578, 0.0
  %v1771 = vmax.f32 %v1579, 0.0
  %v1772 = vmax.f32 %v1580, 0.0
  %v1773 = vmax.f32 %v1581, 0.0
  %v1774 = vmax.f32 %v1582, 0.0
  %v1775 = vmax.f32 %v1583, 0.0
  %v1776 = vmax.f32 %v1584, 0.0
  %v1777 = vmax.f32 %v1585, 0.0
  %v1778 = vmax.f32 %v1586, 0.0
  %v1779 = vmax.f32 %v1587, 0.0
  %v1780 = vmax.f32 %v1588, 0.0
  %v1781 = vmax.f32 %v1589, 0.0
  %v1782 = vmax.f32 %v1590, 0.0
  %v1783 = vmax.f32 %v1591, 0.0
  %v1784 = vmax.f32 %v1592, 0.0
  %1785 = vst [vmem:[%s4] sm:$0xff] %v1593
  %1786 = vst [vmem:[%s4 + $0x8] sm:$0xff] %v1596
  %1787 = vst [vmem:[%s4 + $0x10] sm:$0xff] %v1599
  %1788 = vst [vmem:[%s4 + $0x18] sm:$0xff] %v1602
  %1789 = vst [vmem:[%s4 + $0x20] sm:$0xff] %v1605
  %1790 = vst [vmem:[%s4 + $0x28] sm:$0xff] %v1608
  %1791 = vst [vmem:[%s4 + $0x30] sm:$0xff] %v1611
  %1792 = vst [vmem:[%s4 + $0x38] sm:$0xff] %v1614
  %1793 = vst [vmem:[%s4 + $0x40] sm:$0xff] %v1617
  %1794 = vst [vmem:[%s4 + $0x48] sm:$0xff] %v1620
  %1795 = vst [vmem:[%s4 + $0x50] sm:$0xff] %v1623
  %1796 = vst [vmem:[%s4 + $0x58] sm:$0xff] %v1626
  %1797 = vst [vmem:[%s4 + $0x60] sm:$0xff] %v1629
  %1798 = vst [vmem:[%s4 + $0x68] sm:$0xff] %v1632
  %1799 = vst [vmem:[%s4 + $0x70] sm:$0xff] %v1635
  %1800 = vst [vmem:[%s4 + $0x78] sm:$0xff] %v1638
  %1801 = vst [vmem:[%s4 + $0x80] sm:$0xff] %v1641
  %1802 = vst [vmem:[%s4 + $0x88] sm:$0xff] %v1644
  %1803 = vst [vmem:[%s4 + $0x90] sm:$0xff] %v1647
  %1804 = vst [vmem:[%s4 + $0x98] sm:$0xff] %v1650
  %1805 = vst [vmem:[%s4 + $0xa0] sm:$0xff] %v1653
  %1806 = vst [vmem:[%s4 + $0xa8] sm:$0xff] %v1656
  %1807 = vst [vmem:[%s4 + $0xb0] sm:$0xff] %v1659
  %1808 = vst [vmem:[%s4 + $0xb8] sm:$0xff] %v1662
  %1809 = vst [vmem:[%s4 + $0xc0] sm:$0xff] %v1665
  %1810 = vst [vmem:[%s4 + $0xc8] sm:$0xff] %v1668
  %1811 = vst [vmem:[%s4 + $0xd0] sm:$0xff] %v1671
  %1812 = vst [vmem:[%s4 + $0xd8] sm:$0xff] %v1674
  %1813 = vst [vmem:[%s4 + $0xe0] sm:$0xff] %v1677
  %1814 = vst [vmem:[%s4 + $0xe8] sm:$0xff] %v1680
  %1815 = vst [vmem:[%s4 + $0xf0] sm:$0xff] %v1683
  %1816 = vst [vmem:[%s4 + $0xf8] sm:$0xff] %v1686
  %1817 = vst [vmem:[%s4 + $0x100] sm:$0xff] %v1689
  %1818 = vst [vmem:[%s4 + $0x108] sm:$0xff] %v1692
  %1819 = vst [vmem:[%s4 + $0x110] sm:$0xff] %v1695
  %1820 = vst [vmem:[%s4 + $0x118] sm:$0xff] %v1698
  %1821 = vst [vmem:[%s4 + $0x120] sm:$0xff] %v1701
  %1822 = vst [vmem:[%s4 + $0x128] sm:$0xff] %v1704
  %1823 = vst [vmem:[%s4 + $0x130] sm:$0xff] %v1707
  %1824 = vst [vmem:[%s4 + $0x138] sm:$0xff] %v1710
  %1825 = vst [vmem:[%s4 + $0x140] sm:$0xff] %v1713
  %1826 = vst [vmem:[%s4 + $0x148] sm:$0xff] %v1716
  %1827 = vst [vmem:[%s4 + $0x150] sm:$0xff] %v1719
  %1828 = vst [vmem:[%s4 + $0x158] sm:$0xff] %v1722
  %1829 = vst [vmem:[%s4 + $0x160] sm:$0xff] %v1725
  %1830 = vst [vmem:[%s4 + $0x168] sm:$0xff] %v1728
  %1831 = vst [vmem:[%s4 + $0x170] sm:$0xff] %v1731
  %1832 = vst [vmem:[%s4 + $0x178] sm:$0xff] %v1734
  %1833 = vst [vmem:[%s4 + $0x180] sm:$0xff] %v1737
  %1834 = vst [vmem:[%s4 + $0x188] sm:$0xff] %v1740
  %1835 = vst [vmem:[%s4 + $0x190] sm:$0xff] %v1743
  %1836 = vst [vmem:[%s4 + $0x198] sm:$0xff] %v1746
  %1837 = vst [vmem:[%s4 + $0x1a0] sm:$0xff] %v1749
  %1838 = vst [vmem:[%s4 + $0x1a8] sm:$0xff] %v1752
  %1839 = vst [vmem:[%s4 + $0x1b0] sm:$0xff] %v1755
  %1840 = vst [vmem:[%s4 + $0x1b8] sm:$0xff] %v1758
  %1841 = vst [vmem:[%s4 + $0x1c0] sm:$0xff] %v1761
  %1842 = vst [vmem:[%s4 + $0x1c8] sm:$0xff] %v1764
  %1843 = vst [vmem:[%s4 + $0x1d0] sm:$0xff] %v1767
  %1844 = vst [vmem:[%s4 + $0x1d8] sm:$0xff] %v1770
  %1845 = vst [vmem:[%s4 + $0x1e0] sm:$0xff] %v1773
  %1846 = vst [vmem:[%s4 + $0x1e8] sm:$0xff] %v1776
  %1847 = vst [vmem:[%s4 + $0x1f0] sm:$0xff] %v1779
  %1848 = vst [vmem:[%s4 + $0x1f8] sm:$0xff] %v1782
  %v1849 = vpack.c.bf16 %v1597, %v1594
  %v1850 = vpack.c.bf16 %v1603, %v1600
  %v1851 = vpack.c.bf16 %v1609, %v1606
  %v1852 = vpack.c.bf16 %v1615, %v1612
  %v1853 = vpack.c.bf16 %v1621, %v1618
  %v1854 = vpack.c.bf16 %v1627, %v1624
  %v1855 = vpack.c.bf16 %v1633, %v1630
  %v1856 = vpack.c.bf16 %v1639, %v1636
  %v1857 = vpack.c.bf16 %v1645, %v1642
  %v1858 = vpack.c.bf16 %v1651, %v1648
  %v1859 = vpack.c.bf16 %v1657, %v1654
  %v1860 = vpack.c.bf16 %v1663, %v1660
  %v1861 = vpack.c.bf16 %v1669, %v1666
  %v1862 = vpack.c.bf16 %v1675, %v1672
  %v1863 = vpack.c.bf16 %v1681, %v1678
  %v1864 = vpack.c.bf16 %v1687, %v1684
  %v1865 = vpack.c.bf16 %v1693, %v1690
  %v1866 = vpack.c.bf16 %v1699, %v1696
  %v1867 = vpack.c.bf16 %v1705, %v1702
  %v1868 = vpack.c.bf16 %v1711, %v1708
  %v1869 = vpack.c.bf16 %v1717, %v1714
  %v1870 = vpack.c.bf16 %v1723, %v1720
  %v1871 = vpack.c.bf16 %v1729, %v1726
  %v1872 = vpack.c.bf16 %v1735, %v1732
  %v1873 = vpack.c.bf16 %v1741, %v1738
  %v1874 = vpack.c.bf16 %v1747, %v1744
  %v1875 = vpack.c.bf16 %v1753, %v1750
  %v1876 = vpack.c.bf16 %v1759, %v1756
  %v1877 = vpack.c.bf16 %v1765, %v1762
  %v1878 = vpack.c.bf16 %v1771, %v1768
  %v1879 = vpack.c.bf16 %v1777, %v1774
  %v1880 = vpack.c.bf16 %v1783, %v1780
  %v1913 = vunpack.c.l.b16 %v1849
  %v1914 = vunpack.c.h.b16 %v1849
  %v1915 = vunpack.c.l.b16 %v1850
  %v1916 = vunpack.c.h.b16 %v1850
  %v1917 = vunpack.c.l.b16 %v1851
  %v1918 = vunpack.c.h.b16 %v1851
  %v1919 = vunpack.c.l.b16 %v1852
  %v1920 = vunpack.c.h.b16 %v1852
  %v1921 = vunpack.c.l.b16 %v1853
  %v1922 = vunpack.c.h.b16 %v1853
  %v1923 = vunpack.c.l.b16 %v1854
  %v1924 = vunpack.c.h.b16 %v1854
  %v1925 = vunpack.c.l.b16 %v1855
  %v1926 = vunpack.c.h.b16 %v1855
  %v1927 = vunpack.c.l.b16 %v1856
  %v1928 = vunpack.c.h.b16 %v1856
  %v1929 = vunpack.c.l.b16 %v1857
  %v1930 = vunpack.c.h.b16 %v1857
  %v1931 = vunpack.c.l.b16 %v1858
  %v1932 = vunpack.c.h.b16 %v1858
  %v1933 = vunpack.c.l.b16 %v1859
  %v1934 = vunpack.c.h.b16 %v1859
  %v1935 = vunpack.c.l.b16 %v1860
  %v1936 = vunpack.c.h.b16 %v1860
  %v1937 = vunpack.c.l.b16 %v1861
  %v1938 = vunpack.c.h.b16 %v1861
  %v1939 = vunpack.c.l.b16 %v1862
  %v1940 = vunpack.c.h.b16 %v1862
  %v1941 = vunpack.c.l.b16 %v1863
  %v1942 = vunpack.c.h.b16 %v1863
  %v1943 = vunpack.c.l.b16 %v1864
  %v1944 = vunpack.c.h.b16 %v1864
  %v1945 = vunpack.c.l.b16 %v1865
  %v1946 = vunpack.c.h.b16 %v1865
  %v1947 = vunpack.c.l.b16 %v1866
  %v1948 = vunpack.c.h.b16 %v1866
  %v1949 = vunpack.c.l.b16 %v1867
  %v1950 = vunpack.c.h.b16 %v1867
  %v1951 = vunpack.c.l.b16 %v1868
  %v1952 = vunpack.c.h.b16 %v1868
  %v1953 = vunpack.c.l.b16 %v1869
  %v1954 = vunpack.c.h.b16 %v1869
  %v1955 = vunpack.c.l.b16 %v1870
  %v1956 = vunpack.c.h.b16 %v1870
  %v1957 = vunpack.c.l.b16 %v1871
  %v1958 = vunpack.c.h.b16 %v1871
  %v1959 = vunpack.c.l.b16 %v1872
  %v1960 = vunpack.c.h.b16 %v1872
  %v1961 = vunpack.c.l.b16 %v1873
  %v1962 = vunpack.c.h.b16 %v1873
  %v1963 = vunpack.c.l.b16 %v1874
  %v1964 = vunpack.c.h.b16 %v1874
  %v1965 = vunpack.c.l.b16 %v1875
  %v1966 = vunpack.c.h.b16 %v1875
  %v1967 = vunpack.c.l.b16 %v1876
  %v1968 = vunpack.c.h.b16 %v1876
  %v1969 = vunpack.c.l.b16 %v1877
  %v1970 = vunpack.c.h.b16 %v1877
  %v1971 = vunpack.c.l.b16 %v1878
  %v1972 = vunpack.c.h.b16 %v1878
  %v1973 = vunpack.c.l.b16 %v1879
  %v1974 = vunpack.c.h.b16 %v1879
  %v1975 = vunpack.c.l.b16 %v1880
  %v1976 = vunpack.c.h.b16 %v1880
  %v1977 = vpack.c.b16 %v1913, %v1913
  %v1978 = vpack.c.b16 %v1914, %v1914
  %v1979 = vpack.c.b16 %v1915, %v1915
  %v1980 = vpack.c.b16 %v1916, %v1916
  %v1981 = vpack.c.b16 %v1917, %v1917
  %v1982 = vpack.c.b16 %v1918, %v1918
  %v1983 = vpack.c.b16 %v1919, %v1919
  %v1984 = vpack.c.b16 %v1920, %v1920
  %v1985 = vpack.c.b16 %v1921, %v1921
  %v1986 = vpack.c.b16 %v1922, %v1922
  %v1987 = vpack.c.b16 %v1923, %v1923
  %v1988 = vpack.c.b16 %v1924, %v1924
  %v1989 = vpack.c.b16 %v1925, %v1925
  %v1990 = vpack.c.b16 %v1926, %v1926
  %v1991 = vpack.c.b16 %v1927, %v1927
  %v1992 = vpack.c.b16 %v1928, %v1928
  %v1993 = vpack.c.b16 %v1929, %v1929
  %v1994 = vpack.c.b16 %v1930, %v1930
  %v1995 = vpack.c.b16 %v1931, %v1931
  %v1996 = vpack.c.b16 %v1932, %v1932
  %v1997 = vpack.c.b16 %v1933, %v1933
  %v1998 = vpack.c.b16 %v1934, %v1934
  %v1999 = vpack.c.b16 %v1935, %v1935
  %v2000 = vpack.c.b16 %v1936, %v1936
  %v2001 = vpack.c.b16 %v1937, %v1937
  %v2002 = vpack.c.b16 %v1938, %v1938
  %v2003 = vpack.c.b16 %v1939, %v1939
  %v2004 = vpack.c.b16 %v1940, %v1940
  %v2005 = vpack.c.b16 %v1941, %v1941
  %v2006 = vpack.c.b16 %v1942, %v1942
  %v2007 = vpack.c.b16 %v1943, %v1943
  %v2008 = vpack.c.b16 %v1944, %v1944
  %v2009 = vpack.c.b16 %v1945, %v1945
  %v2010 = vpack.c.b16 %v1946, %v1946
  %v2011 = vpack.c.b16 %v1947, %v1947
  %v2012 = vpack.c.b16 %v1948, %v1948
  %v2013 = vpack.c.b16 %v1949, %v1949
  %v2014 = vpack.c.b16 %v1950, %v1950
  %v2015 = vpack.c.b16 %v1951, %v1951
  %v2016 = vpack.c.b16 %v1952, %v1952
  %v2017 = vpack.c.b16 %v1953, %v1953
  %v2018 = vpack.c.b16 %v1954, %v1954
  %v2019 = vpack.c.b16 %v1955, %v1955
  %v2020 = vpack.c.b16 %v1956, %v1956
  %v2021 = vpack.c.b16 %v1957, %v1957
  %v2022 = vpack.c.b16 %v1958, %v1958
  %v2023 = vpack.c.b16 %v1959, %v1959
  %v2024 = vpack.c.b16 %v1960, %v1960
  %v2025 = vpack.c.b16 %v1961, %v1961
  %v2026 = vpack.c.b16 %v1962, %v1962
  %v2027 = vpack.c.b16 %v1963, %v1963
  %v2028 = vpack.c.b16 %v1964, %v1964
  %v2029 = vpack.c.b16 %v1965, %v1965
  %v2030 = vpack.c.b16 %v1966, %v1966
  %v2031 = vpack.c.b16 %v1967, %v1967
  %v2032 = vpack.c.b16 %v1968, %v1968
  %v2033 = vpack.c.b16 %v1969, %v1969
  %v2034 = vpack.c.b16 %v1970, %v1970
  %v2035 = vpack.c.b16 %v1971, %v1971
  %v2036 = vpack.c.b16 %v1972, %v1972
  %v2037 = vpack.c.b16 %v1973, %v1973
  %v2038 = vpack.c.b16 %v1974, %v1974
  %v2039 = vpack.c.b16 %v1975, %v1975
  %v2040 = vpack.c.b16 %v1976, %v1976
  %2105 = vst [vmem:[%s5] sm:$0xf] %v1977
  %2106 = vst [vmem:[%s5 + $0x4] sm:$0xf] %v1978
  %2107 = vst [vmem:[%s5 + $0x8] sm:$0xf] %v1979
  %2108 = vst [vmem:[%s5 + $0xc] sm:$0xf] %v1980
  %2109 = vst [vmem:[%s5 + $0x10] sm:$0xf] %v1981
  %2110 = vst [vmem:[%s5 + $0x14] sm:$0xf] %v1982
  %2111 = vst [vmem:[%s5 + $0x18] sm:$0xf] %v1983
  %2112 = vst [vmem:[%s5 + $0x1c] sm:$0xf] %v1984
  %2113 = vst [vmem:[%s5 + $0x20] sm:$0xf] %v1985
  %2114 = vst [vmem:[%s5 + $0x24] sm:$0xf] %v1986
  %2115 = vst [vmem:[%s5 + $0x28] sm:$0xf] %v1987
  %2116 = vst [vmem:[%s5 + $0x2c] sm:$0xf] %v1988
  %2117 = vst [vmem:[%s5 + $0x30] sm:$0xf] %v1989
  %2118 = vst [vmem:[%s5 + $0x34] sm:$0xf] %v1990
  %2119 = vst [vmem:[%s5 + $0x38] sm:$0xf] %v1991
  %2120 = vst [vmem:[%s5 + $0x3c] sm:$0xf] %v1992
  %2121 = vst [vmem:[%s5 + $0x40] sm:$0xf] %v1993
  %2122 = vst [vmem:[%s5 + $0x44] sm:$0xf] %v1994
  %2123 = vst [vmem:[%s5 + $0x48] sm:$0xf] %v1995
  %2124 = vst [vmem:[%s5 + $0x4c] sm:$0xf] %v1996
  %2125 = vst [vmem:[%s5 + $0x50] sm:$0xf] %v1997
  %2126 = vst [vmem:[%s5 + $0x54] sm:$0xf] %v1998
  %2127 = vst [vmem:[%s5 + $0x58] sm:$0xf] %v1999
  %2128 = vst [vmem:[%s5 + $0x5c] sm:$0xf] %v2000
  %2129 = vst [vmem:[%s5 + $0x60] sm:$0xf] %v2001
  %2130 = vst [vmem:[%s5 + $0x64] sm:$0xf] %v2002
  %2131 = vst [vmem:[%s5 + $0x68] sm:$0xf] %v2003
  %2132 = vst [vmem:[%s5 + $0x6c] sm:$0xf] %v2004
  %2133 = vst [vmem:[%s5 + $0x70] sm:$0xf] %v2005
  %2134 = vst [vmem:[%s5 + $0x74] sm:$0xf] %v2006
  %2135 = vst [vmem:[%s5 + $0x78] sm:$0xf] %v2007
  %2136 = vst [vmem:[%s5 + $0x7c] sm:$0xf] %v2008
  %2137 = vst [vmem:[%s5 + $0x80] sm:$0xf] %v2009
  %2138 = vst [vmem:[%s5 + $0x84] sm:$0xf] %v2010
  %2139 = vst [vmem:[%s5 + $0x88] sm:$0xf] %v2011
  %2140 = vst [vmem:[%s5 + $0x8c] sm:$0xf] %v2012
  %2141 = vst [vmem:[%s5 + $0x90] sm:$0xf] %v2013
  %2142 = vst [vmem:[%s5 + $0x94] sm:$0xf] %v2014
  %2143 = vst [vmem:[%s5 + $0x98] sm:$0xf] %v2015
  %2144 = vst [vmem:[%s5 + $0x9c] sm:$0xf] %v2016
  %2145 = vst [vmem:[%s5 + $0xa0] sm:$0xf] %v2017
  %2146 = vst [vmem:[%s5 + $0xa4] sm:$0xf] %v2018
  %2147 = vst [vmem:[%s5 + $0xa8] sm:$0xf] %v2019
  %2148 = vst [vmem:[%s5 + $0xac] sm:$0xf] %v2020
  %2149 = vst [vmem:[%s5 + $0xb0] sm:$0xf] %v2021
  %2150 = vst [vmem:[%s5 + $0xb4] sm:$0xf] %v2022
  %2151 = vst [vmem:[%s5 + $0xb8] sm:$0xf] %v2023
  %2152 = vst [vmem:[%s5 + $0xbc] sm:$0xf] %v2024
  %2153 = vst [vmem:[%s5 + $0xc0] sm:$0xf] %v2025
  %2154 = vst [vmem:[%s5 + $0xc4] sm:$0xf] %v2026
  %2155 = vst [vmem:[%s5 + $0xc8] sm:$0xf] %v2027
  %2156 = vst [vmem:[%s5 + $0xcc] sm:$0xf] %v2028
  %2157 = vst [vmem:[%s5 + $0xd0] sm:$0xf] %v2029
  %2158 = vst [vmem:[%s5 + $0xd4] sm:$0xf] %v2030
  %2159 = vst [vmem:[%s5 + $0xd8] sm:$0xf] %v2031
  %2160 = vst [vmem:[%s5 + $0xdc] sm:$0xf] %v2032
  %2161 = vst [vmem:[%s5 + $0xe0] sm:$0xf] %v2033
  %2162 = vst [vmem:[%s5 + $0xe4] sm:$0xf] %v2034
  %2163 = vst [vmem:[%s5 + $0xe8] sm:$0xf] %v2035
  %2164 = vst [vmem:[%s5 + $0xec] sm:$0xf] %v2036
  %2165 = vst [vmem:[%s5 + $0xf0] sm:$0xf] %v2037
  %2166 = vst [vmem:[%s5 + $0xf4] sm:$0xf] %v2038
  %2167 = vst [vmem:[%s5 + $0xf8] sm:$0xf] %v2039
  %2168 = vst [vmem:[%s5 + $0xfc] sm:$0xf] %v2040
  %v2169 = vpack.c.bf16 %v1598, %v1595
  %v2170 = vpack.c.bf16 %v1604, %v1601
  %v2171 = vpack.c.bf16 %v1610, %v1607
  %v2172 = vpack.c.bf16 %v1616, %v1613
  %v2173 = vpack.c.bf16 %v1622, %v1619
  %v2174 = vpack.c.bf16 %v1628, %v1625
  %v2175 = vpack.c.bf16 %v1634, %v1631
  %v2176 = vpack.c.bf16 %v1640, %v1637
  %v2177 = vpack.c.bf16 %v1646, %v1643
  %v2178 = vpack.c.bf16 %v1652, %v1649
  %v2179 = vpack.c.bf16 %v1658, %v1655
  %v2180 = vpack.c.bf16 %v1664, %v1661
  %v2181 = vpack.c.bf16 %v1670, %v1667
  %v2182 = vpack.c.bf16 %v1676, %v1673
  %v2183 = vpack.c.bf16 %v1682, %v1679
  %v2184 = vpack.c.bf16 %v1688, %v1685
  %v2185 = vpack.c.bf16 %v1694, %v1691
  %v2186 = vpack.c.bf16 %v1700, %v1697
  %v2187 = vpack.c.bf16 %v1706, %v1703
  %v2188 = vpack.c.bf16 %v1712, %v1709
  %v2189 = vpack.c.bf16 %v1718, %v1715
  %v2190 = vpack.c.bf16 %v1724, %v1721
  %v2191 = vpack.c.bf16 %v1730, %v1727
  %v2192 = vpack.c.bf16 %v1736, %v1733
  %v2193 = vpack.c.bf16 %v1742, %v1739
  %v2194 = vpack.c.bf16 %v1748, %v1745
  %v2195 = vpack.c.bf16 %v1754, %v1751
  %v2196 = vpack.c.bf16 %v1760, %v1757
  %v2197 = vpack.c.bf16 %v1766, %v1763
  %v2198 = vpack.c.bf16 %v1772, %v1769
  %v2199 = vpack.c.bf16 %v1778, %v1775
  %v2200 = vpack.c.bf16 %v1784, %v1781
  %v2233 = vunpack.c.l.b16 %v2169
  %v2234 = vunpack.c.h.b16 %v2169
  %v2235 = vunpack.c.l.b16 %v2170
  %v2236 = vunpack.c.h.b16 %v2170
  %v2237 = vunpack.c.l.b16 %v2171
  %v2238 = vunpack.c.h.b16 %v2171
  %v2239 = vunpack.c.l.b16 %v2172
  %v2240 = vunpack.c.h.b16 %v2172
  %v2241 = vunpack.c.l.b16 %v2173
  %v2242 = vunpack.c.h.b16 %v2173
  %v2243 = vunpack.c.l.b16 %v2174
  %v2244 = vunpack.c.h.b16 %v2174
  %v2245 = vunpack.c.l.b16 %v2175
  %v2246 = vunpack.c.h.b16 %v2175
  %v2247 = vunpack.c.l.b16 %v2176
  %v2248 = vunpack.c.h.b16 %v2176
  %v2249 = vunpack.c.l.b16 %v2177
  %v2250 = vunpack.c.h.b16 %v2177
  %v2251 = vunpack.c.l.b16 %v2178
  %v2252 = vunpack.c.h.b16 %v2178
  %v2253 = vunpack.c.l.b16 %v2179
  %v2254 = vunpack.c.h.b16 %v2179
  %v2255 = vunpack.c.l.b16 %v2180
  %v2256 = vunpack.c.h.b16 %v2180
  %v2257 = vunpack.c.l.b16 %v2181
  %v2258 = vunpack.c.h.b16 %v2181
  %v2259 = vunpack.c.l.b16 %v2182
  %v2260 = vunpack.c.h.b16 %v2182
  %v2261 = vunpack.c.l.b16 %v2183
  %v2262 = vunpack.c.h.b16 %v2183
  %v2263 = vunpack.c.l.b16 %v2184
  %v2264 = vunpack.c.h.b16 %v2184
  %v2265 = vunpack.c.l.b16 %v2185
  %v2266 = vunpack.c.h.b16 %v2185
  %v2267 = vunpack.c.l.b16 %v2186
  %v2268 = vunpack.c.h.b16 %v2186
  %v2269 = vunpack.c.l.b16 %v2187
  %v2270 = vunpack.c.h.b16 %v2187
  %v2271 = vunpack.c.l.b16 %v2188
  %v2272 = vunpack.c.h.b16 %v2188
  %v2273 = vunpack.c.l.b16 %v2189
  %v2274 = vunpack.c.h.b16 %v2189
  %v2275 = vunpack.c.l.b16 %v2190
  %v2276 = vunpack.c.h.b16 %v2190
  %v2277 = vunpack.c.l.b16 %v2191
  %v2278 = vunpack.c.h.b16 %v2191
  %v2279 = vunpack.c.l.b16 %v2192
  %v2280 = vunpack.c.h.b16 %v2192
  %v2281 = vunpack.c.l.b16 %v2193
  %v2282 = vunpack.c.h.b16 %v2193
  %v2283 = vunpack.c.l.b16 %v2194
  %v2284 = vunpack.c.h.b16 %v2194
  %v2285 = vunpack.c.l.b16 %v2195
  %v2286 = vunpack.c.h.b16 %v2195
  %v2287 = vunpack.c.l.b16 %v2196
  %v2288 = vunpack.c.h.b16 %v2196
  %v2289 = vunpack.c.l.b16 %v2197
  %v2290 = vunpack.c.h.b16 %v2197
  %v2291 = vunpack.c.l.b16 %v2198
  %v2292 = vunpack.c.h.b16 %v2198
  %v2293 = vunpack.c.l.b16 %v2199
  %v2294 = vunpack.c.h.b16 %v2199
  %v2295 = vunpack.c.l.b16 %v2200
  %v2296 = vunpack.c.h.b16 %v2200
  %v2297 = vpack.c.b16 %v2233, %v2233
  %v2298 = vpack.c.b16 %v2234, %v2234
  %v2299 = vpack.c.b16 %v2235, %v2235
  %v2300 = vpack.c.b16 %v2236, %v2236
  %v2301 = vpack.c.b16 %v2237, %v2237
  %v2302 = vpack.c.b16 %v2238, %v2238
  %v2303 = vpack.c.b16 %v2239, %v2239
  %v2304 = vpack.c.b16 %v2240, %v2240
  %v2305 = vpack.c.b16 %v2241, %v2241
  %v2306 = vpack.c.b16 %v2242, %v2242
  %v2307 = vpack.c.b16 %v2243, %v2243
  %v2308 = vpack.c.b16 %v2244, %v2244
  %v2309 = vpack.c.b16 %v2245, %v2245
  %v2310 = vpack.c.b16 %v2246, %v2246
  %v2311 = vpack.c.b16 %v2247, %v2247
  %v2312 = vpack.c.b16 %v2248, %v2248
  %v2313 = vpack.c.b16 %v2249, %v2249
  %v2314 = vpack.c.b16 %v2250, %v2250
  %v2315 = vpack.c.b16 %v2251, %v2251
  %v2316 = vpack.c.b16 %v2252, %v2252
  %v2317 = vpack.c.b16 %v2253, %v2253
  %v2318 = vpack.c.b16 %v2254, %v2254
  %v2319 = vpack.c.b16 %v2255, %v2255
  %v2320 = vpack.c.b16 %v2256, %v2256
  %v2321 = vpack.c.b16 %v2257, %v2257
  %v2322 = vpack.c.b16 %v2258, %v2258
  %v2323 = vpack.c.b16 %v2259, %v2259
  %v2324 = vpack.c.b16 %v2260, %v2260
  %v2325 = vpack.c.b16 %v2261, %v2261
  %v2326 = vpack.c.b16 %v2262, %v2262
  %v2327 = vpack.c.b16 %v2263, %v2263
  %v2328 = vpack.c.b16 %v2264, %v2264
  %v2329 = vpack.c.b16 %v2265, %v2265
  %v2330 = vpack.c.b16 %v2266, %v2266
  %v2331 = vpack.c.b16 %v2267, %v2267
  %v2332 = vpack.c.b16 %v2268, %v2268
  %v2333 = vpack.c.b16 %v2269, %v2269
  %v2334 = vpack.c.b16 %v2270, %v2270
  %v2335 = vpack.c.b16 %v2271, %v2271
  %v2336 = vpack.c.b16 %v2272, %v2272
  %v2337 = vpack.c.b16 %v2273, %v2273
  %v2338 = vpack.c.b16 %v2274, %v2274
  %v2339 = vpack.c.b16 %v2275, %v2275
  %v2340 = vpack.c.b16 %v2276, %v2276
  %v2341 = vpack.c.b16 %v2277, %v2277
  %v2342 = vpack.c.b16 %v2278, %v2278
  %v2343 = vpack.c.b16 %v2279, %v2279
  %v2344 = vpack.c.b16 %v2280, %v2280
  %v2345 = vpack.c.b16 %v2281, %v2281
  %v2346 = vpack.c.b16 %v2282, %v2282
  %v2347 = vpack.c.b16 %v2283, %v2283
  %v2348 = vpack.c.b16 %v2284, %v2284
  %v2349 = vpack.c.b16 %v2285, %v2285
  %v2350 = vpack.c.b16 %v2286, %v2286
  %v2351 = vpack.c.b16 %v2287, %v2287
  %v2352 = vpack.c.b16 %v2288, %v2288
  %v2353 = vpack.c.b16 %v2289, %v2289
  %v2354 = vpack.c.b16 %v2290, %v2290
  %v2355 = vpack.c.b16 %v2291, %v2291
  %v2356 = vpack.c.b16 %v2292, %v2292
  %v2357 = vpack.c.b16 %v2293, %v2293
  %v2358 = vpack.c.b16 %v2294, %v2294
  %v2359 = vpack.c.b16 %v2295, %v2295
  %v2360 = vpack.c.b16 %v2296, %v2296
  %vm2425 = vcmask 257024
  %2426 = vst.msk [vmem:[%s6] sm:$0xf] %vm2425, %v2297
  %2427 = vst.msk [vmem:[%s6 + $0x4] sm:$0xf] %vm2425, %v2298
  %2428 = vst.msk [vmem:[%s6 + $0x8] sm:$0xf] %vm2425, %v2299
  %2429 = vst.msk [vmem:[%s6 + $0xc] sm:$0xf] %vm2425, %v2300
  %2430 = vst.msk [vmem:[%s6 + $0x10] sm:$0xf] %vm2425, %v2301
  %2431 = vst.msk [vmem:[%s6 + $0x14] sm:$0xf] %vm2425, %v2302
  %2432 = vst.msk [vmem:[%s6 + $0x18] sm:$0xf] %vm2425, %v2303
  %2433 = vst.msk [vmem:[%s6 + $0x1c] sm:$0xf] %vm2425, %v2304
  %2434 = vst.msk [vmem:[%s6 + $0x20] sm:$0xf] %vm2425, %v2305
  %2435 = vst.msk [vmem:[%s6 + $0x24] sm:$0xf] %vm2425, %v2306
  %2436 = vst.msk [vmem:[%s6 + $0x28] sm:$0xf] %vm2425, %v2307
  %2437 = vst.msk [vmem:[%s6 + $0x2c] sm:$0xf] %vm2425, %v2308
  %2438 = vst.msk [vmem:[%s6 + $0x30] sm:$0xf] %vm2425, %v2309
  %2439 = vst.msk [vmem:[%s6 + $0x34] sm:$0xf] %vm2425, %v2310
  %2440 = vst.msk [vmem:[%s6 + $0x38] sm:$0xf] %vm2425, %v2311
  %2441 = vst.msk [vmem:[%s6 + $0x3c] sm:$0xf] %vm2425, %v2312
  %2442 = vst.msk [vmem:[%s6 + $0x40] sm:$0xf] %vm2425, %v2313
  %2443 = vst.msk [vmem:[%s6 + $0x44] sm:$0xf] %vm2425, %v2314
  %2444 = vst.msk [vmem:[%s6 + $0x48] sm:$0xf] %vm2425, %v2315
  %2445 = vst.msk [vmem:[%s6 + $0x4c] sm:$0xf] %vm2425, %v2316
  %2446 = vst.msk [vmem:[%s6 + $0x50] sm:$0xf] %vm2425, %v2317
  %2447 = vst.msk [vmem:[%s6 + $0x54] sm:$0xf] %vm2425, %v2318
  %2448 = vst.msk [vmem:[%s6 + $0x58] sm:$0xf] %vm2425, %v2319
  %2449 = vst.msk [vmem:[%s6 + $0x5c] sm:$0xf] %vm2425, %v2320
  %2450 = vst.msk [vmem:[%s6 + $0x60] sm:$0xf] %vm2425, %v2321
  %2451 = vst.msk [vmem:[%s6 + $0x64] sm:$0xf] %vm2425, %v2322
  %2452 = vst.msk [vmem:[%s6 + $0x68] sm:$0xf] %vm2425, %v2323
  %2453 = vst.msk [vmem:[%s6 + $0x6c] sm:$0xf] %vm2425, %v2324
  %2454 = vst.msk [vmem:[%s6 + $0x70] sm:$0xf] %vm2425, %v2325
  %2455 = vst.msk [vmem:[%s6 + $0x74] sm:$0xf] %vm2425, %v2326
  %2456 = vst.msk [vmem:[%s6 + $0x78] sm:$0xf] %vm2425, %v2327
  %2457 = vst.msk [vmem:[%s6 + $0x7c] sm:$0xf] %vm2425, %v2328
  %2458 = vst.msk [vmem:[%s6 + $0x80] sm:$0xf] %vm2425, %v2329
  %2459 = vst.msk [vmem:[%s6 + $0x84] sm:$0xf] %vm2425, %v2330
  %2460 = vst.msk [vmem:[%s6 + $0x88] sm:$0xf] %vm2425, %v2331
  %2461 = vst.msk [vmem:[%s6 + $0x8c] sm:$0xf] %vm2425, %v2332
  %2462 = vst.msk [vmem:[%s6 + $0x90] sm:$0xf] %vm2425, %v2333
  %2463 = vst.msk [vmem:[%s6 + $0x94] sm:$0xf] %vm2425, %v2334
  %2464 = vst.msk [vmem:[%s6 + $0x98] sm:$0xf] %vm2425, %v2335
  %2465 = vst.msk [vmem:[%s6 + $0x9c] sm:$0xf] %vm2425, %v2336
  %2466 = vst.msk [vmem:[%s6 + $0xa0] sm:$0xf] %vm2425, %v2337
  %2467 = vst.msk [vmem:[%s6 + $0xa4] sm:$0xf] %vm2425, %v2338
  %2468 = vst.msk [vmem:[%s6 + $0xa8] sm:$0xf] %vm2425, %v2339
  %2469 = vst.msk [vmem:[%s6 + $0xac] sm:$0xf] %vm2425, %v2340
  %2470 = vst.msk [vmem:[%s6 + $0xb0] sm:$0xf] %vm2425, %v2341
  %2471 = vst.msk [vmem:[%s6 + $0xb4] sm:$0xf] %vm2425, %v2342
  %2472 = vst.msk [vmem:[%s6 + $0xb8] sm:$0xf] %vm2425, %v2343
  %2473 = vst.msk [vmem:[%s6 + $0xbc] sm:$0xf] %vm2425, %v2344
  %2474 = vst.msk [vmem:[%s6 + $0xc0] sm:$0xf] %vm2425, %v2345
  %2475 = vst.msk [vmem:[%s6 + $0xc4] sm:$0xf] %vm2425, %v2346
  %2476 = vst.msk [vmem:[%s6 + $0xc8] sm:$0xf] %vm2425, %v2347
  %2477 = vst.msk [vmem:[%s6 + $0xcc] sm:$0xf] %vm2425, %v2348
  %2478 = vst.msk [vmem:[%s6 + $0xd0] sm:$0xf] %vm2425, %v2349
  %2479 = vst.msk [vmem:[%s6 + $0xd4] sm:$0xf] %vm2425, %v2350
  %2480 = vst.msk [vmem:[%s6 + $0xd8] sm:$0xf] %vm2425, %v2351
  %2481 = vst.msk [vmem:[%s6 + $0xdc] sm:$0xf] %vm2425, %v2352
  %2482 = vst.msk [vmem:[%s6 + $0xe0] sm:$0xf] %vm2425, %v2353
  %2483 = vst.msk [vmem:[%s6 + $0xe4] sm:$0xf] %vm2425, %v2354
  %2484 = vst.msk [vmem:[%s6 + $0xe8] sm:$0xf] %vm2425, %v2355
  %2485 = vst.msk [vmem:[%s6 + $0xec] sm:$0xf] %vm2425, %v2356
  %2486 = vst.msk [vmem:[%s6 + $0xf0] sm:$0xf] %vm2425, %v2357
  %2487 = vst.msk [vmem:[%s6 + $0xf4] sm:$0xf] %vm2425, %v2358
  %2488 = vst.msk [vmem:[%s6 + $0xf8] sm:$0xf] %vm2425, %v2359
  %2489 = vst.msk [vmem:[%s6 + $0xfc] sm:$0xf] %vm2425, %v2360
  // Predicated region
  $region18: #{mixed_3c.6} parent=0 // pred_check
    _
  $region19: #{mixed_3c.6} parent=0 // pred_check_branch
    %2491 = sbr.rel (0) target = $region21
  $region20: #{mixed_3c.6} parent=0 // pred_region
    _
  $region21: #{mixed_3c.6} parent=0 // pred_fallthru
    _
  // Predicated region
  $region22: #{mixed_3c.6} parent=0 // pred_check
    _
  $region23: #{mixed_3c.6} parent=0 // pred_check_branch
    %2493 = sbr.rel (0) target = $region25
  $region24: #{mixed_3c.6} parent=0 // pred_region
    _
  $region25: #{mixed_3c.6} parent=0 // pred_fallthru
    _
  // Predicated region
  $region26: #{mixed_3c.6} parent=0 // pred_check
    _
  $region27: #{mixed_3c.6} parent=0 // pred_check_branch
    %2495 = sbr.rel (0) target = $region29
  $region28: #{mixed_3c.6} parent=0 // pred_region
    _
  $region29: #{mixed_3c.6} parent=0 // pred_fallthru
    _
  // Predicated region
  $region30: #{mixed_3c.6} parent=0 // pred_check
    _
  $region31: #{mixed_3c.6} parent=0 // pred_check_branch
    %2497 = sbr.rel (0) target = $region33
  $region32: #{mixed_3c.6} parent=0 // pred_region
    _
  $region33: #{mixed_3c.6} parent=0 // pred_fallthru
    _
  // Predicated region
  $region34: #{mixed_3c.6} parent=0 // pred_check
    _
  $region35: #{mixed_3c.6} parent=0 // pred_check_branch
    %2499 = sbr.rel (0) target = $region37
  $region36: #{mixed_3c.6} parent=0 // pred_region
    _
  $region37: #{mixed_3c.6} parent=0 // pred_fallthru
    _
  // Predicated region
  $region38: #{mixed_3c.6} parent=0 // pred_check
    _
  $region39: #{mixed_3c.6} parent=0 // pred_check_branch
    %2501 = sbr.rel (0) target = $region41
  $region40: #{mixed_3c.6} parent=0 // pred_region
    _
  $region41: #{mixed_3c.6} parent=0 // pred_fallthru
    _

// kernel: mixed_3c.8
$region0: #{mixed_3c.8}
  #allocation0 [shape = 'u32[]', space=smem, size = 0x4, offset = 0x4, fixed_abs, tag = 'smem constant byte address 0x4 - core index']
  #allocation1 [shape = 'u32[144,128]{1,0:T(1,128)}', space=vmem, size = 0x12000, scoped, tag = 'internal scratch']
  %s0 = inlined_call_operand.vmem [shape: bf16[2,4,64,192], index: 0, kind: input, shape index: {}]
  %s1 = inlined_call_operand.vmem [shape: bf16[576,192], index: 1, kind: input, shape index: {}]
  %s2 = inlined_call_operand.vmem [shape: f32[1,192], index: 2, kind: input, shape index: {}]
  %s3 = inlined_call_operand.vmem [shape: f32[1,192], index: 3, kind: input, shape index: {}]
  %s4 = inlined_call_operand.vmem [shape: f32[2,4,64,192], index: 4, kind: output, shape index: {}]
  %s5 = sld [smem:[#allocation0]]
  $region49: #{mixed_3c.8} parent=0
    _
  %s7 = ssub.s32 1, %s5
  %s8 = scalar_select 0, %s7, %s5
  loop: start=0, step=1, limit=4
  $region2: #{mixed_3c.8} parent=0 // loop_pre_header
    _
  $region3: #{mixed_3c.8} parent=0 // loop_header
    %s10 = sphi 0, %s14
    %p11 = scmp.ge.s32.totalorder %s10, 4
    %s17 = sphi 0, %s29
    %s18 = sphi 0, %s25
    %s19 = sphi 0, %s17
    %s20 = sphi 0, %s18
    %s21 = sphi 0, %s19
    %s22 = sphi 0, %s20
    %s34 = sphi 0, %s36
    %s37 = sphi 0, %s34
    %s38 = sphi 0, %s37
    %s54 = sphi 0, %s38
    %s58 = sphi 0, %s58
    %s60 = sphi 0, %s58
    %s61 = sphi 0, %s60
    %s75 = sphi 0, %s61
    %s79 = sphi 0, %s79
    %s81 = sphi 0, %s79
    %s82 = sphi 0, %s81
    %s96 = sphi 0, %s82
    %s100 = sphi 0, %s100
    %s102 = sphi 0, %s100
    %s103 = sphi 0, %s102
    %s117 = sphi 0, %s103
    %s125 = sphi 0, %s127
    %s128 = sphi 0, %s125
    %s129 = sphi 0, %s128
    %s145 = sphi 0, %s129
  $region4: #{mixed_3c.8} parent=0 // loop_header_branch
    %13 = sbr.rel (%p11) target = $region8
  $region5: #{mixed_3c.8} parent=0 // loop_body
    %s15 = ssub.s32 %s10, 1
    %s16 = ssub.s32 %s10, 2
    %s23 = sadd.s32 1, %s18
    %p24 = scmp.ge.s32.totalorder %s23, 1
    %s25 = scalar_select %p24, 0, %s23
    %s26 = sadd.s32 1, %s17
    %s27 = scalar_select %p24, %s26, %s17
    %p28 = scmp.ge.s32.totalorder %s27, 2
    %s29 = scalar_select %p28, 0, %s27
    %s30 = ssub.s32 %s17, %s29
    %s31 = ssub.s32 %s18, %s25
    %s32 = sor.u32 %s30, %s31
    %p33 = scmp.eq.s32.totalorder %s32, 0
    %s35 = sadd.s32 %s34, 1
    %s36 = scalar_select %p33, %s34, %s35
    %p39 = pneg %p33
    %p40 = scmp.eq.s32.totalorder %s10, 1
    %p41 = por %p39, %p40
    %p42 = scmp.ne.s32.totalorder %s34, %s37
    %p43 = scmp.eq.s32.totalorder %s10, 0
    %p44 = por %p42, %p43
    %p45 = scmp.ne.s32.totalorder %s34, %s37
    %p46 = scmp.eq.s32.totalorder %s15, 1
    %p47 = por %p45, %p46
    %p48 = scmp.ne.s32.totalorder %s37, %s38
    %p49 = scmp.eq.s32.totalorder %s15, 0
    %p50 = por %p48, %p49
    %p51 = scmp.ne.s32.totalorder %s37, %s38
    %p52 = scmp.eq.s32.totalorder %s16, 1
    %p53 = por %p51, %p52
    %p55 = scmp.ne.s32.totalorder %s38, %s54
    %p56 = scmp.eq.s32.totalorder %s16, 0
    %p57 = por %p55, %p56
    %s59 = sadd.s32 %s58, 1
    %p62 = scmp.eq.s32.totalorder %s10, 1
    %p63 = scmp.ne.s32.totalorder %s58, %s60
    %p64 = scmp.eq.s32.totalorder %s10, 0
    %p65 = por %p63, %p64
    %p66 = scmp.ne.s32.totalorder %s58, %s60
    %p67 = scmp.eq.s32.totalorder %s15, 1
    %p68 = por %p66, %p67
    %p69 = scmp.ne.s32.totalorder %s60, %s61
    %p70 = scmp.eq.s32.totalorder %s15, 0
    %p71 = por %p69, %p70
    %p72 = scmp.ne.s32.totalorder %s60, %s61
    %p73 = scmp.eq.s32.totalorder %s16, 1
    %p74 = por %p72, %p73
    %p76 = scmp.ne.s32.totalorder %s61, %s75
    %p77 = scmp.eq.s32.totalorder %s16, 0
    %p78 = por %p76, %p77
    %s80 = sadd.s32 %s79, 1
    %p83 = scmp.eq.s32.totalorder %s10, 1
    %p84 = scmp.ne.s32.totalorder %s79, %s81
    %p85 = scmp.eq.s32.totalorder %s10, 0
    %p86 = por %p84, %p85
    %p87 = scmp.ne.s32.totalorder %s79, %s81
    %p88 = scmp.eq.s32.totalorder %s15, 1
    %p89 = por %p87, %p88
    %p90 = scmp.ne.s32.totalorder %s81, %s82
    %p91 = scmp.eq.s32.totalorder %s15, 0
    %p92 = por %p90, %p91
    %p93 = scmp.ne.s32.totalorder %s81, %s82
    %p94 = scmp.eq.s32.totalorder %s16, 1
    %p95 = por %p93, %p94
    %p97 = scmp.ne.s32.totalorder %s82, %s96
    %p98 = scmp.eq.s32.totalorder %s16, 0
    %p99 = por %p97, %p98
    %s101 = sadd.s32 %s100, 1
    %p104 = scmp.eq.s32.totalorder %s10, 1
    %p105 = scmp.ne.s32.totalorder %s100, %s102
    %p106 = scmp.eq.s32.totalorder %s10, 0
    %p107 = por %p105, %p106
    %p108 = scmp.ne.s32.totalorder %s100, %s102
    %p109 = scmp.eq.s32.totalorder %s15, 1
    %p110 = por %p108, %p109
    %p111 = scmp.ne.s32.totalorder %s102, %s103
    %p112 = scmp.eq.s32.totalorder %s15, 0
    %p113 = por %p111, %p112
    %p114 = scmp.ne.s32.totalorder %s102, %s103
    %p115 = scmp.eq.s32.totalorder %s16, 1
    %p116 = por %p114, %p115
    %p118 = scmp.ne.s32.totalorder %s103, %s117
    %p119 = scmp.eq.s32.totalorder %s16, 0
    %p120 = por %p118, %p119
    %s121 = ssub.s32 %s17, %s29
    %s122 = ssub.s32 %s18, %s25
    %s123 = sor.u32 %s121, %s122
    %p124 = scmp.eq.s32.totalorder %s123, 0
    %s126 = sadd.s32 %s125, 1
    %s127 = scalar_select %p124, %s125, %s126
    %p130 = pneg %p124
    %p131 = scmp.eq.s32.totalorder %s10, 1
    %p132 = por %p130, %p131
    %p133 = scmp.ne.s32.totalorder %s125, %s128
    %p134 = scmp.eq.s32.totalorder %s10, 0
    %p135 = por %p133, %p134
    %p136 = scmp.ne.s32.totalorder %s125, %s128
    %p137 = scmp.eq.s32.totalorder %s15, 1
    %p138 = por %p136, %p137
    %p139 = scmp.ne.s32.totalorder %s128, %s129
    %p140 = scmp.eq.s32.totalorder %s15, 0
    %p141 = por %p139, %p140
    %p142 = scmp.ne.s32.totalorder %s128, %s129
    %p143 = scmp.eq.s32.totalorder %s16, 1
    %p144 = por %p142, %p143
    %p146 = scmp.ne.s32.totalorder %s129, %s145
    %p147 = scmp.eq.s32.totalorder %s16, 0
    %p148 = por %p146, %p147
    %p149 = scmp.le.s32.totalorder 1, %s10
    %p150 = scmp.lt.s32.totalorder %s10, 3
    %p151 = pnand %p149, %p150
    %p152 = pneg %p151
    // Predicated region
    $region9: #{mixed_3c.8} parent=5 // pred_check
      _
    $region10: #{mixed_3c.8} parent=5 // pred_check_branch
      %154 = sbr.rel (%p151) target = $region12
    $region11: #{mixed_3c.8} parent=5 // pred_region
      %s155 = ssub.s32 %s10, 1
      // Predicated region
      $region13: #{mixed_3c.8} parent=11 // pred_check
        %p156 = pneg %p71
      $region14: #{mixed_3c.8} parent=11 // pred_check_branch
        %158 = sbr.rel (%p156) target = $region16
      $region15: #{mixed_3c.8} parent=11 // pred_region
        _
      $region16: #{mixed_3c.8} parent=11 // pred_fallthru
        _
      // Predicated region
      $region17: #{mixed_3c.8} parent=11 // pred_check
        %p159 = pneg %p92
      $region18: #{mixed_3c.8} parent=11 // pred_check_branch
        %161 = sbr.rel (%p159) target = $region20
      $region19: #{mixed_3c.8} parent=11 // pred_region
        _
      $region20: #{mixed_3c.8} parent=11 // pred_fallthru
        _
      // Predicated region
      $region21: #{mixed_3c.8} parent=11 // pred_check
        %p162 = pneg %p113
      $region22: #{mixed_3c.8} parent=11 // pred_check_branch
        %164 = sbr.rel (%p162) target = $region24
      $region23: #{mixed_3c.8} parent=11 // pred_region
        _
      $region24: #{mixed_3c.8} parent=11 // pred_fallthru
        _
    $region12: #{mixed_3c.8} parent=5 // pred_fallthru
      _
    %p165 = scmp.lt.s32.totalorder %s10, 2
    // Predicated region
    $region25: #{mixed_3c.8} parent=5 // pred_check
      %p166 = pneg %p165
    $region26: #{mixed_3c.8} parent=5 // pred_check_branch
      %168 = sbr.rel (%p166) target = $region28
    $region27: #{mixed_3c.8} parent=5 // pred_region
      // Predicated region
      $region29: #{mixed_3c.8} parent=27 // pred_check
        %p169 = pneg %p44
      $region30: #{mixed_3c.8} parent=27 // pred_check_branch
        %171 = sbr.rel (%p169) target = $region32
      $region31: #{mixed_3c.8} parent=27 // pred_region
        %s172 = smul.u32 8, %s18
        %p173 = scmp.lt.s32.totalorder %s17, 1
        %s174 = scalar_select %p173, %s17, 1
        %p175 = scmp.lt.s32.totalorder %s172, 7
        %s176 = scalar_select %p175, %s172, 7
        %s177 = smul.addr %s176, 2
        %s178 = smul.addr %s174, 64
        %s179 = sadd.s32 %s177, %s178
        %s180 = smul.addr %s179, 4
        %s181 = scalar_lea.vmem %s0, %s180
        %s182 = smul.u32 8, %s18
      $region32: #{mixed_3c.8} parent=27 // pred_fallthru
        _
    $region28: #{mixed_3c.8} parent=5 // pred_fallthru
      _
    %p183 = scmp.le.s32.totalorder 1, %s10
    %p184 = scmp.lt.s32.totalorder %s10, 3
    %p185 = pnand %p183, %p184
    %p186 = pneg %p185
    // Predicated region
    $region33: #{mixed_3c.8} parent=5 // pred_check
      _
    $region34: #{mixed_3c.8} parent=5 // pred_check_branch
      %188 = sbr.rel (%p185) target = $region36
    $region35: #{mixed_3c.8} parent=5 // pred_region
      %s189 = ssub.s32 %s10, 1
      %s190 = smul.u32 8, %s20
      %p191 = scmp.lt.s32.totalorder %s19, 1
      %s192 = scalar_select %p191, %s19, 1
      %p193 = scmp.lt.s32.totalorder %s190, 7
      %s194 = scalar_select %p193, %s190, 7
      %s195 = smul.addr %s194, 2
      %s196 = smul.addr %s192, 64
      %s197 = sadd.s32 %s195, %s196
      %s198 = smul.addr %s197, 4
      %s199 = scalar_lea.vmem %s0, %s198
      %p200 = pneg %p50
      %p201 = pneg %p47
      %p202 = pneg %p71
      %p203 = pneg %p68
      %p204 = pneg %p92
      %p205 = pneg %p89
      %p206 = pneg %p113
      %p207 = pneg %p110
      %p208 = pneg %p141
      %p209 = pneg %p138
      %s210 = smul.u32 8, %s20
      %p211 = scmp.lt.s32.totalorder %s19, 1
      %s212 = scalar_select %p211, %s19, 1
      %p213 = scmp.lt.s32.totalorder %s210, 7
      %s214 = scalar_select %p213, %s210, 7
      %s215 = smul.addr %s214, 2
      %s216 = smul.addr %s212, 64
      %s217 = sadd.s32 %s215, %s216
      %s218 = smul.addr %s217, 8
      %s219 = scalar_lea.vmem %s4, %s218
      %s220 = smul.u32 8, %s20
      %p221 = scmp.lt.s32.totalorder %s19, 1
      %s222 = scalar_select %p221, %s19, 1
      %p223 = scmp.lt.s32.totalorder %s220, 7
      %s224 = scalar_select %p223, %s220, 7
      %s225 = smul.addr %s224, 2
      %s226 = smul.addr %s222, 64
      %s227 = sadd.s32 %s225, %s226
      %s228 = smul.addr %s227, 4
      %s229 = scalar_lea.vmem %s0, %s228
      %s230 = smul.u32 8, %s20
      %s231 = smul.u32 8, %s20
      %p232 = scmp.lt.s32.totalorder %s19, 1
      %s233 = scalar_select %p232, %s19, 1
      %p234 = scmp.lt.s32.totalorder %s231, 7
      %s235 = scalar_select %p234, %s231, 7
      %s236 = smul.addr %s235, 2
      %s237 = smul.addr %s233, 64
      %s238 = sadd.s32 %s236, %s237
      %s239 = smul.addr %s238, 8
      %s240 = scalar_lea.vmem %s4, %s239
      %s241 = smul.u32 8, %s20
      %v243 = vld [vmem:[%s229] sm:$0xff]
      %v244 = vld [vmem:[%s229 + $0x8] sm:$0xff]
      %v245 = vld [vmem:[%s229 + $0x10] sm:$0xff]
      %v246 = vld [vmem:[%s229 + $0x18] sm:$0xff]
      %v247 = vld [vmem:[%s229 + $0x20] sm:$0xff]
      %v248 = vld [vmem:[%s229 + $0x28] sm:$0xff]
      %v249 = vld [vmem:[%s229 + $0x30] sm:$0xff]
      %v250 = vld [vmem:[%s229 + $0x38] sm:$0xff]
      %v251 = vld [vmem:[%s229 + $0x40] sm:$0xff]
      %v252 = vld [vmem:[%s229 + $0x48] sm:$0xff]
      %v253 = vld [vmem:[%s229 + $0x50] sm:$0xff]
      %v254 = vld [vmem:[%s229 + $0x58] sm:$0xff]
      %v255 = vld [vmem:[%s229 + $0x60] sm:$0xff]
      %v256 = vld [vmem:[%s229 + $0x68] sm:$0xff]
      %v257 = vld [vmem:[%s229 + $0x70] sm:$0xff]
      %v258 = vld [vmem:[%s229 + $0x78] sm:$0xff]
      %v259 = vld [vmem:[%s229 + $0x80] sm:$0xff]
      %v260 = vld [vmem:[%s229 + $0x88] sm:$0xff]
      %v261 = vld [vmem:[%s229 + $0x90] sm:$0xff]
      %v262 = vld [vmem:[%s229 + $0x98] sm:$0xff]
      %v263 = vld [vmem:[%s229 + $0xa0] sm:$0xff]
      %v264 = vld [vmem:[%s229 + $0xa8] sm:$0xff]
      %v265 = vld [vmem:[%s229 + $0xb0] sm:$0xff]
      %v266 = vld [vmem:[%s229 + $0xb8] sm:$0xff]
      %v267 = vld [vmem:[%s229 + $0xc0] sm:$0xff]
      %v268 = vld [vmem:[%s229 + $0xc8] sm:$0xff]
      %v269 = vld [vmem:[%s229 + $0xd0] sm:$0xff]
      %v270 = vld [vmem:[%s229 + $0xd8] sm:$0xff]
      %v271 = vld [vmem:[%s229 + $0xe0] sm:$0xff]
      %v272 = vld [vmem:[%s229 + $0xe8] sm:$0xff]
      %v273 = vld [vmem:[%s229 + $0xf0] sm:$0xff]
      %v274 = vld [vmem:[%s229 + $0xf8] sm:$0xff]
      %v307 = vunpack.c.l.b16 %v243
      %v308 = vunpack.c.h.b16 %v243
      %v309 = vunpack.c.l.b16 %v244
      %v310 = vunpack.c.h.b16 %v244
      %v311 = vunpack.c.l.b16 %v245
      %v312 = vunpack.c.h.b16 %v245
      %v313 = vunpack.c.l.b16 %v246
      %v314 = vunpack.c.h.b16 %v246
      %v315 = vunpack.c.l.b16 %v247
      %v316 = vunpack.c.h.b16 %v247
      %v317 = vunpack.c.l.b16 %v248
      %v318 = vunpack.c.h.b16 %v248
      %v319 = vunpack.c.l.b16 %v249
      %v320 = vunpack.c.h.b16 %v249
      %v321 = vunpack.c.l.b16 %v250
      %v322 = vunpack.c.h.b16 %v250
      %v323 = vunpack.c.l.b16 %v251
      %v324 = vunpack.c.h.b16 %v251
      %v325 = vunpack.c.l.b16 %v252
      %v326 = vunpack.c.h.b16 %v252
      %v327 = vunpack.c.l.b16 %v253
      %v328 = vunpack.c.h.b16 %v253
      %v329 = vunpack.c.l.b16 %v254
      %v330 = vunpack.c.h.b16 %v254
      %v331 = vunpack.c.l.b16 %v255
      %v332 = vunpack.c.h.b16 %v255
      %v333 = vunpack.c.l.b16 %v256
      %v334 = vunpack.c.h.b16 %v256
      %v335 = vunpack.c.l.b16 %v257
      %v336 = vunpack.c.h.b16 %v257
      %v337 = vunpack.c.l.b16 %v258
      %v338 = vunpack.c.h.b16 %v258
      %v339 = vunpack.c.l.b16 %v259
      %v340 = vunpack.c.h.b16 %v259
      %v341 = vunpack.c.l.b16 %v260
      %v342 = vunpack.c.h.b16 %v260
      %v343 = vunpack.c.l.b16 %v261
      %v344 = vunpack.c.h.b16 %v261
      %v345 = vunpack.c.l.b16 %v262
      %v346 = vunpack.c.h.b16 %v262
      %v347 = vunpack.c.l.b16 %v263
      %v348 = vunpack.c.h.b16 %v263
      %v349 = vunpack.c.l.b16 %v264
      %v350 = vunpack.c.h.b16 %v264
      %v351 = vunpack.c.l.b16 %v265
      %v352 = vunpack.c.h.b16 %v265
      %v353 = vunpack.c.l.b16 %v266
      %v354 = vunpack.c.h.b16 %v266
      %v355 = vunpack.c.l.b16 %v267
      %v356 = vunpack.c.h.b16 %v267
      %v357 = vunpack.c.l.b16 %v268
      %v358 = vunpack.c.h.b16 %v268
      %v359 = vunpack.c.l.b16 %v269
      %v360 = vunpack.c.h.b16 %v269
      %v361 = vunpack.c.l.b16 %v270
      %v362 = vunpack.c.h.b16 %v270
      %v363 = vunpack.c.l.b16 %v271
      %v364 = vunpack.c.h.b16 %v271
      %v365 = vunpack.c.l.b16 %v272
      %v366 = vunpack.c.h.b16 %v272
      %v367 = vunpack.c.l.b16 %v273
      %v368 = vunpack.c.h.b16 %v273
      %v369 = vunpack.c.l.b16 %v274
      %v370 = vunpack.c.h.b16 %v274
      %v371 = vpack.c.b16 %v309, %v307
      %v372 = vpack.c.b16 %v310, %v308
      %v373 = vpack.c.b16 %v313, %v311
      %v374 = vpack.c.b16 %v314, %v312
      %v375 = vpack.c.b16 %v317, %v315
      %v376 = vpack.c.b16 %v318, %v316
      %v377 = vpack.c.b16 %v321, %v319
      %v378 = vpack.c.b16 %v322, %v320
      %v379 = vpack.c.b16 %v325, %v323
      %v380 = vpack.c.b16 %v326, %v324
      %v381 = vpack.c.b16 %v329, %v327
      %v382 = vpack.c.b16 %v330, %v328
      %v383 = vpack.c.b16 %v333, %v331
      %v384 = vpack.c.b16 %v334, %v332
      %v385 = vpack.c.b16 %v337, %v335
      %v386 = vpack.c.b16 %v338, %v336
      %v387 = vpack.c.b16 %v341, %v339
      %v388 = vpack.c.b16 %v342, %v340
      %v389 = vpack.c.b16 %v345, %v343
      %v390 = vpack.c.b16 %v346, %v344
      %v391 = vpack.c.b16 %v349, %v347
      %v392 = vpack.c.b16 %v350, %v348
      %v393 = vpack.c.b16 %v353, %v351
      %v394 = vpack.c.b16 %v354, %v352
      %v395 = vpack.c.b16 %v357, %v355
      %v396 = vpack.c.b16 %v358, %v356
      %v397 = vpack.c.b16 %v361, %v359
      %v398 = vpack.c.b16 %v362, %v360
      %v399 = vpack.c.b16 %v365, %v363
      %v400 = vpack.c.b16 %v366, %v364
      %v401 = vpack.c.b16 %v369, %v367
      %v402 = vpack.c.b16 %v370, %v368
      %419 = vrot.lane.b32.xlu0 %v371, 64
      %v420 = vpop.permute.xlu0 %419
      %421 = vrot.lane.b32.xlu0 %v372, 64
      %v422 = vpop.permute.xlu0 %421
      %423 = vrot.lane.b32.xlu0 %v373, 64
      %v424 = vpop.permute.xlu0 %423
      %425 = vrot.lane.b32.xlu0 %v374, 64
      %v426 = vpop.permute.xlu0 %425
      %427 = vrot.lane.b32.xlu0 %v375, 64
      %v428 = vpop.permute.xlu0 %427
      %429 = vrot.lane.b32.xlu0 %v376, 64
      %v430 = vpop.permute.xlu0 %429
      %431 = vrot.lane.b32.xlu0 %v377, 64
      %v432 = vpop.permute.xlu0 %431
      %433 = vrot.lane.b32.xlu0 %v378, 64
      %v434 = vpop.permute.xlu0 %433
      %435 = vrot.lane.b32.xlu0 %v379, 64
      %v436 = vpop.permute.xlu0 %435
      %437 = vrot.lane.b32.xlu0 %v380, 64
      %v438 = vpop.permute.xlu0 %437
      %439 = vrot.lane.b32.xlu0 %v381, 64
      %v440 = vpop.permute.xlu0 %439
      %441 = vrot.lane.b32.xlu0 %v382, 64
      %v442 = vpop.permute.xlu0 %441
      %443 = vrot.lane.b32.xlu0 %v383, 64
      %v444 = vpop.permute.xlu0 %443
      %445 = vrot.lane.b32.xlu0 %v384, 64
      %v446 = vpop.permute.xlu0 %445
      %447 = vrot.lane.b32.xlu0 %v385, 64
      %v448 = vpop.permute.xlu0 %447
      %449 = vrot.lane.b32.xlu0 %v386, 64
      %v450 = vpop.permute.xlu0 %449
      %451 = vrot.lane.b32.xlu0 %v387, 64
      %v452 = vpop.permute.xlu0 %451
      %453 = vrot.lane.b32.xlu0 %v388, 64
      %v454 = vpop.permute.xlu0 %453
      %455 = vrot.lane.b32.xlu0 %v389, 64
      %v456 = vpop.permute.xlu0 %455
      %457 = vrot.lane.b32.xlu0 %v390, 64
      %v458 = vpop.permute.xlu0 %457
      %459 = vrot.lane.b32.xlu0 %v391, 64
      %v460 = vpop.permute.xlu0 %459
      %461 = vrot.lane.b32.xlu0 %v392, 64
      %v462 = vpop.permute.xlu0 %461
      %463 = vrot.lane.b32.xlu0 %v393, 64
      %v464 = vpop.permute.xlu0 %463
      %465 = vrot.lane.b32.xlu0 %v394, 64
      %v466 = vpop.permute.xlu0 %465
      %467 = vrot.lane.b32.xlu0 %v395, 64
      %v468 = vpop.permute.xlu0 %467
      %469 = vrot.lane.b32.xlu0 %v396, 64
      %v470 = vpop.permute.xlu0 %469
      %471 = vrot.lane.b32.xlu0 %v397, 64
      %v472 = vpop.permute.xlu0 %471
      %473 = vrot.lane.b32.xlu0 %v398, 64
      %v474 = vpop.permute.xlu0 %473
      %475 = vrot.lane.b32.xlu0 %v399, 64
      %v476 = vpop.permute.xlu0 %475
      %477 = vrot.lane.b32.xlu0 %v400, 64
      %v478 = vpop.permute.xlu0 %477
      %479 = vrot.lane.b32.xlu0 %v401, 64
      %v480 = vpop.permute.xlu0 %479
      %481 = vrot.lane.b32.xlu0 %v402, 64
      %v482 = vpop.permute.xlu0 %481
      %vm483 = vcmask 523264
      %v484 = vsel %vm483, %v420, %v422
      %v485 = vsel %vm483, %v424, %v426
      %v486 = vsel %vm483, %v428, %v430
      %v487 = vsel %vm483, %v432, %v434
      %v488 = vsel %vm483, %v436, %v438
      %v489 = vsel %vm483, %v440, %v442
      %v490 = vsel %vm483, %v444, %v446
      %v491 = vsel %vm483, %v448, %v450
      %v492 = vsel %vm483, %v452, %v454
      %v493 = vsel %vm483, %v456, %v458
      %v494 = vsel %vm483, %v460, %v462
      %v495 = vsel %vm483, %v464, %v466
      %v496 = vsel %vm483, %v468, %v470
      %v497 = vsel %vm483, %v472, %v474
      %v498 = vsel %vm483, %v476, %v478
      %v499 = vsel %vm483, %v480, %v482
      %vm516 = vcmask 523264
      %v519 = vsel %vm516, 0, %v420
      %v522 = vsel %vm516, 0, %v424
      %v525 = vsel %vm516, 0, %v428
      %v528 = vsel %vm516, 0, %v432
      %v532 = vsel %vm516, %v372, %v436
      %v536 = vsel %vm516, %v374, %v440
      %v540 = vsel %vm516, %v376, %v444
      %v544 = vsel %vm516, %v378, %v448
      %v548 = vsel %vm516, %v380, %v452
      %v552 = vsel %vm516, %v382, %v456
      %v556 = vsel %vm516, %v384, %v460
      %v560 = vsel %vm516, %v386, %v464
      %v564 = vsel %vm516, %v388, %v468
      %v568 = vsel %vm516, %v390, %v472
      %v572 = vsel %vm516, %v392, %v476
      %v576 = vsel %vm516, %v394, %v480
      %v578 = vld [vmem:[%s1] sm:$0xff]
      %v579 = vld [vmem:[%s1 + $0x8] sm:$0xff]
      %v580 = vld [vmem:[%s1 + $0x10] sm:$0xff]
      %v581 = vld [vmem:[%s1 + $0x18] sm:$0xff]
      %v582 = vld [vmem:[%s1 + $0x20] sm:$0xff]
      %v583 = vld [vmem:[%s1 + $0x28] sm:$0xff]
      %v584 = vld [vmem:[%s1 + $0x30] sm:$0xff]
      %v585 = vld [vmem:[%s1 + $0x38] sm:$0xff]
      %v586 = vld [vmem:[%s1 + $0x40] sm:$0xff]
      %v587 = vld [vmem:[%s1 + $0x48] sm:$0xff]
      %v588 = vld [vmem:[%s1 + $0x50] sm:$0xff]
      %v589 = vld [vmem:[%s1 + $0x58] sm:$0xff]
      %v590 = vld [vmem:[%s1 + $0x60] sm:$0xff]
      %v591 = vld [vmem:[%s1 + $0x68] sm:$0xff]
      %v592 = vld [vmem:[%s1 + $0x70] sm:$0xff]
      %v593 = vld [vmem:[%s1 + $0x78] sm:$0xff]
      %v594 = vld [vmem:[%s1 + $0x80] sm:$0xff]
      %v595 = vld [vmem:[%s1 + $0x88] sm:$0xff]
      %v596 = vld [vmem:[%s1 + $0x90] sm:$0xff]
      %v597 = vld [vmem:[%s1 + $0x98] sm:$0xff]
      %v598 = vld [vmem:[%s1 + $0xa0] sm:$0xff]
      %v599 = vld [vmem:[%s1 + $0xa8] sm:$0xff]
      %v600 = vld [vmem:[%s1 + $0xb0] sm:$0xff]
      %v601 = vld [vmem:[%s1 + $0xb8] sm:$0xff]
      %v602 = vld [vmem:[%s1 + $0xc0] sm:$0xff]
      %v603 = vld [vmem:[%s1 + $0xc8] sm:$0xff]
      %v604 = vld [vmem:[%s1 + $0xd0] sm:$0xff]
      %v605 = vld [vmem:[%s1 + $0xd8] sm:$0xff]
      %v606 = vld [vmem:[%s1 + $0xe0] sm:$0xff]
      %v607 = vld [vmem:[%s1 + $0xe8] sm:$0xff]
      %v608 = vld [vmem:[%s1 + $0xf0] sm:$0xff]
      %v609 = vld [vmem:[%s1 + $0xf8] sm:$0xff]
      %v610 = vld [vmem:[%s1 + $0x100] sm:$0xff]
      %v611 = vld [vmem:[%s1 + $0x108] sm:$0xff]
      %v612 = vld [vmem:[%s1 + $0x110] sm:$0xff]
      %v613 = vld [vmem:[%s1 + $0x118] sm:$0xff]
      %v614 = vld [vmem:[%s1 + $0x120] sm:$0xff]
      %v615 = vld [vmem:[%s1 + $0x128] sm:$0xff]
      %v616 = vld [vmem:[%s1 + $0x130] sm:$0xff]
      %v617 = vld [vmem:[%s1 + $0x138] sm:$0xff]
      %v618 = vld [vmem:[%s1 + $0x140] sm:$0xff]
      %v619 = vld [vmem:[%s1 + $0x148] sm:$0xff]
      %v620 = vld [vmem:[%s1 + $0x150] sm:$0xff]
      %v621 = vld [vmem:[%s1 + $0x158] sm:$0xff]
      %v622 = vld [vmem:[%s1 + $0x160] sm:$0xff]
      %v623 = vld [vmem:[%s1 + $0x168] sm:$0xff]
      %v624 = vld [vmem:[%s1 + $0x170] sm:$0xff]
      %v625 = vld [vmem:[%s1 + $0x178] sm:$0xff]
      %v626 = vld [vmem:[%s1 + $0x180] sm:$0xff]
      %v627 = vld [vmem:[%s1 + $0x188] sm:$0xff]
      %v628 = vld [vmem:[%s1 + $0x190] sm:$0xff]
      %v629 = vld [vmem:[%s1 + $0x198] sm:$0xff]
      %v630 = vld [vmem:[%s1 + $0x1a0] sm:$0xff]
      %v631 = vld [vmem:[%s1 + $0x1a8] sm:$0xff]
      %v632 = vld [vmem:[%s1 + $0x1b0] sm:$0xff]
      %v633 = vld [vmem:[%s1 + $0x1b8] sm:$0xff]
      %v634 = vld [vmem:[%s1 + $0x1c0] sm:$0xff]
      %v635 = vld [vmem:[%s1 + $0x1c8] sm:$0xff]
      %v636 = vld [vmem:[%s1 + $0x1d0] sm:$0xff]
      %v637 = vld [vmem:[%s1 + $0x1d8] sm:$0xff]
      %v638 = vld [vmem:[%s1 + $0x1e0] sm:$0xff]
      %v639 = vld [vmem:[%s1 + $0x1e8] sm:$0xff]
      %v640 = vld [vmem:[%s1 + $0x1f0] sm:$0xff]
      %v641 = vld [vmem:[%s1 + $0x1f8] sm:$0xff]
      %v642 = vld [vmem:[%s1 + $0x200] sm:$0xff]
      %v643 = vld [vmem:[%s1 + $0x208] sm:$0xff]
      %v644 = vld [vmem:[%s1 + $0x210] sm:$0xff]
      %v645 = vld [vmem:[%s1 + $0x218] sm:$0xff]
      %v646 = vld [vmem:[%s1 + $0x220] sm:$0xff]
      %v647 = vld [vmem:[%s1 + $0x228] sm:$0xff]
      %v648 = vld [vmem:[%s1 + $0x230] sm:$0xff]
      %v649 = vld [vmem:[%s1 + $0x238] sm:$0xff]
      %v722 = vunpack.c.l.b16 %v578
      %v723 = vunpack.c.h.b16 %v578
      %v724 = vunpack.c.l.b16 %v579
      %v725 = vunpack.c.h.b16 %v579
      %v726 = vunpack.c.l.b16 %v580
      %v727 = vunpack.c.h.b16 %v580
      %v728 = vunpack.c.l.b16 %v581
      %v729 = vunpack.c.h.b16 %v581
      %v730 = vunpack.c.l.b16 %v582
      %v731 = vunpack.c.h.b16 %v582
      %v732 = vunpack.c.l.b16 %v583
      %v733 = vunpack.c.h.b16 %v583
      %v734 = vunpack.c.l.b16 %v584
      %v735 = vunpack.c.h.b16 %v584
      %v736 = vunpack.c.l.b16 %v585
      %v737 = vunpack.c.h.b16 %v585
      %v738 = vunpack.c.l.b16 %v586
      %v739 = vunpack.c.h.b16 %v586
      %v740 = vunpack.c.l.b16 %v587
      %v741 = vunpack.c.h.b16 %v587
      %v742 = vunpack.c.l.b16 %v588
      %v743 = vunpack.c.h.b16 %v588
      %v744 = vunpack.c.l.b16 %v589
      %v745 = vunpack.c.h.b16 %v589
      %v746 = vunpack.c.l.b16 %v590
      %v747 = vunpack.c.h.b16 %v590
      %v748 = vunpack.c.l.b16 %v591
      %v749 = vunpack.c.h.b16 %v591
      %v750 = vunpack.c.l.b16 %v592
      %v751 = vunpack.c.h.b16 %v592
      %v752 = vunpack.c.l.b16 %v593
      %v753 = vunpack.c.h.b16 %v593
      %v754 = vunpack.c.l.b16 %v594
      %v755 = vunpack.c.h.b16 %v594
      %v756 = vunpack.c.l.b16 %v595
      %v757 = vunpack.c.h.b16 %v595
      %v758 = vunpack.c.l.b16 %v596
      %v759 = vunpack.c.h.b16 %v596
      %v760 = vunpack.c.l.b16 %v597
      %v761 = vunpack.c.h.b16 %v597
      %v762 = vunpack.c.l.b16 %v598
      %v763 = vunpack.c.h.b16 %v598
      %v764 = vunpack.c.l.b16 %v599
      %v765 = vunpack.c.h.b16 %v599
      %v766 = vunpack.c.l.b16 %v600
      %v767 = vunpack.c.h.b16 %v600
      %v768 = vunpack.c.l.b16 %v601
      %v769 = vunpack.c.h.b16 %v601
      %v770 = vunpack.c.l.b16 %v602
      %v771 = vunpack.c.h.b16 %v602
      %v772 = vunpack.c.l.b16 %v603
      %v773 = vunpack.c.h.b16 %v603
      %v774 = vunpack.c.l.b16 %v604
      %v775 = vunpack.c.h.b16 %v604
      %v776 = vunpack.c.l.b16 %v605
      %v777 = vunpack.c.h.b16 %v605
      %v778 = vunpack.c.l.b16 %v606
      %v779 = vunpack.c.h.b16 %v606
      %v780 = vunpack.c.l.b16 %v607
      %v781 = vunpack.c.h.b16 %v607
      %v782 = vunpack.c.l.b16 %v608
      %v783 = vunpack.c.h.b16 %v608
      %v784 = vunpack.c.l.b16 %v609
      %v785 = vunpack.c.h.b16 %v609
      %v786 = vunpack.c.l.b16 %v610
      %v787 = vunpack.c.h.b16 %v610
      %v788 = vunpack.c.l.b16 %v611
      %v789 = vunpack.c.h.b16 %v611
      %v790 = vunpack.c.l.b16 %v612
      %v791 = vunpack.c.h.b16 %v612
      %v792 = vunpack.c.l.b16 %v613
      %v793 = vunpack.c.h.b16 %v613
      %v794 = vunpack.c.l.b16 %v614
      %v795 = vunpack.c.h.b16 %v614
      %v796 = vunpack.c.l.b16 %v615
      %v797 = vunpack.c.h.b16 %v615
      %v798 = vunpack.c.l.b16 %v616
      %v799 = vunpack.c.h.b16 %v616
      %v800 = vunpack.c.l.b16 %v617
      %v801 = vunpack.c.h.b16 %v617
      %v802 = vunpack.c.l.b16 %v618
      %v803 = vunpack.c.h.b16 %v618
      %v804 = vunpack.c.l.b16 %v619
      %v805 = vunpack.c.h.b16 %v619
      %v806 = vunpack.c.l.b16 %v620
      %v807 = vunpack.c.h.b16 %v620
      %v808 = vunpack.c.l.b16 %v621
      %v809 = vunpack.c.h.b16 %v621
      %v810 = vunpack.c.l.b16 %v622
      %v811 = vunpack.c.h.b16 %v622
      %v812 = vunpack.c.l.b16 %v623
      %v813 = vunpack.c.h.b16 %v623
      %v814 = vunpack.c.l.b16 %v624
      %v815 = vunpack.c.h.b16 %v624
      %v816 = vunpack.c.l.b16 %v625
      %v817 = vunpack.c.h.b16 %v625
      %v818 = vunpack.c.l.b16 %v626
      %v819 = vunpack.c.h.b16 %v626
      %v820 = vunpack.c.l.b16 %v627
      %v821 = vunpack.c.h.b16 %v627
      %v822 = vunpack.c.l.b16 %v628
      %v823 = vunpack.c.h.b16 %v628
      %v824 = vunpack.c.l.b16 %v629
      %v825 = vunpack.c.h.b16 %v629
      %v826 = vunpack.c.l.b16 %v630
      %v827 = vunpack.c.h.b16 %v630
      %v828 = vunpack.c.l.b16 %v631
      %v829 = vunpack.c.h.b16 %v631
      %v830 = vunpack.c.l.b16 %v632
      %v831 = vunpack.c.h.b16 %v632
      %v832 = vunpack.c.l.b16 %v633
      %v833 = vunpack.c.h.b16 %v633
      %v834 = vunpack.c.l.b16 %v634
      %v835 = vunpack.c.h.b16 %v634
      %v836 = vunpack.c.l.b16 %v635
      %v837 = vunpack.c.h.b16 %v635
      %v838 = vunpack.c.l.b16 %v636
      %v839 = vunpack.c.h.b16 %v636
      %v840 = vunpack.c.l.b16 %v637
      %v841 = vunpack.c.h.b16 %v637
      %v842 = vunpack.c.l.b16 %v638
      %v843 = vunpack.c.h.b16 %v638
      %v844 = vunpack.c.l.b16 %v639
      %v845 = vunpack.c.h.b16 %v639
      %v846 = vunpack.c.l.b16 %v640
      %v847 = vunpack.c.h.b16 %v640
      %v848 = vunpack.c.l.b16 %v641
      %v849 = vunpack.c.h.b16 %v641
      %v850 = vunpack.c.l.b16 %v642
      %v851 = vunpack.c.h.b16 %v642
      %v852 = vunpack.c.l.b16 %v643
      %v853 = vunpack.c.h.b16 %v643
      %v854 = vunpack.c.l.b16 %v644
      %v855 = vunpack.c.h.b16 %v644
      %v856 = vunpack.c.l.b16 %v645
      %v857 = vunpack.c.h.b16 %v645
      %v858 = vunpack.c.l.b16 %v646
      %v859 = vunpack.c.h.b16 %v646
      %v860 = vunpack.c.l.b16 %v647
      %v861 = vunpack.c.h.b16 %v647
      %v862 = vunpack.c.l.b16 %v648
      %v863 = vunpack.c.h.b16 %v648
      %v864 = vunpack.c.l.b16 %v649
      %v865 = vunpack.c.h.b16 %v649
      %v866 = vpack.c.b16 %v724, %v722
      %v867 = vpack.c.b16 %v725, %v723
      %v868 = vpack.c.b16 %v728, %v726
      %v869 = vpack.c.b16 %v729, %v727
      %v870 = vpack.c.b16 %v732, %v730
      %v871 = vpack.c.b16 %v733, %v731
      %v872 = vpack.c.b16 %v736, %v734
      %v873 = vpack.c.b16 %v737, %v735
      %v874 = vpack.c.b16 %v740, %v738
      %v875 = vpack.c.b16 %v741, %v739
      %v876 = vpack.c.b16 %v744, %v742
      %v877 = vpack.c.b16 %v745, %v743
      %v878 = vpack.c.b16 %v748, %v746
      %v879 = vpack.c.b16 %v749, %v747
      %v880 = vpack.c.b16 %v752, %v750
      %v881 = vpack.c.b16 %v753, %v751
      %v882 = vpack.c.b16 %v756, %v754
      %v883 = vpack.c.b16 %v757, %v755
      %v884 = vpack.c.b16 %v760, %v758
      %v885 = vpack.c.b16 %v761, %v759
      %v886 = vpack.c.b16 %v764, %v762
      %v887 = vpack.c.b16 %v765, %v763
      %v888 = vpack.c.b16 %v768, %v766
      %v889 = vpack.c.b16 %v769, %v767
      %v890 = vpack.c.b16 %v772, %v770
      %v891 = vpack.c.b16 %v773, %v771
      %v892 = vpack.c.b16 %v776, %v774
      %v893 = vpack.c.b16 %v777, %v775
      %v894 = vpack.c.b16 %v780, %v778
      %v895 = vpack.c.b16 %v781, %v779
      %v896 = vpack.c.b16 %v784, %v782
      %v897 = vpack.c.b16 %v785, %v783
      %v898 = vpack.c.b16 %v788, %v786
      %v899 = vpack.c.b16 %v789, %v787
      %v900 = vpack.c.b16 %v792, %v790
      %v901 = vpack.c.b16 %v793, %v791
      %v902 = vpack.c.b16 %v796, %v794
      %v903 = vpack.c.b16 %v797, %v795
      %v904 = vpack.c.b16 %v800, %v798
      %v905 = vpack.c.b16 %v801, %v799
      %v906 = vpack.c.b16 %v804, %v802
      %v907 = vpack.c.b16 %v805, %v803
      %v908 = vpack.c.b16 %v808, %v806
      %v909 = vpack.c.b16 %v809, %v807
      %v910 = vpack.c.b16 %v812, %v810
      %v911 = vpack.c.b16 %v813, %v811
      %v912 = vpack.c.b16 %v816, %v814
      %v913 = vpack.c.b16 %v817, %v815
      %v914 = vpack.c.b16 %v820, %v818
      %v915 = vpack.c.b16 %v821, %v819
      %v916 = vpack.c.b16 %v824, %v822
      %v917 = vpack.c.b16 %v825, %v823
      %v918 = vpack.c.b16 %v828, %v826
      %v919 = vpack.c.b16 %v829, %v827
      %v920 = vpack.c.b16 %v832, %v830
      %v921 = vpack.c.b16 %v833, %v831
      %v922 = vpack.c.b16 %v836, %v834
      %v923 = vpack.c.b16 %v837, %v835
      %v924 = vpack.c.b16 %v840, %v838
      %v925 = vpack.c.b16 %v841, %v839
      %v926 = vpack.c.b16 %v844, %v842
      %v927 = vpack.c.b16 %v845, %v843
      %v928 = vpack.c.b16 %v848, %v846
      %v929 = vpack.c.b16 %v849, %v847
      %v930 = vpack.c.b16 %v852, %v850
      %v931 = vpack.c.b16 %v853, %v851
      %v932 = vpack.c.b16 %v856, %v854
      %v933 = vpack.c.b16 %v857, %v855
      %v934 = vpack.c.b16 %v860, %v858
      %v935 = vpack.c.b16 %v861, %v859
      %v936 = vpack.c.b16 %v864, %v862
      %v937 = vpack.c.b16 %v865, %v863
      %v1010 = vsel %vm516, %v380, 0
      %v1012 = vsel %vm516, %v382, 0
      %v1014 = vsel %vm516, %v384, 0
      %v1016 = vsel %vm516, %v386, 0
      %v1018 = vsel %vm516, %v388, 0
      %v1020 = vsel %vm516, %v390, 0
      %v1022 = vsel %vm516, %v392, 0
      %v1024 = vsel %vm516, %v394, 0
      %v1027 = vsel %vm516, %v396, 0
      %v1030 = vsel %vm516, %v398, 0
      %v1033 = vsel %vm516, %v400, 0
      %v1036 = vsel %vm516, %v402, 0
      %v1038 = vsel %vm516, 0, 0
      %1040 = vmatprep.subr.bf16.mxu0 %v881
      %1041 = vmatpush1.bf16.msra.mxu0 %v880
      %1042 = vmatprep.subr.bf16.mxu0 %v879
      %1043 = vmatpush1.bf16.msra.mxu0 %v878
      %1044 = vmatprep.subr.bf16.mxu0 %v877
      %1045 = vmatpush1.bf16.msra.mxu0 %v876
      %1046 = vmatprep.subr.bf16.mxu0 %v875
      %1047 = vmatpush1.bf16.msra.mxu0 %v874
      %1048 = vmatprep.subr.bf16.mxu0 %v873
      %1049 = vmatpush1.bf16.msra.mxu0 %v872
      %1050 = vmatprep.subr.bf16.mxu0 %v871
      %1051 = vmatpush1.bf16.msra.mxu0 %v870
      %1052 = vmatprep.subr.bf16.mxu0 %v869
      %1053 = vmatpush1.bf16.msra.mxu0 %v868
      %1054 = vmatprep.subr.bf16.mxu0 %v867
      %1055 = vmatpush1.bf16.msra.mxu0 %v866
      %1056 = vmatprep.subr.bf16.mxu0 %v897
      %1057 = vmatpush2.bf16.msra.mxu0 %v896
      %1058 = vmatprep.subr.bf16.mxu0 %v895
      %1059 = vmatpush2.bf16.msra.mxu0 %v894
      %1060 = vmatprep.subr.bf16.mxu0 %v893
      %1061 = vmatpush2.bf16.msra.mxu0 %v892
      %1062 = vmatprep.subr.bf16.mxu0 %v891
      %1063 = vmatpush2.bf16.msra.mxu0 %v890
      %1064 = vmatprep.subr.bf16.mxu0 %v889
      %1065 = vmatpush2.bf16.msra.mxu0 %v888
      %1066 = vmatprep.subr.bf16.mxu0 %v887
      %1067 = vmatpush2.bf16.msra.mxu0 %v886
      %1068 = vmatprep.subr.bf16.mxu0 %v885
      %1069 = vmatpush2.bf16.msra.mxu0 %v884
      %1070 = vmatprep.subr.bf16.mxu0 %v883
      %1071 = vmatpush2.bf16.msra.mxu0 %v882
      %1072 = vmatprep.mubr.bf16.mxu0 %v519
      %1073 = vmatmul.mubr.bf16.gmra.mxu0 0
      %v1074 = vpop.f32.mrf.mxu0
      %v1075 = vadd.f32 0.0, %v1074
      %v1076 = vpop.f32.mrf.mxu0
      %v1077 = vadd.f32 0.0, %v1076
      %v1078 = vpop.f32.mrf.mxu0
      %v1079 = vadd.f32 0.0, %v1078
      %v1080 = vpop.f32.mrf.mxu0
      %v1081 = vadd.f32 0.0, %v1080
      %1082 = vmatprep.mubr.bf16.mxu0 %v522
      %1083 = vmatmul.mubr.bf16.gmra.mxu0 0
      %v1084 = vpop.f32.mrf.mxu0
      %v1085 = vadd.f32 0.0, %v1084
      %v1086 = vpop.f32.mrf.mxu0
      %v1087 = vadd.f32 0.0, %v1086
      %v1088 = vpop.f32.mrf.mxu0
      %v1089 = vadd.f32 0.0, %v1088
      %v1090 = vpop.f32.mrf.mxu0
      %v1091 = vadd.f32 0.0, %v1090
      %1092 = vmatprep.mubr.bf16.mxu0 %v525
      %1093 = vmatmul.mubr.bf16.gmra.mxu0 0
      %v1094 = vpop.f32.mrf.mxu0
      %v1095 = vadd.f32 0.0, %v1094
      %v1096 = vpop.f32.mrf.mxu0
      %v1097 = vadd.f32 0.0, %v1096
      %v1098 = vpop.f32.mrf.mxu0
      %v1099 = vadd.f32 0.0, %v1098
      %v1100 = vpop.f32.mrf.mxu0
      %v1101 = vadd.f32 0.0, %v1100
      %1102 = vmatprep.mubr.bf16.mxu0 %v528
      %1103 = vmatmul.mubr.bf16.gmra.mxu0 0
      %v1104 = vpop.f32.mrf.mxu0
      %v1105 = vadd.f32 0.0, %v1104
      %v1106 = vpop.f32.mrf.mxu0
      %v1107 = vadd.f32 0.0, %v1106
      %v1108 = vpop.f32.mrf.mxu0
      %v1109 = vadd.f32 0.0, %v1108
      %v1110 = vpop.f32.mrf.mxu0
      %v1111 = vadd.f32 0.0, %v1110
      %1112 = vmatprep.mubr.bf16.mxu0 %v532
      %1113 = vmatmul.mubr.bf16.gmra.mxu0 %v371
      %v1114 = vpop.f32.mrf.mxu0
      %v1115 = vadd.f32 0.0, %v1114
      %v1116 = vpop.f32.mrf.mxu0
      %v1117 = vadd.f32 0.0, %v1116
      %v1118 = vpop.f32.mrf.mxu0
      %v1119 = vadd.f32 0.0, %v1118
      %v1120 = vpop.f32.mrf.mxu0
      %v1121 = vadd.f32 0.0, %v1120
      %1122 = vmatprep.mubr.bf16.mxu0 %v536
      %1123 = vmatmul.mubr.bf16.gmra.mxu0 %v373
      %v1124 = vpop.f32.mrf.mxu0
      %v1125 = vadd.f32 0.0, %v1124
      %v1126 = vpop.f32.mrf.mxu0
      %v1127 = vadd.f32 0.0, %v1126
      %v1128 = vpop.f32.mrf.mxu0
      %v1129 = vadd.f32 0.0, %v1128
      %v1130 = vpop.f32.mrf.mxu0
      %v1131 = vadd.f32 0.0, %v1130
      %1132 = vmatprep.mubr.bf16.mxu0 %v540
      %1133 = vmatmul.mubr.bf16.gmra.mxu0 %v375
      %v1134 = vpop.f32.mrf.mxu0
      %v1135 = vadd.f32 0.0, %v1134
      %v1136 = vpop.f32.mrf.mxu0
      %v1137 = vadd.f32 0.0, %v1136
      %v1138 = vpop.f32.mrf.mxu0
      %v1139 = vadd.f32 0.0, %v1138
      %v1140 = vpop.f32.mrf.mxu0
      %v1141 = vadd.f32 0.0, %v1140
      %1142 = vmatprep.mubr.bf16.mxu0 %v544
      %1143 = vmatmul.mubr.bf16.gmra.mxu0 %v377
      %v1144 = vpop.f32.mrf.mxu0
      %v1145 = vadd.f32 0.0, %v1144
      %v1146 = vpop.f32.mrf.mxu0
      %v1147 = vadd.f32 0.0, %v1146
      %v1148 = vpop.f32.mrf.mxu0
      %v1149 = vadd.f32 0.0, %v1148
      %v1150 = vpop.f32.mrf.mxu0
      %v1151 = vadd.f32 0.0, %v1150
      %1152 = vmatprep.mubr.bf16.mxu0 %v548
      %1153 = vmatmul.mubr.bf16.gmra.mxu0 %v379
      %v1154 = vpop.f32.mrf.mxu0
      %v1155 = vadd.f32 0.0, %v1154
      %v1156 = vpop.f32.mrf.mxu0
      %v1157 = vadd.f32 0.0, %v1156
      %v1158 = vpop.f32.mrf.mxu0
      %v1159 = vadd.f32 0.0, %v1158
      %v1160 = vpop.f32.mrf.mxu0
      %v1161 = vadd.f32 0.0, %v1160
      %1162 = vmatprep.mubr.bf16.mxu0 %v552
      %1163 = vmatmul.mubr.bf16.gmra.mxu0 %v381
      %v1164 = vpop.f32.mrf.mxu0
      %v1165 = vadd.f32 0.0, %v1164
      %v1166 = vpop.f32.mrf.mxu0
      %v1167 = vadd.f32 0.0, %v1166
      %v1168 = vpop.f32.mrf.mxu0
      %v1169 = vadd.f32 0.0, %v1168
      %v1170 = vpop.f32.mrf.mxu0
      %v1171 = vadd.f32 0.0, %v1170
      %1172 = vmatprep.mubr.bf16.mxu0 %v556
      %1173 = vmatmul.mubr.bf16.gmra.mxu0 %v383
      %v1174 = vpop.f32.mrf.mxu0
      %v1175 = vadd.f32 0.0, %v1174
      %v1176 = vpop.f32.mrf.mxu0
      %v1177 = vadd.f32 0.0, %v1176
      %v1178 = vpop.f32.mrf.mxu0
      %v1179 = vadd.f32 0.0, %v1178
      %v1180 = vpop.f32.mrf.mxu0
      %v1181 = vadd.f32 0.0, %v1180
      %1182 = vmatprep.mubr.bf16.mxu0 %v560
      %1183 = vmatmul.mubr.bf16.gmra.mxu0 %v385
      %v1184 = vpop.f32.mrf.mxu0
      %v1185 = vadd.f32 0.0, %v1184
      %v1186 = vpop.f32.mrf.mxu0
      %v1187 = vadd.f32 0.0, %v1186
      %v1188 = vpop.f32.mrf.mxu0
      %v1189 = vadd.f32 0.0, %v1188
      %v1190 = vpop.f32.mrf.mxu0
      %v1191 = vadd.f32 0.0, %v1190
      %1192 = vmatprep.mubr.bf16.mxu0 %v564
      %1193 = vmatmul.mubr.bf16.gmra.mxu0 %v387
      %v1194 = vpop.f32.mrf.mxu0
      %v1195 = vadd.f32 0.0, %v1194
      %v1196 = vpop.f32.mrf.mxu0
      %v1197 = vadd.f32 0.0, %v1196
      %v1198 = vpop.f32.mrf.mxu0
      %v1199 = vadd.f32 0.0, %v1198
      %v1200 = vpop.f32.mrf.mxu0
      %v1201 = vadd.f32 0.0, %v1200
      %1202 = vmatprep.mubr.bf16.mxu0 %v568
      %1203 = vmatmul.mubr.bf16.gmra.mxu0 %v389
      %v1204 = vpop.f32.mrf.mxu0
      %v1205 = vadd.f32 0.0, %v1204
      %v1206 = vpop.f32.mrf.mxu0
      %v1207 = vadd.f32 0.0, %v1206
      %v1208 = vpop.f32.mrf.mxu0
      %v1209 = vadd.f32 0.0, %v1208
      %v1210 = vpop.f32.mrf.mxu0
      %v1211 = vadd.f32 0.0, %v1210
      %1212 = vmatprep.mubr.bf16.mxu0 %v572
      %1213 = vmatmul.mubr.bf16.gmra.mxu0 %v391
      %v1214 = vpop.f32.mrf.mxu0
      %v1215 = vadd.f32 0.0, %v1214
      %v1216 = vpop.f32.mrf.mxu0
      %v1217 = vadd.f32 0.0, %v1216
      %v1218 = vpop.f32.mrf.mxu0
      %v1219 = vadd.f32 0.0, %v1218
      %v1220 = vpop.f32.mrf.mxu0
      %v1221 = vadd.f32 0.0, %v1220
      %1222 = vmatprep.mubr.bf16.mxu0 %v576
      %1223 = vmatmul.mubr.bf16.gmra.mxu0 %v393
      %v1224 = vpop.f32.mrf.mxu0
      %v1225 = vadd.f32 0.0, %v1224
      %v1226 = vpop.f32.mrf.mxu0
      %v1227 = vadd.f32 0.0, %v1226
      %v1228 = vpop.f32.mrf.mxu0
      %v1229 = vadd.f32 0.0, %v1228
      %v1230 = vpop.f32.mrf.mxu0
      %v1231 = vadd.f32 0.0, %v1230
      %1232 = vdwg.mxu0
      %1233 = vmatprep.subr.bf16.mxu0 %v913
      %1234 = vmatpush1.bf16.msra.mxu0 %v912
      %1235 = vmatprep.subr.bf16.mxu0 %v911
      %1236 = vmatpush1.bf16.msra.mxu0 %v910
      %1237 = vmatprep.subr.bf16.mxu0 %v909
      %1238 = vmatpush1.bf16.msra.mxu0 %v908
      %1239 = vmatprep.subr.bf16.mxu0 %v907
      %1240 = vmatpush1.bf16.msra.mxu0 %v906
      %1241 = vmatprep.subr.bf16.mxu0 %v905
      %1242 = vmatpush1.bf16.msra.mxu0 %v904
      %1243 = vmatprep.subr.bf16.mxu0 %v903
      %1244 = vmatpush1.bf16.msra.mxu0 %v902
      %1245 = vmatprep.subr.bf16.mxu0 %v901
      %1246 = vmatpush1.bf16.msra.mxu0 %v900
      %1247 = vmatprep.subr.bf16.mxu0 %v899
      %1248 = vmatpush1.bf16.msra.mxu0 %v898
      %1249 = vmatprep.subr.bf16.mxu0 %v929
      %1250 = vmatpush2.bf16.msra.mxu0 %v928
      %1251 = vmatprep.subr.bf16.mxu0 %v927
      %1252 = vmatpush2.bf16.msra.mxu0 %v926
      %1253 = vmatprep.subr.bf16.mxu0 %v925
      %1254 = vmatpush2.bf16.msra.mxu0 %v924
      %1255 = vmatprep.subr.bf16.mxu0 %v923
      %1256 = vmatpush2.bf16.msra.mxu0 %v922
      %1257 = vmatprep.subr.bf16.mxu0 %v921
      %1258 = vmatpush2.bf16.msra.mxu0 %v920
      %1259 = vmatprep.subr.bf16.mxu0 %v919
      %1260 = vmatpush2.bf16.msra.mxu0 %v918
      %1261 = vmatprep.subr.bf16.mxu0 %v917
      %1262 = vmatpush2.bf16.msra.mxu0 %v916
      %1263 = vmatprep.subr.bf16.mxu0 %v915
      %1264 = vmatpush2.bf16.msra.mxu0 %v914
      %1265 = vmatprep.mubr.bf16.mxu0 %v379
      %1266 = vmatmul.mubr.bf16.gmra.mxu0 %v484
      %v1267 = vpop.f32.mrf.mxu0
      %v1268 = vadd.f32 %v1075, %v1267
      %v1269 = vpop.f32.mrf.mxu0
      %v1270 = vadd.f32 %v1077, %v1269
      %v1271 = vpop.f32.mrf.mxu0
      %v1272 = vadd.f32 %v1079, %v1271
      %v1273 = vpop.f32.mrf.mxu0
      %v1274 = vadd.f32 %v1081, %v1273
      %1275 = vmatprep.mubr.bf16.mxu0 %v381
      %1276 = vmatmul.mubr.bf16.gmra.mxu0 %v485
      %v1277 = vpop.f32.mrf.mxu0
      %v1278 = vadd.f32 %v1085, %v1277
      %v1279 = vpop.f32.mrf.mxu0
      %v1280 = vadd.f32 %v1087, %v1279
      %v1281 = vpop.f32.mrf.mxu0
      %v1282 = vadd.f32 %v1089, %v1281
      %v1283 = vpop.f32.mrf.mxu0
      %v1284 = vadd.f32 %v1091, %v1283
      %1285 = vmatprep.mubr.bf16.mxu0 %v383
      %1286 = vmatmul.mubr.bf16.gmra.mxu0 %v486
      %v1287 = vpop.f32.mrf.mxu0
      %v1288 = vadd.f32 %v1095, %v1287
      %v1289 = vpop.f32.mrf.mxu0
      %v1290 = vadd.f32 %v1097, %v1289
      %v1291 = vpop.f32.mrf.mxu0
      %v1292 = vadd.f32 %v1099, %v1291
      %v1293 = vpop.f32.mrf.mxu0
      %v1294 = vadd.f32 %v1101, %v1293
      %1295 = vmatprep.mubr.bf16.mxu0 %v385
      %1296 = vmatmul.mubr.bf16.gmra.mxu0 %v487
      %v1297 = vpop.f32.mrf.mxu0
      %v1298 = vadd.f32 %v1105, %v1297
      %v1299 = vpop.f32.mrf.mxu0
      %v1300 = vadd.f32 %v1107, %v1299
      %v1301 = vpop.f32.mrf.mxu0
      %v1302 = vadd.f32 %v1109, %v1301
      %v1303 = vpop.f32.mrf.mxu0
      %v1304 = vadd.f32 %v1111, %v1303
      %1305 = vmatprep.mubr.bf16.mxu0 %v387
      %1306 = vmatmul.mubr.bf16.gmra.mxu0 %v488
      %v1307 = vpop.f32.mrf.mxu0
      %v1308 = vadd.f32 %v1115, %v1307
      %v1309 = vpop.f32.mrf.mxu0
      %v1310 = vadd.f32 %v1117, %v1309
      %v1311 = vpop.f32.mrf.mxu0
      %v1312 = vadd.f32 %v1119, %v1311
      %v1313 = vpop.f32.mrf.mxu0
      %v1314 = vadd.f32 %v1121, %v1313
      %1315 = vmatprep.mubr.bf16.mxu0 %v389
      %1316 = vmatmul.mubr.bf16.gmra.mxu0 %v489
      %v1317 = vpop.f32.mrf.mxu0
      %v1318 = vadd.f32 %v1125, %v1317
      %v1319 = vpop.f32.mrf.mxu0
      %v1320 = vadd.f32 %v1127, %v1319
      %v1321 = vpop.f32.mrf.mxu0
      %v1322 = vadd.f32 %v1129, %v1321
      %v1323 = vpop.f32.mrf.mxu0
      %v1324 = vadd.f32 %v1131, %v1323
      %1325 = vmatprep.mubr.bf16.mxu0 %v391
      %1326 = vmatmul.mubr.bf16.gmra.mxu0 %v490
      %v1327 = vpop.f32.mrf.mxu0
      %v1328 = vadd.f32 %v1135, %v1327
      %v1329 = vpop.f32.mrf.mxu0
      %v1330 = vadd.f32 %v1137, %v1329
      %v1331 = vpop.f32.mrf.mxu0
      %v1332 = vadd.f32 %v1139, %v1331
      %v1333 = vpop.f32.mrf.mxu0
      %v1334 = vadd.f32 %v1141, %v1333
      %1335 = vmatprep.mubr.bf16.mxu0 %v393
      %1336 = vmatmul.mubr.bf16.gmra.mxu0 %v491
      %v1337 = vpop.f32.mrf.mxu0
      %v1338 = vadd.f32 %v1145, %v1337
      %v1339 = vpop.f32.mrf.mxu0
      %v1340 = vadd.f32 %v1147, %v1339
      %v1341 = vpop.f32.mrf.mxu0
      %v1342 = vadd.f32 %v1149, %v1341
      %v1343 = vpop.f32.mrf.mxu0
      %v1344 = vadd.f32 %v1151, %v1343
      %1345 = vmatprep.mubr.bf16.mxu0 %v395
      %1346 = vmatmul.mubr.bf16.gmra.mxu0 %v492
      %v1347 = vpop.f32.mrf.mxu0
      %v1348 = vadd.f32 %v1155, %v1347
      %v1349 = vpop.f32.mrf.mxu0
      %v1350 = vadd.f32 %v1157, %v1349
      %v1351 = vpop.f32.mrf.mxu0
      %v1352 = vadd.f32 %v1159, %v1351
      %v1353 = vpop.f32.mrf.mxu0
      %v1354 = vadd.f32 %v1161, %v1353
      %1355 = vmatprep.mubr.bf16.mxu0 %v397
      %1356 = vmatmul.mubr.bf16.gmra.mxu0 %v493
      %v1357 = vpop.f32.mrf.mxu0
      %v1358 = vadd.f32 %v1165, %v1357
      %v1359 = vpop.f32.mrf.mxu0
      %v1360 = vadd.f32 %v1167, %v1359
      %v1361 = vpop.f32.mrf.mxu0
      %v1362 = vadd.f32 %v1169, %v1361
      %v1363 = vpop.f32.mrf.mxu0
      %v1364 = vadd.f32 %v1171, %v1363
      %1365 = vmatprep.mubr.bf16.mxu0 %v399
      %1366 = vmatmul.mubr.bf16.gmra.mxu0 %v494
      %v1367 = vpop.f32.mrf.mxu0
      %v1368 = vadd.f32 %v1175, %v1367
      %v1369 = vpop.f32.mrf.mxu0
      %v1370 = vadd.f32 %v1177, %v1369
      %v1371 = vpop.f32.mrf.mxu0
      %v1372 = vadd.f32 %v1179, %v1371
      %v1373 = vpop.f32.mrf.mxu0
      %v1374 = vadd.f32 %v1181, %v1373
      %1375 = vmatprep.mubr.bf16.mxu0 %v401
      %1376 = vmatmul.mubr.bf16.gmra.mxu0 %v495
      %v1377 = vpop.f32.mrf.mxu0
      %v1378 = vadd.f32 %v1185, %v1377
      %v1379 = vpop.f32.mrf.mxu0
      %v1380 = vadd.f32 %v1187, %v1379
      %v1381 = vpop.f32.mrf.mxu0
      %v1382 = vadd.f32 %v1189, %v1381
      %v1383 = vpop.f32.mrf.mxu0
      %v1384 = vadd.f32 %v1191, %v1383
      %1385 = vmatprep.mubr.bf16.mxu0 0
      %1386 = vmatmul.mubr.bf16.gmra.mxu0 %v496
      %v1387 = vpop.f32.mrf.mxu0
      %v1388 = vadd.f32 %v1195, %v1387
      %v1389 = vpop.f32.mrf.mxu0
      %v1390 = vadd.f32 %v1197, %v1389
      %v1391 = vpop.f32.mrf.mxu0
      %v1392 = vadd.f32 %v1199, %v1391
      %v1393 = vpop.f32.mrf.mxu0
      %v1394 = vadd.f32 %v1201, %v1393
      %1395 = vmatprep.mubr.bf16.mxu0 0
      %1396 = vmatmul.mubr.bf16.gmra.mxu0 %v497
      %v1397 = vpop.f32.mrf.mxu0
      %v1398 = vadd.f32 %v1205, %v1397
      %v1399 = vpop.f32.mrf.mxu0
      %v1400 = vadd.f32 %v1207, %v1399
      %v1401 = vpop.f32.mrf.mxu0
      %v1402 = vadd.f32 %v1209, %v1401
      %v1403 = vpop.f32.mrf.mxu0
      %v1404 = vadd.f32 %v1211, %v1403
      %1405 = vmatprep.mubr.bf16.mxu0 0
      %1406 = vmatmul.mubr.bf16.gmra.mxu0 %v498
      %v1407 = vpop.f32.mrf.mxu0
      %v1408 = vadd.f32 %v1215, %v1407
      %v1409 = vpop.f32.mrf.mxu0
      %v1410 = vadd.f32 %v1217, %v1409
      %v1411 = vpop.f32.mrf.mxu0
      %v1412 = vadd.f32 %v1219, %v1411
      %v1413 = vpop.f32.mrf.mxu0
      %v1414 = vadd.f32 %v1221, %v1413
      %1415 = vmatprep.mubr.bf16.mxu0 0
      %1416 = vmatmul.mubr.bf16.gmra.mxu0 %v499
      %v1417 = vpop.f32.mrf.mxu0
      %v1418 = vadd.f32 %v1225, %v1417
      %v1419 = vpop.f32.mrf.mxu0
      %v1420 = vadd.f32 %v1227, %v1419
      %v1421 = vpop.f32.mrf.mxu0
      %v1422 = vadd.f32 %v1229, %v1421
      %v1423 = vpop.f32.mrf.mxu0
      %v1424 = vadd.f32 %v1231, %v1423
      %1425 = vdwg.mxu0
      %1426 = vmatprep.subr.bf16.mxu0 0
      %1427 = vmatpush1.bf16.msra.mxu0 0
      %1428 = vmatprep.subr.bf16.mxu0 0
      %1429 = vmatpush1.bf16.msra.mxu0 0
      %1430 = vmatprep.subr.bf16.mxu0 0
      %1431 = vmatpush1.bf16.msra.mxu0 0
      %1432 = vmatprep.subr.bf16.mxu0 0
      %1433 = vmatpush1.bf16.msra.mxu0 0
      %1434 = vmatprep.subr.bf16.mxu0 %v937
      %1435 = vmatpush1.bf16.msra.mxu0 %v936
      %1436 = vmatprep.subr.bf16.mxu0 %v935
      %1437 = vmatpush1.bf16.msra.mxu0 %v934
      %1438 = vmatprep.subr.bf16.mxu0 %v933
      %1439 = vmatpush1.bf16.msra.mxu0 %v932
      %1440 = vmatprep.subr.bf16.mxu0 %v931
      %1441 = vmatpush1.bf16.msra.mxu0 %v930
      %1442 = vmatprep.subr.bf16.mxu0 0
      %1443 = vmatpush2.bf16.msra.mxu0 0
      %1444 = vmatprep.subr.bf16.mxu0 0
      %1445 = vmatpush2.bf16.msra.mxu0 0
      %1446 = vmatprep.subr.bf16.mxu0 0
      %1447 = vmatpush2.bf16.msra.mxu0 0
      %1448 = vmatprep.subr.bf16.mxu0 0
      %1449 = vmatpush2.bf16.msra.mxu0 0
      %1450 = vmatprep.subr.bf16.mxu0 0
      %1451 = vmatpush2.bf16.msra.mxu0 0
      %1452 = vmatprep.subr.bf16.mxu0 0
      %1453 = vmatpush2.bf16.msra.mxu0 0
      %1454 = vmatprep.subr.bf16.mxu0 0
      %1455 = vmatpush2.bf16.msra.mxu0 0
      %1456 = vmatprep.subr.bf16.mxu0 0
      %1457 = vmatpush2.bf16.msra.mxu0 0
      %1458 = vmatprep.mubr.bf16.mxu0 0
      %1459 = vmatmul.mubr.bf16.gmra.mxu0 %v1010
      %v1460 = vpop.f32.mrf.mxu0
      %v1461 = vadd.f32 %v1268, %v1460
      %v1462 = vpop.f32.mrf.mxu0
      %v1463 = vadd.f32 %v1270, %v1462
      %v1464 = vpop.f32.mrf.mxu0
      %v1465 = vadd.f32 %v1272, %v1464
      %v1466 = vpop.f32.mrf.mxu0
      %v1467 = vadd.f32 %v1274, %v1466
      %1468 = vmatprep.mubr.bf16.mxu0 0
      %1469 = vmatmul.mubr.bf16.gmra.mxu0 %v1012
      %v1470 = vpop.f32.mrf.mxu0
      %v1471 = vadd.f32 %v1278, %v1470
      %v1472 = vpop.f32.mrf.mxu0
      %v1473 = vadd.f32 %v1280, %v1472
      %v1474 = vpop.f32.mrf.mxu0
      %v1475 = vadd.f32 %v1282, %v1474
      %v1476 = vpop.f32.mrf.mxu0
      %v1477 = vadd.f32 %v1284, %v1476
      %1478 = vmatprep.mubr.bf16.mxu0 0
      %1479 = vmatmul.mubr.bf16.gmra.mxu0 %v1014
      %v1480 = vpop.f32.mrf.mxu0
      %v1481 = vadd.f32 %v1288, %v1480
      %v1482 = vpop.f32.mrf.mxu0
      %v1483 = vadd.f32 %v1290, %v1482
      %v1484 = vpop.f32.mrf.mxu0
      %v1485 = vadd.f32 %v1292, %v1484
      %v1486 = vpop.f32.mrf.mxu0
      %v1487 = vadd.f32 %v1294, %v1486
      %1488 = vmatprep.mubr.bf16.mxu0 0
      %1489 = vmatmul.mubr.bf16.gmra.mxu0 %v1016
      %v1490 = vpop.f32.mrf.mxu0
      %v1491 = vadd.f32 %v1298, %v1490
      %v1492 = vpop.f32.mrf.mxu0
      %v1493 = vadd.f32 %v1300, %v1492
      %v1494 = vpop.f32.mrf.mxu0
      %v1495 = vadd.f32 %v1302, %v1494
      %v1496 = vpop.f32.mrf.mxu0
      %v1497 = vadd.f32 %v1304, %v1496
      %1498 = vmatprep.mubr.bf16.mxu0 0
      %1499 = vmatmul.mubr.bf16.gmra.mxu0 %v1018
      %v1500 = vpop.f32.mrf.mxu0
      %v1501 = vadd.f32 %v1308, %v1500
      %v1502 = vpop.f32.mrf.mxu0
      %v1503 = vadd.f32 %v1310, %v1502
      %v1504 = vpop.f32.mrf.mxu0
      %v1505 = vadd.f32 %v1312, %v1504
      %v1506 = vpop.f32.mrf.mxu0
      %v1507 = vadd.f32 %v1314, %v1506
      %1508 = vmatprep.mubr.bf16.mxu0 0
      %1509 = vmatmul.mubr.bf16.gmra.mxu0 %v1020
      %v1510 = vpop.f32.mrf.mxu0
      %v1511 = vadd.f32 %v1318, %v1510
      %v1512 = vpop.f32.mrf.mxu0
      %v1513 = vadd.f32 %v1320, %v1512
      %v1514 = vpop.f32.mrf.mxu0
      %v1515 = vadd.f32 %v1322, %v1514
      %v1516 = vpop.f32.mrf.mxu0
      %v1517 = vadd.f32 %v1324, %v1516
      %1518 = vmatprep.mubr.bf16.mxu0 0
      %1519 = vmatmul.mubr.bf16.gmra.mxu0 %v1022
      %v1520 = vpop.f32.mrf.mxu0
      %v1521 = vadd.f32 %v1328, %v1520
      %v1522 = vpop.f32.mrf.mxu0
      %v1523 = vadd.f32 %v1330, %v1522
      %v1524 = vpop.f32.mrf.mxu0
      %v1525 = vadd.f32 %v1332, %v1524
      %v1526 = vpop.f32.mrf.mxu0
      %v1527 = vadd.f32 %v1334, %v1526
      %1528 = vmatprep.mubr.bf16.mxu0 0
      %1529 = vmatmul.mubr.bf16.gmra.mxu0 %v1024
      %v1530 = vpop.f32.mrf.mxu0
      %v1531 = vadd.f32 %v1338, %v1530
      %v1532 = vpop.f32.mrf.mxu0
      %v1533 = vadd.f32 %v1340, %v1532
      %v1534 = vpop.f32.mrf.mxu0
      %v1535 = vadd.f32 %v1342, %v1534
      %v1536 = vpop.f32.mrf.mxu0
      %v1537 = vadd.f32 %v1344, %v1536
      %1538 = vmatprep.mubr.bf16.mxu0 0
      %1539 = vmatmul.mubr.bf16.gmra.mxu0 %v1027
      %v1540 = vpop.f32.mrf.mxu0
      %v1541 = vadd.f32 %v1348, %v1540
      %v1542 = vpop.f32.mrf.mxu0
      %v1543 = vadd.f32 %v1350, %v1542
      %v1544 = vpop.f32.mrf.mxu0
      %v1545 = vadd.f32 %v1352, %v1544
      %v1546 = vpop.f32.mrf.mxu0
      %v1547 = vadd.f32 %v1354, %v1546
      %1548 = vmatprep.mubr.bf16.mxu0 0
      %1549 = vmatmul.mubr.bf16.gmra.mxu0 %v1030
      %v1550 = vpop.f32.mrf.mxu0
      %v1551 = vadd.f32 %v1358, %v1550
      %v1552 = vpop.f32.mrf.mxu0
      %v1553 = vadd.f32 %v1360, %v1552
      %v1554 = vpop.f32.mrf.mxu0
      %v1555 = vadd.f32 %v1362, %v1554
      %v1556 = vpop.f32.mrf.mxu0
      %v1557 = vadd.f32 %v1364, %v1556
      %1558 = vmatprep.mubr.bf16.mxu0 0
      %1559 = vmatmul.mubr.bf16.gmra.mxu0 %v1033
      %v1560 = vpop.f32.mrf.mxu0
      %v1561 = vadd.f32 %v1368, %v1560
      %v1562 = vpop.f32.mrf.mxu0
      %v1563 = vadd.f32 %v1370, %v1562
      %v1564 = vpop.f32.mrf.mxu0
      %v1565 = vadd.f32 %v1372, %v1564
      %v1566 = vpop.f32.mrf.mxu0
      %v1567 = vadd.f32 %v1374, %v1566
      %1568 = vmatprep.mubr.bf16.mxu0 0
      %1569 = vmatmul.mubr.bf16.gmra.mxu0 %v1036
      %v1570 = vpop.f32.mrf.mxu0
      %v1571 = vadd.f32 %v1378, %v1570
      %v1572 = vpop.f32.mrf.mxu0
      %v1573 = vadd.f32 %v1380, %v1572
      %v1574 = vpop.f32.mrf.mxu0
      %v1575 = vadd.f32 %v1382, %v1574
      %v1576 = vpop.f32.mrf.mxu0
      %v1577 = vadd.f32 %v1384, %v1576
      %1578 = vmatprep.mubr.bf16.mxu0 0
      %1579 = vmatmul.mubr.bf16.gmra.mxu0 %v1038
      %v1580 = vpop.f32.mrf.mxu0
      %v1581 = vadd.f32 %v1388, %v1580
      %v1582 = vpop.f32.mrf.mxu0
      %v1583 = vadd.f32 %v1390, %v1582
      %v1584 = vpop.f32.mrf.mxu0
      %v1585 = vadd.f32 %v1392, %v1584
      %v1586 = vpop.f32.mrf.mxu0
      %v1587 = vadd.f32 %v1394, %v1586
      %1588 = vmatprep.mubr.bf16.mxu0 0
      %1589 = vmatmul.mubr.bf16.gmra.mxu0 %v1038
      %v1590 = vpop.f32.mrf.mxu0
      %v1591 = vadd.f32 %v1398, %v1590
      %v1592 = vpop.f32.mrf.mxu0
      %v1593 = vadd.f32 %v1400, %v1592
      %v1594 = vpop.f32.mrf.mxu0
      %v1595 = vadd.f32 %v1402, %v1594
      %v1596 = vpop.f32.mrf.mxu0
      %v1597 = vadd.f32 %v1404, %v1596
      %1598 = vmatprep.mubr.bf16.mxu0 0
      %1599 = vmatmul.mubr.bf16.gmra.mxu0 %v1038
      %v1600 = vpop.f32.mrf.mxu0
      %v1601 = vadd.f32 %v1408, %v1600
      %v1602 = vpop.f32.mrf.mxu0
      %v1603 = vadd.f32 %v1410, %v1602
      %v1604 = vpop.f32.mrf.mxu0
      %v1605 = vadd.f32 %v1412, %v1604
      %v1606 = vpop.f32.mrf.mxu0
      %v1607 = vadd.f32 %v1414, %v1606
      %1608 = vmatprep.mubr.bf16.mxu0 0
      %1609 = vmatmul.mubr.bf16.gmra.mxu0 %v1038
      %v1610 = vpop.f32.mrf.mxu0
      %v1611 = vadd.f32 %v1418, %v1610
      %v1612 = vpop.f32.mrf.mxu0
      %v1613 = vadd.f32 %v1420, %v1612
      %v1614 = vpop.f32.mrf.mxu0
      %v1615 = vadd.f32 %v1422, %v1614
      %v1616 = vpop.f32.mrf.mxu0
      %v1617 = vadd.f32 %v1424, %v1616
      %1618 = vdwg.mxu0
      %v1619 = vld [vmem:[%s2] sm:$0x3]
      %v1621 = vlaneseq
      %v1622 = vshrl.u32 %v1621, 7
      %v1623 = vsub.s32 0, %v1622
      %v1624 = vrot.slane %v1619, %v1623
      %v1625 = vlaneseq
      %v1626 = vshrl.u32 %v1625, 7
      %v1627 = vsub.s32 1, %v1626
      %v1628 = vrot.slane %v1619, %v1627
      %v1631 = vmul.f32 %v1461, %v1624
      %v1632 = vmul.f32 %v1463, %v1628
      %v1633 = vmul.f32 %v1465, %v1624
      %v1634 = vmul.f32 %v1467, %v1628
      %v1635 = vmul.f32 %v1471, %v1624
      %v1636 = vmul.f32 %v1473, %v1628
      %v1637 = vmul.f32 %v1475, %v1624
      %v1638 = vmul.f32 %v1477, %v1628
      %v1639 = vmul.f32 %v1481, %v1624
      %v1640 = vmul.f32 %v1483, %v1628
      %v1641 = vmul.f32 %v1485, %v1624
      %v1642 = vmul.f32 %v1487, %v1628
      %v1643 = vmul.f32 %v1491, %v1624
      %v1644 = vmul.f32 %v1493, %v1628
      %v1645 = vmul.f32 %v1495, %v1624
      %v1646 = vmul.f32 %v1497, %v1628
      %v1647 = vmul.f32 %v1501, %v1624
      %v1648 = vmul.f32 %v1503, %v1628
      %v1649 = vmul.f32 %v1505, %v1624
      %v1650 = vmul.f32 %v1507, %v1628
      %v1651 = vmul.f32 %v1511, %v1624
      %v1652 = vmul.f32 %v1513, %v1628
      %v1653 = vmul.f32 %v1515, %v1624
      %v1654 = vmul.f32 %v1517, %v1628
      %v1655 = vmul.f32 %v1521, %v1624
      %v1656 = vmul.f32 %v1523, %v1628
      %v1657 = vmul.f32 %v1525, %v1624
      %v1658 = vmul.f32 %v1527, %v1628
      %v1659 = vmul.f32 %v1531, %v1624
      %v1660 = vmul.f32 %v1533, %v1628
      %v1661 = vmul.f32 %v1535, %v1624
      %v1662 = vmul.f32 %v1537, %v1628
      %v1663 = vmul.f32 %v1541, %v1624
      %v1664 = vmul.f32 %v1543, %v1628
      %v1665 = vmul.f32 %v1545, %v1624
      %v1666 = vmul.f32 %v1547, %v1628
      %v1667 = vmul.f32 %v1551, %v1624
      %v1668 = vmul.f32 %v1553, %v1628
      %v1669 = vmul.f32 %v1555, %v1624
      %v1670 = vmul.f32 %v1557, %v1628
      %v1671 = vmul.f32 %v1561, %v1624
      %v1672 = vmul.f32 %v1563, %v1628
      %v1673 = vmul.f32 %v1565, %v1624
      %v1674 = vmul.f32 %v1567, %v1628
      %v1675 = vmul.f32 %v1571, %v1624
      %v1676 = vmul.f32 %v1573, %v1628
      %v1677 = vmul.f32 %v1575, %v1624
      %v1678 = vmul.f32 %v1577, %v1628
      %v1679 = vmul.f32 %v1581, %v1624
      %v1680 = vmul.f32 %v1583, %v1628
      %v1681 = vmul.f32 %v1585, %v1624
      %v1682 = vmul.f32 %v1587, %v1628
      %v1683 = vmul.f32 %v1591, %v1624
      %v1684 = vmul.f32 %v1593, %v1628
      %v1685 = vmul.f32 %v1595, %v1624
      %v1686 = vmul.f32 %v1597, %v1628
      %v1687 = vmul.f32 %v1601, %v1624
      %v1688 = vmul.f32 %v1603, %v1628
      %v1689 = vmul.f32 %v1605, %v1624
      %v1690 = vmul.f32 %v1607, %v1628
      %v1691 = vmul.f32 %v1611, %v1624
      %v1692 = vmul.f32 %v1613, %v1628
      %v1693 = vmul.f32 %v1615, %v1624
      %v1694 = vmul.f32 %v1617, %v1628
      %v1695 = vld [vmem:[%s3] sm:$0x3]
      %v1697 = vlaneseq
      %v1698 = vshrl.u32 %v1697, 7
      %v1699 = vsub.s32 0, %v1698
      %v1700 = vrot.slane %v1695, %v1699
      %v1701 = vlaneseq
      %v1702 = vshrl.u32 %v1701, 7
      %v1703 = vsub.s32 1, %v1702
      %v1704 = vrot.slane %v1695, %v1703
      %v1707 = vadd.f32 %v1631, %v1700
      %v1708 = vadd.f32 %v1632, %v1704
      %v1709 = vadd.f32 %v1633, %v1700
      %v1710 = vadd.f32 %v1634, %v1704
      %v1711 = vadd.f32 %v1635, %v1700
      %v1712 = vadd.f32 %v1636, %v1704
      %v1713 = vadd.f32 %v1637, %v1700
      %v1714 = vadd.f32 %v1638, %v1704
      %v1715 = vadd.f32 %v1639, %v1700
      %v1716 = vadd.f32 %v1640, %v1704
      %v1717 = vadd.f32 %v1641, %v1700
      %v1718 = vadd.f32 %v1642, %v1704
      %v1719 = vadd.f32 %v1643, %v1700
      %v1720 = vadd.f32 %v1644, %v1704
      %v1721 = vadd.f32 %v1645, %v1700
      %v1722 = vadd.f32 %v1646, %v1704
      %v1723 = vadd.f32 %v1647, %v1700
      %v1724 = vadd.f32 %v1648, %v1704
      %v1725 = vadd.f32 %v1649, %v1700
      %v1726 = vadd.f32 %v1650, %v1704
      %v1727 = vadd.f32 %v1651, %v1700
      %v1728 = vadd.f32 %v1652, %v1704
      %v1729 = vadd.f32 %v1653, %v1700
      %v1730 = vadd.f32 %v1654, %v1704
      %v1731 = vadd.f32 %v1655, %v1700
      %v1732 = vadd.f32 %v1656, %v1704
      %v1733 = vadd.f32 %v1657, %v1700
      %v1734 = vadd.f32 %v1658, %v1704
      %v1735 = vadd.f32 %v1659, %v1700
      %v1736 = vadd.f32 %v1660, %v1704
      %v1737 = vadd.f32 %v1661, %v1700
      %v1738 = vadd.f32 %v1662, %v1704
      %v1739 = vadd.f32 %v1663, %v1700
      %v1740 = vadd.f32 %v1664, %v1704
      %v1741 = vadd.f32 %v1665, %v1700
      %v1742 = vadd.f32 %v1666, %v1704
      %v1743 = vadd.f32 %v1667, %v1700
      %v1744 = vadd.f32 %v1668, %v1704
      %v1745 = vadd.f32 %v1669, %v1700
      %v1746 = vadd.f32 %v1670, %v1704
      %v1747 = vadd.f32 %v1671, %v1700
      %v1748 = vadd.f32 %v1672, %v1704
      %v1749 = vadd.f32 %v1673, %v1700
      %v1750 = vadd.f32 %v1674, %v1704
      %v1751 = vadd.f32 %v1675, %v1700
      %v1752 = vadd.f32 %v1676, %v1704
      %v1753 = vadd.f32 %v1677, %v1700
      %v1754 = vadd.f32 %v1678, %v1704
      %v1755 = vadd.f32 %v1679, %v1700
      %v1756 = vadd.f32 %v1680, %v1704
      %v1757 = vadd.f32 %v1681, %v1700
      %v1758 = vadd.f32 %v1682, %v1704
      %v1759 = vadd.f32 %v1683, %v1700
      %v1760 = vadd.f32 %v1684, %v1704
      %v1761 = vadd.f32 %v1685, %v1700
      %v1762 = vadd.f32 %v1686, %v1704
      %v1763 = vadd.f32 %v1687, %v1700
      %v1764 = vadd.f32 %v1688, %v1704
      %v1765 = vadd.f32 %v1689, %v1700
      %v1766 = vadd.f32 %v1690, %v1704
      %v1767 = vadd.f32 %v1691, %v1700
      %v1768 = vadd.f32 %v1692, %v1704
      %v1769 = vadd.f32 %v1693, %v1700
      %v1770 = vadd.f32 %v1694, %v1704
      %v1771 = vmax.f32 %v1707, 0.0
      %v1772 = vmax.f32 %v1708, 0.0
      %v1773 = vmax.f32 %v1709, 0.0
      %v1774 = vmax.f32 %v1710, 0.0
      %v1775 = vmax.f32 %v1711, 0.0
      %v1776 = vmax.f32 %v1712, 0.0
      %v1777 = vmax.f32 %v1713, 0.0
      %v1778 = vmax.f32 %v1714, 0.0
      %v1779 = vmax.f32 %v1715, 0.0
      %v1780 = vmax.f32 %v1716, 0.0
      %v1781 = vmax.f32 %v1717, 0.0
      %v1782 = vmax.f32 %v1718, 0.0
      %v1783 = vmax.f32 %v1719, 0.0
      %v1784 = vmax.f32 %v1720, 0.0
      %v1785 = vmax.f32 %v1721, 0.0
      %v1786 = vmax.f32 %v1722, 0.0
      %v1787 = vmax.f32 %v1723, 0.0
      %v1788 = vmax.f32 %v1724, 0.0
      %v1789 = vmax.f32 %v1725, 0.0
      %v1790 = vmax.f32 %v1726, 0.0
      %v1791 = vmax.f32 %v1727, 0.0
      %v1792 = vmax.f32 %v1728, 0.0
      %v1793 = vmax.f32 %v1729, 0.0
      %v1794 = vmax.f32 %v1730, 0.0
      %v1795 = vmax.f32 %v1731, 0.0
      %v1796 = vmax.f32 %v1732, 0.0
      %v1797 = vmax.f32 %v1733, 0.0
      %v1798 = vmax.f32 %v1734, 0.0
      %v1799 = vmax.f32 %v1735, 0.0
      %v1800 = vmax.f32 %v1736, 0.0
      %v1801 = vmax.f32 %v1737, 0.0
      %v1802 = vmax.f32 %v1738, 0.0
      %v1803 = vmax.f32 %v1739, 0.0
      %v1804 = vmax.f32 %v1740, 0.0
      %v1805 = vmax.f32 %v1741, 0.0
      %v1806 = vmax.f32 %v1742, 0.0
      %v1807 = vmax.f32 %v1743, 0.0
      %v1808 = vmax.f32 %v1744, 0.0
      %v1809 = vmax.f32 %v1745, 0.0
      %v1810 = vmax.f32 %v1746, 0.0
      %v1811 = vmax.f32 %v1747, 0.0
      %v1812 = vmax.f32 %v1748, 0.0
      %v1813 = vmax.f32 %v1749, 0.0
      %v1814 = vmax.f32 %v1750, 0.0
      %v1815 = vmax.f32 %v1751, 0.0
      %v1816 = vmax.f32 %v1752, 0.0
      %v1817 = vmax.f32 %v1753, 0.0
      %v1818 = vmax.f32 %v1754, 0.0
      %v1819 = vmax.f32 %v1755, 0.0
      %v1820 = vmax.f32 %v1756, 0.0
      %v1821 = vmax.f32 %v1757, 0.0
      %v1822 = vmax.f32 %v1758, 0.0
      %v1823 = vmax.f32 %v1759, 0.0
      %v1824 = vmax.f32 %v1760, 0.0
      %v1825 = vmax.f32 %v1761, 0.0
      %v1826 = vmax.f32 %v1762, 0.0
      %v1827 = vmax.f32 %v1763, 0.0
      %v1828 = vmax.f32 %v1764, 0.0
      %v1829 = vmax.f32 %v1765, 0.0
      %v1830 = vmax.f32 %v1766, 0.0
      %v1831 = vmax.f32 %v1767, 0.0
      %v1832 = vmax.f32 %v1768, 0.0
      %v1833 = vmax.f32 %v1769, 0.0
      %v1834 = vmax.f32 %v1770, 0.0
      %1835 = vst [vmem:[%s240] sm:$0xff] %v1771
      %1836 = vst.msk [vmem:[%s240 + $0x8] sm:$0xff] %vm516, %v1772
      %1837 = vst [vmem:[%s240 + $0x10] sm:$0xff] %v1773
      %1838 = vst.msk [vmem:[%s240 + $0x18] sm:$0xff] %vm516, %v1774
      %1839 = vst [vmem:[%s240 + $0x20] sm:$0xff] %v1775
      %1840 = vst.msk [vmem:[%s240 + $0x28] sm:$0xff] %vm516, %v1776
      %1841 = vst [vmem:[%s240 + $0x30] sm:$0xff] %v1777
      %1842 = vst.msk [vmem:[%s240 + $0x38] sm:$0xff] %vm516, %v1778
      %1843 = vst [vmem:[%s240 + $0x40] sm:$0xff] %v1779
      %1844 = vst.msk [vmem:[%s240 + $0x48] sm:$0xff] %vm516, %v1780
      %1845 = vst [vmem:[%s240 + $0x50] sm:$0xff] %v1781
      %1846 = vst.msk [vmem:[%s240 + $0x58] sm:$0xff] %vm516, %v1782
      %1847 = vst [vmem:[%s240 + $0x60] sm:$0xff] %v1783
      %1848 = vst.msk [vmem:[%s240 + $0x68] sm:$0xff] %vm516, %v1784
      %1849 = vst [vmem:[%s240 + $0x70] sm:$0xff] %v1785
      %1850 = vst.msk [vmem:[%s240 + $0x78] sm:$0xff] %vm516, %v1786
      %1851 = vst [vmem:[%s240 + $0x80] sm:$0xff] %v1787
      %1852 = vst.msk [vmem:[%s240 + $0x88] sm:$0xff] %vm516, %v1788
      %1853 = vst [vmem:[%s240 + $0x90] sm:$0xff] %v1789
      %1854 = vst.msk [vmem:[%s240 + $0x98] sm:$0xff] %vm516, %v1790
      %1855 = vst [vmem:[%s240 + $0xa0] sm:$0xff] %v1791
      %1856 = vst.msk [vmem:[%s240 + $0xa8] sm:$0xff] %vm516, %v1792
      %1857 = vst [vmem:[%s240 + $0xb0] sm:$0xff] %v1793
      %1858 = vst.msk [vmem:[%s240 + $0xb8] sm:$0xff] %vm516, %v1794
      %1859 = vst [vmem:[%s240 + $0xc0] sm:$0xff] %v1795
      %1860 = vst.msk [vmem:[%s240 + $0xc8] sm:$0xff] %vm516, %v1796
      %1861 = vst [vmem:[%s240 + $0xd0] sm:$0xff] %v1797
      %1862 = vst.msk [vmem:[%s240 + $0xd8] sm:$0xff] %vm516, %v1798
      %1863 = vst [vmem:[%s240 + $0xe0] sm:$0xff] %v1799
      %1864 = vst.msk [vmem:[%s240 + $0xe8] sm:$0xff] %vm516, %v1800
      %1865 = vst [vmem:[%s240 + $0xf0] sm:$0xff] %v1801
      %1866 = vst.msk [vmem:[%s240 + $0xf8] sm:$0xff] %vm516, %v1802
      %1867 = vst [vmem:[%s240 + $0x100] sm:$0xff] %v1803
      %1868 = vst.msk [vmem:[%s240 + $0x108] sm:$0xff] %vm516, %v1804
      %1869 = vst [vmem:[%s240 + $0x110] sm:$0xff] %v1805
      %1870 = vst.msk [vmem:[%s240 + $0x118] sm:$0xff] %vm516, %v1806
      %1871 = vst [vmem:[%s240 + $0x120] sm:$0xff] %v1807
      %1872 = vst.msk [vmem:[%s240 + $0x128] sm:$0xff] %vm516, %v1808
      %1873 = vst [vmem:[%s240 + $0x130] sm:$0xff] %v1809
      %1874 = vst.msk [vmem:[%s240 + $0x138] sm:$0xff] %vm516, %v1810
      %1875 = vst [vmem:[%s240 + $0x140] sm:$0xff] %v1811
      %1876 = vst.msk [vmem:[%s240 + $0x148] sm:$0xff] %vm516, %v1812
      %1877 = vst [vmem:[%s240 + $0x150] sm:$0xff] %v1813
      %1878 = vst.msk [vmem:[%s240 + $0x158] sm:$0xff] %vm516, %v1814
      %1879 = vst [vmem:[%s240 + $0x160] sm:$0xff] %v1815
      %1880 = vst.msk [vmem:[%s240 + $0x168] sm:$0xff] %vm516, %v1816
      %1881 = vst [vmem:[%s240 + $0x170] sm:$0xff] %v1817
      %1882 = vst.msk [vmem:[%s240 + $0x178] sm:$0xff] %vm516, %v1818
      %1883 = vst [vmem:[%s240 + $0x180] sm:$0xff] %v1819
      %1884 = vst.msk [vmem:[%s240 + $0x188] sm:$0xff] %vm516, %v1820
      %1885 = vst [vmem:[%s240 + $0x190] sm:$0xff] %v1821
      %1886 = vst.msk [vmem:[%s240 + $0x198] sm:$0xff] %vm516, %v1822
      %1887 = vst [vmem:[%s240 + $0x1a0] sm:$0xff] %v1823
      %1888 = vst.msk [vmem:[%s240 + $0x1a8] sm:$0xff] %vm516, %v1824
      %1889 = vst [vmem:[%s240 + $0x1b0] sm:$0xff] %v1825
      %1890 = vst.msk [vmem:[%s240 + $0x1b8] sm:$0xff] %vm516, %v1826
      %1891 = vst [vmem:[%s240 + $0x1c0] sm:$0xff] %v1827
      %1892 = vst.msk [vmem:[%s240 + $0x1c8] sm:$0xff] %vm516, %v1828
      %1893 = vst [vmem:[%s240 + $0x1d0] sm:$0xff] %v1829
      %1894 = vst.msk [vmem:[%s240 + $0x1d8] sm:$0xff] %vm516, %v1830
      %1895 = vst [vmem:[%s240 + $0x1e0] sm:$0xff] %v1831
      %1896 = vst.msk [vmem:[%s240 + $0x1e8] sm:$0xff] %vm516, %v1832
      %1897 = vst [vmem:[%s240 + $0x1f0] sm:$0xff] %v1833
      %1898 = vst.msk [vmem:[%s240 + $0x1f8] sm:$0xff] %vm516, %v1834
      %s1899 = smul.u32 8, %s20
      %p1900 = scmp.lt.s32.totalorder %s19, 1
      %s1901 = scalar_select %p1900, %s19, 1
      %p1902 = scmp.lt.s32.totalorder %s1899, 7
      %s1903 = scalar_select %p1902, %s1899, 7
      %s1904 = smul.addr %s1903, 2
      %s1905 = smul.addr %s1901, 64
      %s1906 = sadd.s32 %s1904, %s1905
      %s1907 = smul.addr %s1906, 8
      %s1908 = scalar_lea.vmem %s4, %s1907
      // Predicated region
      $region37: #{mixed_3c.8} parent=35 // pred_check
        %p1909 = pneg %p138
      $region38: #{mixed_3c.8} parent=35 // pred_check_branch
        %1911 = sbr.rel (%p1909) target = $region40
      $region39: #{mixed_3c.8} parent=35 // pred_region
        %s1912 = smul.u32 8, %s20
      $region40: #{mixed_3c.8} parent=35 // pred_fallthru
        _
    $region36: #{mixed_3c.8} parent=5 // pred_fallthru
      _
    %p1913 = scmp.le.s32.totalorder 2, %s10
    // Predicated region
    $region41: #{mixed_3c.8} parent=5 // pred_check
      %p1914 = pneg %p1913
    $region42: #{mixed_3c.8} parent=5 // pred_check_branch
      %1916 = sbr.rel (%p1914) target = $region44
    $region43: #{mixed_3c.8} parent=5 // pred_region
      %s1917 = ssub.s32 %s10, 2
      // Predicated region
      $region45: #{mixed_3c.8} parent=43 // pred_check
        %p1918 = pneg %p144
      $region46: #{mixed_3c.8} parent=43 // pred_check_branch
        %1920 = sbr.rel (%p1918) target = $region48
      $region47: #{mixed_3c.8} parent=43 // pred_region
        %s1921 = smul.u32 8, %s22
        %p1922 = scmp.lt.s32.totalorder %s21, 1
        %s1923 = scalar_select %p1922, %s21, 1
        %p1924 = scmp.lt.s32.totalorder %s1921, 7
        %s1925 = scalar_select %p1924, %s1921, 7
        %s1926 = smul.addr %s1925, 2
        %s1927 = smul.addr %s1923, 64
        %s1928 = sadd.s32 %s1926, %s1927
        %s1929 = smul.addr %s1928, 8
        %s1930 = scalar_lea.vmem %s4, %s1929
      $region48: #{mixed_3c.8} parent=43 // pred_fallthru
        _
    $region44: #{mixed_3c.8} parent=5 // pred_fallthru
      _
  $region6: #{mixed_3c.8} parent=0 // loop_footer
    %s14 = sadd.s32 1, %s10
  $region7: #{mixed_3c.8} parent=0 // loop_footer_branch
    %9 = sbr.rel target = $region3
  $region8: #{mixed_3c.8} parent=0 // loop_exit
    _

// kernel: mixed_3c.7
$region0: #{mixed_3c.7}
  #allocation0 [shape = 'u32[]', space=smem, size = 0x4, offset = 0x4, fixed_abs, tag = 'smem constant byte address 0x4 - core index']
  #allocation1 [shape = 'u32[144,128]{1,0:T(1,128)}', space=vmem, size = 0x12000, scoped, tag = 'internal scratch']
  %s0 = inlined_call_operand.vmem [shape: bf16[8,8,8,128], index: 0, kind: input, shape index: {}]
  %s1 = inlined_call_operand.vmem [shape: bf16[1152,192], index: 1, kind: input, shape index: {}]
  %s2 = inlined_call_operand.vmem [shape: f32[1,192], index: 2, kind: input, shape index: {}]
  %s3 = inlined_call_operand.vmem [shape: f32[1,192], index: 3, kind: input, shape index: {}]
  %s4 = inlined_call_operand.vmem [shape: bf16[8,8,8,192], index: 4, kind: output, shape index: {}]
  %s5 = sld [smem:[#allocation0]]
  $region49: #{mixed_3c.7} parent=0
    _
  %s7 = ssub.s32 1, %s5
  %s8 = scalar_select 0, %s7, %s5
  loop: start=0, step=1, limit=4
  $region2: #{mixed_3c.7} parent=0 // loop_pre_header
    _
  $region3: #{mixed_3c.7} parent=0 // loop_header
    %s10 = sphi 0, %s14
    %p11 = scmp.ge.s32.totalorder %s10, 4
    %s20 = sphi 0, %s22
    %s23 = sphi 0, %s20
    %s24 = sphi 0, %s23
    %s40 = sphi 0, %s24
    %s44 = sphi 0, %s44
    %s46 = sphi 0, %s44
    %s47 = sphi 0, %s46
    %s61 = sphi 0, %s47
    %s65 = sphi 0, %s65
    %s67 = sphi 0, %s65
    %s68 = sphi 0, %s67
    %s82 = sphi 0, %s68
    %s86 = sphi 0, %s86
    %s88 = sphi 0, %s86
    %s89 = sphi 0, %s88
    %s103 = sphi 0, %s89
    %s109 = sphi 0, %s111
    %s112 = sphi 0, %s109
    %s113 = sphi 0, %s112
    %s129 = sphi 0, %s113
  $region4: #{mixed_3c.7} parent=0 // loop_header_branch
    %13 = sbr.rel (%p11) target = $region8
  $region5: #{mixed_3c.7} parent=0 // loop_body
    %s15 = ssub.s32 %s10, 1
    %s16 = ssub.s32 %s10, 2
    %s17 = sadd.s32 %s10, 1
    %s18 = ssub.s32 %s10, %s17
    %p19 = scmp.eq.s32.totalorder %s18, 0
    %s21 = sadd.s32 %s20, 1
    %s22 = scalar_select %p19, %s20, %s21
    %p25 = pneg %p19
    %p26 = scmp.eq.s32.totalorder %s10, 1
    %p27 = por %p25, %p26
    %p28 = scmp.ne.s32.totalorder %s20, %s23
    %p29 = scmp.eq.s32.totalorder %s10, 0
    %p30 = por %p28, %p29
    %p31 = scmp.ne.s32.totalorder %s20, %s23
    %p32 = scmp.eq.s32.totalorder %s15, 1
    %p33 = por %p31, %p32
    %p34 = scmp.ne.s32.totalorder %s23, %s24
    %p35 = scmp.eq.s32.totalorder %s15, 0
    %p36 = por %p34, %p35
    %p37 = scmp.ne.s32.totalorder %s23, %s24
    %p38 = scmp.eq.s32.totalorder %s16, 1
    %p39 = por %p37, %p38
    %p41 = scmp.ne.s32.totalorder %s24, %s40
    %p42 = scmp.eq.s32.totalorder %s16, 0
    %p43 = por %p41, %p42
    %s45 = sadd.s32 %s44, 1
    %p48 = scmp.eq.s32.totalorder %s10, 1
    %p49 = scmp.ne.s32.totalorder %s44, %s46
    %p50 = scmp.eq.s32.totalorder %s10, 0
    %p51 = por %p49, %p50
    %p52 = scmp.ne.s32.totalorder %s44, %s46
    %p53 = scmp.eq.s32.totalorder %s15, 1
    %p54 = por %p52, %p53
    %p55 = scmp.ne.s32.totalorder %s46, %s47
    %p56 = scmp.eq.s32.totalorder %s15, 0
    %p57 = por %p55, %p56
    %p58 = scmp.ne.s32.totalorder %s46, %s47
    %p59 = scmp.eq.s32.totalorder %s16, 1
    %p60 = por %p58, %p59
    %p62 = scmp.ne.s32.totalorder %s47, %s61
    %p63 = scmp.eq.s32.totalorder %s16, 0
    %p64 = por %p62, %p63
    %s66 = sadd.s32 %s65, 1
    %p69 = scmp.eq.s32.totalorder %s10, 1
    %p70 = scmp.ne.s32.totalorder %s65, %s67
    %p71 = scmp.eq.s32.totalorder %s10, 0
    %p72 = por %p70, %p71
    %p73 = scmp.ne.s32.totalorder %s65, %s67
    %p74 = scmp.eq.s32.totalorder %s15, 1
    %p75 = por %p73, %p74
    %p76 = scmp.ne.s32.totalorder %s67, %s68
    %p77 = scmp.eq.s32.totalorder %s15, 0
    %p78 = por %p76, %p77
    %p79 = scmp.ne.s32.totalorder %s67, %s68
    %p80 = scmp.eq.s32.totalorder %s16, 1
    %p81 = por %p79, %p80
    %p83 = scmp.ne.s32.totalorder %s68, %s82
    %p84 = scmp.eq.s32.totalorder %s16, 0
    %p85 = por %p83, %p84
    %s87 = sadd.s32 %s86, 1
    %p90 = scmp.eq.s32.totalorder %s10, 1
    %p91 = scmp.ne.s32.totalorder %s86, %s88
    %p92 = scmp.eq.s32.totalorder %s10, 0
    %p93 = por %p91, %p92
    %p94 = scmp.ne.s32.totalorder %s86, %s88
    %p95 = scmp.eq.s32.totalorder %s15, 1
    %p96 = por %p94, %p95
    %p97 = scmp.ne.s32.totalorder %s88, %s89
    %p98 = scmp.eq.s32.totalorder %s15, 0
    %p99 = por %p97, %p98
    %p100 = scmp.ne.s32.totalorder %s88, %s89
    %p101 = scmp.eq.s32.totalorder %s16, 1
    %p102 = por %p100, %p101
    %p104 = scmp.ne.s32.totalorder %s89, %s103
    %p105 = scmp.eq.s32.totalorder %s16, 0
    %p106 = por %p104, %p105
    %s107 = ssub.s32 %s10, %s17
    %p108 = scmp.eq.s32.totalorder %s107, 0
    %s110 = sadd.s32 %s109, 1
    %s111 = scalar_select %p108, %s109, %s110
    %p114 = pneg %p108
    %p115 = scmp.eq.s32.totalorder %s10, 1
    %p116 = por %p114, %p115
    %p117 = scmp.ne.s32.totalorder %s109, %s112
    %p118 = scmp.eq.s32.totalorder %s10, 0
    %p119 = por %p117, %p118
    %p120 = scmp.ne.s32.totalorder %s109, %s112
    %p121 = scmp.eq.s32.totalorder %s15, 1
    %p122 = por %p120, %p121
    %p123 = scmp.ne.s32.totalorder %s112, %s113
    %p124 = scmp.eq.s32.totalorder %s15, 0
    %p125 = por %p123, %p124
    %p126 = scmp.ne.s32.totalorder %s112, %s113
    %p127 = scmp.eq.s32.totalorder %s16, 1
    %p128 = por %p126, %p127
    %p130 = scmp.ne.s32.totalorder %s113, %s129
    %p131 = scmp.eq.s32.totalorder %s16, 0
    %p132 = por %p130, %p131
    %p133 = scmp.le.s32.totalorder 1, %s10
    %p134 = scmp.lt.s32.totalorder %s10, 3
    %p135 = pnand %p133, %p134
    %p136 = pneg %p135
    // Predicated region
    $region9: #{mixed_3c.7} parent=5 // pred_check
      _
    $region10: #{mixed_3c.7} parent=5 // pred_check_branch
      %138 = sbr.rel (%p135) target = $region12
    $region11: #{mixed_3c.7} parent=5 // pred_region
      %s139 = ssub.s32 %s10, 1
      // Predicated region
      $region13: #{mixed_3c.7} parent=11 // pred_check
        %p140 = pneg %p57
      $region14: #{mixed_3c.7} parent=11 // pred_check_branch
        %142 = sbr.rel (%p140) target = $region16
      $region15: #{mixed_3c.7} parent=11 // pred_region
        _
      $region16: #{mixed_3c.7} parent=11 // pred_fallthru
        _
      // Predicated region
      $region17: #{mixed_3c.7} parent=11 // pred_check
        %p143 = pneg %p78
      $region18: #{mixed_3c.7} parent=11 // pred_check_branch
        %145 = sbr.rel (%p143) target = $region20
      $region19: #{mixed_3c.7} parent=11 // pred_region
        _
      $region20: #{mixed_3c.7} parent=11 // pred_fallthru
        _
      // Predicated region
      $region21: #{mixed_3c.7} parent=11 // pred_check
        %p146 = pneg %p99
      $region22: #{mixed_3c.7} parent=11 // pred_check_branch
        %148 = sbr.rel (%p146) target = $region24
      $region23: #{mixed_3c.7} parent=11 // pred_region
        _
      $region24: #{mixed_3c.7} parent=11 // pred_fallthru
        _
    $region12: #{mixed_3c.7} parent=5 // pred_fallthru
      _
    %p149 = scmp.lt.s32.totalorder %s10, 2
    // Predicated region
    $region25: #{mixed_3c.7} parent=5 // pred_check
      %p150 = pneg %p149
    $region26: #{mixed_3c.7} parent=5 // pred_check_branch
      %152 = sbr.rel (%p150) target = $region28
    $region27: #{mixed_3c.7} parent=5 // pred_region
      // Predicated region
      $region29: #{mixed_3c.7} parent=27 // pred_check
        %p153 = pneg %p30
      $region30: #{mixed_3c.7} parent=27 // pred_check_branch
        %155 = sbr.rel (%p153) target = $region32
      $region31: #{mixed_3c.7} parent=27 // pred_region
        %s156 = smul.u32 4, %s10
        %p157 = scmp.lt.s32.totalorder %s156, 7
        %s158 = scalar_select %p157, %s156, 7
        %s159 = smul.addr %s158, 8
        %s160 = smul.addr %s159, 4
        %s161 = scalar_lea.vmem %s0, %s160
        %s162 = smul.u32 4, %s10
      $region32: #{mixed_3c.7} parent=27 // pred_fallthru
        _
    $region28: #{mixed_3c.7} parent=5 // pred_fallthru
      _
    %p163 = scmp.le.s32.totalorder 1, %s10
    %p164 = scmp.lt.s32.totalorder %s10, 3
    %p165 = pnand %p163, %p164
    %p166 = pneg %p165
    // Predicated region
    $region33: #{mixed_3c.7} parent=5 // pred_check
      _
    $region34: #{mixed_3c.7} parent=5 // pred_check_branch
      %168 = sbr.rel (%p165) target = $region36
    $region35: #{mixed_3c.7} parent=5 // pred_region
      %s169 = ssub.s32 %s10, 1
      %s170 = smul.u32 4, %s15
      %p171 = scmp.lt.s32.totalorder %s170, 7
      %s172 = scalar_select %p171, %s170, 7
      %s173 = smul.addr %s172, 8
      %s174 = smul.addr %s173, 4
      %s175 = scalar_lea.vmem %s0, %s174
      %p176 = pneg %p36
      %p177 = pneg %p33
      %p178 = pneg %p57
      %p179 = pneg %p54
      %p180 = pneg %p78
      %p181 = pneg %p75
      %p182 = pneg %p99
      %p183 = pneg %p96
      %p184 = pneg %p125
      %p185 = pneg %p122
      %s186 = smul.u32 4, %s15
      %p187 = scmp.lt.s32.totalorder %s186, 7
      %s188 = scalar_select %p187, %s186, 7
      %s189 = smul.addr %s188, 16
      %s190 = smul.addr %s189, 4
      %s191 = scalar_lea.vmem %s4, %s190
      %s192 = smul.u32 4, %s15
      %p193 = scmp.lt.s32.totalorder %s192, 7
      %s194 = scalar_select %p193, %s192, 7
      %s195 = smul.addr %s194, 8
      %s196 = smul.addr %s195, 4
      %s197 = scalar_lea.vmem %s0, %s196
      %s198 = smul.u32 4, %s15
      %s199 = smul.u32 4, %s15
      %p200 = scmp.lt.s32.totalorder %s199, 7
      %s201 = scalar_select %p200, %s199, 7
      %s202 = smul.addr %s201, 16
      %s203 = smul.addr %s202, 4
      %s204 = scalar_lea.vmem %s4, %s203
      %s205 = smul.u32 4, %s15
      %v207 = vld [vmem:[%s197] sm:$0xf]
      %v208 = vld [vmem:[%s197 + $0x4] sm:$0xf]
      %v209 = vld [vmem:[%s197 + $0x8] sm:$0xf]
      %v210 = vld [vmem:[%s197 + $0xc] sm:$0xf]
      %v211 = vld [vmem:[%s197 + $0x10] sm:$0xf]
      %v212 = vld [vmem:[%s197 + $0x14] sm:$0xf]
      %v213 = vld [vmem:[%s197 + $0x18] sm:$0xf]
      %v214 = vld [vmem:[%s197 + $0x1c] sm:$0xf]
      %v215 = vld [vmem:[%s197 + $0x20] sm:$0xf]
      %v216 = vld [vmem:[%s197 + $0x24] sm:$0xf]
      %v217 = vld [vmem:[%s197 + $0x28] sm:$0xf]
      %v218 = vld [vmem:[%s197 + $0x2c] sm:$0xf]
      %v219 = vld [vmem:[%s197 + $0x30] sm:$0xf]
      %v220 = vld [vmem:[%s197 + $0x34] sm:$0xf]
      %v221 = vld [vmem:[%s197 + $0x38] sm:$0xf]
      %v222 = vld [vmem:[%s197 + $0x3c] sm:$0xf]
      %v223 = vld [vmem:[%s197 + $0x40] sm:$0xf]
      %v224 = vld [vmem:[%s197 + $0x44] sm:$0xf]
      %v225 = vld [vmem:[%s197 + $0x48] sm:$0xf]
      %v226 = vld [vmem:[%s197 + $0x4c] sm:$0xf]
      %v227 = vld [vmem:[%s197 + $0x50] sm:$0xf]
      %v228 = vld [vmem:[%s197 + $0x54] sm:$0xf]
      %v229 = vld [vmem:[%s197 + $0x58] sm:$0xf]
      %v230 = vld [vmem:[%s197 + $0x5c] sm:$0xf]
      %v231 = vld [vmem:[%s197 + $0x60] sm:$0xf]
      %v232 = vld [vmem:[%s197 + $0x64] sm:$0xf]
      %v233 = vld [vmem:[%s197 + $0x68] sm:$0xf]
      %v234 = vld [vmem:[%s197 + $0x6c] sm:$0xf]
      %v235 = vld [vmem:[%s197 + $0x70] sm:$0xf]
      %v236 = vld [vmem:[%s197 + $0x74] sm:$0xf]
      %v237 = vld [vmem:[%s197 + $0x78] sm:$0xf]
      %v238 = vld [vmem:[%s197 + $0x7c] sm:$0xf]
      %v271 = vunpack.c.l.b16 %v207
      %v272 = vunpack.c.l.b16 %v208
      %v273 = vunpack.c.l.b16 %v209
      %v274 = vunpack.c.l.b16 %v210
      %v275 = vunpack.c.l.b16 %v211
      %v276 = vunpack.c.l.b16 %v212
      %v277 = vunpack.c.l.b16 %v213
      %v278 = vunpack.c.l.b16 %v214
      %v279 = vunpack.c.l.b16 %v215
      %v280 = vunpack.c.l.b16 %v216
      %v281 = vunpack.c.l.b16 %v217
      %v282 = vunpack.c.l.b16 %v218
      %v283 = vunpack.c.l.b16 %v219
      %v284 = vunpack.c.l.b16 %v220
      %v285 = vunpack.c.l.b16 %v221
      %v286 = vunpack.c.l.b16 %v222
      %v287 = vunpack.c.l.b16 %v223
      %v288 = vunpack.c.l.b16 %v224
      %v289 = vunpack.c.l.b16 %v225
      %v290 = vunpack.c.l.b16 %v226
      %v291 = vunpack.c.l.b16 %v227
      %v292 = vunpack.c.l.b16 %v228
      %v293 = vunpack.c.l.b16 %v229
      %v294 = vunpack.c.l.b16 %v230
      %v295 = vunpack.c.l.b16 %v231
      %v296 = vunpack.c.l.b16 %v232
      %v297 = vunpack.c.l.b16 %v233
      %v298 = vunpack.c.l.b16 %v234
      %v299 = vunpack.c.l.b16 %v235
      %v300 = vunpack.c.l.b16 %v236
      %v301 = vunpack.c.l.b16 %v237
      %v302 = vunpack.c.l.b16 %v238
      %v303 = vpack.c.b16 %v271, %v271
      %v304 = vpack.c.b16 %v272, %v272
      %v305 = vpack.c.b16 %v273, %v273
      %v306 = vpack.c.b16 %v274, %v274
      %v307 = vpack.c.b16 %v275, %v275
      %v308 = vpack.c.b16 %v276, %v276
      %v309 = vpack.c.b16 %v277, %v277
      %v310 = vpack.c.b16 %v278, %v278
      %v311 = vpack.c.b16 %v279, %v279
      %v312 = vpack.c.b16 %v280, %v280
      %v313 = vpack.c.b16 %v281, %v281
      %v314 = vpack.c.b16 %v282, %v282
      %v315 = vpack.c.b16 %v283, %v283
      %v316 = vpack.c.b16 %v284, %v284
      %v317 = vpack.c.b16 %v285, %v285
      %v318 = vpack.c.b16 %v286, %v286
      %v319 = vpack.c.b16 %v287, %v287
      %v320 = vpack.c.b16 %v288, %v288
      %v321 = vpack.c.b16 %v289, %v289
      %v322 = vpack.c.b16 %v290, %v290
      %v323 = vpack.c.b16 %v291, %v291
      %v324 = vpack.c.b16 %v292, %v292
      %v325 = vpack.c.b16 %v293, %v293
      %v326 = vpack.c.b16 %v294, %v294
      %v327 = vpack.c.b16 %v295, %v295
      %v328 = vpack.c.b16 %v296, %v296
      %v329 = vpack.c.b16 %v297, %v297
      %v330 = vpack.c.b16 %v298, %v298
      %v331 = vpack.c.b16 %v299, %v299
      %v332 = vpack.c.b16 %v300, %v300
      %v333 = vpack.c.b16 %v301, %v301
      %v334 = vpack.c.b16 %v302, %v302
      %v336 = vshrl.u32 %v303, 16
      %v338 = vrot.slane %v336, 7
      %v339 = vshll.u32 %v303, 16
      %v341 = vor.u32 %v338, %v339
      %v343 = vshrl.u32 %v304, 16
      %v345 = vrot.slane %v343, 7
      %v346 = vshll.u32 %v304, 16
      %v348 = vor.u32 %v345, %v346
      %v350 = vshrl.u32 %v305, 16
      %v352 = vrot.slane %v350, 7
      %v353 = vshll.u32 %v305, 16
      %v355 = vor.u32 %v352, %v353
      %v357 = vshrl.u32 %v306, 16
      %v359 = vrot.slane %v357, 7
      %v360 = vshll.u32 %v306, 16
      %v362 = vor.u32 %v359, %v360
      %v364 = vshrl.u32 %v307, 16
      %v366 = vrot.slane %v364, 7
      %v367 = vshll.u32 %v307, 16
      %v369 = vor.u32 %v366, %v367
      %v371 = vshrl.u32 %v308, 16
      %v373 = vrot.slane %v371, 7
      %v374 = vshll.u32 %v308, 16
      %v376 = vor.u32 %v373, %v374
      %v378 = vshrl.u32 %v309, 16
      %v380 = vrot.slane %v378, 7
      %v381 = vshll.u32 %v309, 16
      %v383 = vor.u32 %v380, %v381
      %v385 = vshrl.u32 %v310, 16
      %v387 = vrot.slane %v385, 7
      %v388 = vshll.u32 %v310, 16
      %v390 = vor.u32 %v387, %v388
      %v392 = vshrl.u32 %v311, 16
      %v394 = vrot.slane %v392, 7
      %v395 = vshll.u32 %v311, 16
      %v397 = vor.u32 %v394, %v395
      %v399 = vshrl.u32 %v312, 16
      %v401 = vrot.slane %v399, 7
      %v402 = vshll.u32 %v312, 16
      %v404 = vor.u32 %v401, %v402
      %v406 = vshrl.u32 %v313, 16
      %v408 = vrot.slane %v406, 7
      %v409 = vshll.u32 %v313, 16
      %v411 = vor.u32 %v408, %v409
      %v413 = vshrl.u32 %v314, 16
      %v415 = vrot.slane %v413, 7
      %v416 = vshll.u32 %v314, 16
      %v418 = vor.u32 %v415, %v416
      %v420 = vshrl.u32 %v315, 16
      %v422 = vrot.slane %v420, 7
      %v423 = vshll.u32 %v315, 16
      %v425 = vor.u32 %v422, %v423
      %v427 = vshrl.u32 %v316, 16
      %v429 = vrot.slane %v427, 7
      %v430 = vshll.u32 %v316, 16
      %v432 = vor.u32 %v429, %v430
      %v434 = vshrl.u32 %v317, 16
      %v436 = vrot.slane %v434, 7
      %v437 = vshll.u32 %v317, 16
      %v439 = vor.u32 %v436, %v437
      %v441 = vshrl.u32 %v318, 16
      %v443 = vrot.slane %v441, 7
      %v444 = vshll.u32 %v318, 16
      %v446 = vor.u32 %v443, %v444
      %v448 = vshrl.u32 %v319, 16
      %v450 = vrot.slane %v448, 7
      %v451 = vshll.u32 %v319, 16
      %v453 = vor.u32 %v450, %v451
      %v455 = vshrl.u32 %v320, 16
      %v457 = vrot.slane %v455, 7
      %v458 = vshll.u32 %v320, 16
      %v460 = vor.u32 %v457, %v458
      %v462 = vshrl.u32 %v321, 16
      %v464 = vrot.slane %v462, 7
      %v465 = vshll.u32 %v321, 16
      %v467 = vor.u32 %v464, %v465
      %v469 = vshrl.u32 %v322, 16
      %v471 = vrot.slane %v469, 7
      %v472 = vshll.u32 %v322, 16
      %v474 = vor.u32 %v471, %v472
      %v476 = vshrl.u32 %v323, 16
      %v478 = vrot.slane %v476, 7
      %v479 = vshll.u32 %v323, 16
      %v481 = vor.u32 %v478, %v479
      %v483 = vshrl.u32 %v324, 16
      %v485 = vrot.slane %v483, 7
      %v486 = vshll.u32 %v324, 16
      %v488 = vor.u32 %v485, %v486
      %v490 = vshrl.u32 %v325, 16
      %v492 = vrot.slane %v490, 7
      %v493 = vshll.u32 %v325, 16
      %v495 = vor.u32 %v492, %v493
      %v497 = vshrl.u32 %v326, 16
      %v499 = vrot.slane %v497, 7
      %v500 = vshll.u32 %v326, 16
      %v502 = vor.u32 %v499, %v500
      %v504 = vshrl.u32 %v327, 16
      %v506 = vrot.slane %v504, 7
      %v507 = vshll.u32 %v327, 16
      %v509 = vor.u32 %v506, %v507
      %v511 = vshrl.u32 %v328, 16
      %v513 = vrot.slane %v511, 7
      %v514 = vshll.u32 %v328, 16
      %v516 = vor.u32 %v513, %v514
      %v518 = vshrl.u32 %v329, 16
      %v520 = vrot.slane %v518, 7
      %v521 = vshll.u32 %v329, 16
      %v523 = vor.u32 %v520, %v521
      %v525 = vshrl.u32 %v330, 16
      %v527 = vrot.slane %v525, 7
      %v528 = vshll.u32 %v330, 16
      %v530 = vor.u32 %v527, %v528
      %v532 = vshrl.u32 %v331, 16
      %v534 = vrot.slane %v532, 7
      %v535 = vshll.u32 %v331, 16
      %v537 = vor.u32 %v534, %v535
      %v539 = vshrl.u32 %v332, 16
      %v541 = vrot.slane %v539, 7
      %v542 = vshll.u32 %v332, 16
      %v544 = vor.u32 %v541, %v542
      %v546 = vshrl.u32 %v333, 16
      %v548 = vrot.slane %v546, 7
      %v549 = vshll.u32 %v333, 16
      %v551 = vor.u32 %v548, %v549
      %v553 = vshrl.u32 %v334, 16
      %v555 = vrot.slane %v553, 7
      %v556 = vshll.u32 %v334, 16
      %v558 = vor.u32 %v555, %v556
      %vm591 = vcmask 1040384
      %vm592 = vsmask.f32 256
      %vm593 = vmand %vm591, %vm592
      %v594 = vsel %vm593, 0, %v341
      %v595 = vsel %vm593, 0, %v348
      %v596 = vsel %vm593, 0, %v355
      %v597 = vsel %vm593, 0, %v362
      %v598 = vsel %vm593, 0, %v369
      %v599 = vsel %vm593, 0, %v376
      %v600 = vsel %vm593, 0, %v383
      %v601 = vsel %vm593, 0, %v390
      %v602 = vsel %vm593, 0, %v397
      %v603 = vsel %vm593, 0, %v404
      %v604 = vsel %vm593, 0, %v411
      %v605 = vsel %vm593, 0, %v418
      %v606 = vsel %vm593, 0, %v425
      %v607 = vsel %vm593, 0, %v432
      %v608 = vsel %vm593, 0, %v439
      %v609 = vsel %vm593, 0, %v446
      %v610 = vsel %vm593, 0, %v453
      %v611 = vsel %vm593, 0, %v460
      %v612 = vsel %vm593, 0, %v467
      %v613 = vsel %vm593, 0, %v474
      %v614 = vsel %vm593, 0, %v481
      %v615 = vsel %vm593, 0, %v488
      %v616 = vsel %vm593, 0, %v495
      %v617 = vsel %vm593, 0, %v502
      %v618 = vsel %vm593, 0, %v509
      %v619 = vsel %vm593, 0, %v516
      %v620 = vsel %vm593, 0, %v523
      %v621 = vsel %vm593, 0, %v530
      %v622 = vsel %vm593, 0, %v537
      %v623 = vsel %vm593, 0, %v544
      %v624 = vsel %vm593, 0, %v551
      %v625 = vsel %vm593, 0, %v558
      %vm626 = vcmask 1044480
      %vm627 = vsmask.f32 4352
      %vm628 = vmand %vm626, %vm627
      %v629 = vsel %vm628, %v594, 0
      %v630 = vsel %vm628, %v595, 0
      %v631 = vsel %vm628, %v596, 0
      %v632 = vsel %vm628, %v597, 0
      %v633 = vsel %vm628, %v598, 0
      %v634 = vsel %vm628, %v599, 0
      %v635 = vsel %vm628, %v600, 0
      %v636 = vsel %vm628, %v601, 0
      %v637 = vsel %vm628, %v602, 0
      %v638 = vsel %vm628, %v603, 0
      %v639 = vsel %vm628, %v604, 0
      %v640 = vsel %vm628, %v605, 0
      %v641 = vsel %vm628, %v606, 0
      %v642 = vsel %vm628, %v607, 0
      %v643 = vsel %vm628, %v608, 0
      %v644 = vsel %vm628, %v609, 0
      %v645 = vsel %vm628, %v610, 0
      %v646 = vsel %vm628, %v611, 0
      %v647 = vsel %vm628, %v612, 0
      %v648 = vsel %vm628, %v613, 0
      %v649 = vsel %vm628, %v614, 0
      %v650 = vsel %vm628, %v615, 0
      %v651 = vsel %vm628, %v616, 0
      %v652 = vsel %vm628, %v617, 0
      %v653 = vsel %vm628, %v618, 0
      %v654 = vsel %vm628, %v619, 0
      %v655 = vsel %vm628, %v620, 0
      %v656 = vsel %vm628, %v621, 0
      %v657 = vsel %vm628, %v622, 0
      %v658 = vsel %vm628, %v623, 0
      %v659 = vsel %vm628, %v624, 0
      %v660 = vsel %vm628, %v625, 0
      %v662 = vshrl.u32 0, 16
      %v664 = vshll.u32 0, 16
      %v666 = vrot.slane %v664, 1
      %v667 = vor.u32 %v662, %v666
      %v669 = vshrl.u32 %v629, 16
      %v671 = vshll.u32 %v629, 16
      %v673 = vrot.slane %v671, 1
      %v674 = vor.u32 %v669, %v673
      %v676 = vshrl.u32 %v630, 16
      %v678 = vshll.u32 %v630, 16
      %v680 = vrot.slane %v678, 1
      %v681 = vor.u32 %v676, %v680
      %v683 = vshrl.u32 %v631, 16
      %v685 = vshll.u32 %v631, 16
      %v687 = vrot.slane %v685, 1
      %v688 = vor.u32 %v683, %v687
      %v690 = vshrl.u32 %v632, 16
      %v692 = vshll.u32 %v632, 16
      %v694 = vrot.slane %v692, 1
      %v695 = vor.u32 %v690, %v694
      %v697 = vshrl.u32 %v633, 16
      %v699 = vshll.u32 %v633, 16
      %v701 = vrot.slane %v699, 1
      %v702 = vor.u32 %v697, %v701
      %v704 = vshrl.u32 %v634, 16
      %v706 = vshll.u32 %v634, 16
      %v708 = vrot.slane %v706, 1
      %v709 = vor.u32 %v704, %v708
      %v711 = vshrl.u32 %v635, 16
      %v713 = vshll.u32 %v635, 16
      %v715 = vrot.slane %v713, 1
      %v716 = vor.u32 %v711, %v715
      %v718 = vshrl.u32 %v637, 16
      %v720 = vshll.u32 %v637, 16
      %v722 = vrot.slane %v720, 1
      %v723 = vor.u32 %v718, %v722
      %v725 = vshrl.u32 %v638, 16
      %v727 = vshll.u32 %v638, 16
      %v729 = vrot.slane %v727, 1
      %v730 = vor.u32 %v725, %v729
      %v732 = vshrl.u32 %v639, 16
      %v734 = vshll.u32 %v639, 16
      %v736 = vrot.slane %v734, 1
      %v737 = vor.u32 %v732, %v736
      %v739 = vshrl.u32 %v640, 16
      %v741 = vshll.u32 %v640, 16
      %v743 = vrot.slane %v741, 1
      %v744 = vor.u32 %v739, %v743
      %v746 = vshrl.u32 %v641, 16
      %v748 = vshll.u32 %v641, 16
      %v750 = vrot.slane %v748, 1
      %v751 = vor.u32 %v746, %v750
      %v753 = vshrl.u32 %v642, 16
      %v755 = vshll.u32 %v642, 16
      %v757 = vrot.slane %v755, 1
      %v758 = vor.u32 %v753, %v757
      %v760 = vshrl.u32 %v643, 16
      %v762 = vshll.u32 %v643, 16
      %v764 = vrot.slane %v762, 1
      %v765 = vor.u32 %v760, %v764
      %v767 = vshrl.u32 %v645, 16
      %v769 = vshll.u32 %v645, 16
      %v771 = vrot.slane %v769, 1
      %v772 = vor.u32 %v767, %v771
      %v774 = vshrl.u32 %v646, 16
      %v776 = vshll.u32 %v646, 16
      %v778 = vrot.slane %v776, 1
      %v779 = vor.u32 %v774, %v778
      %v781 = vshrl.u32 %v647, 16
      %v783 = vshll.u32 %v647, 16
      %v785 = vrot.slane %v783, 1
      %v786 = vor.u32 %v781, %v785
      %v788 = vshrl.u32 %v648, 16
      %v790 = vshll.u32 %v648, 16
      %v792 = vrot.slane %v790, 1
      %v793 = vor.u32 %v788, %v792
      %v795 = vshrl.u32 %v649, 16
      %v797 = vshll.u32 %v649, 16
      %v799 = vrot.slane %v797, 1
      %v800 = vor.u32 %v795, %v799
      %v802 = vshrl.u32 %v650, 16
      %v804 = vshll.u32 %v650, 16
      %v806 = vrot.slane %v804, 1
      %v807 = vor.u32 %v802, %v806
      %v809 = vshrl.u32 %v651, 16
      %v811 = vshll.u32 %v651, 16
      %v813 = vrot.slane %v811, 1
      %v814 = vor.u32 %v809, %v813
      %v816 = vshrl.u32 %v653, 16
      %v818 = vshll.u32 %v653, 16
      %v820 = vrot.slane %v818, 1
      %v821 = vor.u32 %v816, %v820
      %v823 = vshrl.u32 %v654, 16
      %v825 = vshll.u32 %v654, 16
      %v827 = vrot.slane %v825, 1
      %v828 = vor.u32 %v823, %v827
      %v830 = vshrl.u32 %v655, 16
      %v832 = vshll.u32 %v655, 16
      %v834 = vrot.slane %v832, 1
      %v835 = vor.u32 %v830, %v834
      %v837 = vshrl.u32 %v656, 16
      %v839 = vshll.u32 %v656, 16
      %v841 = vrot.slane %v839, 1
      %v842 = vor.u32 %v837, %v841
      %v844 = vshrl.u32 %v657, 16
      %v846 = vshll.u32 %v657, 16
      %v848 = vrot.slane %v846, 1
      %v849 = vor.u32 %v844, %v848
      %v851 = vshrl.u32 %v658, 16
      %v853 = vshll.u32 %v658, 16
      %v855 = vrot.slane %v853, 1
      %v856 = vor.u32 %v851, %v855
      %v858 = vshrl.u32 %v659, 16
      %v860 = vshll.u32 %v659, 16
      %v862 = vrot.slane %v860, 1
      %v863 = vor.u32 %v858, %v862
      %v893 = vrot.slane 0, 1
      %v894 = vrot.slane %v629, 1
      %v895 = vrot.slane %v630, 1
      %v896 = vrot.slane %v631, 1
      %v897 = vrot.slane %v632, 1
      %v898 = vrot.slane %v633, 1
      %v899 = vrot.slane %v634, 1
      %v900 = vrot.slane %v635, 1
      %v901 = vrot.slane %v637, 1
      %v902 = vrot.slane %v638, 1
      %v903 = vrot.slane %v639, 1
      %v904 = vrot.slane %v640, 1
      %v905 = vrot.slane %v641, 1
      %v906 = vrot.slane %v642, 1
      %v907 = vrot.slane %v643, 1
      %v908 = vrot.slane %v645, 1
      %v909 = vrot.slane %v646, 1
      %v910 = vrot.slane %v647, 1
      %v911 = vrot.slane %v648, 1
      %v912 = vrot.slane %v649, 1
      %v913 = vrot.slane %v650, 1
      %v914 = vrot.slane %v651, 1
      %v915 = vrot.slane %v653, 1
      %v916 = vrot.slane %v654, 1
      %v917 = vrot.slane %v655, 1
      %v918 = vrot.slane %v656, 1
      %v919 = vrot.slane %v657, 1
      %v920 = vrot.slane %v658, 1
      %v921 = vrot.slane %v659, 1
      %v923 = vshrl.u32 %v636, 16
      %v925 = vshll.u32 %v636, 16
      %v927 = vrot.slane %v925, 1
      %v928 = vor.u32 %v923, %v927
      %v930 = vshrl.u32 %v644, 16
      %v932 = vshll.u32 %v644, 16
      %v934 = vrot.slane %v932, 1
      %v935 = vor.u32 %v930, %v934
      %v937 = vshrl.u32 %v652, 16
      %v939 = vshll.u32 %v652, 16
      %v941 = vrot.slane %v939, 1
      %v942 = vor.u32 %v937, %v941
      %v944 = vshrl.u32 %v660, 16
      %v946 = vshll.u32 %v660, 16
      %v948 = vrot.slane %v946, 1
      %v949 = vor.u32 %v944, %v948
      %v954 = vrot.slane %v636, 1
      %v955 = vrot.slane %v644, 1
      %v956 = vrot.slane %v652, 1
      %v957 = vrot.slane %v660, 1
      %v958 = vunpack.c.l.b16 0
      %v959 = vunpack.c.l.b16 %v667
      %v960 = vunpack.c.l.b16 %v893
      %v961 = vunpack.c.l.b16 %v629
      %v962 = vunpack.c.l.b16 %v674
      %v963 = vunpack.c.l.b16 %v894
      %v964 = vunpack.c.l.b16 %v630
      %v965 = vunpack.c.l.b16 %v681
      %v966 = vunpack.c.l.b16 %v895
      %v967 = vunpack.c.l.b16 %v631
      %v968 = vunpack.c.l.b16 %v688
      %v969 = vunpack.c.l.b16 %v896
      %v970 = vunpack.c.l.b16 %v632
      %v971 = vunpack.c.l.b16 %v695
      %v972 = vunpack.c.l.b16 %v897
      %v973 = vunpack.c.l.b16 %v633
      %v974 = vunpack.c.l.b16 %v702
      %v975 = vunpack.c.l.b16 %v898
      %v976 = vunpack.c.l.b16 %v634
      %v977 = vunpack.c.l.b16 %v709
      %v978 = vunpack.c.l.b16 %v899
      %v979 = vunpack.c.l.b16 %v635
      %v980 = vunpack.c.l.b16 %v716
      %v981 = vunpack.c.l.b16 %v900
      %v982 = vunpack.c.l.b16 %v636
      %v983 = vunpack.c.l.b16 %v928
      %v984 = vunpack.c.l.b16 %v954
      %v985 = vunpack.c.l.b16 %v637
      %v986 = vunpack.c.l.b16 %v723
      %v987 = vunpack.c.l.b16 %v901
      %v988 = vunpack.c.l.b16 %v638
      %v989 = vunpack.c.l.b16 %v730
      %v990 = vunpack.c.l.b16 %v902
      %v991 = vunpack.c.l.b16 %v639
      %v992 = vunpack.c.l.b16 %v737
      %v993 = vunpack.c.l.b16 %v903
      %v994 = vunpack.c.l.b16 %v640
      %v995 = vunpack.c.l.b16 %v744
      %v996 = vunpack.c.l.b16 %v904
      %v997 = vunpack.c.l.b16 %v641
      %v998 = vunpack.c.l.b16 %v751
      %v999 = vunpack.c.l.b16 %v905
      %v1000 = vunpack.c.l.b16 %v642
      %v1001 = vunpack.c.l.b16 %v758
      %v1002 = vunpack.c.l.b16 %v906
      %v1003 = vunpack.c.l.b16 %v643
      %v1004 = vunpack.c.l.b16 %v765
      %v1005 = vunpack.c.l.b16 %v907
      %v1006 = vunpack.c.l.b16 %v644
      %v1007 = vunpack.c.l.b16 %v935
      %v1008 = vunpack.c.l.b16 %v955
      %v1009 = vunpack.c.l.b16 %v645
      %v1010 = vunpack.c.l.b16 %v772
      %v1011 = vunpack.c.l.b16 %v908
      %v1012 = vunpack.c.l.b16 %v646
      %v1013 = vunpack.c.l.b16 %v779
      %v1014 = vunpack.c.l.b16 %v909
      %v1015 = vunpack.c.l.b16 %v647
      %v1016 = vunpack.c.l.b16 %v786
      %v1017 = vunpack.c.l.b16 %v910
      %v1018 = vunpack.c.l.b16 %v648
      %v1019 = vunpack.c.l.b16 %v793
      %v1020 = vunpack.c.l.b16 %v911
      %v1021 = vunpack.c.l.b16 %v649
      %v1022 = vunpack.c.l.b16 %v800
      %v1023 = vunpack.c.l.b16 %v912
      %v1024 = vunpack.c.l.b16 %v650
      %v1025 = vunpack.c.l.b16 %v807
      %v1026 = vunpack.c.l.b16 %v913
      %v1027 = vunpack.c.l.b16 %v651
      %v1028 = vunpack.c.l.b16 %v814
      %v1029 = vunpack.c.l.b16 %v914
      %v1030 = vunpack.c.l.b16 %v652
      %v1031 = vunpack.c.l.b16 %v942
      %v1032 = vunpack.c.l.b16 %v956
      %v1033 = vunpack.c.l.b16 %v653
      %v1034 = vunpack.c.l.b16 %v821
      %v1035 = vunpack.c.l.b16 %v915
      %v1036 = vunpack.c.l.b16 %v654
      %v1037 = vunpack.c.l.b16 %v828
      %v1038 = vunpack.c.l.b16 %v916
      %v1039 = vunpack.c.l.b16 %v655
      %v1040 = vunpack.c.l.b16 %v835
      %v1041 = vunpack.c.l.b16 %v917
      %v1042 = vunpack.c.l.b16 %v656
      %v1043 = vunpack.c.l.b16 %v842
      %v1044 = vunpack.c.l.b16 %v918
      %v1045 = vunpack.c.l.b16 %v657
      %v1046 = vunpack.c.l.b16 %v849
      %v1047 = vunpack.c.l.b16 %v919
      %v1048 = vunpack.c.l.b16 %v658
      %v1049 = vunpack.c.l.b16 %v856
      %v1050 = vunpack.c.l.b16 %v920
      %v1051 = vunpack.c.l.b16 %v659
      %v1052 = vunpack.c.l.b16 %v863
      %v1053 = vunpack.c.l.b16 %v921
      %v1054 = vunpack.c.l.b16 %v660
      %v1055 = vunpack.c.l.b16 %v949
      %v1056 = vunpack.c.l.b16 %v957
      %v1057 = vld [vmem:[%s1] sm:$0xff]
      %v1058 = vld [vmem:[%s1 + $0x8] sm:$0xff]
      %v1059 = vld [vmem:[%s1 + $0x10] sm:$0xff]
      %v1060 = vld [vmem:[%s1 + $0x18] sm:$0xff]
      %v1061 = vld [vmem:[%s1 + $0x20] sm:$0xff]
      %v1062 = vld [vmem:[%s1 + $0x28] sm:$0xff]
      %v1063 = vld [vmem:[%s1 + $0x30] sm:$0xff]
      %v1064 = vld [vmem:[%s1 + $0x38] sm:$0xff]
      %v1065 = vld [vmem:[%s1 + $0x40] sm:$0xff]
      %v1066 = vld [vmem:[%s1 + $0x48] sm:$0xff]
      %v1067 = vld [vmem:[%s1 + $0x50] sm:$0xff]
      %v1068 = vld [vmem:[%s1 + $0x58] sm:$0xff]
      %v1069 = vld [vmem:[%s1 + $0x60] sm:$0xff]
      %v1070 = vld [vmem:[%s1 + $0x68] sm:$0xff]
      %v1071 = vld [vmem:[%s1 + $0x70] sm:$0xff]
      %v1072 = vld [vmem:[%s1 + $0x78] sm:$0xff]
      %v1073 = vld [vmem:[%s1 + $0x80] sm:$0xff]
      %v1074 = vld [vmem:[%s1 + $0x88] sm:$0xff]
      %v1075 = vld [vmem:[%s1 + $0x90] sm:$0xff]
      %v1076 = vld [vmem:[%s1 + $0x98] sm:$0xff]
      %v1077 = vld [vmem:[%s1 + $0xa0] sm:$0xff]
      %v1078 = vld [vmem:[%s1 + $0xa8] sm:$0xff]
      %v1079 = vld [vmem:[%s1 + $0xb0] sm:$0xff]
      %v1080 = vld [vmem:[%s1 + $0xb8] sm:$0xff]
      %v1081 = vld [vmem:[%s1 + $0xc0] sm:$0xff]
      %v1082 = vld [vmem:[%s1 + $0xc8] sm:$0xff]
      %v1083 = vld [vmem:[%s1 + $0xd0] sm:$0xff]
      %v1084 = vld [vmem:[%s1 + $0xd8] sm:$0xff]
      %v1085 = vld [vmem:[%s1 + $0xe0] sm:$0xff]
      %v1086 = vld [vmem:[%s1 + $0xe8] sm:$0xff]
      %v1087 = vld [vmem:[%s1 + $0xf0] sm:$0xff]
      %v1088 = vld [vmem:[%s1 + $0xf8] sm:$0xff]
      %v1089 = vld [vmem:[%s1 + $0x100] sm:$0xff]
      %v1090 = vld [vmem:[%s1 + $0x108] sm:$0xff]
      %v1091 = vld [vmem:[%s1 + $0x110] sm:$0xff]
      %v1092 = vld [vmem:[%s1 + $0x118] sm:$0xff]
      %v1093 = vld [vmem:[%s1 + $0x120] sm:$0xff]
      %v1094 = vld [vmem:[%s1 + $0x128] sm:$0xff]
      %v1095 = vld [vmem:[%s1 + $0x130] sm:$0xff]
      %v1096 = vld [vmem:[%s1 + $0x138] sm:$0xff]
      %v1097 = vld [vmem:[%s1 + $0x140] sm:$0xff]
      %v1098 = vld [vmem:[%s1 + $0x148] sm:$0xff]
      %v1099 = vld [vmem:[%s1 + $0x150] sm:$0xff]
      %v1100 = vld [vmem:[%s1 + $0x158] sm:$0xff]
      %v1101 = vld [vmem:[%s1 + $0x160] sm:$0xff]
      %v1102 = vld [vmem:[%s1 + $0x168] sm:$0xff]
      %v1103 = vld [vmem:[%s1 + $0x170] sm:$0xff]
      %v1104 = vld [vmem:[%s1 + $0x178] sm:$0xff]
      %v1105 = vld [vmem:[%s1 + $0x180] sm:$0xff]
      %v1106 = vld [vmem:[%s1 + $0x188] sm:$0xff]
      %v1107 = vld [vmem:[%s1 + $0x190] sm:$0xff]
      %v1108 = vld [vmem:[%s1 + $0x198] sm:$0xff]
      %v1109 = vld [vmem:[%s1 + $0x1a0] sm:$0xff]
      %v1110 = vld [vmem:[%s1 + $0x1a8] sm:$0xff]
      %v1111 = vld [vmem:[%s1 + $0x1b0] sm:$0xff]
      %v1112 = vld [vmem:[%s1 + $0x1b8] sm:$0xff]
      %v1113 = vld [vmem:[%s1 + $0x1c0] sm:$0xff]
      %v1114 = vld [vmem:[%s1 + $0x1c8] sm:$0xff]
      %v1115 = vld [vmem:[%s1 + $0x1d0] sm:$0xff]
      %v1116 = vld [vmem:[%s1 + $0x1d8] sm:$0xff]
      %v1117 = vld [vmem:[%s1 + $0x1e0] sm:$0xff]
      %v1118 = vld [vmem:[%s1 + $0x1e8] sm:$0xff]
      %v1119 = vld [vmem:[%s1 + $0x1f0] sm:$0xff]
      %v1120 = vld [vmem:[%s1 + $0x1f8] sm:$0xff]
      %v1121 = vld [vmem:[%s1 + $0x200] sm:$0xff]
      %v1122 = vld [vmem:[%s1 + $0x208] sm:$0xff]
      %v1123 = vld [vmem:[%s1 + $0x210] sm:$0xff]
      %v1124 = vld [vmem:[%s1 + $0x218] sm:$0xff]
      %v1125 = vld [vmem:[%s1 + $0x220] sm:$0xff]
      %v1126 = vld [vmem:[%s1 + $0x228] sm:$0xff]
      %v1127 = vld [vmem:[%s1 + $0x230] sm:$0xff]
      %v1128 = vld [vmem:[%s1 + $0x238] sm:$0xff]
      %v1129 = vld [vmem:[%s1 + $0x240] sm:$0xff]
      %v1130 = vld [vmem:[%s1 + $0x248] sm:$0xff]
      %v1131 = vld [vmem:[%s1 + $0x250] sm:$0xff]
      %v1132 = vld [vmem:[%s1 + $0x258] sm:$0xff]
      %v1133 = vld [vmem:[%s1 + $0x260] sm:$0xff]
      %v1134 = vld [vmem:[%s1 + $0x268] sm:$0xff]
      %v1135 = vld [vmem:[%s1 + $0x270] sm:$0xff]
      %v1136 = vld [vmem:[%s1 + $0x278] sm:$0xff]
      %v1137 = vld [vmem:[%s1 + $0x280] sm:$0xff]
      %v1138 = vld [vmem:[%s1 + $0x288] sm:$0xff]
      %v1139 = vld [vmem:[%s1 + $0x290] sm:$0xff]
      %v1140 = vld [vmem:[%s1 + $0x298] sm:$0xff]
      %v1141 = vld [vmem:[%s1 + $0x2a0] sm:$0xff]
      %v1142 = vld [vmem:[%s1 + $0x2a8] sm:$0xff]
      %v1143 = vld [vmem:[%s1 + $0x2b0] sm:$0xff]
      %v1144 = vld [vmem:[%s1 + $0x2b8] sm:$0xff]
      %v1145 = vld [vmem:[%s1 + $0x2c0] sm:$0xff]
      %v1146 = vld [vmem:[%s1 + $0x2c8] sm:$0xff]
      %v1147 = vld [vmem:[%s1 + $0x2d0] sm:$0xff]
      %v1148 = vld [vmem:[%s1 + $0x2d8] sm:$0xff]
      %v1149 = vld [vmem:[%s1 + $0x2e0] sm:$0xff]
      %v1150 = vld [vmem:[%s1 + $0x2e8] sm:$0xff]
      %v1151 = vld [vmem:[%s1 + $0x2f0] sm:$0xff]
      %v1152 = vld [vmem:[%s1 + $0x2f8] sm:$0xff]
      %v1153 = vld [vmem:[%s1 + $0x300] sm:$0xff]
      %v1154 = vld [vmem:[%s1 + $0x308] sm:$0xff]
      %v1155 = vld [vmem:[%s1 + $0x310] sm:$0xff]
      %v1156 = vld [vmem:[%s1 + $0x318] sm:$0xff]
      %v1157 = vld [vmem:[%s1 + $0x320] sm:$0xff]
      %v1158 = vld [vmem:[%s1 + $0x328] sm:$0xff]
      %v1159 = vld [vmem:[%s1 + $0x330] sm:$0xff]
      %v1160 = vld [vmem:[%s1 + $0x338] sm:$0xff]
      %v1161 = vld [vmem:[%s1 + $0x340] sm:$0xff]
      %v1162 = vld [vmem:[%s1 + $0x348] sm:$0xff]
      %v1163 = vld [vmem:[%s1 + $0x350] sm:$0xff]
      %v1164 = vld [vmem:[%s1 + $0x358] sm:$0xff]
      %v1165 = vld [vmem:[%s1 + $0x360] sm:$0xff]
      %v1166 = vld [vmem:[%s1 + $0x368] sm:$0xff]
      %v1167 = vld [vmem:[%s1 + $0x370] sm:$0xff]
      %v1168 = vld [vmem:[%s1 + $0x378] sm:$0xff]
      %v1169 = vld [vmem:[%s1 + $0x380] sm:$0xff]
      %v1170 = vld [vmem:[%s1 + $0x388] sm:$0xff]
      %v1171 = vld [vmem:[%s1 + $0x390] sm:$0xff]
      %v1172 = vld [vmem:[%s1 + $0x398] sm:$0xff]
      %v1173 = vld [vmem:[%s1 + $0x3a0] sm:$0xff]
      %v1174 = vld [vmem:[%s1 + $0x3a8] sm:$0xff]
      %v1175 = vld [vmem:[%s1 + $0x3b0] sm:$0xff]
      %v1176 = vld [vmem:[%s1 + $0x3b8] sm:$0xff]
      %v1177 = vld [vmem:[%s1 + $0x3c0] sm:$0xff]
      %v1178 = vld [vmem:[%s1 + $0x3c8] sm:$0xff]
      %v1179 = vld [vmem:[%s1 + $0x3d0] sm:$0xff]
      %v1180 = vld [vmem:[%s1 + $0x3d8] sm:$0xff]
      %v1181 = vld [vmem:[%s1 + $0x3e0] sm:$0xff]
      %v1182 = vld [vmem:[%s1 + $0x3e8] sm:$0xff]
      %v1183 = vld [vmem:[%s1 + $0x3f0] sm:$0xff]
      %v1184 = vld [vmem:[%s1 + $0x3f8] sm:$0xff]
      %v1185 = vld [vmem:[%s1 + $0x400] sm:$0xff]
      %v1186 = vld [vmem:[%s1 + $0x408] sm:$0xff]
      %v1187 = vld [vmem:[%s1 + $0x410] sm:$0xff]
      %v1188 = vld [vmem:[%s1 + $0x418] sm:$0xff]
      %v1189 = vld [vmem:[%s1 + $0x420] sm:$0xff]
      %v1190 = vld [vmem:[%s1 + $0x428] sm:$0xff]
      %v1191 = vld [vmem:[%s1 + $0x430] sm:$0xff]
      %v1192 = vld [vmem:[%s1 + $0x438] sm:$0xff]
      %v1193 = vld [vmem:[%s1 + $0x440] sm:$0xff]
      %v1194 = vld [vmem:[%s1 + $0x448] sm:$0xff]
      %v1195 = vld [vmem:[%s1 + $0x450] sm:$0xff]
      %v1196 = vld [vmem:[%s1 + $0x458] sm:$0xff]
      %v1197 = vld [vmem:[%s1 + $0x460] sm:$0xff]
      %v1198 = vld [vmem:[%s1 + $0x468] sm:$0xff]
      %v1199 = vld [vmem:[%s1 + $0x470] sm:$0xff]
      %v1200 = vld [vmem:[%s1 + $0x478] sm:$0xff]
      %v1201 = vpack.c.b16 %v961, %v958
      %v1202 = vpack.c.b16 %v962, %v959
      %v1203 = vpack.c.b16 %v963, %v960
      %v1204 = vpack.c.b16 %v964, %v961
      %v1205 = vpack.c.b16 %v965, %v962
      %v1206 = vpack.c.b16 %v966, %v963
      %v1207 = vpack.c.b16 %v967, %v964
      %v1208 = vpack.c.b16 %v968, %v965
      %v1209 = vpack.c.b16 %v969, %v966
      %v1210 = vpack.c.b16 %v970, %v967
      %v1211 = vpack.c.b16 %v971, %v968
      %v1212 = vpack.c.b16 %v972, %v969
      %v1213 = vpack.c.b16 %v973, %v970
      %v1214 = vpack.c.b16 %v974, %v971
      %v1215 = vpack.c.b16 %v975, %v972
      %v1216 = vpack.c.b16 %v976, %v973
      %v1217 = vpack.c.b16 %v977, %v974
      %v1218 = vpack.c.b16 %v978, %v975
      %v1219 = vpack.c.b16 %v979, %v976
      %v1220 = vpack.c.b16 %v980, %v977
      %v1221 = vpack.c.b16 %v981, %v978
      %v1222 = vpack.c.b16 %v982, %v979
      %v1223 = vpack.c.b16 %v983, %v980
      %v1224 = vpack.c.b16 %v984, %v981
      %v1225 = vpack.c.b16 %v958, %v982
      %v1226 = vpack.c.b16 %v959, %v983
      %v1227 = vpack.c.b16 %v960, %v984
      %v1228 = vpack.c.b16 %v985, %v958
      %v1229 = vpack.c.b16 %v986, %v959
      %v1230 = vpack.c.b16 %v987, %v960
      %v1231 = vpack.c.b16 %v988, %v985
      %v1232 = vpack.c.b16 %v989, %v986
      %v1233 = vpack.c.b16 %v990, %v987
      %v1234 = vpack.c.b16 %v991, %v988
      %v1235 = vpack.c.b16 %v992, %v989
      %v1236 = vpack.c.b16 %v993, %v990
      %v1237 = vpack.c.b16 %v994, %v991
      %v1238 = vpack.c.b16 %v995, %v992
      %v1239 = vpack.c.b16 %v996, %v993
      %v1240 = vpack.c.b16 %v997, %v994
      %v1241 = vpack.c.b16 %v998, %v995
      %v1242 = vpack.c.b16 %v999, %v996
      %v1243 = vpack.c.b16 %v1000, %v997
      %v1244 = vpack.c.b16 %v1001, %v998
      %v1245 = vpack.c.b16 %v1002, %v999
      %v1246 = vpack.c.b16 %v1003, %v1000
      %v1247 = vpack.c.b16 %v1004, %v1001
      %v1248 = vpack.c.b16 %v1005, %v1002
      %v1249 = vpack.c.b16 %v1006, %v1003
      %v1250 = vpack.c.b16 %v1007, %v1004
      %v1251 = vpack.c.b16 %v1008, %v1005
      %v1252 = vpack.c.b16 %v958, %v1006
      %v1253 = vpack.c.b16 %v959, %v1007
      %v1254 = vpack.c.b16 %v960, %v1008
      %v1255 = vpack.c.b16 %v1009, %v958
      %v1256 = vpack.c.b16 %v1010, %v959
      %v1257 = vpack.c.b16 %v1011, %v960
      %v1258 = vpack.c.b16 %v1012, %v1009
      %v1259 = vpack.c.b16 %v1013, %v1010
      %v1260 = vpack.c.b16 %v1014, %v1011
      %v1261 = vpack.c.b16 %v1015, %v1012
      %v1262 = vpack.c.b16 %v1016, %v1013
      %v1263 = vpack.c.b16 %v1017, %v1014
      %v1264 = vpack.c.b16 %v1018, %v1015
      %v1265 = vpack.c.b16 %v1019, %v1016
      %v1266 = vpack.c.b16 %v1020, %v1017
      %v1267 = vpack.c.b16 %v1021, %v1018
      %v1268 = vpack.c.b16 %v1022, %v1019
      %v1269 = vpack.c.b16 %v1023, %v1020
      %v1270 = vpack.c.b16 %v1024, %v1021
      %v1271 = vpack.c.b16 %v1025, %v1022
      %v1272 = vpack.c.b16 %v1026, %v1023
      %v1273 = vpack.c.b16 %v1027, %v1024
      %v1274 = vpack.c.b16 %v1028, %v1025
      %v1275 = vpack.c.b16 %v1029, %v1026
      %v1276 = vpack.c.b16 %v1030, %v1027
      %v1277 = vpack.c.b16 %v1031, %v1028
      %v1278 = vpack.c.b16 %v1032, %v1029
      %v1279 = vpack.c.b16 %v958, %v1030
      %v1280 = vpack.c.b16 %v959, %v1031
      %v1281 = vpack.c.b16 %v960, %v1032
      %v1282 = vpack.c.b16 %v1033, %v958
      %v1283 = vpack.c.b16 %v1034, %v959
      %v1284 = vpack.c.b16 %v1035, %v960
      %v1285 = vpack.c.b16 %v1036, %v1033
      %v1286 = vpack.c.b16 %v1037, %v1034
      %v1287 = vpack.c.b16 %v1038, %v1035
      %v1288 = vpack.c.b16 %v1039, %v1036
      %v1289 = vpack.c.b16 %v1040, %v1037
      %v1290 = vpack.c.b16 %v1041, %v1038
      %v1291 = vpack.c.b16 %v1042, %v1039
      %v1292 = vpack.c.b16 %v1043, %v1040
      %v1293 = vpack.c.b16 %v1044, %v1041
      %v1294 = vpack.c.b16 %v1045, %v1042
      %v1295 = vpack.c.b16 %v1046, %v1043
      %v1296 = vpack.c.b16 %v1047, %v1044
      %v1297 = vpack.c.b16 %v1048, %v1045
      %v1298 = vpack.c.b16 %v1049, %v1046
      %v1299 = vpack.c.b16 %v1050, %v1047
      %v1300 = vpack.c.b16 %v1051, %v1048
      %v1301 = vpack.c.b16 %v1052, %v1049
      %v1302 = vpack.c.b16 %v1053, %v1050
      %v1303 = vpack.c.b16 %v1054, %v1051
      %v1304 = vpack.c.b16 %v1055, %v1052
      %v1305 = vpack.c.b16 %v1056, %v1053
      %v1306 = vpack.c.b16 %v958, %v1054
      %v1307 = vpack.c.b16 %v959, %v1055
      %v1308 = vpack.c.b16 %v960, %v1056
      %v1561 = vunpack.c.l.b16 %v1057
      %v1562 = vunpack.c.h.b16 %v1057
      %v1563 = vunpack.c.l.b16 %v1058
      %v1564 = vunpack.c.h.b16 %v1058
      %v1565 = vunpack.c.l.b16 %v1059
      %v1566 = vunpack.c.h.b16 %v1059
      %v1567 = vunpack.c.l.b16 %v1060
      %v1568 = vunpack.c.h.b16 %v1060
      %v1569 = vunpack.c.l.b16 %v1061
      %v1570 = vunpack.c.h.b16 %v1061
      %v1571 = vunpack.c.l.b16 %v1062
      %v1572 = vunpack.c.h.b16 %v1062
      %v1573 = vunpack.c.l.b16 %v1063
      %v1574 = vunpack.c.h.b16 %v1063
      %v1575 = vunpack.c.l.b16 %v1064
      %v1576 = vunpack.c.h.b16 %v1064
      %v1577 = vunpack.c.l.b16 %v1065
      %v1578 = vunpack.c.h.b16 %v1065
      %v1579 = vunpack.c.l.b16 %v1066
      %v1580 = vunpack.c.h.b16 %v1066
      %v1581 = vunpack.c.l.b16 %v1067
      %v1582 = vunpack.c.h.b16 %v1067
      %v1583 = vunpack.c.l.b16 %v1068
      %v1584 = vunpack.c.h.b16 %v1068
      %v1585 = vunpack.c.l.b16 %v1069
      %v1586 = vunpack.c.h.b16 %v1069
      %v1587 = vunpack.c.l.b16 %v1070
      %v1588 = vunpack.c.h.b16 %v1070
      %v1589 = vunpack.c.l.b16 %v1071
      %v1590 = vunpack.c.h.b16 %v1071
      %v1591 = vunpack.c.l.b16 %v1072
      %v1592 = vunpack.c.h.b16 %v1072
      %v1593 = vunpack.c.l.b16 %v1073
      %v1594 = vunpack.c.h.b16 %v1073
      %v1595 = vunpack.c.l.b16 %v1074
      %v1596 = vunpack.c.h.b16 %v1074
      %v1597 = vunpack.c.l.b16 %v1075
      %v1598 = vunpack.c.h.b16 %v1075
      %v1599 = vunpack.c.l.b16 %v1076
      %v1600 = vunpack.c.h.b16 %v1076
      %v1601 = vunpack.c.l.b16 %v1077
      %v1602 = vunpack.c.h.b16 %v1077
      %v1603 = vunpack.c.l.b16 %v1078
      %v1604 = vunpack.c.h.b16 %v1078
      %v1605 = vunpack.c.l.b16 %v1079
      %v1606 = vunpack.c.h.b16 %v1079
      %v1607 = vunpack.c.l.b16 %v1080
      %v1608 = vunpack.c.h.b16 %v1080
      %v1609 = vunpack.c.l.b16 %v1081
      %v1610 = vunpack.c.h.b16 %v1081
      %v1611 = vunpack.c.l.b16 %v1082
      %v1612 = vunpack.c.h.b16 %v1082
      %v1613 = vunpack.c.l.b16 %v1083
      %v1614 = vunpack.c.h.b16 %v1083
      %v1615 = vunpack.c.l.b16 %v1084
      %v1616 = vunpack.c.h.b16 %v1084
      %v1617 = vunpack.c.l.b16 %v1085
      %v1618 = vunpack.c.h.b16 %v1085
      %v1619 = vunpack.c.l.b16 %v1086
      %v1620 = vunpack.c.h.b16 %v1086
      %v1621 = vunpack.c.l.b16 %v1087
      %v1622 = vunpack.c.h.b16 %v1087
      %v1623 = vunpack.c.l.b16 %v1088
      %v1624 = vunpack.c.h.b16 %v1088
      %v1625 = vunpack.c.l.b16 %v1089
      %v1626 = vunpack.c.h.b16 %v1089
      %v1627 = vunpack.c.l.b16 %v1090
      %v1628 = vunpack.c.h.b16 %v1090
      %v1629 = vunpack.c.l.b16 %v1091
      %v1630 = vunpack.c.h.b16 %v1091
      %v1631 = vunpack.c.l.b16 %v1092
      %v1632 = vunpack.c.h.b16 %v1092
      %v1633 = vunpack.c.l.b16 %v1093
      %v1634 = vunpack.c.h.b16 %v1093
      %v1635 = vunpack.c.l.b16 %v1094
      %v1636 = vunpack.c.h.b16 %v1094
      %v1637 = vunpack.c.l.b16 %v1095
      %v1638 = vunpack.c.h.b16 %v1095
      %v1639 = vunpack.c.l.b16 %v1096
      %v1640 = vunpack.c.h.b16 %v1096
      %v1641 = vunpack.c.l.b16 %v1097
      %v1642 = vunpack.c.h.b16 %v1097
      %v1643 = vunpack.c.l.b16 %v1098
      %v1644 = vunpack.c.h.b16 %v1098
      %v1645 = vunpack.c.l.b16 %v1099
      %v1646 = vunpack.c.h.b16 %v1099
      %v1647 = vunpack.c.l.b16 %v1100
      %v1648 = vunpack.c.h.b16 %v1100
      %v1649 = vunpack.c.l.b16 %v1101
      %v1650 = vunpack.c.h.b16 %v1101
      %v1651 = vunpack.c.l.b16 %v1102
      %v1652 = vunpack.c.h.b16 %v1102
      %v1653 = vunpack.c.l.b16 %v1103
      %v1654 = vunpack.c.h.b16 %v1103
      %v1655 = vunpack.c.l.b16 %v1104
      %v1656 = vunpack.c.h.b16 %v1104
      %v1657 = vunpack.c.l.b16 %v1105
      %v1658 = vunpack.c.h.b16 %v1105
      %v1659 = vunpack.c.l.b16 %v1106
      %v1660 = vunpack.c.h.b16 %v1106
      %v1661 = vunpack.c.l.b16 %v1107
      %v1662 = vunpack.c.h.b16 %v1107
      %v1663 = vunpack.c.l.b16 %v1108
      %v1664 = vunpack.c.h.b16 %v1108
      %v1665 = vunpack.c.l.b16 %v1109
      %v1666 = vunpack.c.h.b16 %v1109
      %v1667 = vunpack.c.l.b16 %v1110
      %v1668 = vunpack.c.h.b16 %v1110
      %v1669 = vunpack.c.l.b16 %v1111
      %v1670 = vunpack.c.h.b16 %v1111
      %v1671 = vunpack.c.l.b16 %v1112
      %v1672 = vunpack.c.h.b16 %v1112
      %v1673 = vunpack.c.l.b16 %v1113
      %v1674 = vunpack.c.h.b16 %v1113
      %v1675 = vunpack.c.l.b16 %v1114
      %v1676 = vunpack.c.h.b16 %v1114
      %v1677 = vunpack.c.l.b16 %v1115
      %v1678 = vunpack.c.h.b16 %v1115
      %v1679 = vunpack.c.l.b16 %v1116
      %v1680 = vunpack.c.h.b16 %v1116
      %v1681 = vunpack.c.l.b16 %v1117
      %v1682 = vunpack.c.h.b16 %v1117
      %v1683 = vunpack.c.l.b16 %v1118
      %v1684 = vunpack.c.h.b16 %v1118
      %v1685 = vunpack.c.l.b16 %v1119
      %v1686 = vunpack.c.h.b16 %v1119
      %v1687 = vunpack.c.l.b16 %v1120
      %v1688 = vunpack.c.h.b16 %v1120
      %v1689 = vunpack.c.l.b16 %v1121
      %v1690 = vunpack.c.h.b16 %v1121
      %v1691 = vunpack.c.l.b16 %v1122
      %v1692 = vunpack.c.h.b16 %v1122
      %v1693 = vunpack.c.l.b16 %v1123
      %v1694 = vunpack.c.h.b16 %v1123
      %v1695 = vunpack.c.l.b16 %v1124
      %v1696 = vunpack.c.h.b16 %v1124
      %v1697 = vunpack.c.l.b16 %v1125
      %v1698 = vunpack.c.h.b16 %v1125
      %v1699 = vunpack.c.l.b16 %v1126
      %v1700 = vunpack.c.h.b16 %v1126
      %v1701 = vunpack.c.l.b16 %v1127
      %v1702 = vunpack.c.h.b16 %v1127
      %v1703 = vunpack.c.l.b16 %v1128
      %v1704 = vunpack.c.h.b16 %v1128
      %v1705 = vunpack.c.l.b16 %v1129
      %v1706 = vunpack.c.h.b16 %v1129
      %v1707 = vunpack.c.l.b16 %v1130
      %v1708 = vunpack.c.h.b16 %v1130
      %v1709 = vunpack.c.l.b16 %v1131
      %v1710 = vunpack.c.h.b16 %v1131
      %v1711 = vunpack.c.l.b16 %v1132
      %v1712 = vunpack.c.h.b16 %v1132
      %v1713 = vunpack.c.l.b16 %v1133
      %v1714 = vunpack.c.h.b16 %v1133
      %v1715 = vunpack.c.l.b16 %v1134
      %v1716 = vunpack.c.h.b16 %v1134
      %v1717 = vunpack.c.l.b16 %v1135
      %v1718 = vunpack.c.h.b16 %v1135
      %v1719 = vunpack.c.l.b16 %v1136
      %v1720 = vunpack.c.h.b16 %v1136
      %v1721 = vunpack.c.l.b16 %v1137
      %v1722 = vunpack.c.h.b16 %v1137
      %v1723 = vunpack.c.l.b16 %v1138
      %v1724 = vunpack.c.h.b16 %v1138
      %v1725 = vunpack.c.l.b16 %v1139
      %v1726 = vunpack.c.h.b16 %v1139
      %v1727 = vunpack.c.l.b16 %v1140
      %v1728 = vunpack.c.h.b16 %v1140
      %v1729 = vunpack.c.l.b16 %v1141
      %v1730 = vunpack.c.h.b16 %v1141
      %v1731 = vunpack.c.l.b16 %v1142
      %v1732 = vunpack.c.h.b16 %v1142
      %v1733 = vunpack.c.l.b16 %v1143
      %v1734 = vunpack.c.h.b16 %v1143
      %v1735 = vunpack.c.l.b16 %v1144
      %v1736 = vunpack.c.h.b16 %v1144
      %v1737 = vunpack.c.l.b16 %v1145
      %v1738 = vunpack.c.h.b16 %v1145
      %v1739 = vunpack.c.l.b16 %v1146
      %v1740 = vunpack.c.h.b16 %v1146
      %v1741 = vunpack.c.l.b16 %v1147
      %v1742 = vunpack.c.h.b16 %v1147
      %v1743 = vunpack.c.l.b16 %v1148
      %v1744 = vunpack.c.h.b16 %v1148
      %v1745 = vunpack.c.l.b16 %v1149
      %v1746 = vunpack.c.h.b16 %v1149
      %v1747 = vunpack.c.l.b16 %v1150
      %v1748 = vunpack.c.h.b16 %v1150
      %v1749 = vunpack.c.l.b16 %v1151
      %v1750 = vunpack.c.h.b16 %v1151
      %v1751 = vunpack.c.l.b16 %v1152
      %v1752 = vunpack.c.h.b16 %v1152
      %v1753 = vunpack.c.l.b16 %v1153
      %v1754 = vunpack.c.h.b16 %v1153
      %v1755 = vunpack.c.l.b16 %v1154
      %v1756 = vunpack.c.h.b16 %v1154
      %v1757 = vunpack.c.l.b16 %v1155
      %v1758 = vunpack.c.h.b16 %v1155
      %v1759 = vunpack.c.l.b16 %v1156
      %v1760 = vunpack.c.h.b16 %v1156
      %v1761 = vunpack.c.l.b16 %v1157
      %v1762 = vunpack.c.h.b16 %v1157
      %v1763 = vunpack.c.l.b16 %v1158
      %v1764 = vunpack.c.h.b16 %v1158
      %v1765 = vunpack.c.l.b16 %v1159
      %v1766 = vunpack.c.h.b16 %v1159
      %v1767 = vunpack.c.l.b16 %v1160
      %v1768 = vunpack.c.h.b16 %v1160
      %v1769 = vunpack.c.l.b16 %v1161
      %v1770 = vunpack.c.h.b16 %v1161
      %v1771 = vunpack.c.l.b16 %v1162
      %v1772 = vunpack.c.h.b16 %v1162
      %v1773 = vunpack.c.l.b16 %v1163
      %v1774 = vunpack.c.h.b16 %v1163
      %v1775 = vunpack.c.l.b16 %v1164
      %v1776 = vunpack.c.h.b16 %v1164
      %v1777 = vunpack.c.l.b16 %v1165
      %v1778 = vunpack.c.h.b16 %v1165
      %v1779 = vunpack.c.l.b16 %v1166
      %v1780 = vunpack.c.h.b16 %v1166
      %v1781 = vunpack.c.l.b16 %v1167
      %v1782 = vunpack.c.h.b16 %v1167
      %v1783 = vunpack.c.l.b16 %v1168
      %v1784 = vunpack.c.h.b16 %v1168
      %v1785 = vunpack.c.l.b16 %v1169
      %v1786 = vunpack.c.h.b16 %v1169
      %v1787 = vunpack.c.l.b16 %v1170
      %v1788 = vunpack.c.h.b16 %v1170
      %v1789 = vunpack.c.l.b16 %v1171
      %v1790 = vunpack.c.h.b16 %v1171
      %v1791 = vunpack.c.l.b16 %v1172
      %v1792 = vunpack.c.h.b16 %v1172
      %v1793 = vunpack.c.l.b16 %v1173
      %v1794 = vunpack.c.h.b16 %v1173
      %v1795 = vunpack.c.l.b16 %v1174
      %v1796 = vunpack.c.h.b16 %v1174
      %v1797 = vunpack.c.l.b16 %v1175
      %v1798 = vunpack.c.h.b16 %v1175
      %v1799 = vunpack.c.l.b16 %v1176
      %v1800 = vunpack.c.h.b16 %v1176
      %v1801 = vunpack.c.l.b16 %v1177
      %v1802 = vunpack.c.h.b16 %v1177
      %v1803 = vunpack.c.l.b16 %v1178
      %v1804 = vunpack.c.h.b16 %v1178
      %v1805 = vunpack.c.l.b16 %v1179
      %v1806 = vunpack.c.h.b16 %v1179
      %v1807 = vunpack.c.l.b16 %v1180
      %v1808 = vunpack.c.h.b16 %v1180
      %v1809 = vunpack.c.l.b16 %v1181
      %v1810 = vunpack.c.h.b16 %v1181
      %v1811 = vunpack.c.l.b16 %v1182
      %v1812 = vunpack.c.h.b16 %v1182
      %v1813 = vunpack.c.l.b16 %v1183
      %v1814 = vunpack.c.h.b16 %v1183
      %v1815 = vunpack.c.l.b16 %v1184
      %v1816 = vunpack.c.h.b16 %v1184
      %v1817 = vunpack.c.l.b16 %v1185
      %v1818 = vunpack.c.h.b16 %v1185
      %v1819 = vunpack.c.l.b16 %v1186
      %v1820 = vunpack.c.h.b16 %v1186
      %v1821 = vunpack.c.l.b16 %v1187
      %v1822 = vunpack.c.h.b16 %v1187
      %v1823 = vunpack.c.l.b16 %v1188
      %v1824 = vunpack.c.h.b16 %v1188
      %v1825 = vunpack.c.l.b16 %v1189
      %v1826 = vunpack.c.h.b16 %v1189
      %v1827 = vunpack.c.l.b16 %v1190
      %v1828 = vunpack.c.h.b16 %v1190
      %v1829 = vunpack.c.l.b16 %v1191
      %v1830 = vunpack.c.h.b16 %v1191
      %v1831 = vunpack.c.l.b16 %v1192
      %v1832 = vunpack.c.h.b16 %v1192
      %v1833 = vunpack.c.l.b16 %v1193
      %v1834 = vunpack.c.h.b16 %v1193
      %v1835 = vunpack.c.l.b16 %v1194
      %v1836 = vunpack.c.h.b16 %v1194
      %v1837 = vunpack.c.l.b16 %v1195
      %v1838 = vunpack.c.h.b16 %v1195
      %v1839 = vunpack.c.l.b16 %v1196
      %v1840 = vunpack.c.h.b16 %v1196
      %v1841 = vunpack.c.l.b16 %v1197
      %v1842 = vunpack.c.h.b16 %v1197
      %v1843 = vunpack.c.l.b16 %v1198
      %v1844 = vunpack.c.h.b16 %v1198
      %v1845 = vunpack.c.l.b16 %v1199
      %v1846 = vunpack.c.h.b16 %v1199
      %v1847 = vunpack.c.l.b16 %v1200
      %v1848 = vunpack.c.h.b16 %v1200
      %v1849 = vpack.c.b16 %v1563, %v1561
      %v1850 = vpack.c.b16 %v1564, %v1562
      %v1851 = vpack.c.b16 %v1567, %v1565
      %v1852 = vpack.c.b16 %v1568, %v1566
      %v1853 = vpack.c.b16 %v1571, %v1569
      %v1854 = vpack.c.b16 %v1572, %v1570
      %v1855 = vpack.c.b16 %v1575, %v1573
      %v1856 = vpack.c.b16 %v1576, %v1574
      %v1857 = vpack.c.b16 %v1579, %v1577
      %v1858 = vpack.c.b16 %v1580, %v1578
      %v1859 = vpack.c.b16 %v1583, %v1581
      %v1860 = vpack.c.b16 %v1584, %v1582
      %v1861 = vpack.c.b16 %v1587, %v1585
      %v1862 = vpack.c.b16 %v1588, %v1586
      %v1863 = vpack.c.b16 %v1591, %v1589
      %v1864 = vpack.c.b16 %v1592, %v1590
      %v1865 = vpack.c.b16 %v1595, %v1593
      %v1866 = vpack.c.b16 %v1596, %v1594
      %v1867 = vpack.c.b16 %v1599, %v1597
      %v1868 = vpack.c.b16 %v1600, %v1598
      %v1869 = vpack.c.b16 %v1603, %v1601
      %v1870 = vpack.c.b16 %v1604, %v1602
      %v1871 = vpack.c.b16 %v1607, %v1605
      %v1872 = vpack.c.b16 %v1608, %v1606
      %v1873 = vpack.c.b16 %v1611, %v1609
      %v1874 = vpack.c.b16 %v1612, %v1610
      %v1875 = vpack.c.b16 %v1615, %v1613
      %v1876 = vpack.c.b16 %v1616, %v1614
      %v1877 = vpack.c.b16 %v1619, %v1617
      %v1878 = vpack.c.b16 %v1620, %v1618
      %v1879 = vpack.c.b16 %v1623, %v1621
      %v1880 = vpack.c.b16 %v1624, %v1622
      %v1881 = vpack.c.b16 %v1627, %v1625
      %v1882 = vpack.c.b16 %v1628, %v1626
      %v1883 = vpack.c.b16 %v1631, %v1629
      %v1884 = vpack.c.b16 %v1632, %v1630
      %v1885 = vpack.c.b16 %v1635, %v1633
      %v1886 = vpack.c.b16 %v1636, %v1634
      %v1887 = vpack.c.b16 %v1639, %v1637
      %v1888 = vpack.c.b16 %v1640, %v1638
      %v1889 = vpack.c.b16 %v1643, %v1641
      %v1890 = vpack.c.b16 %v1644, %v1642
      %v1891 = vpack.c.b16 %v1647, %v1645
      %v1892 = vpack.c.b16 %v1648, %v1646
      %v1893 = vpack.c.b16 %v1651, %v1649
      %v1894 = vpack.c.b16 %v1652, %v1650
      %v1895 = vpack.c.b16 %v1655, %v1653
      %v1896 = vpack.c.b16 %v1656, %v1654
      %v1897 = vpack.c.b16 %v1659, %v1657
      %v1898 = vpack.c.b16 %v1660, %v1658
      %v1899 = vpack.c.b16 %v1663, %v1661
      %v1900 = vpack.c.b16 %v1664, %v1662
      %v1901 = vpack.c.b16 %v1667, %v1665
      %v1902 = vpack.c.b16 %v1668, %v1666
      %v1903 = vpack.c.b16 %v1671, %v1669
      %v1904 = vpack.c.b16 %v1672, %v1670
      %v1905 = vpack.c.b16 %v1675, %v1673
      %v1906 = vpack.c.b16 %v1676, %v1674
      %v1907 = vpack.c.b16 %v1679, %v1677
      %v1908 = vpack.c.b16 %v1680, %v1678
      %v1909 = vpack.c.b16 %v1683, %v1681
      %v1910 = vpack.c.b16 %v1684, %v1682
      %v1911 = vpack.c.b16 %v1687, %v1685
      %v1912 = vpack.c.b16 %v1688, %v1686
      %v1913 = vpack.c.b16 %v1691, %v1689
      %v1914 = vpack.c.b16 %v1692, %v1690
      %v1915 = vpack.c.b16 %v1695, %v1693
      %v1916 = vpack.c.b16 %v1696, %v1694
      %v1917 = vpack.c.b16 %v1699, %v1697
      %v1918 = vpack.c.b16 %v1700, %v1698
      %v1919 = vpack.c.b16 %v1703, %v1701
      %v1920 = vpack.c.b16 %v1704, %v1702
      %v1921 = vpack.c.b16 %v1707, %v1705
      %v1922 = vpack.c.b16 %v1708, %v1706
      %v1923 = vpack.c.b16 %v1711, %v1709
      %v1924 = vpack.c.b16 %v1712, %v1710
      %v1925 = vpack.c.b16 %v1715, %v1713
      %v1926 = vpack.c.b16 %v1716, %v1714
      %v1927 = vpack.c.b16 %v1719, %v1717
      %v1928 = vpack.c.b16 %v1720, %v1718
      %v1929 = vpack.c.b16 %v1723, %v1721
      %v1930 = vpack.c.b16 %v1724, %v1722
      %v1931 = vpack.c.b16 %v1727, %v1725
      %v1932 = vpack.c.b16 %v1728, %v1726
      %v1933 = vpack.c.b16 %v1731, %v1729
      %v1934 = vpack.c.b16 %v1732, %v1730
      %v1935 = vpack.c.b16 %v1735, %v1733
      %v1936 = vpack.c.b16 %v1736, %v1734
      %v1937 = vpack.c.b16 %v1739, %v1737
      %v1938 = vpack.c.b16 %v1740, %v1738
      %v1939 = vpack.c.b16 %v1743, %v1741
      %v1940 = vpack.c.b16 %v1744, %v1742
      %v1941 = vpack.c.b16 %v1747, %v1745
      %v1942 = vpack.c.b16 %v1748, %v1746
      %v1943 = vpack.c.b16 %v1751, %v1749
      %v1944 = vpack.c.b16 %v1752, %v1750
      %v1945 = vpack.c.b16 %v1755, %v1753
      %v1946 = vpack.c.b16 %v1756, %v1754
      %v1947 = vpack.c.b16 %v1759, %v1757
      %v1948 = vpack.c.b16 %v1760, %v1758
      %v1949 = vpack.c.b16 %v1763, %v1761
      %v1950 = vpack.c.b16 %v1764, %v1762
      %v1951 = vpack.c.b16 %v1767, %v1765
      %v1952 = vpack.c.b16 %v1768, %v1766
      %v1953 = vpack.c.b16 %v1771, %v1769
      %v1954 = vpack.c.b16 %v1772, %v1770
      %v1955 = vpack.c.b16 %v1775, %v1773
      %v1956 = vpack.c.b16 %v1776, %v1774
      %v1957 = vpack.c.b16 %v1779, %v1777
      %v1958 = vpack.c.b16 %v1780, %v1778
      %v1959 = vpack.c.b16 %v1783, %v1781
      %v1960 = vpack.c.b16 %v1784, %v1782
      %v1961 = vpack.c.b16 %v1787, %v1785
      %v1962 = vpack.c.b16 %v1788, %v1786
      %v1963 = vpack.c.b16 %v1791, %v1789
      %v1964 = vpack.c.b16 %v1792, %v1790
      %v1965 = vpack.c.b16 %v1795, %v1793
      %v1966 = vpack.c.b16 %v1796, %v1794
      %v1967 = vpack.c.b16 %v1799, %v1797
      %v1968 = vpack.c.b16 %v1800, %v1798
      %v1969 = vpack.c.b16 %v1803, %v1801
      %v1970 = vpack.c.b16 %v1804, %v1802
      %v1971 = vpack.c.b16 %v1807, %v1805
      %v1972 = vpack.c.b16 %v1808, %v1806
      %v1973 = vpack.c.b16 %v1811, %v1809
      %v1974 = vpack.c.b16 %v1812, %v1810
      %v1975 = vpack.c.b16 %v1815, %v1813
      %v1976 = vpack.c.b16 %v1816, %v1814
      %v1977 = vpack.c.b16 %v1819, %v1817
      %v1978 = vpack.c.b16 %v1820, %v1818
      %v1979 = vpack.c.b16 %v1823, %v1821
      %v1980 = vpack.c.b16 %v1824, %v1822
      %v1981 = vpack.c.b16 %v1827, %v1825
      %v1982 = vpack.c.b16 %v1828, %v1826
      %v1983 = vpack.c.b16 %v1831, %v1829
      %v1984 = vpack.c.b16 %v1832, %v1830
      %v1985 = vpack.c.b16 %v1835, %v1833
      %v1986 = vpack.c.b16 %v1836, %v1834
      %v1987 = vpack.c.b16 %v1839, %v1837
      %v1988 = vpack.c.b16 %v1840, %v1838
      %v1989 = vpack.c.b16 %v1843, %v1841
      %v1990 = vpack.c.b16 %v1844, %v1842
      %v1991 = vpack.c.b16 %v1847, %v1845
      %v1992 = vpack.c.b16 %v1848, %v1846
      %2137 = vmatprep.subr.bf16.mxu0 %v1864
      %2138 = vmatpush1.bf16.msra.mxu0 %v1863
      %2139 = vmatprep.subr.bf16.mxu0 %v1862
      %2140 = vmatpush1.bf16.msra.mxu0 %v1861
      %2141 = vmatprep.subr.bf16.mxu0 %v1860
      %2142 = vmatpush1.bf16.msra.mxu0 %v1859
      %2143 = vmatprep.subr.bf16.mxu0 %v1858
      %2144 = vmatpush1.bf16.msra.mxu0 %v1857
      %2145 = vmatprep.subr.bf16.mxu0 %v1856
      %2146 = vmatpush1.bf16.msra.mxu0 %v1855
      %2147 = vmatprep.subr.bf16.mxu0 %v1854
      %2148 = vmatpush1.bf16.msra.mxu0 %v1853
      %2149 = vmatprep.subr.bf16.mxu0 %v1852
      %2150 = vmatpush1.bf16.msra.mxu0 %v1851
      %2151 = vmatprep.subr.bf16.mxu0 %v1850
      %2152 = vmatpush1.bf16.msra.mxu0 %v1849
      %2153 = vmatprep.subr.bf16.mxu0 %v1880
      %2154 = vmatpush2.bf16.msra.mxu0 %v1879
      %2155 = vmatprep.subr.bf16.mxu0 %v1878
      %2156 = vmatpush2.bf16.msra.mxu0 %v1877
      %2157 = vmatprep.subr.bf16.mxu0 %v1876
      %2158 = vmatpush2.bf16.msra.mxu0 %v1875
      %2159 = vmatprep.subr.bf16.mxu0 %v1874
      %2160 = vmatpush2.bf16.msra.mxu0 %v1873
      %2161 = vmatprep.subr.bf16.mxu0 %v1872
      %2162 = vmatpush2.bf16.msra.mxu0 %v1871
      %2163 = vmatprep.subr.bf16.mxu0 %v1870
      %2164 = vmatpush2.bf16.msra.mxu0 %v1869
      %2165 = vmatprep.subr.bf16.mxu0 %v1868
      %2166 = vmatpush2.bf16.msra.mxu0 %v1867
      %2167 = vmatprep.subr.bf16.mxu0 %v1866
      %2168 = vmatpush2.bf16.msra.mxu0 %v1865
      %2169 = vmatprep.mubr.bf16.mxu0 %v1202
      %2170 = vmatmul.mubr.bf16.gmra.mxu0 %v1201
      %v2171 = vpop.f32.mrf.mxu0
      %v2172 = vadd.f32 0.0, %v2171
      %v2173 = vpop.f32.mrf.mxu0
      %v2174 = vadd.f32 0.0, %v2173
      %v2175 = vpop.f32.mrf.mxu0
      %v2176 = vadd.f32 0.0, %v2175
      %v2177 = vpop.f32.mrf.mxu0
      %v2178 = vadd.f32 0.0, %v2177
      %2179 = vmatprep.mubr.bf16.mxu0 %v1208
      %2180 = vmatmul.mubr.bf16.gmra.mxu0 %v1207
      %v2181 = vpop.f32.mrf.mxu0
      %v2182 = vadd.f32 0.0, %v2181
      %v2183 = vpop.f32.mrf.mxu0
      %v2184 = vadd.f32 0.0, %v2183
      %v2185 = vpop.f32.mrf.mxu0
      %v2186 = vadd.f32 0.0, %v2185
      %v2187 = vpop.f32.mrf.mxu0
      %v2188 = vadd.f32 0.0, %v2187
      %2189 = vmatprep.mubr.bf16.mxu0 %v1214
      %2190 = vmatmul.mubr.bf16.gmra.mxu0 %v1213
      %v2191 = vpop.f32.mrf.mxu0
      %v2192 = vadd.f32 0.0, %v2191
      %v2193 = vpop.f32.mrf.mxu0
      %v2194 = vadd.f32 0.0, %v2193
      %v2195 = vpop.f32.mrf.mxu0
      %v2196 = vadd.f32 0.0, %v2195
      %v2197 = vpop.f32.mrf.mxu0
      %v2198 = vadd.f32 0.0, %v2197
      %2199 = vmatprep.mubr.bf16.mxu0 %v1220
      %2200 = vmatmul.mubr.bf16.gmra.mxu0 %v1219
      %v2201 = vpop.f32.mrf.mxu0
      %v2202 = vadd.f32 0.0, %v2201
      %v2203 = vpop.f32.mrf.mxu0
      %v2204 = vadd.f32 0.0, %v2203
      %v2205 = vpop.f32.mrf.mxu0
      %v2206 = vadd.f32 0.0, %v2205
      %v2207 = vpop.f32.mrf.mxu0
      %v2208 = vadd.f32 0.0, %v2207
      %2209 = vmatprep.mubr.bf16.mxu0 %v1229
      %2210 = vmatmul.mubr.bf16.gmra.mxu0 %v1228
      %v2211 = vpop.f32.mrf.mxu0
      %v2212 = vadd.f32 0.0, %v2211
      %v2213 = vpop.f32.mrf.mxu0
      %v2214 = vadd.f32 0.0, %v2213
      %v2215 = vpop.f32.mrf.mxu0
      %v2216 = vadd.f32 0.0, %v2215
      %v2217 = vpop.f32.mrf.mxu0
      %v2218 = vadd.f32 0.0, %v2217
      %2219 = vmatprep.mubr.bf16.mxu0 %v1235
      %2220 = vmatmul.mubr.bf16.gmra.mxu0 %v1234
      %v2221 = vpop.f32.mrf.mxu0
      %v2222 = vadd.f32 0.0, %v2221
      %v2223 = vpop.f32.mrf.mxu0
      %v2224 = vadd.f32 0.0, %v2223
      %v2225 = vpop.f32.mrf.mxu0
      %v2226 = vadd.f32 0.0, %v2225
      %v2227 = vpop.f32.mrf.mxu0
      %v2228 = vadd.f32 0.0, %v2227
      %2229 = vmatprep.mubr.bf16.mxu0 %v1241
      %2230 = vmatmul.mubr.bf16.gmra.mxu0 %v1240
      %v2231 = vpop.f32.mrf.mxu0
      %v2232 = vadd.f32 0.0, %v2231
      %v2233 = vpop.f32.mrf.mxu0
      %v2234 = vadd.f32 0.0, %v2233
      %v2235 = vpop.f32.mrf.mxu0
      %v2236 = vadd.f32 0.0, %v2235
      %v2237 = vpop.f32.mrf.mxu0
      %v2238 = vadd.f32 0.0, %v2237
      %2239 = vmatprep.mubr.bf16.mxu0 %v1247
      %2240 = vmatmul.mubr.bf16.gmra.mxu0 %v1246
      %v2241 = vpop.f32.mrf.mxu0
      %v2242 = vadd.f32 0.0, %v2241
      %v2243 = vpop.f32.mrf.mxu0
      %v2244 = vadd.f32 0.0, %v2243
      %v2245 = vpop.f32.mrf.mxu0
      %v2246 = vadd.f32 0.0, %v2245
      %v2247 = vpop.f32.mrf.mxu0
      %v2248 = vadd.f32 0.0, %v2247
      %2249 = vmatprep.mubr.bf16.mxu0 %v1256
      %2250 = vmatmul.mubr.bf16.gmra.mxu0 %v1255
      %v2251 = vpop.f32.mrf.mxu0
      %v2252 = vadd.f32 0.0, %v2251
      %v2253 = vpop.f32.mrf.mxu0
      %v2254 = vadd.f32 0.0, %v2253
      %v2255 = vpop.f32.mrf.mxu0
      %v2256 = vadd.f32 0.0, %v2255
      %v2257 = vpop.f32.mrf.mxu0
      %v2258 = vadd.f32 0.0, %v2257
      %2259 = vmatprep.mubr.bf16.mxu0 %v1262
      %2260 = vmatmul.mubr.bf16.gmra.mxu0 %v1261
      %v2261 = vpop.f32.mrf.mxu0
      %v2262 = vadd.f32 0.0, %v2261
      %v2263 = vpop.f32.mrf.mxu0
      %v2264 = vadd.f32 0.0, %v2263
      %v2265 = vpop.f32.mrf.mxu0
      %v2266 = vadd.f32 0.0, %v2265
      %v2267 = vpop.f32.mrf.mxu0
      %v2268 = vadd.f32 0.0, %v2267
      %2269 = vmatprep.mubr.bf16.mxu0 %v1268
      %2270 = vmatmul.mubr.bf16.gmra.mxu0 %v1267
      %v2271 = vpop.f32.mrf.mxu0
      %v2272 = vadd.f32 0.0, %v2271
      %v2273 = vpop.f32.mrf.mxu0
      %v2274 = vadd.f32 0.0, %v2273
      %v2275 = vpop.f32.mrf.mxu0
      %v2276 = vadd.f32 0.0, %v2275
      %v2277 = vpop.f32.mrf.mxu0
      %v2278 = vadd.f32 0.0, %v2277
      %2279 = vmatprep.mubr.bf16.mxu0 %v1274
      %2280 = vmatmul.mubr.bf16.gmra.mxu0 %v1273
      %v2281 = vpop.f32.mrf.mxu0
      %v2282 = vadd.f32 0.0, %v2281
      %v2283 = vpop.f32.mrf.mxu0
      %v2284 = vadd.f32 0.0, %v2283
      %v2285 = vpop.f32.mrf.mxu0
      %v2286 = vadd.f32 0.0, %v2285
      %v2287 = vpop.f32.mrf.mxu0
      %v2288 = vadd.f32 0.0, %v2287
      %2289 = vmatprep.mubr.bf16.mxu0 %v1283
      %2290 = vmatmul.mubr.bf16.gmra.mxu0 %v1282
      %v2291 = vpop.f32.mrf.mxu0
      %v2292 = vadd.f32 0.0, %v2291
      %v2293 = vpop.f32.mrf.mxu0
      %v2294 = vadd.f32 0.0, %v2293
      %v2295 = vpop.f32.mrf.mxu0
      %v2296 = vadd.f32 0.0, %v2295
      %v2297 = vpop.f32.mrf.mxu0
      %v2298 = vadd.f32 0.0, %v2297
      %2299 = vmatprep.mubr.bf16.mxu0 %v1289
      %2300 = vmatmul.mubr.bf16.gmra.mxu0 %v1288
      %v2301 = vpop.f32.mrf.mxu0
      %v2302 = vadd.f32 0.0, %v2301
      %v2303 = vpop.f32.mrf.mxu0
      %v2304 = vadd.f32 0.0, %v2303
      %v2305 = vpop.f32.mrf.mxu0
      %v2306 = vadd.f32 0.0, %v2305
      %v2307 = vpop.f32.mrf.mxu0
      %v2308 = vadd.f32 0.0, %v2307
      %2309 = vmatprep.mubr.bf16.mxu0 %v1295
      %2310 = vmatmul.mubr.bf16.gmra.mxu0 %v1294
      %v2311 = vpop.f32.mrf.mxu0
      %v2312 = vadd.f32 0.0, %v2311
      %v2313 = vpop.f32.mrf.mxu0
      %v2314 = vadd.f32 0.0, %v2313
      %v2315 = vpop.f32.mrf.mxu0
      %v2316 = vadd.f32 0.0, %v2315
      %v2317 = vpop.f32.mrf.mxu0
      %v2318 = vadd.f32 0.0, %v2317
      %2319 = vmatprep.mubr.bf16.mxu0 %v1301
      %2320 = vmatmul.mubr.bf16.gmra.mxu0 %v1300
      %v2321 = vpop.f32.mrf.mxu0
      %v2322 = vadd.f32 0.0, %v2321
      %v2323 = vpop.f32.mrf.mxu0
      %v2324 = vadd.f32 0.0, %v2323
      %v2325 = vpop.f32.mrf.mxu0
      %v2326 = vadd.f32 0.0, %v2325
      %v2327 = vpop.f32.mrf.mxu0
      %v2328 = vadd.f32 0.0, %v2327
      %2329 = vdwg.mxu0
      %2330 = vmatprep.subr.bf16.mxu0 %v1896
      %2331 = vmatpush1.bf16.msra.mxu0 %v1895
      %2332 = vmatprep.subr.bf16.mxu0 %v1894
      %2333 = vmatpush1.bf16.msra.mxu0 %v1893
      %2334 = vmatprep.subr.bf16.mxu0 %v1892
      %2335 = vmatpush1.bf16.msra.mxu0 %v1891
      %2336 = vmatprep.subr.bf16.mxu0 %v1890
      %2337 = vmatpush1.bf16.msra.mxu0 %v1889
      %2338 = vmatprep.subr.bf16.mxu0 %v1888
      %2339 = vmatpush1.bf16.msra.mxu0 %v1887
      %2340 = vmatprep.subr.bf16.mxu0 %v1886
      %2341 = vmatpush1.bf16.msra.mxu0 %v1885
      %2342 = vmatprep.subr.bf16.mxu0 %v1884
      %2343 = vmatpush1.bf16.msra.mxu0 %v1883
      %2344 = vmatprep.subr.bf16.mxu0 %v1882
      %2345 = vmatpush1.bf16.msra.mxu0 %v1881
      %2346 = vmatprep.subr.bf16.mxu0 %v1912
      %2347 = vmatpush2.bf16.msra.mxu0 %v1911
      %2348 = vmatprep.subr.bf16.mxu0 %v1910
      %2349 = vmatpush2.bf16.msra.mxu0 %v1909
      %2350 = vmatprep.subr.bf16.mxu0 %v1908
      %2351 = vmatpush2.bf16.msra.mxu0 %v1907
      %2352 = vmatprep.subr.bf16.mxu0 %v1906
      %2353 = vmatpush2.bf16.msra.mxu0 %v1905
      %2354 = vmatprep.subr.bf16.mxu0 %v1904
      %2355 = vmatpush2.bf16.msra.mxu0 %v1903
      %2356 = vmatprep.subr.bf16.mxu0 %v1902
      %2357 = vmatpush2.bf16.msra.mxu0 %v1901
      %2358 = vmatprep.subr.bf16.mxu0 %v1900
      %2359 = vmatpush2.bf16.msra.mxu0 %v1899
      %2360 = vmatprep.subr.bf16.mxu0 %v1898
      %2361 = vmatpush2.bf16.msra.mxu0 %v1897
      %2362 = vmatprep.mubr.bf16.mxu0 %v1204
      %2363 = vmatmul.mubr.bf16.gmra.mxu0 %v1203
      %v2364 = vpop.f32.mrf.mxu0
      %v2365 = vadd.f32 %v2172, %v2364
      %v2366 = vpop.f32.mrf.mxu0
      %v2367 = vadd.f32 %v2174, %v2366
      %v2368 = vpop.f32.mrf.mxu0
      %v2369 = vadd.f32 %v2176, %v2368
      %v2370 = vpop.f32.mrf.mxu0
      %v2371 = vadd.f32 %v2178, %v2370
      %2372 = vmatprep.mubr.bf16.mxu0 %v1210
      %2373 = vmatmul.mubr.bf16.gmra.mxu0 %v1209
      %v2374 = vpop.f32.mrf.mxu0
      %v2375 = vadd.f32 %v2182, %v2374
      %v2376 = vpop.f32.mrf.mxu0
      %v2377 = vadd.f32 %v2184, %v2376
      %v2378 = vpop.f32.mrf.mxu0
      %v2379 = vadd.f32 %v2186, %v2378
      %v2380 = vpop.f32.mrf.mxu0
      %v2381 = vadd.f32 %v2188, %v2380
      %2382 = vmatprep.mubr.bf16.mxu0 %v1216
      %2383 = vmatmul.mubr.bf16.gmra.mxu0 %v1215
      %v2384 = vpop.f32.mrf.mxu0
      %v2385 = vadd.f32 %v2192, %v2384
      %v2386 = vpop.f32.mrf.mxu0
      %v2387 = vadd.f32 %v2194, %v2386
      %v2388 = vpop.f32.mrf.mxu0
      %v2389 = vadd.f32 %v2196, %v2388
      %v2390 = vpop.f32.mrf.mxu0
      %v2391 = vadd.f32 %v2198, %v2390
      %2392 = vmatprep.mubr.bf16.mxu0 %v1222
      %2393 = vmatmul.mubr.bf16.gmra.mxu0 %v1221
      %v2394 = vpop.f32.mrf.mxu0
      %v2395 = vadd.f32 %v2202, %v2394
      %v2396 = vpop.f32.mrf.mxu0
      %v2397 = vadd.f32 %v2204, %v2396
      %v2398 = vpop.f32.mrf.mxu0
      %v2399 = vadd.f32 %v2206, %v2398
      %v2400 = vpop.f32.mrf.mxu0
      %v2401 = vadd.f32 %v2208, %v2400
      %2402 = vmatprep.mubr.bf16.mxu0 %v1231
      %2403 = vmatmul.mubr.bf16.gmra.mxu0 %v1230
      %v2404 = vpop.f32.mrf.mxu0
      %v2405 = vadd.f32 %v2212, %v2404
      %v2406 = vpop.f32.mrf.mxu0
      %v2407 = vadd.f32 %v2214, %v2406
      %v2408 = vpop.f32.mrf.mxu0
      %v2409 = vadd.f32 %v2216, %v2408
      %v2410 = vpop.f32.mrf.mxu0
      %v2411 = vadd.f32 %v2218, %v2410
      %2412 = vmatprep.mubr.bf16.mxu0 %v1237
      %2413 = vmatmul.mubr.bf16.gmra.mxu0 %v1236
      %v2414 = vpop.f32.mrf.mxu0
      %v2415 = vadd.f32 %v2222, %v2414
      %v2416 = vpop.f32.mrf.mxu0
      %v2417 = vadd.f32 %v2224, %v2416
      %v2418 = vpop.f32.mrf.mxu0
      %v2419 = vadd.f32 %v2226, %v2418
      %v2420 = vpop.f32.mrf.mxu0
      %v2421 = vadd.f32 %v2228, %v2420
      %2422 = vmatprep.mubr.bf16.mxu0 %v1243
      %2423 = vmatmul.mubr.bf16.gmra.mxu0 %v1242
      %v2424 = vpop.f32.mrf.mxu0
      %v2425 = vadd.f32 %v2232, %v2424
      %v2426 = vpop.f32.mrf.mxu0
      %v2427 = vadd.f32 %v2234, %v2426
      %v2428 = vpop.f32.mrf.mxu0
      %v2429 = vadd.f32 %v2236, %v2428
      %v2430 = vpop.f32.mrf.mxu0
      %v2431 = vadd.f32 %v2238, %v2430
      %2432 = vmatprep.mubr.bf16.mxu0 %v1249
      %2433 = vmatmul.mubr.bf16.gmra.mxu0 %v1248
      %v2434 = vpop.f32.mrf.mxu0
      %v2435 = vadd.f32 %v2242, %v2434
      %v2436 = vpop.f32.mrf.mxu0
      %v2437 = vadd.f32 %v2244, %v2436
      %v2438 = vpop.f32.mrf.mxu0
      %v2439 = vadd.f32 %v2246, %v2438
      %v2440 = vpop.f32.mrf.mxu0
      %v2441 = vadd.f32 %v2248, %v2440
      %2442 = vmatprep.mubr.bf16.mxu0 %v1258
      %2443 = vmatmul.mubr.bf16.gmra.mxu0 %v1257
      %v2444 = vpop.f32.mrf.mxu0
      %v2445 = vadd.f32 %v2252, %v2444
      %v2446 = vpop.f32.mrf.mxu0
      %v2447 = vadd.f32 %v2254, %v2446
      %v2448 = vpop.f32.mrf.mxu0
      %v2449 = vadd.f32 %v2256, %v2448
      %v2450 = vpop.f32.mrf.mxu0
      %v2451 = vadd.f32 %v2258, %v2450
      %2452 = vmatprep.mubr.bf16.mxu0 %v1264
      %2453 = vmatmul.mubr.bf16.gmra.mxu0 %v1263
      %v2454 = vpop.f32.mrf.mxu0
      %v2455 = vadd.f32 %v2262, %v2454
      %v2456 = vpop.f32.mrf.mxu0
      %v2457 = vadd.f32 %v2264, %v2456
      %v2458 = vpop.f32.mrf.mxu0
      %v2459 = vadd.f32 %v2266, %v2458
      %v2460 = vpop.f32.mrf.mxu0
      %v2461 = vadd.f32 %v2268, %v2460
      %2462 = vmatprep.mubr.bf16.mxu0 %v1270
      %2463 = vmatmul.mubr.bf16.gmra.mxu0 %v1269
      %v2464 = vpop.f32.mrf.mxu0
      %v2465 = vadd.f32 %v2272, %v2464
      %v2466 = vpop.f32.mrf.mxu0
      %v2467 = vadd.f32 %v2274, %v2466
      %v2468 = vpop.f32.mrf.mxu0
      %v2469 = vadd.f32 %v2276, %v2468
      %v2470 = vpop.f32.mrf.mxu0
      %v2471 = vadd.f32 %v2278, %v2470
      %2472 = vmatprep.mubr.bf16.mxu0 %v1276
      %2473 = vmatmul.mubr.bf16.gmra.mxu0 %v1275
      %v2474 = vpop.f32.mrf.mxu0
      %v2475 = vadd.f32 %v2282, %v2474
      %v2476 = vpop.f32.mrf.mxu0
      %v2477 = vadd.f32 %v2284, %v2476
      %v2478 = vpop.f32.mrf.mxu0
      %v2479 = vadd.f32 %v2286, %v2478
      %v2480 = vpop.f32.mrf.mxu0
      %v2481 = vadd.f32 %v2288, %v2480
      %2482 = vmatprep.mubr.bf16.mxu0 %v1285
      %2483 = vmatmul.mubr.bf16.gmra.mxu0 %v1284
      %v2484 = vpop.f32.mrf.mxu0
      %v2485 = vadd.f32 %v2292, %v2484
      %v2486 = vpop.f32.mrf.mxu0
      %v2487 = vadd.f32 %v2294, %v2486
      %v2488 = vpop.f32.mrf.mxu0
      %v2489 = vadd.f32 %v2296, %v2488
      %v2490 = vpop.f32.mrf.mxu0
      %v2491 = vadd.f32 %v2298, %v2490
      %2492 = vmatprep.mubr.bf16.mxu0 %v1291
      %2493 = vmatmul.mubr.bf16.gmra.mxu0 %v1290
      %v2494 = vpop.f32.mrf.mxu0
      %v2495 = vadd.f32 %v2302, %v2494
      %v2496 = vpop.f32.mrf.mxu0
      %v2497 = vadd.f32 %v2304, %v2496
      %v2498 = vpop.f32.mrf.mxu0
      %v2499 = vadd.f32 %v2306, %v2498
      %v2500 = vpop.f32.mrf.mxu0
      %v2501 = vadd.f32 %v2308, %v2500
      %2502 = vmatprep.mubr.bf16.mxu0 %v1297
      %2503 = vmatmul.mubr.bf16.gmra.mxu0 %v1296
      %v2504 = vpop.f32.mrf.mxu0
      %v2505 = vadd.f32 %v2312, %v2504
      %v2506 = vpop.f32.mrf.mxu0
      %v2507 = vadd.f32 %v2314, %v2506
      %v2508 = vpop.f32.mrf.mxu0
      %v2509 = vadd.f32 %v2316, %v2508
      %v2510 = vpop.f32.mrf.mxu0
      %v2511 = vadd.f32 %v2318, %v2510
      %2512 = vmatprep.mubr.bf16.mxu0 %v1303
      %2513 = vmatmul.mubr.bf16.gmra.mxu0 %v1302
      %v2514 = vpop.f32.mrf.mxu0
      %v2515 = vadd.f32 %v2322, %v2514
      %v2516 = vpop.f32.mrf.mxu0
      %v2517 = vadd.f32 %v2324, %v2516
      %v2518 = vpop.f32.mrf.mxu0
      %v2519 = vadd.f32 %v2326, %v2518
      %v2520 = vpop.f32.mrf.mxu0
      %v2521 = vadd.f32 %v2328, %v2520
      %2522 = vdwg.mxu0
      %2523 = vmatprep.subr.bf16.mxu0 %v1928
      %2524 = vmatpush1.bf16.msra.mxu0 %v1927
      %2525 = vmatprep.subr.bf16.mxu0 %v1926
      %2526 = vmatpush1.bf16.msra.mxu0 %v1925
      %2527 = vmatprep.subr.bf16.mxu0 %v1924
      %2528 = vmatpush1.bf16.msra.mxu0 %v1923
      %2529 = vmatprep.subr.bf16.mxu0 %v1922
      %2530 = vmatpush1.bf16.msra.mxu0 %v1921
      %2531 = vmatprep.subr.bf16.mxu0 %v1920
      %2532 = vmatpush1.bf16.msra.mxu0 %v1919
      %2533 = vmatprep.subr.bf16.mxu0 %v1918
      %2534 = vmatpush1.bf16.msra.mxu0 %v1917
      %2535 = vmatprep.subr.bf16.mxu0 %v1916
      %2536 = vmatpush1.bf16.msra.mxu0 %v1915
      %2537 = vmatprep.subr.bf16.mxu0 %v1914
      %2538 = vmatpush1.bf16.msra.mxu0 %v1913
      %2539 = vmatprep.subr.bf16.mxu0 %v1944
      %2540 = vmatpush2.bf16.msra.mxu0 %v1943
      %2541 = vmatprep.subr.bf16.mxu0 %v1942
      %2542 = vmatpush2.bf16.msra.mxu0 %v1941
      %2543 = vmatprep.subr.bf16.mxu0 %v1940
      %2544 = vmatpush2.bf16.msra.mxu0 %v1939
      %2545 = vmatprep.subr.bf16.mxu0 %v1938
      %2546 = vmatpush2.bf16.msra.mxu0 %v1937
      %2547 = vmatprep.subr.bf16.mxu0 %v1936
      %2548 = vmatpush2.bf16.msra.mxu0 %v1935
      %2549 = vmatprep.subr.bf16.mxu0 %v1934
      %2550 = vmatpush2.bf16.msra.mxu0 %v1933
      %2551 = vmatprep.subr.bf16.mxu0 %v1932
      %2552 = vmatpush2.bf16.msra.mxu0 %v1931
      %2553 = vmatprep.subr.bf16.mxu0 %v1930
      %2554 = vmatpush2.bf16.msra.mxu0 %v1929
      %2555 = vmatprep.mubr.bf16.mxu0 %v1206
      %2556 = vmatmul.mubr.bf16.gmra.mxu0 %v1205
      %v2557 = vpop.f32.mrf.mxu0
      %v2558 = vadd.f32 %v2365, %v2557
      %v2559 = vpop.f32.mrf.mxu0
      %v2560 = vadd.f32 %v2367, %v2559
      %v2561 = vpop.f32.mrf.mxu0
      %v2562 = vadd.f32 %v2369, %v2561
      %v2563 = vpop.f32.mrf.mxu0
      %v2564 = vadd.f32 %v2371, %v2563
      %2565 = vmatprep.mubr.bf16.mxu0 %v1212
      %2566 = vmatmul.mubr.bf16.gmra.mxu0 %v1211
      %v2567 = vpop.f32.mrf.mxu0
      %v2568 = vadd.f32 %v2375, %v2567
      %v2569 = vpop.f32.mrf.mxu0
      %v2570 = vadd.f32 %v2377, %v2569
      %v2571 = vpop.f32.mrf.mxu0
      %v2572 = vadd.f32 %v2379, %v2571
      %v2573 = vpop.f32.mrf.mxu0
      %v2574 = vadd.f32 %v2381, %v2573
      %2575 = vmatprep.mubr.bf16.mxu0 %v1218
      %2576 = vmatmul.mubr.bf16.gmra.mxu0 %v1217
      %v2577 = vpop.f32.mrf.mxu0
      %v2578 = vadd.f32 %v2385, %v2577
      %v2579 = vpop.f32.mrf.mxu0
      %v2580 = vadd.f32 %v2387, %v2579
      %v2581 = vpop.f32.mrf.mxu0
      %v2582 = vadd.f32 %v2389, %v2581
      %v2583 = vpop.f32.mrf.mxu0
      %v2584 = vadd.f32 %v2391, %v2583
      %2585 = vmatprep.mubr.bf16.mxu0 %v1224
      %2586 = vmatmul.mubr.bf16.gmra.mxu0 %v1223
      %v2587 = vpop.f32.mrf.mxu0
      %v2588 = vadd.f32 %v2395, %v2587
      %v2589 = vpop.f32.mrf.mxu0
      %v2590 = vadd.f32 %v2397, %v2589
      %v2591 = vpop.f32.mrf.mxu0
      %v2592 = vadd.f32 %v2399, %v2591
      %v2593 = vpop.f32.mrf.mxu0
      %v2594 = vadd.f32 %v2401, %v2593
      %2595 = vmatprep.mubr.bf16.mxu0 %v1233
      %2596 = vmatmul.mubr.bf16.gmra.mxu0 %v1232
      %v2597 = vpop.f32.mrf.mxu0
      %v2598 = vadd.f32 %v2405, %v2597
      %v2599 = vpop.f32.mrf.mxu0
      %v2600 = vadd.f32 %v2407, %v2599
      %v2601 = vpop.f32.mrf.mxu0
      %v2602 = vadd.f32 %v2409, %v2601
      %v2603 = vpop.f32.mrf.mxu0
      %v2604 = vadd.f32 %v2411, %v2603
      %2605 = vmatprep.mubr.bf16.mxu0 %v1239
      %2606 = vmatmul.mubr.bf16.gmra.mxu0 %v1238
      %v2607 = vpop.f32.mrf.mxu0
      %v2608 = vadd.f32 %v2415, %v2607
      %v2609 = vpop.f32.mrf.mxu0
      %v2610 = vadd.f32 %v2417, %v2609
      %v2611 = vpop.f32.mrf.mxu0
      %v2612 = vadd.f32 %v2419, %v2611
      %v2613 = vpop.f32.mrf.mxu0
      %v2614 = vadd.f32 %v2421, %v2613
      %2615 = vmatprep.mubr.bf16.mxu0 %v1245
      %2616 = vmatmul.mubr.bf16.gmra.mxu0 %v1244
      %v2617 = vpop.f32.mrf.mxu0
      %v2618 = vadd.f32 %v2425, %v2617
      %v2619 = vpop.f32.mrf.mxu0
      %v2620 = vadd.f32 %v2427, %v2619
      %v2621 = vpop.f32.mrf.mxu0
      %v2622 = vadd.f32 %v2429, %v2621
      %v2623 = vpop.f32.mrf.mxu0
      %v2624 = vadd.f32 %v2431, %v2623
      %2625 = vmatprep.mubr.bf16.mxu0 %v1251
      %2626 = vmatmul.mubr.bf16.gmra.mxu0 %v1250
      %v2627 = vpop.f32.mrf.mxu0
      %v2628 = vadd.f32 %v2435, %v2627
      %v2629 = vpop.f32.mrf.mxu0
      %v2630 = vadd.f32 %v2437, %v2629
      %v2631 = vpop.f32.mrf.mxu0
      %v2632 = vadd.f32 %v2439, %v2631
      %v2633 = vpop.f32.mrf.mxu0
      %v2634 = vadd.f32 %v2441, %v2633
      %2635 = vmatprep.mubr.bf16.mxu0 %v1260
      %2636 = vmatmul.mubr.bf16.gmra.mxu0 %v1259
      %v2637 = vpop.f32.mrf.mxu0
      %v2638 = vadd.f32 %v2445, %v2637
      %v2639 = vpop.f32.mrf.mxu0
      %v2640 = vadd.f32 %v2447, %v2639
      %v2641 = vpop.f32.mrf.mxu0
      %v2642 = vadd.f32 %v2449, %v2641
      %v2643 = vpop.f32.mrf.mxu0
      %v2644 = vadd.f32 %v2451, %v2643
      %2645 = vmatprep.mubr.bf16.mxu0 %v1266
      %2646 = vmatmul.mubr.bf16.gmra.mxu0 %v1265
      %v2647 = vpop.f32.mrf.mxu0
      %v2648 = vadd.f32 %v2455, %v2647
      %v2649 = vpop.f32.mrf.mxu0
      %v2650 = vadd.f32 %v2457, %v2649
      %v2651 = vpop.f32.mrf.mxu0
      %v2652 = vadd.f32 %v2459, %v2651
      %v2653 = vpop.f32.mrf.mxu0
      %v2654 = vadd.f32 %v2461, %v2653
      %2655 = vmatprep.mubr.bf16.mxu0 %v1272
      %2656 = vmatmul.mubr.bf16.gmra.mxu0 %v1271
      %v2657 = vpop.f32.mrf.mxu0
      %v2658 = vadd.f32 %v2465, %v2657
      %v2659 = vpop.f32.mrf.mxu0
      %v2660 = vadd.f32 %v2467, %v2659
      %v2661 = vpop.f32.mrf.mxu0
      %v2662 = vadd.f32 %v2469, %v2661
      %v2663 = vpop.f32.mrf.mxu0
      %v2664 = vadd.f32 %v2471, %v2663
      %2665 = vmatprep.mubr.bf16.mxu0 %v1278
      %2666 = vmatmul.mubr.bf16.gmra.mxu0 %v1277
      %v2667 = vpop.f32.mrf.mxu0
      %v2668 = vadd.f32 %v2475, %v2667
      %v2669 = vpop.f32.mrf.mxu0
      %v2670 = vadd.f32 %v2477, %v2669
      %v2671 = vpop.f32.mrf.mxu0
      %v2672 = vadd.f32 %v2479, %v2671
      %v2673 = vpop.f32.mrf.mxu0
      %v2674 = vadd.f32 %v2481, %v2673
      %2675 = vmatprep.mubr.bf16.mxu0 %v1287
      %2676 = vmatmul.mubr.bf16.gmra.mxu0 %v1286
      %v2677 = vpop.f32.mrf.mxu0
      %v2678 = vadd.f32 %v2485, %v2677
      %v2679 = vpop.f32.mrf.mxu0
      %v2680 = vadd.f32 %v2487, %v2679
      %v2681 = vpop.f32.mrf.mxu0
      %v2682 = vadd.f32 %v2489, %v2681
      %v2683 = vpop.f32.mrf.mxu0
      %v2684 = vadd.f32 %v2491, %v2683
      %2685 = vmatprep.mubr.bf16.mxu0 %v1293
      %2686 = vmatmul.mubr.bf16.gmra.mxu0 %v1292
      %v2687 = vpop.f32.mrf.mxu0
      %v2688 = vadd.f32 %v2495, %v2687
      %v2689 = vpop.f32.mrf.mxu0
      %v2690 = vadd.f32 %v2497, %v2689
      %v2691 = vpop.f32.mrf.mxu0
      %v2692 = vadd.f32 %v2499, %v2691
      %v2693 = vpop.f32.mrf.mxu0
      %v2694 = vadd.f32 %v2501, %v2693
      %2695 = vmatprep.mubr.bf16.mxu0 %v1299
      %2696 = vmatmul.mubr.bf16.gmra.mxu0 %v1298
      %v2697 = vpop.f32.mrf.mxu0
      %v2698 = vadd.f32 %v2505, %v2697
      %v2699 = vpop.f32.mrf.mxu0
      %v2700 = vadd.f32 %v2507, %v2699
      %v2701 = vpop.f32.mrf.mxu0
      %v2702 = vadd.f32 %v2509, %v2701
      %v2703 = vpop.f32.mrf.mxu0
      %v2704 = vadd.f32 %v2511, %v2703
      %2705 = vmatprep.mubr.bf16.mxu0 %v1305
      %2706 = vmatmul.mubr.bf16.gmra.mxu0 %v1304
      %v2707 = vpop.f32.mrf.mxu0
      %v2708 = vadd.f32 %v2515, %v2707
      %v2709 = vpop.f32.mrf.mxu0
      %v2710 = vadd.f32 %v2517, %v2709
      %v2711 = vpop.f32.mrf.mxu0
      %v2712 = vadd.f32 %v2519, %v2711
      %v2713 = vpop.f32.mrf.mxu0
      %v2714 = vadd.f32 %v2521, %v2713
      %2715 = vdwg.mxu0
      %2716 = vmatprep.subr.bf16.mxu0 %v1960
      %2717 = vmatpush1.bf16.msra.mxu0 %v1959
      %2718 = vmatprep.subr.bf16.mxu0 %v1958
      %2719 = vmatpush1.bf16.msra.mxu0 %v1957
      %2720 = vmatprep.subr.bf16.mxu0 %v1956
      %2721 = vmatpush1.bf16.msra.mxu0 %v1955
      %2722 = vmatprep.subr.bf16.mxu0 %v1954
      %2723 = vmatpush1.bf16.msra.mxu0 %v1953
      %2724 = vmatprep.subr.bf16.mxu0 %v1952
      %2725 = vmatpush1.bf16.msra.mxu0 %v1951
      %2726 = vmatprep.subr.bf16.mxu0 %v1950
      %2727 = vmatpush1.bf16.msra.mxu0 %v1949
      %2728 = vmatprep.subr.bf16.mxu0 %v1948
      %2729 = vmatpush1.bf16.msra.mxu0 %v1947
      %2730 = vmatprep.subr.bf16.mxu0 %v1946
      %2731 = vmatpush1.bf16.msra.mxu0 %v1945
      %2732 = vmatprep.subr.bf16.mxu0 %v1976
      %2733 = vmatpush2.bf16.msra.mxu0 %v1975
      %2734 = vmatprep.subr.bf16.mxu0 %v1974
      %2735 = vmatpush2.bf16.msra.mxu0 %v1973
      %2736 = vmatprep.subr.bf16.mxu0 %v1972
      %2737 = vmatpush2.bf16.msra.mxu0 %v1971
      %2738 = vmatprep.subr.bf16.mxu0 %v1970
      %2739 = vmatpush2.bf16.msra.mxu0 %v1969
      %2740 = vmatprep.subr.bf16.mxu0 %v1968
      %2741 = vmatpush2.bf16.msra.mxu0 %v1967
      %2742 = vmatprep.subr.bf16.mxu0 %v1966
      %2743 = vmatpush2.bf16.msra.mxu0 %v1965
      %2744 = vmatprep.subr.bf16.mxu0 %v1964
      %2745 = vmatpush2.bf16.msra.mxu0 %v1963
      %2746 = vmatprep.subr.bf16.mxu0 %v1962
      %2747 = vmatpush2.bf16.msra.mxu0 %v1961
      %2748 = vmatprep.mubr.bf16.mxu0 %v1208
      %2749 = vmatmul.mubr.bf16.gmra.mxu0 %v1207
      %v2750 = vpop.f32.mrf.mxu0
      %v2751 = vadd.f32 %v2558, %v2750
      %v2752 = vpop.f32.mrf.mxu0
      %v2753 = vadd.f32 %v2560, %v2752
      %v2754 = vpop.f32.mrf.mxu0
      %v2755 = vadd.f32 %v2562, %v2754
      %v2756 = vpop.f32.mrf.mxu0
      %v2757 = vadd.f32 %v2564, %v2756
      %2758 = vmatprep.mubr.bf16.mxu0 %v1214
      %2759 = vmatmul.mubr.bf16.gmra.mxu0 %v1213
      %v2760 = vpop.f32.mrf.mxu0
      %v2761 = vadd.f32 %v2568, %v2760
      %v2762 = vpop.f32.mrf.mxu0
      %v2763 = vadd.f32 %v2570, %v2762
      %v2764 = vpop.f32.mrf.mxu0
      %v2765 = vadd.f32 %v2572, %v2764
      %v2766 = vpop.f32.mrf.mxu0
      %v2767 = vadd.f32 %v2574, %v2766
      %2768 = vmatprep.mubr.bf16.mxu0 %v1220
      %2769 = vmatmul.mubr.bf16.gmra.mxu0 %v1219
      %v2770 = vpop.f32.mrf.mxu0
      %v2771 = vadd.f32 %v2578, %v2770
      %v2772 = vpop.f32.mrf.mxu0
      %v2773 = vadd.f32 %v2580, %v2772
      %v2774 = vpop.f32.mrf.mxu0
      %v2775 = vadd.f32 %v2582, %v2774
      %v2776 = vpop.f32.mrf.mxu0
      %v2777 = vadd.f32 %v2584, %v2776
      %2778 = vmatprep.mubr.bf16.mxu0 %v1226
      %2779 = vmatmul.mubr.bf16.gmra.mxu0 %v1225
      %v2780 = vpop.f32.mrf.mxu0
      %v2781 = vadd.f32 %v2588, %v2780
      %v2782 = vpop.f32.mrf.mxu0
      %v2783 = vadd.f32 %v2590, %v2782
      %v2784 = vpop.f32.mrf.mxu0
      %v2785 = vadd.f32 %v2592, %v2784
      %v2786 = vpop.f32.mrf.mxu0
      %v2787 = vadd.f32 %v2594, %v2786
      %2788 = vmatprep.mubr.bf16.mxu0 %v1235
      %2789 = vmatmul.mubr.bf16.gmra.mxu0 %v1234
      %v2790 = vpop.f32.mrf.mxu0
      %v2791 = vadd.f32 %v2598, %v2790
      %v2792 = vpop.f32.mrf.mxu0
      %v2793 = vadd.f32 %v2600, %v2792
      %v2794 = vpop.f32.mrf.mxu0
      %v2795 = vadd.f32 %v2602, %v2794
      %v2796 = vpop.f32.mrf.mxu0
      %v2797 = vadd.f32 %v2604, %v2796
      %2798 = vmatprep.mubr.bf16.mxu0 %v1241
      %2799 = vmatmul.mubr.bf16.gmra.mxu0 %v1240
      %v2800 = vpop.f32.mrf.mxu0
      %v2801 = vadd.f32 %v2608, %v2800
      %v2802 = vpop.f32.mrf.mxu0
      %v2803 = vadd.f32 %v2610, %v2802
      %v2804 = vpop.f32.mrf.mxu0
      %v2805 = vadd.f32 %v2612, %v2804
      %v2806 = vpop.f32.mrf.mxu0
      %v2807 = vadd.f32 %v2614, %v2806
      %2808 = vmatprep.mubr.bf16.mxu0 %v1247
      %2809 = vmatmul.mubr.bf16.gmra.mxu0 %v1246
      %v2810 = vpop.f32.mrf.mxu0
      %v2811 = vadd.f32 %v2618, %v2810
      %v2812 = vpop.f32.mrf.mxu0
      %v2813 = vadd.f32 %v2620, %v2812
      %v2814 = vpop.f32.mrf.mxu0
      %v2815 = vadd.f32 %v2622, %v2814
      %v2816 = vpop.f32.mrf.mxu0
      %v2817 = vadd.f32 %v2624, %v2816
      %2818 = vmatprep.mubr.bf16.mxu0 %v1253
      %2819 = vmatmul.mubr.bf16.gmra.mxu0 %v1252
      %v2820 = vpop.f32.mrf.mxu0
      %v2821 = vadd.f32 %v2628, %v2820
      %v2822 = vpop.f32.mrf.mxu0
      %v2823 = vadd.f32 %v2630, %v2822
      %v2824 = vpop.f32.mrf.mxu0
      %v2825 = vadd.f32 %v2632, %v2824
      %v2826 = vpop.f32.mrf.mxu0
      %v2827 = vadd.f32 %v2634, %v2826
      %2828 = vmatprep.mubr.bf16.mxu0 %v1262
      %2829 = vmatmul.mubr.bf16.gmra.mxu0 %v1261
      %v2830 = vpop.f32.mrf.mxu0
      %v2831 = vadd.f32 %v2638, %v2830
      %v2832 = vpop.f32.mrf.mxu0
      %v2833 = vadd.f32 %v2640, %v2832
      %v2834 = vpop.f32.mrf.mxu0
      %v2835 = vadd.f32 %v2642, %v2834
      %v2836 = vpop.f32.mrf.mxu0
      %v2837 = vadd.f32 %v2644, %v2836
      %2838 = vmatprep.mubr.bf16.mxu0 %v1268
      %2839 = vmatmul.mubr.bf16.gmra.mxu0 %v1267
      %v2840 = vpop.f32.mrf.mxu0
      %v2841 = vadd.f32 %v2648, %v2840
      %v2842 = vpop.f32.mrf.mxu0
      %v2843 = vadd.f32 %v2650, %v2842
      %v2844 = vpop.f32.mrf.mxu0
      %v2845 = vadd.f32 %v2652, %v2844
      %v2846 = vpop.f32.mrf.mxu0
      %v2847 = vadd.f32 %v2654, %v2846
      %2848 = vmatprep.mubr.bf16.mxu0 %v1274
      %2849 = vmatmul.mubr.bf16.gmra.mxu0 %v1273
      %v2850 = vpop.f32.mrf.mxu0
      %v2851 = vadd.f32 %v2658, %v2850
      %v2852 = vpop.f32.mrf.mxu0
      %v2853 = vadd.f32 %v2660, %v2852
      %v2854 = vpop.f32.mrf.mxu0
      %v2855 = vadd.f32 %v2662, %v2854
      %v2856 = vpop.f32.mrf.mxu0
      %v2857 = vadd.f32 %v2664, %v2856
      %2858 = vmatprep.mubr.bf16.mxu0 %v1280
      %2859 = vmatmul.mubr.bf16.gmra.mxu0 %v1279
      %v2860 = vpop.f32.mrf.mxu0
      %v2861 = vadd.f32 %v2668, %v2860
      %v2862 = vpop.f32.mrf.mxu0
      %v2863 = vadd.f32 %v2670, %v2862
      %v2864 = vpop.f32.mrf.mxu0
      %v2865 = vadd.f32 %v2672, %v2864
      %v2866 = vpop.f32.mrf.mxu0
      %v2867 = vadd.f32 %v2674, %v2866
      %2868 = vmatprep.mubr.bf16.mxu0 %v1289
      %2869 = vmatmul.mubr.bf16.gmra.mxu0 %v1288
      %v2870 = vpop.f32.mrf.mxu0
      %v2871 = vadd.f32 %v2678, %v2870
      %v2872 = vpop.f32.mrf.mxu0
      %v2873 = vadd.f32 %v2680, %v2872
      %v2874 = vpop.f32.mrf.mxu0
      %v2875 = vadd.f32 %v2682, %v2874
      %v2876 = vpop.f32.mrf.mxu0
      %v2877 = vadd.f32 %v2684, %v2876
      %2878 = vmatprep.mubr.bf16.mxu0 %v1295
      %2879 = vmatmul.mubr.bf16.gmra.mxu0 %v1294
      %v2880 = vpop.f32.mrf.mxu0
      %v2881 = vadd.f32 %v2688, %v2880
      %v2882 = vpop.f32.mrf.mxu0
      %v2883 = vadd.f32 %v2690, %v2882
      %v2884 = vpop.f32.mrf.mxu0
      %v2885 = vadd.f32 %v2692, %v2884
      %v2886 = vpop.f32.mrf.mxu0
      %v2887 = vadd.f32 %v2694, %v2886
      %2888 = vmatprep.mubr.bf16.mxu0 %v1301
      %2889 = vmatmul.mubr.bf16.gmra.mxu0 %v1300
      %v2890 = vpop.f32.mrf.mxu0
      %v2891 = vadd.f32 %v2698, %v2890
      %v2892 = vpop.f32.mrf.mxu0
      %v2893 = vadd.f32 %v2700, %v2892
      %v2894 = vpop.f32.mrf.mxu0
      %v2895 = vadd.f32 %v2702, %v2894
      %v2896 = vpop.f32.mrf.mxu0
      %v2897 = vadd.f32 %v2704, %v2896
      %2898 = vmatprep.mubr.bf16.mxu0 %v1307
      %2899 = vmatmul.mubr.bf16.gmra.mxu0 %v1306
      %v2900 = vpop.f32.mrf.mxu0
      %v2901 = vadd.f32 %v2708, %v2900
      %v2902 = vpop.f32.mrf.mxu0
      %v2903 = vadd.f32 %v2710, %v2902
      %v2904 = vpop.f32.mrf.mxu0
      %v2905 = vadd.f32 %v2712, %v2904
      %v2906 = vpop.f32.mrf.mxu0
      %v2907 = vadd.f32 %v2714, %v2906
      %2908 = vdwg.mxu0
      %2909 = vmatprep.subr.bf16.mxu0 %v1992
      %2910 = vmatpush1.bf16.msra.mxu0 %v1991
      %2911 = vmatprep.subr.bf16.mxu0 %v1990
      %2912 = vmatpush1.bf16.msra.mxu0 %v1989
      %2913 = vmatprep.subr.bf16.mxu0 %v1988
      %2914 = vmatpush1.bf16.msra.mxu0 %v1987
      %2915 = vmatprep.subr.bf16.mxu0 %v1986
      %2916 = vmatpush1.bf16.msra.mxu0 %v1985
      %2917 = vmatprep.subr.bf16.mxu0 %v1984
      %2918 = vmatpush1.bf16.msra.mxu0 %v1983
      %2919 = vmatprep.subr.bf16.mxu0 %v1982
      %2920 = vmatpush1.bf16.msra.mxu0 %v1981
      %2921 = vmatprep.subr.bf16.mxu0 %v1980
      %2922 = vmatpush1.bf16.msra.mxu0 %v1979
      %2923 = vmatprep.subr.bf16.mxu0 %v1978
      %2924 = vmatpush1.bf16.msra.mxu0 %v1977
      %2925 = vmatprep.subr.bf16.mxu0 0
      %2926 = vmatpush2.bf16.msra.mxu0 0
      %2927 = vmatprep.subr.bf16.mxu0 0
      %2928 = vmatpush2.bf16.msra.mxu0 0
      %2929 = vmatprep.subr.bf16.mxu0 0
      %2930 = vmatpush2.bf16.msra.mxu0 0
      %2931 = vmatprep.subr.bf16.mxu0 0
      %2932 = vmatpush2.bf16.msra.mxu0 0
      %2933 = vmatprep.subr.bf16.mxu0 0
      %2934 = vmatpush2.bf16.msra.mxu0 0
      %2935 = vmatprep.subr.bf16.mxu0 0
      %2936 = vmatpush2.bf16.msra.mxu0 0
      %2937 = vmatprep.subr.bf16.mxu0 0
      %2938 = vmatpush2.bf16.msra.mxu0 0
      %2939 = vmatprep.subr.bf16.mxu0 0
      %2940 = vmatpush2.bf16.msra.mxu0 0
      %2941 = vmatprep.mubr.bf16.mxu0 0
      %2942 = vmatmul.mubr.bf16.gmra.mxu0 %v1209
      %v2943 = vpop.f32.mrf.mxu0
      %v2944 = vadd.f32 %v2751, %v2943
      %v2945 = vpop.f32.mrf.mxu0
      %v2946 = vadd.f32 %v2753, %v2945
      %v2947 = vpop.f32.mrf.mxu0
      %v2948 = vadd.f32 %v2755, %v2947
      %v2949 = vpop.f32.mrf.mxu0
      %v2950 = vadd.f32 %v2757, %v2949
      %2951 = vmatprep.mubr.bf16.mxu0 0
      %2952 = vmatmul.mubr.bf16.gmra.mxu0 %v1215
      %v2953 = vpop.f32.mrf.mxu0
      %v2954 = vadd.f32 %v2761, %v2953
      %v2955 = vpop.f32.mrf.mxu0
      %v2956 = vadd.f32 %v2763, %v2955
      %v2957 = vpop.f32.mrf.mxu0
      %v2958 = vadd.f32 %v2765, %v2957
      %v2959 = vpop.f32.mrf.mxu0
      %v2960 = vadd.f32 %v2767, %v2959
      %2961 = vmatprep.mubr.bf16.mxu0 0
      %2962 = vmatmul.mubr.bf16.gmra.mxu0 %v1221
      %v2963 = vpop.f32.mrf.mxu0
      %v2964 = vadd.f32 %v2771, %v2963
      %v2965 = vpop.f32.mrf.mxu0
      %v2966 = vadd.f32 %v2773, %v2965
      %v2967 = vpop.f32.mrf.mxu0
      %v2968 = vadd.f32 %v2775, %v2967
      %v2969 = vpop.f32.mrf.mxu0
      %v2970 = vadd.f32 %v2777, %v2969
      %2971 = vmatprep.mubr.bf16.mxu0 0
      %2972 = vmatmul.mubr.bf16.gmra.mxu0 %v1227
      %v2973 = vpop.f32.mrf.mxu0
      %v2974 = vadd.f32 %v2781, %v2973
      %v2975 = vpop.f32.mrf.mxu0
      %v2976 = vadd.f32 %v2783, %v2975
      %v2977 = vpop.f32.mrf.mxu0
      %v2978 = vadd.f32 %v2785, %v2977
      %v2979 = vpop.f32.mrf.mxu0
      %v2980 = vadd.f32 %v2787, %v2979
      %2981 = vmatprep.mubr.bf16.mxu0 0
      %2982 = vmatmul.mubr.bf16.gmra.mxu0 %v1236
      %v2983 = vpop.f32.mrf.mxu0
      %v2984 = vadd.f32 %v2791, %v2983
      %v2985 = vpop.f32.mrf.mxu0
      %v2986 = vadd.f32 %v2793, %v2985
      %v2987 = vpop.f32.mrf.mxu0
      %v2988 = vadd.f32 %v2795, %v2987
      %v2989 = vpop.f32.mrf.mxu0
      %v2990 = vadd.f32 %v2797, %v2989
      %2991 = vmatprep.mubr.bf16.mxu0 0
      %2992 = vmatmul.mubr.bf16.gmra.mxu0 %v1242
      %v2993 = vpop.f32.mrf.mxu0
      %v2994 = vadd.f32 %v2801, %v2993
      %v2995 = vpop.f32.mrf.mxu0
      %v2996 = vadd.f32 %v2803, %v2995
      %v2997 = vpop.f32.mrf.mxu0
      %v2998 = vadd.f32 %v2805, %v2997
      %v2999 = vpop.f32.mrf.mxu0
      %v3000 = vadd.f32 %v2807, %v2999
      %3001 = vmatprep.mubr.bf16.mxu0 0
      %3002 = vmatmul.mubr.bf16.gmra.mxu0 %v1248
      %v3003 = vpop.f32.mrf.mxu0
      %v3004 = vadd.f32 %v2811, %v3003
      %v3005 = vpop.f32.mrf.mxu0
      %v3006 = vadd.f32 %v2813, %v3005
      %v3007 = vpop.f32.mrf.mxu0
      %v3008 = vadd.f32 %v2815, %v3007
      %v3009 = vpop.f32.mrf.mxu0
      %v3010 = vadd.f32 %v2817, %v3009
      %3011 = vmatprep.mubr.bf16.mxu0 0
      %3012 = vmatmul.mubr.bf16.gmra.mxu0 %v1254
      %v3013 = vpop.f32.mrf.mxu0
      %v3014 = vadd.f32 %v2821, %v3013
      %v3015 = vpop.f32.mrf.mxu0
      %v3016 = vadd.f32 %v2823, %v3015
      %v3017 = vpop.f32.mrf.mxu0
      %v3018 = vadd.f32 %v2825, %v3017
      %v3019 = vpop.f32.mrf.mxu0
      %v3020 = vadd.f32 %v2827, %v3019
      %3021 = vmatprep.mubr.bf16.mxu0 0
      %3022 = vmatmul.mubr.bf16.gmra.mxu0 %v1263
      %v3023 = vpop.f32.mrf.mxu0
      %v3024 = vadd.f32 %v2831, %v3023
      %v3025 = vpop.f32.mrf.mxu0
      %v3026 = vadd.f32 %v2833, %v3025
      %v3027 = vpop.f32.mrf.mxu0
      %v3028 = vadd.f32 %v2835, %v3027
      %v3029 = vpop.f32.mrf.mxu0
      %v3030 = vadd.f32 %v2837, %v3029
      %3031 = vmatprep.mubr.bf16.mxu0 0
      %3032 = vmatmul.mubr.bf16.gmra.mxu0 %v1269
      %v3033 = vpop.f32.mrf.mxu0
      %v3034 = vadd.f32 %v2841, %v3033
      %v3035 = vpop.f32.mrf.mxu0
      %v3036 = vadd.f32 %v2843, %v3035
      %v3037 = vpop.f32.mrf.mxu0
      %v3038 = vadd.f32 %v2845, %v3037
      %v3039 = vpop.f32.mrf.mxu0
      %v3040 = vadd.f32 %v2847, %v3039
      %3041 = vmatprep.mubr.bf16.mxu0 0
      %3042 = vmatmul.mubr.bf16.gmra.mxu0 %v1275
      %v3043 = vpop.f32.mrf.mxu0
      %v3044 = vadd.f32 %v2851, %v3043
      %v3045 = vpop.f32.mrf.mxu0
      %v3046 = vadd.f32 %v2853, %v3045
      %v3047 = vpop.f32.mrf.mxu0
      %v3048 = vadd.f32 %v2855, %v3047
      %v3049 = vpop.f32.mrf.mxu0
      %v3050 = vadd.f32 %v2857, %v3049
      %3051 = vmatprep.mubr.bf16.mxu0 0
      %3052 = vmatmul.mubr.bf16.gmra.mxu0 %v1281
      %v3053 = vpop.f32.mrf.mxu0
      %v3054 = vadd.f32 %v2861, %v3053
      %v3055 = vpop.f32.mrf.mxu0
      %v3056 = vadd.f32 %v2863, %v3055
      %v3057 = vpop.f32.mrf.mxu0
      %v3058 = vadd.f32 %v2865, %v3057
      %v3059 = vpop.f32.mrf.mxu0
      %v3060 = vadd.f32 %v2867, %v3059
      %3061 = vmatprep.mubr.bf16.mxu0 0
      %3062 = vmatmul.mubr.bf16.gmra.mxu0 %v1290
      %v3063 = vpop.f32.mrf.mxu0
      %v3064 = vadd.f32 %v2871, %v3063
      %v3065 = vpop.f32.mrf.mxu0
      %v3066 = vadd.f32 %v2873, %v3065
      %v3067 = vpop.f32.mrf.mxu0
      %v3068 = vadd.f32 %v2875, %v3067
      %v3069 = vpop.f32.mrf.mxu0
      %v3070 = vadd.f32 %v2877, %v3069
      %3071 = vmatprep.mubr.bf16.mxu0 0
      %3072 = vmatmul.mubr.bf16.gmra.mxu0 %v1296
      %v3073 = vpop.f32.mrf.mxu0
      %v3074 = vadd.f32 %v2881, %v3073
      %v3075 = vpop.f32.mrf.mxu0
      %v3076 = vadd.f32 %v2883, %v3075
      %v3077 = vpop.f32.mrf.mxu0
      %v3078 = vadd.f32 %v2885, %v3077
      %v3079 = vpop.f32.mrf.mxu0
      %v3080 = vadd.f32 %v2887, %v3079
      %3081 = vmatprep.mubr.bf16.mxu0 0
      %3082 = vmatmul.mubr.bf16.gmra.mxu0 %v1302
      %v3083 = vpop.f32.mrf.mxu0
      %v3084 = vadd.f32 %v2891, %v3083
      %v3085 = vpop.f32.mrf.mxu0
      %v3086 = vadd.f32 %v2893, %v3085
      %v3087 = vpop.f32.mrf.mxu0
      %v3088 = vadd.f32 %v2895, %v3087
      %v3089 = vpop.f32.mrf.mxu0
      %v3090 = vadd.f32 %v2897, %v3089
      %3091 = vmatprep.mubr.bf16.mxu0 0
      %3092 = vmatmul.mubr.bf16.gmra.mxu0 %v1308
      %v3093 = vpop.f32.mrf.mxu0
      %v3094 = vadd.f32 %v2901, %v3093
      %v3095 = vpop.f32.mrf.mxu0
      %v3096 = vadd.f32 %v2903, %v3095
      %v3097 = vpop.f32.mrf.mxu0
      %v3098 = vadd.f32 %v2905, %v3097
      %v3099 = vpop.f32.mrf.mxu0
      %v3100 = vadd.f32 %v2907, %v3099
      %3101 = vdwg.mxu0
      %v3102 = vld [vmem:[%s2] sm:$0x3]
      %v3104 = vlaneseq
      %v3105 = vshrl.u32 %v3104, 7
      %v3106 = vsub.s32 0, %v3105
      %v3107 = vrot.slane %v3102, %v3106
      %v3108 = vlaneseq
      %v3109 = vshrl.u32 %v3108, 7
      %v3110 = vsub.s32 1, %v3109
      %v3111 = vrot.slane %v3102, %v3110
      %v3114 = vmul.f32 %v2944, %v3107
      %v3115 = vmul.f32 %v2946, %v3111
      %v3116 = vmul.f32 %v2948, %v3107
      %v3117 = vmul.f32 %v2950, %v3111
      %v3118 = vmul.f32 %v2954, %v3107
      %v3119 = vmul.f32 %v2956, %v3111
      %v3120 = vmul.f32 %v2958, %v3107
      %v3121 = vmul.f32 %v2960, %v3111
      %v3122 = vmul.f32 %v2964, %v3107
      %v3123 = vmul.f32 %v2966, %v3111
      %v3124 = vmul.f32 %v2968, %v3107
      %v3125 = vmul.f32 %v2970, %v3111
      %v3126 = vmul.f32 %v2974, %v3107
      %v3127 = vmul.f32 %v2976, %v3111
      %v3128 = vmul.f32 %v2978, %v3107
      %v3129 = vmul.f32 %v2980, %v3111
      %v3130 = vmul.f32 %v2984, %v3107
      %v3131 = vmul.f32 %v2986, %v3111
      %v3132 = vmul.f32 %v2988, %v3107
      %v3133 = vmul.f32 %v2990, %v3111
      %v3134 = vmul.f32 %v2994, %v3107
      %v3135 = vmul.f32 %v2996, %v3111
      %v3136 = vmul.f32 %v2998, %v3107
      %v3137 = vmul.f32 %v3000, %v3111
      %v3138 = vmul.f32 %v3004, %v3107
      %v3139 = vmul.f32 %v3006, %v3111
      %v3140 = vmul.f32 %v3008, %v3107
      %v3141 = vmul.f32 %v3010, %v3111
      %v3142 = vmul.f32 %v3014, %v3107
      %v3143 = vmul.f32 %v3016, %v3111
      %v3144 = vmul.f32 %v3018, %v3107
      %v3145 = vmul.f32 %v3020, %v3111
      %v3146 = vmul.f32 %v3024, %v3107
      %v3147 = vmul.f32 %v3026, %v3111
      %v3148 = vmul.f32 %v3028, %v3107
      %v3149 = vmul.f32 %v3030, %v3111
      %v3150 = vmul.f32 %v3034, %v3107
      %v3151 = vmul.f32 %v3036, %v3111
      %v3152 = vmul.f32 %v3038, %v3107
      %v3153 = vmul.f32 %v3040, %v3111
      %v3154 = vmul.f32 %v3044, %v3107
      %v3155 = vmul.f32 %v3046, %v3111
      %v3156 = vmul.f32 %v3048, %v3107
      %v3157 = vmul.f32 %v3050, %v3111
      %v3158 = vmul.f32 %v3054, %v3107
      %v3159 = vmul.f32 %v3056, %v3111
      %v3160 = vmul.f32 %v3058, %v3107
      %v3161 = vmul.f32 %v3060, %v3111
      %v3162 = vmul.f32 %v3064, %v3107
      %v3163 = vmul.f32 %v3066, %v3111
      %v3164 = vmul.f32 %v3068, %v3107
      %v3165 = vmul.f32 %v3070, %v3111
      %v3166 = vmul.f32 %v3074, %v3107
      %v3167 = vmul.f32 %v3076, %v3111
      %v3168 = vmul.f32 %v3078, %v3107
      %v3169 = vmul.f32 %v3080, %v3111
      %v3170 = vmul.f32 %v3084, %v3107
      %v3171 = vmul.f32 %v3086, %v3111
      %v3172 = vmul.f32 %v3088, %v3107
      %v3173 = vmul.f32 %v3090, %v3111
      %v3174 = vmul.f32 %v3094, %v3107
      %v3175 = vmul.f32 %v3096, %v3111
      %v3176 = vmul.f32 %v3098, %v3107
      %v3177 = vmul.f32 %v3100, %v3111
      %v3178 = vld [vmem:[%s3] sm:$0x3]
      %v3180 = vlaneseq
      %v3181 = vshrl.u32 %v3180, 7
      %v3182 = vsub.s32 0, %v3181
      %v3183 = vrot.slane %v3178, %v3182
      %v3184 = vlaneseq
      %v3185 = vshrl.u32 %v3184, 7
      %v3186 = vsub.s32 1, %v3185
      %v3187 = vrot.slane %v3178, %v3186
      %v3190 = vadd.f32 %v3114, %v3183
      %v3191 = vadd.f32 %v3115, %v3187
      %v3192 = vadd.f32 %v3116, %v3183
      %v3193 = vadd.f32 %v3117, %v3187
      %v3194 = vadd.f32 %v3118, %v3183
      %v3195 = vadd.f32 %v3119, %v3187
      %v3196 = vadd.f32 %v3120, %v3183
      %v3197 = vadd.f32 %v3121, %v3187
      %v3198 = vadd.f32 %v3122, %v3183
      %v3199 = vadd.f32 %v3123, %v3187
      %v3200 = vadd.f32 %v3124, %v3183
      %v3201 = vadd.f32 %v3125, %v3187
      %v3202 = vadd.f32 %v3126, %v3183
      %v3203 = vadd.f32 %v3127, %v3187
      %v3204 = vadd.f32 %v3128, %v3183
      %v3205 = vadd.f32 %v3129, %v3187
      %v3206 = vadd.f32 %v3130, %v3183
      %v3207 = vadd.f32 %v3131, %v3187
      %v3208 = vadd.f32 %v3132, %v3183
      %v3209 = vadd.f32 %v3133, %v3187
      %v3210 = vadd.f32 %v3134, %v3183
      %v3211 = vadd.f32 %v3135, %v3187
      %v3212 = vadd.f32 %v3136, %v3183
      %v3213 = vadd.f32 %v3137, %v3187
      %v3214 = vadd.f32 %v3138, %v3183
      %v3215 = vadd.f32 %v3139, %v3187
      %v3216 = vadd.f32 %v3140, %v3183
      %v3217 = vadd.f32 %v3141, %v3187
      %v3218 = vadd.f32 %v3142, %v3183
      %v3219 = vadd.f32 %v3143, %v3187
      %v3220 = vadd.f32 %v3144, %v3183
      %v3221 = vadd.f32 %v3145, %v3187
      %v3222 = vadd.f32 %v3146, %v3183
      %v3223 = vadd.f32 %v3147, %v3187
      %v3224 = vadd.f32 %v3148, %v3183
      %v3225 = vadd.f32 %v3149, %v3187
      %v3226 = vadd.f32 %v3150, %v3183
      %v3227 = vadd.f32 %v3151, %v3187
      %v3228 = vadd.f32 %v3152, %v3183
      %v3229 = vadd.f32 %v3153, %v3187
      %v3230 = vadd.f32 %v3154, %v3183
      %v3231 = vadd.f32 %v3155, %v3187
      %v3232 = vadd.f32 %v3156, %v3183
      %v3233 = vadd.f32 %v3157, %v3187
      %v3234 = vadd.f32 %v3158, %v3183
      %v3235 = vadd.f32 %v3159, %v3187
      %v3236 = vadd.f32 %v3160, %v3183
      %v3237 = vadd.f32 %v3161, %v3187
      %v3238 = vadd.f32 %v3162, %v3183
      %v3239 = vadd.f32 %v3163, %v3187
      %v3240 = vadd.f32 %v3164, %v3183
      %v3241 = vadd.f32 %v3165, %v3187
      %v3242 = vadd.f32 %v3166, %v3183
      %v3243 = vadd.f32 %v3167, %v3187
      %v3244 = vadd.f32 %v3168, %v3183
      %v3245 = vadd.f32 %v3169, %v3187
      %v3246 = vadd.f32 %v3170, %v3183
      %v3247 = vadd.f32 %v3171, %v3187
      %v3248 = vadd.f32 %v3172, %v3183
      %v3249 = vadd.f32 %v3173, %v3187
      %v3250 = vadd.f32 %v3174, %v3183
      %v3251 = vadd.f32 %v3175, %v3187
      %v3252 = vadd.f32 %v3176, %v3183
      %v3253 = vadd.f32 %v3177, %v3187
      %v3254 = vmax.f32 %v3190, 0.0
      %v3255 = vmax.f32 %v3191, 0.0
      %v3256 = vmax.f32 %v3192, 0.0
      %v3257 = vmax.f32 %v3193, 0.0
      %v3258 = vmax.f32 %v3194, 0.0
      %v3259 = vmax.f32 %v3195, 0.0
      %v3260 = vmax.f32 %v3196, 0.0
      %v3261 = vmax.f32 %v3197, 0.0
      %v3262 = vmax.f32 %v3198, 0.0
      %v3263 = vmax.f32 %v3199, 0.0
      %v3264 = vmax.f32 %v3200, 0.0
      %v3265 = vmax.f32 %v3201, 0.0
      %v3266 = vmax.f32 %v3202, 0.0
      %v3267 = vmax.f32 %v3203, 0.0
      %v3268 = vmax.f32 %v3204, 0.0
      %v3269 = vmax.f32 %v3205, 0.0
      %v3270 = vmax.f32 %v3206, 0.0
      %v3271 = vmax.f32 %v3207, 0.0
      %v3272 = vmax.f32 %v3208, 0.0
      %v3273 = vmax.f32 %v3209, 0.0
      %v3274 = vmax.f32 %v3210, 0.0
      %v3275 = vmax.f32 %v3211, 0.0
      %v3276 = vmax.f32 %v3212, 0.0
      %v3277 = vmax.f32 %v3213, 0.0
      %v3278 = vmax.f32 %v3214, 0.0
      %v3279 = vmax.f32 %v3215, 0.0
      %v3280 = vmax.f32 %v3216, 0.0
      %v3281 = vmax.f32 %v3217, 0.0
      %v3282 = vmax.f32 %v3218, 0.0
      %v3283 = vmax.f32 %v3219, 0.0
      %v3284 = vmax.f32 %v3220, 0.0
      %v3285 = vmax.f32 %v3221, 0.0
      %v3286 = vmax.f32 %v3222, 0.0
      %v3287 = vmax.f32 %v3223, 0.0
      %v3288 = vmax.f32 %v3224, 0.0
      %v3289 = vmax.f32 %v3225, 0.0
      %v3290 = vmax.f32 %v3226, 0.0
      %v3291 = vmax.f32 %v3227, 0.0
      %v3292 = vmax.f32 %v3228, 0.0
      %v3293 = vmax.f32 %v3229, 0.0
      %v3294 = vmax.f32 %v3230, 0.0
      %v3295 = vmax.f32 %v3231, 0.0
      %v3296 = vmax.f32 %v3232, 0.0
      %v3297 = vmax.f32 %v3233, 0.0
      %v3298 = vmax.f32 %v3234, 0.0
      %v3299 = vmax.f32 %v3235, 0.0
      %v3300 = vmax.f32 %v3236, 0.0
      %v3301 = vmax.f32 %v3237, 0.0
      %v3302 = vmax.f32 %v3238, 0.0
      %v3303 = vmax.f32 %v3239, 0.0
      %v3304 = vmax.f32 %v3240, 0.0
      %v3305 = vmax.f32 %v3241, 0.0
      %v3306 = vmax.f32 %v3242, 0.0
      %v3307 = vmax.f32 %v3243, 0.0
      %v3308 = vmax.f32 %v3244, 0.0
      %v3309 = vmax.f32 %v3245, 0.0
      %v3310 = vmax.f32 %v3246, 0.0
      %v3311 = vmax.f32 %v3247, 0.0
      %v3312 = vmax.f32 %v3248, 0.0
      %v3313 = vmax.f32 %v3249, 0.0
      %v3314 = vmax.f32 %v3250, 0.0
      %v3315 = vmax.f32 %v3251, 0.0
      %v3316 = vmax.f32 %v3252, 0.0
      %v3317 = vmax.f32 %v3253, 0.0
      %v3318 = vpack.c.bf16 %v3254, %v3254
      %v3319 = vpack.c.bf16 %v3255, %v3255
      %v3320 = vpack.c.bf16 %v3256, %v3256
      %v3321 = vpack.c.bf16 %v3257, %v3257
      %v3322 = vpack.c.bf16 %v3258, %v3258
      %v3323 = vpack.c.bf16 %v3259, %v3259
      %v3324 = vpack.c.bf16 %v3260, %v3260
      %v3325 = vpack.c.bf16 %v3261, %v3261
      %v3326 = vpack.c.bf16 %v3262, %v3262
      %v3327 = vpack.c.bf16 %v3263, %v3263
      %v3328 = vpack.c.bf16 %v3264, %v3264
      %v3329 = vpack.c.bf16 %v3265, %v3265
      %v3330 = vpack.c.bf16 %v3266, %v3266
      %v3331 = vpack.c.bf16 %v3267, %v3267
      %v3332 = vpack.c.bf16 %v3268, %v3268
      %v3333 = vpack.c.bf16 %v3269, %v3269
      %v3334 = vpack.c.bf16 %v3270, %v3270
      %v3335 = vpack.c.bf16 %v3271, %v3271
      %v3336 = vpack.c.bf16 %v3272, %v3272
      %v3337 = vpack.c.bf16 %v3273, %v3273
      %v3338 = vpack.c.bf16 %v3274, %v3274
      %v3339 = vpack.c.bf16 %v3275, %v3275
      %v3340 = vpack.c.bf16 %v3276, %v3276
      %v3341 = vpack.c.bf16 %v3277, %v3277
      %v3342 = vpack.c.bf16 %v3278, %v3278
      %v3343 = vpack.c.bf16 %v3279, %v3279
      %v3344 = vpack.c.bf16 %v3280, %v3280
      %v3345 = vpack.c.bf16 %v3281, %v3281
      %v3346 = vpack.c.bf16 %v3282, %v3282
      %v3347 = vpack.c.bf16 %v3283, %v3283
      %v3348 = vpack.c.bf16 %v3284, %v3284
      %v3349 = vpack.c.bf16 %v3285, %v3285
      %v3350 = vpack.c.bf16 %v3286, %v3286
      %v3351 = vpack.c.bf16 %v3287, %v3287
      %v3352 = vpack.c.bf16 %v3288, %v3288
      %v3353 = vpack.c.bf16 %v3289, %v3289
      %v3354 = vpack.c.bf16 %v3290, %v3290
      %v3355 = vpack.c.bf16 %v3291, %v3291
      %v3356 = vpack.c.bf16 %v3292, %v3292
      %v3357 = vpack.c.bf16 %v3293, %v3293
      %v3358 = vpack.c.bf16 %v3294, %v3294
      %v3359 = vpack.c.bf16 %v3295, %v3295
      %v3360 = vpack.c.bf16 %v3296, %v3296
      %v3361 = vpack.c.bf16 %v3297, %v3297
      %v3362 = vpack.c.bf16 %v3298, %v3298
      %v3363 = vpack.c.bf16 %v3299, %v3299
      %v3364 = vpack.c.bf16 %v3300, %v3300
      %v3365 = vpack.c.bf16 %v3301, %v3301
      %v3366 = vpack.c.bf16 %v3302, %v3302
      %v3367 = vpack.c.bf16 %v3303, %v3303
      %v3368 = vpack.c.bf16 %v3304, %v3304
      %v3369 = vpack.c.bf16 %v3305, %v3305
      %v3370 = vpack.c.bf16 %v3306, %v3306
      %v3371 = vpack.c.bf16 %v3307, %v3307
      %v3372 = vpack.c.bf16 %v3308, %v3308
      %v3373 = vpack.c.bf16 %v3309, %v3309
      %v3374 = vpack.c.bf16 %v3310, %v3310
      %v3375 = vpack.c.bf16 %v3311, %v3311
      %v3376 = vpack.c.bf16 %v3312, %v3312
      %v3377 = vpack.c.bf16 %v3313, %v3313
      %v3378 = vpack.c.bf16 %v3314, %v3314
      %v3379 = vpack.c.bf16 %v3315, %v3315
      %v3380 = vpack.c.bf16 %v3316, %v3316
      %v3381 = vpack.c.bf16 %v3317, %v3317
      %v3446 = vunpack.c.l.b16 %v3318
      %v3447 = vunpack.c.l.b16 %v3319
      %v3448 = vunpack.c.l.b16 %v3320
      %v3449 = vunpack.c.l.b16 %v3321
      %v3450 = vunpack.c.l.b16 %v3322
      %v3451 = vunpack.c.l.b16 %v3323
      %v3452 = vunpack.c.l.b16 %v3324
      %v3453 = vunpack.c.l.b16 %v3325
      %v3454 = vunpack.c.l.b16 %v3326
      %v3455 = vunpack.c.l.b16 %v3327
      %v3456 = vunpack.c.l.b16 %v3328
      %v3457 = vunpack.c.l.b16 %v3329
      %v3458 = vunpack.c.l.b16 %v3330
      %v3459 = vunpack.c.l.b16 %v3331
      %v3460 = vunpack.c.l.b16 %v3332
      %v3461 = vunpack.c.l.b16 %v3333
      %v3462 = vunpack.c.l.b16 %v3334
      %v3463 = vunpack.c.l.b16 %v3335
      %v3464 = vunpack.c.l.b16 %v3336
      %v3465 = vunpack.c.l.b16 %v3337
      %v3466 = vunpack.c.l.b16 %v3338
      %v3467 = vunpack.c.l.b16 %v3339
      %v3468 = vunpack.c.l.b16 %v3340
      %v3469 = vunpack.c.l.b16 %v3341
      %v3470 = vunpack.c.l.b16 %v3342
      %v3471 = vunpack.c.l.b16 %v3343
      %v3472 = vunpack.c.l.b16 %v3344
      %v3473 = vunpack.c.l.b16 %v3345
      %v3474 = vunpack.c.l.b16 %v3346
      %v3475 = vunpack.c.l.b16 %v3347
      %v3476 = vunpack.c.l.b16 %v3348
      %v3477 = vunpack.c.l.b16 %v3349
      %v3478 = vunpack.c.l.b16 %v3350
      %v3479 = vunpack.c.l.b16 %v3351
      %v3480 = vunpack.c.l.b16 %v3352
      %v3481 = vunpack.c.l.b16 %v3353
      %v3482 = vunpack.c.l.b16 %v3354
      %v3483 = vunpack.c.l.b16 %v3355
      %v3484 = vunpack.c.l.b16 %v3356
      %v3485 = vunpack.c.l.b16 %v3357
      %v3486 = vunpack.c.l.b16 %v3358
      %v3487 = vunpack.c.l.b16 %v3359
      %v3488 = vunpack.c.l.b16 %v3360
      %v3489 = vunpack.c.l.b16 %v3361
      %v3490 = vunpack.c.l.b16 %v3362
      %v3491 = vunpack.c.l.b16 %v3363
      %v3492 = vunpack.c.l.b16 %v3364
      %v3493 = vunpack.c.l.b16 %v3365
      %v3494 = vunpack.c.l.b16 %v3366
      %v3495 = vunpack.c.l.b16 %v3367
      %v3496 = vunpack.c.l.b16 %v3368
      %v3497 = vunpack.c.l.b16 %v3369
      %v3498 = vunpack.c.l.b16 %v3370
      %v3499 = vunpack.c.l.b16 %v3371
      %v3500 = vunpack.c.l.b16 %v3372
      %v3501 = vunpack.c.l.b16 %v3373
      %v3502 = vunpack.c.l.b16 %v3374
      %v3503 = vunpack.c.l.b16 %v3375
      %v3504 = vunpack.c.l.b16 %v3376
      %v3505 = vunpack.c.l.b16 %v3377
      %v3506 = vunpack.c.l.b16 %v3378
      %v3507 = vunpack.c.l.b16 %v3379
      %v3508 = vunpack.c.l.b16 %v3380
      %v3509 = vunpack.c.l.b16 %v3381
      %v3510 = vpack.c.b16 %v3447, %v3446
      %v3511 = vpack.c.b16 %v3449, %v3448
      %v3512 = vpack.c.b16 %v3451, %v3450
      %v3513 = vpack.c.b16 %v3453, %v3452
      %v3514 = vpack.c.b16 %v3455, %v3454
      %v3515 = vpack.c.b16 %v3457, %v3456
      %v3516 = vpack.c.b16 %v3459, %v3458
      %v3517 = vpack.c.b16 %v3461, %v3460
      %v3518 = vpack.c.b16 %v3463, %v3462
      %v3519 = vpack.c.b16 %v3465, %v3464
      %v3520 = vpack.c.b16 %v3467, %v3466
      %v3521 = vpack.c.b16 %v3469, %v3468
      %v3522 = vpack.c.b16 %v3471, %v3470
      %v3523 = vpack.c.b16 %v3473, %v3472
      %v3524 = vpack.c.b16 %v3475, %v3474
      %v3525 = vpack.c.b16 %v3477, %v3476
      %v3526 = vpack.c.b16 %v3479, %v3478
      %v3527 = vpack.c.b16 %v3481, %v3480
      %v3528 = vpack.c.b16 %v3483, %v3482
      %v3529 = vpack.c.b16 %v3485, %v3484
      %v3530 = vpack.c.b16 %v3487, %v3486
      %v3531 = vpack.c.b16 %v3489, %v3488
      %v3532 = vpack.c.b16 %v3491, %v3490
      %v3533 = vpack.c.b16 %v3493, %v3492
      %v3534 = vpack.c.b16 %v3495, %v3494
      %v3535 = vpack.c.b16 %v3497, %v3496
      %v3536 = vpack.c.b16 %v3499, %v3498
      %v3537 = vpack.c.b16 %v3501, %v3500
      %v3538 = vpack.c.b16 %v3503, %v3502
      %v3539 = vpack.c.b16 %v3505, %v3504
      %v3540 = vpack.c.b16 %v3507, %v3506
      %v3541 = vpack.c.b16 %v3509, %v3508
      %vm3574 = vcmask 1043456
      %vm3575 = vcmask 523268
      %vm3576 = vmor %vm3575, %vm3574
      %3577 = vst.msk [vmem:[%s204] sm:$0xff] %vm3576, %v3510
      %3578 = vst.msk [vmem:[%s204 + $0x8] sm:$0xff] %vm3576, %v3511
      %3579 = vst.msk [vmem:[%s204 + $0x10] sm:$0xff] %vm3576, %v3512
      %3580 = vst.msk [vmem:[%s204 + $0x18] sm:$0xff] %vm3576, %v3513
      %3581 = vst.msk [vmem:[%s204 + $0x20] sm:$0xff] %vm3576, %v3514
      %3582 = vst.msk [vmem:[%s204 + $0x28] sm:$0xff] %vm3576, %v3515
      %3583 = vst.msk [vmem:[%s204 + $0x30] sm:$0xff] %vm3576, %v3516
      %3584 = vst.msk [vmem:[%s204 + $0x38] sm:$0xff] %vm3576, %v3517
      %3585 = vst.msk [vmem:[%s204 + $0x40] sm:$0xff] %vm3576, %v3518
      %3586 = vst.msk [vmem:[%s204 + $0x48] sm:$0xff] %vm3576, %v3519
      %3587 = vst.msk [vmem:[%s204 + $0x50] sm:$0xff] %vm3576, %v3520
      %3588 = vst.msk [vmem:[%s204 + $0x58] sm:$0xff] %vm3576, %v3521
      %3589 = vst.msk [vmem:[%s204 + $0x60] sm:$0xff] %vm3576, %v3522
      %3590 = vst.msk [vmem:[%s204 + $0x68] sm:$0xff] %vm3576, %v3523
      %3591 = vst.msk [vmem:[%s204 + $0x70] sm:$0xff] %vm3576, %v3524
      %3592 = vst.msk [vmem:[%s204 + $0x78] sm:$0xff] %vm3576, %v3525
      %3593 = vst.msk [vmem:[%s204 + $0x80] sm:$0xff] %vm3576, %v3526
      %3594 = vst.msk [vmem:[%s204 + $0x88] sm:$0xff] %vm3576, %v3527
      %3595 = vst.msk [vmem:[%s204 + $0x90] sm:$0xff] %vm3576, %v3528
      %3596 = vst.msk [vmem:[%s204 + $0x98] sm:$0xff] %vm3576, %v3529
      %3597 = vst.msk [vmem:[%s204 + $0xa0] sm:$0xff] %vm3576, %v3530
      %3598 = vst.msk [vmem:[%s204 + $0xa8] sm:$0xff] %vm3576, %v3531
      %3599 = vst.msk [vmem:[%s204 + $0xb0] sm:$0xff] %vm3576, %v3532
      %3600 = vst.msk [vmem:[%s204 + $0xb8] sm:$0xff] %vm3576, %v3533
      %3601 = vst.msk [vmem:[%s204 + $0xc0] sm:$0xff] %vm3576, %v3534
      %3602 = vst.msk [vmem:[%s204 + $0xc8] sm:$0xff] %vm3576, %v3535
      %3603 = vst.msk [vmem:[%s204 + $0xd0] sm:$0xff] %vm3576, %v3536
      %3604 = vst.msk [vmem:[%s204 + $0xd8] sm:$0xff] %vm3576, %v3537
      %3605 = vst.msk [vmem:[%s204 + $0xe0] sm:$0xff] %vm3576, %v3538
      %3606 = vst.msk [vmem:[%s204 + $0xe8] sm:$0xff] %vm3576, %v3539
      %3607 = vst.msk [vmem:[%s204 + $0xf0] sm:$0xff] %vm3576, %v3540
      %3608 = vst.msk [vmem:[%s204 + $0xf8] sm:$0xff] %vm3576, %v3541
      %s3609 = smul.u32 4, %s15
      %p3610 = scmp.lt.s32.totalorder %s3609, 7
      %s3611 = scalar_select %p3610, %s3609, 7
      %s3612 = smul.addr %s3611, 16
      %s3613 = smul.addr %s3612, 4
      %s3614 = scalar_lea.vmem %s4, %s3613
      // Predicated region
      $region37: #{mixed_3c.7} parent=35 // pred_check
        %p3615 = pneg %p122
      $region38: #{mixed_3c.7} parent=35 // pred_check_branch
        %3617 = sbr.rel (%p3615) target = $region40
      $region39: #{mixed_3c.7} parent=35 // pred_region
        %s3618 = smul.u32 4, %s15
      $region40: #{mixed_3c.7} parent=35 // pred_fallthru
        _
    $region36: #{mixed_3c.7} parent=5 // pred_fallthru
      _
    %p3619 = scmp.le.s32.totalorder 2, %s10
    // Predicated region
    $region41: #{mixed_3c.7} parent=5 // pred_check
      %p3620 = pneg %p3619
    $region42: #{mixed_3c.7} parent=5 // pred_check_branch
      %3622 = sbr.rel (%p3620) target = $region44
    $region43: #{mixed_3c.7} parent=5 // pred_region
      %s3623 = ssub.s32 %s10, 2
      // Predicated region
      $region45: #{mixed_3c.7} parent=43 // pred_check
        %p3624 = pneg %p128
      $region46: #{mixed_3c.7} parent=43 // pred_check_branch
        %3626 = sbr.rel (%p3624) target = $region48
      $region47: #{mixed_3c.7} parent=43 // pred_region
        %s3627 = smul.u32 4, %s16
        %p3628 = scmp.lt.s32.totalorder %s3627, 7
        %s3629 = scalar_select %p3628, %s3627, 7
        %s3630 = smul.addr %s3629, 16
        %s3631 = smul.addr %s3630, 4
        %s3632 = scalar_lea.vmem %s4, %s3631
      $region48: #{mixed_3c.7} parent=43 // pred_fallthru
        _
    $region44: #{mixed_3c.7} parent=5 // pred_fallthru
      _
  $region6: #{mixed_3c.7} parent=0 // loop_footer
    %s14 = sadd.s32 1, %s10
  $region7: #{mixed_3c.7} parent=0 // loop_footer_branch
    %9 = sbr.rel target = $region3
  $region8: #{mixed_3c.7} parent=0 // loop_exit
    _

</llo_original>
